<compile_context>
chip_gen: v6e
topology: v6e:2x2x1
jax: 0.10.0
libtpu: 0.0.40
codegen_flags: <defaults>
</compile_context>

<pallas_src>
import numpy as np
import jax
import jax.numpy as jnp
from jax import lax
from jax.experimental import pallas as pl
from jax.experimental.pallas import tpu as pltpu


# ----------------------------- in-kernel helpers -----------------------------

def _cell_update(gates, c_prev, H):
    """LSTM cell from pre-activation gates (PyTorch gate order: i, f, g, o)."""
    # NOTE: at H=32 these are sub-128-lane slices; at production sizes keep H a
    # multiple of 128 so each gate slice is its own lane-aligned tile.
    i = jax.nn.sigmoid(gates[:, 0 * H:1 * H])
    f = jax.nn.sigmoid(gates[:, 1 * H:2 * H])
    g = jnp.tanh(gates[:, 2 * H:3 * H])
    o = jax.nn.sigmoid(gates[:, 3 * H:4 * H])
    c_new = f * c_prev + i * g
    h_new = o * jnp.tanh(c_new)
    return h_new, c_new


# ----------------------------- Pallas kernels -----------------------------

def encoder_vae_kernel(x_ref,                       # (T, B, E)  time-major embeddings
                       w0x_ref, w0h_ref, b0_ref,    # (E, 4H), (H, 4H), (1, 4H)
                       w1x_ref, w1h_ref, b1_ref,    # (H, 4H), (H, 4H), (1, 4H)
                       gamma_ref, beta_ref,         # (1, H)  LayerNorm params
                       wmu_ref, bmu_ref,            # (H, L), (1, L)
                       wlv_ref, blv_ref,            # (H, L), (1, L)
                       eps_ref,                     # (B, L)  reparameterization noise
                       mu_ref, lv_ref, z_ref,       # outputs (B, L)
                       xg_ref):                     # scratch (T, B, 4H)
    T, B, E = x_ref.shape
    H = gamma_ref.shape[1]

    # Hoisted input-side gate projection: ONE (T*B, E) @ (E, 4H) MXU matmul + bias.
    xg = (jnp.dot(x_ref[...].reshape(T * B, E), w0x_ref[...],
                  preferred_element_type=jnp.float32) + b0_ref[...])
    xg_ref[...] = xg.reshape(T, B, 4 * H)

    # Loop-invariant reads / broadcasts hoisted out of the recurrence.
    w0h = w0h_ref[...]
    w1x = w1x_ref[...]
    w1h = w1h_ref[...]
    b1 = jnp.broadcast_to(b1_ref[...], (B, 4 * H))

    zeros = jnp.zeros((B, H), jnp.float32)

    def step(t, carry):
        h0, c0, h1, c1 = carry
        # Layer 0: only the recurrent (B,H)@(H,4H) dot remains on the serial path.
        g0 = xg_ref[t] + jnp.dot(h0, w0h, preferred_element_type=jnp.float32)
        h0, c0 = _cell_update(g0, c0, H)
        # Layer 1: split dots, no concat materialization.
        g1 = (jnp.dot(h0, w1x, preferred_element_type=jnp.float32)
              + jnp.dot(h1, w1h, preferred_element_type=jnp.float32) + b1)
        h1, c1 = _cell_update(g1, c1, H)
        return (h0, c0, h1, c1)

    _, _, h1, _ = lax.fori_loop(0, T, step, (zeros, zeros, zeros, zeros),
                                unroll=min(T, 8))

    # Fused encode head: LayerNorm(h_last) -> fc_mu / fc_logvar -> reparameterize.
    mean = jnp.mean(h1, axis=-1, keepdims=True)
    var = jnp.mean(jnp.square(h1 - mean), axis=-1, keepdims=True)
    hn = (h1 - mean) * lax.rsqrt(var + 1e-5) * gamma_ref[...] + beta_ref[...]
    mu = jnp.dot(hn, wmu_ref[...], preferred_element_type=jnp.float32) + bmu_ref[...]
    lv = jnp.dot(hn, wlv_ref[...], preferred_element_type=jnp.float32) + blv_ref[...]
    mu_ref[...] = mu
    lv_ref[...] = lv
    z_ref[...] = mu + eps_ref[...] * jnp.exp(0.5 * lv)


def decoder_lstm_kernel(x_ref,                      # (T, B, E)  target embeddings
                        z_ref,                      # (B, L)     latent sample
                        w0x_ref, w0z_ref, w0h_ref, b0_ref,  # (E,4H),(L,4H),(H,4H),(1,4H)
                        w1x_ref, w1h_ref, b1_ref,   # (H, 4H), (H, 4H), (1, 4H)
                        hseq_ref,                   # out (T, B, H) layer-1 hidden states
                        xg_ref):                    # scratch (T, B, 4H)
    T, B, E = x_ref.shape
    H = hseq_ref.shape[2]

    # z is time-invariant: its gate contribution (+ bias) is computed exactly once.
    zg = (jnp.dot(z_ref[...], w0z_ref[...], preferred_element_type=jnp.float32)
          + b0_ref[...])                                            # (B, 4H)
    # Hoisted input-side projection: one (T*B, E) @ (E, 4H) matmul.
    xg = jnp.dot(x_ref[...].reshape(T * B, E), w0x_ref[...],
                 preferred_element_type=jnp.float32).reshape(T, B, 4 * H)
    xg_ref[...] = xg + zg[None, :, :]

    w0h = w0h_ref[...]
    w1x = w1x_ref[...]
    w1h = w1h_ref[...]
    b1 = jnp.broadcast_to(b1_ref[...], (B, 4 * H))

    zeros = jnp.zeros((B, H), jnp.float32)

    def step(t, carry):
        h0, c0, h1, c1 = carry
        g0 = xg_ref[t] + jnp.dot(h0, w0h, preferred_element_type=jnp.float32)
        h0, c0 = _cell_update(g0, c0, H)
        g1 = (jnp.dot(h0, w1x, preferred_element_type=jnp.float32)
              + jnp.dot(h1, w1h, preferred_element_type=jnp.float32) + b1)
        h1, c1 = _cell_update(g1, c1, H)
        hseq_ref[t] = h1
        return (h0, c0, h1, c1)

    lax.fori_loop(0, T, step, (zeros, zeros, zeros, zeros), unroll=min(T, 8))


# ----------------------------- pallas_call wrappers -----------------------------

_VMEM_SPEC = pl.BlockSpec(memory_space=pltpu.MemorySpace.VMEM)   # whole array, single-buffered


def run_encoder(x_tm, enc, head, eps):
    T, B, E = x_tm.shape
    H = head["ln_g"].shape[1]
    L = head["wmu_t"].shape[1]
    out_sd = jax.ShapeDtypeStruct((B, L), jnp.float32)
    return pl.pallas_call(
        encoder_vae_kernel,
        out_shape=(out_sd, out_sd, out_sd),
        in_specs=[_VMEM_SPEC] * 14,
        out_specs=(_VMEM_SPEC, _VMEM_SPEC, _VMEM_SPEC),
        scratch_shapes=[pltpu.VMEM((T, B, 4 * H), jnp.float32)],
    )(x_tm,
      enc["w0x"], enc["w0h"], enc["b0"],
      enc["w1x"], enc["w1h"], enc["b1"],
      head["ln_g"], head["ln_b"],
      head["wmu_t"], head["bmu"], head["wlv_t"], head["blv"],
      eps)


def run_decoder(tgt_tm, z, dec):
    T, B, E = tgt_tm.shape
    H = dec["w0h"].shape[0]
    return pl.pallas_call(
        decoder_lstm_kernel,
        out_shape=jax.ShapeDtypeStruct((T, B, H), jnp.float32),
        in_specs=[_VMEM_SPEC] * 9,
        out_specs=_VMEM_SPEC,
        scratch_shapes=[pltpu.VMEM((T, B, 4 * H), jnp.float32)],
    )(tgt_tm, z,
      dec["w0x"], dec["w0z"], dec["w0h"], dec["b0"],
      dec["w1x"], dec["w1h"], dec["b1"])


# ----------------------------- parameters & glue -----------------------------

def init_params(key, V, E, H, L):
    ks = iter(jax.random.split(key, 32))

    def rn(shape, scale=0.1):
        return scale * jax.random.normal(next(ks), shape, dtype=jnp.float32)

    def lstm_layer(in_dim):
        return dict(wih=rn((4 * H, in_dim)), whh=rn((4 * H, H)),
                    bih=rn((4 * H,)), bhh=rn((4 * H,)))

    p = {}
    p["embedding"] = rn((V, E), 0.5)
    p["enc"] = [lstm_layer(E), lstm_layer(H)]
    p["dec"] = [lstm_layer(E + L), lstm_layer(H)]
    p["ln_g"] = jnp.ones((H,), jnp.float32)
    p["ln_b"] = jnp.zeros((H,), jnp.float32)
    p["wmu"], p["bmu"] = rn((L, H)), rn((L,))
    p["wlv"], p["blv"] = rn((L, H)), rn((L,))
    p["wout"], p["bout"] = rn((V, H)), rn((V,))
    return p


def prepare_kernel_params(params):
    """One-time (outside jit) weight transposition/stacking for the kernels.
    At production sizes cast the weights / embeddings to bf16 here."""
    E = params["embedding"].shape[1]
    e0, e1 = params["enc"]
    d0, d1 = params["dec"]
    return dict(
        embedding=params["embedding"],
        enc=dict(
            w0x=e0["wih"].T,                      # (E, 4H)
            w0h=e0["whh"].T,                      # (H, 4H)
            b0=(e0["bih"] + e0["bhh"])[None, :],  # (1, 4H)
            w1x=e1["wih"].T, w1h=e1["whh"].T,
            b1=(e1["bih"] + e1["bhh"])[None, :]),
        head=dict(
            ln_g=params["ln_g"][None, :], ln_b=params["ln_b"][None, :],
            wmu_t=params["wmu"].T, bmu=params["bmu"][None, :],
            wlv_t=params["wlv"].T, blv=params["blv"][None, :]),
        dec=dict(
            w0x=d0["wih"][:, :E].T,               # (E, 4H)
            w0z=d0["wih"][:, E:].T,               # (L, 4H)
            w0h=d0["whh"].T,                      # (H, 4H)
            b0=(d0["bih"] + d0["bhh"])[None, :],
            w1x=d1["wih"].T, w1h=d1["whh"].T,
            b1=(d1["bih"] + d1["bhh"])[None, :]),
        wout=params["wout"], bout=params["bout"])


def vae_forward(kp, x_tokens, target_tokens, eps):
    """Pallas forward: encode -> reparameterize -> teacher-forced decode."""
    emb = kp["embedding"]
    # Dropout layers are identity (eval mode).
    # Embed directly in time-major layout: transpose the tiny (B,T) int32 ids,
    # not the embedded activations -> no activation transposes.
    x_tm = emb[x_tokens.T]                                   # (T, B, E)
    tgt_tm = emb[target_tokens.T]                            # (T, B, E)

    mu, logvar, z = run_encoder(x_tm, kp["enc"], kp["head"], eps)
    hseq_tm = run_decoder(tgt_tm, z, kp["dec"])              # (T, B, H)

    # Vocab projection hoisted out of the recurrence: one lane-dense batched matmul
    # emitted directly in (B, T, V) batch-first layout (pad V to 128 at real sizes).
    logits = jnp.einsum('tbh,vh->btv', hseq_tm, kp["wout"]) + kp["bout"]
    return logits, mu, logvar


# ----------------------------- pure-JAX reference -----------------------------

def _lstm2_ref(x_tm, layers):
    T, B, _ = x_tm.shape
    H = layers[0]["whh"].shape[1]
    h = [jnp.zeros((B, H), jnp.float32) for _ in range(2)]
    c = [jnp.zeros((B, H), jnp.float32) for _ in range(2)]
    outs = []
    for t in range(T):
        inp = x_tm[t]
        for l in range(2):
            p = layers[l]
            gates = inp @ p["wih"].T + h[l] @ p["whh"].T + p["bih"] + p["bhh"]
            i = jax.nn.sigmoid(gates[:, :H])
            f = jax.nn.sigmoid(gates[:, H:2 * H])
            g = jnp.tanh(gates[:, 2 * H:3 * H])
            o = jax.nn.sigmoid(gates[:, 3 * H:])
            c[l] = f * c[l] + i * g
            h[l] = o * jnp.tanh(c[l])
            inp = h[l]
        outs.append(h[-1])
    return jnp.stack(outs, 0), h[-1]


def vae_forward_ref(params, x_tokens, target_tokens, eps):
    emb = params["embedding"]
    x_tm = jnp.transpose(emb[x_tokens], (1, 0, 2))
    _, h_last = _lstm2_ref(x_tm, params["enc"])
    mean = jnp.mean(h_last, -1, keepdims=True)
    var = jnp.mean(jnp.square(h_last - mean), -1, keepdims=True)
    hn = (h_last - mean) * jax.lax.rsqrt(var + 1e-5) * params["ln_g"] + params["ln_b"]
    mu = hn @ params["wmu"].T + params["bmu"]
    logvar = hn @ params["wlv"].T + params["blv"]
    z = mu + eps * jnp.exp(0.5 * logvar)
    tgt_emb = emb[target_tokens]
    B, T, _ = tgt_emb.shape
    dec_in = jnp.concatenate(
        [tgt_emb, jnp.broadcast_to(z[:, None, :], (B, T, z.shape[-1]))], axis=2)
    lstm_out_tm, _ = _lstm2_ref(jnp.transpose(dec_in, (1, 0, 2)), params["dec"])
    logits = lstm_out_tm @ params["wout"].T + params["bout"]
    return jnp.transpose(logits, (1, 0, 2)), mu, logvar


# ----------------------------- main -----------------------------

if __name__ == "__main__":
    V, E, H, L = 64, 32, 32, 8     # vocab, embedding, hidden, latent (small shapes)
    B, T = 2, 8

    key = jax.random.PRNGKey(0)
    pkey, xkey, tkey, ekey = jax.random.split(key, 4)
    params = init_params(pkey, V, E, H, L)
    kparams = prepare_kernel_params(params)    # one-time weight prep, outside jit
    x = jax.random.randint(xkey, (B, T), 0, V, dtype=jnp.int32)
    target = jax.random.randint(tkey, (B, T), 0, V, dtype=jnp.int32)
    eps = jax.random.normal(ekey, (B, L), dtype=jnp.float32)   # reparameterization noise

    fwd = jax.jit(vae_forward)
    logits, mu, logvar = fwd(kparams, x, target, eps)
    jax.block_until_ready((logits, mu, logvar))

    # sanity check against pure-JAX reference
    logits_r, mu_r, logvar_r = vae_forward_ref(params, x, target, eps)
    np.testing.assert_allclose(np.asarray(mu), np.asarray(mu_r), rtol=1e-2, atol=1e-2)
    np.testing.assert_allclose(np.asarray(logvar), np.asarray(logvar_r), rtol=1e-2, atol=1e-2)
    np.testing.assert_allclose(np.asarray(logits), np.asarray(logits_r), rtol=1e-2, atol=1e-2)
    assert logits.shape == (B, T, V) and mu.shape == (B, L) and logvar.shape == (B, L)

    print("KERNEL_OK")
</pallas_src>

<mosaic_0001>
module attributes {stable_mosaic.version = 11 : i64} {
  func.func @encoder_vae_kernel(%arg0: memref<8x2x32xf32, #tpu.memory_space<vmem>>, %arg1: memref<32x128xf32, #tpu.memory_space<vmem>>, %arg2: memref<32x128xf32, #tpu.memory_space<vmem>>, %arg3: memref<1x128xf32, #tpu.memory_space<vmem>>, %arg4: memref<32x128xf32, #tpu.memory_space<vmem>>, %arg5: memref<32x128xf32, #tpu.memory_space<vmem>>, %arg6: memref<1x128xf32, #tpu.memory_space<vmem>>, %arg7: memref<1x32xf32, #tpu.memory_space<vmem>>, %arg8: memref<1x32xf32, #tpu.memory_space<vmem>>, %arg9: memref<32x8xf32, #tpu.memory_space<vmem>>, %arg10: memref<1x8xf32, #tpu.memory_space<vmem>>, %arg11: memref<32x8xf32, #tpu.memory_space<vmem>>, %arg12: memref<1x8xf32, #tpu.memory_space<vmem>>, %arg13: memref<2x8xf32, #tpu.memory_space<vmem>>, %arg14: memref<2x8xf32, #tpu.memory_space<vmem>>, %arg15: memref<2x8xf32, #tpu.memory_space<vmem>>, %arg16: memref<2x8xf32, #tpu.memory_space<vmem>>, %arg17: memref<8x2x128xf32, #tpu.memory_space<vmem>>) attributes {dimension_semantics = [], scalar_prefetch = 0 : i64, scratch_operands = 1 : i64, tpu.core_type = #tpu.core_type<tc>} {
    %c0 = arith.constant 0 : index
    %c0_0 = arith.constant 0 : index
    %c0_1 = arith.constant 0 : index
    %0 = vector.load %arg0[%c0, %c0_0, %c0_1] : memref<8x2x32xf32, #tpu.memory_space<vmem>>, vector<8x2x32xf32>
    %1 = vector.shape_cast %0 : vector<8x2x32xf32> to vector<16x32xf32>
    %c0_2 = arith.constant 0 : index
    %c0_3 = arith.constant 0 : index
    %2 = vector.load %arg1[%c0_2, %c0_3] : memref<32x128xf32, #tpu.memory_space<vmem>>, vector<32x128xf32>
    %cst = arith.constant dense<0.000000e+00> : vector<16x128xf32>
    %3 = tpu.matmul %1, %2, %cst {dimension_numbers = #tpu.dot_dimension_numbers<[1], [0], [0], [1], [0, 0, 1, 1], [], []>} : vector<16x32xf32>, vector<32x128xf32>, vector<16x128xf32> -> vector<16x128xf32>
    %c0_4 = arith.constant 0 : index
    %c0_5 = arith.constant 0 : index
    %4 = vector.load %arg3[%c0_4, %c0_5] : memref<1x128xf32, #tpu.memory_space<vmem>>, vector<1x128xf32>
    %5 = vector.broadcast %4 : vector<1x128xf32> to vector<16x128xf32>
    %6 = arith.addf %3, %5 : vector<16x128xf32>
    %7 = vector.shape_cast %6 : vector<16x128xf32> to vector<8x2x128xf32>
    %c0_6 = arith.constant 0 : index
    %c0_7 = arith.constant 0 : index
    %c0_8 = arith.constant 0 : index
    %8 = vector.load %arg17[%c0_6, %c0_7, %c0_8] : memref<8x2x128xf32, #tpu.memory_space<vmem>>, vector<8x2x128xf32>
    tpu.vector_store %arg17[%c0_6, %c0_7, %c0_8], %7 {strides = array<i32>} : memref<8x2x128xf32, #tpu.memory_space<vmem>>, vector<8x2x128xf32>,
    %c0_9 = arith.constant 0 : index
    %c0_10 = arith.constant 0 : index
    %9 = vector.load %arg2[%c0_9, %c0_10] : memref<32x128xf32, #tpu.memory_space<vmem>>, vector<32x128xf32>
    %c0_11 = arith.constant 0 : index
    %c0_12 = arith.constant 0 : index
    %10 = vector.load %arg4[%c0_11, %c0_12] : memref<32x128xf32, #tpu.memory_space<vmem>>, vector<32x128xf32>
    %c0_13 = arith.constant 0 : index
    %c0_14 = arith.constant 0 : index
    %11 = vector.load %arg5[%c0_13, %c0_14] : memref<32x128xf32, #tpu.memory_space<vmem>>, vector<32x128xf32>
    %c0_15 = arith.constant 0 : index
    %c0_16 = arith.constant 0 : index
    %12 = vector.load %arg6[%c0_15, %c0_16] : memref<1x128xf32, #tpu.memory_space<vmem>>, vector<1x128xf32>
    %13 = vector.shape_cast %12 : vector<1x128xf32> to vector<1x128xf32>
    %14 = vector.broadcast %13 : vector<1x128xf32> to vector<2x128xf32>
    %cst_17 = arith.constant 0.000000e+00 : f32
    %15 = vector.broadcast %cst_17 : f32 to vector<2x32xf32>
    %c0_i32 = arith.constant 0 : i32
    %16 = arith.index_cast %c0_i32 : i32 to index
    %c0_18 = arith.constant 0 : index
    %c0_19 = arith.constant 0 : index
    %17 = vector.load %arg17[%16, %c0_18, %c0_19] : memref<8x2x128xf32, #tpu.memory_space<vmem>>, vector<1x2x128xf32>
    %18 = vector.shape_cast %17 : vector<1x2x128xf32> to vector<2x128xf32>
    %cst_20 = arith.constant dense<0.000000e+00> : vector<2x128xf32>
    %19 = tpu.matmul %15, %9, %cst_20 {dimension_numbers = #tpu.dot_dimension_numbers<[1], [0], [0], [1], [0, 0, 1, 1], [], []>} : vector<2x32xf32>, vector<32x128xf32>, vector<2x128xf32> -> vector<2x128xf32>
    %20 = arith.addf %18, %19 : vector<2x128xf32>
    %21 = vector.extract_strided_slice %20 {offsets = [0, 0], sizes = [2, 32], strides = [1, 1]} : vector<2x128xf32> to vector<2x32xf32>
    %22 = arith.negf %21 : vector<2x32xf32>
    %23 = math.exp %22 : vector<2x32xf32>
    %cst_21 = arith.constant 1.000000e+00 : f32
    %24 = vector.broadcast %cst_21 : f32 to vector<2x32xf32>
    %25 = arith.addf %24, %23 : vector<2x32xf32>
    %26 = arith.divf %24, %25 : vector<2x32xf32>
    %27 = vector.extract_strided_slice %20 {offsets = [0, 32], sizes = [2, 32], strides = [1, 1]} : vector<2x128xf32> to vector<2x32xf32>
    %28 = arith.negf %27 : vector<2x32xf32>
    %29 = math.exp %28 : vector<2x32xf32>
    %cst_22 = arith.constant 1.000000e+00 : f32
    %30 = vector.broadcast %cst_22 : f32 to vector<2x32xf32>
    %31 = arith.addf %30, %29 : vector<2x32xf32>
    %32 = arith.divf %30, %31 : vector<2x32xf32>
    %33 = vector.extract_strided_slice %20 {offsets = [0, 64], sizes = [2, 32], strides = [1, 1]} : vector<2x128xf32> to vector<2x32xf32>
    %34 = math.tanh %33 : vector<2x32xf32>
    %35 = vector.extract_strided_slice %20 {offsets = [0, 96], sizes = [2, 32], strides = [1, 1]} : vector<2x128xf32> to vector<2x32xf32>
    %36 = arith.negf %35 : vector<2x32xf32>
    %37 = math.exp %36 : vector<2x32xf32>
    %cst_23 = arith.constant 1.000000e+00 : f32
    %38 = vector.broadcast %cst_23 : f32 to vector<2x32xf32>
    %39 = arith.addf %38, %37 : vector<2x32xf32>
    %40 = arith.divf %38, %39 : vector<2x32xf32>
    %41 = arith.mulf %32, %15 : vector<2x32xf32>
    %42 = arith.mulf %26, %34 : vector<2x32xf32>
    %43 = arith.addf %41, %42 : vector<2x32xf32>
    %44 = math.tanh %43 : vector<2x32xf32>
    %45 = arith.mulf %40, %44 : vector<2x32xf32>
    %cst_24 = arith.constant dense<0.000000e+00> : vector<2x128xf32>
    %46 = tpu.matmul %45, %10, %cst_24 {dimension_numbers = #tpu.dot_dimension_numbers<[1], [0], [0], [1], [0, 0, 1, 1], [], []>} : vector<2x32xf32>, vector<32x128xf32>, vector<2x128xf32> -> vector<2x128xf32>
    %cst_25 = arith.constant dense<0.000000e+00> : vector<2x128xf32>
    %47 = tpu.matmul %15, %11, %cst_25 {dimension_numbers = #tpu.dot_dimension_numbers<[1], [0], [0], [1], [0, 0, 1, 1], [], []>} : vector<2x32xf32>, vector<32x128xf32>, vector<2x128xf32> -> vector<2x128xf32>
    %48 = arith.addf %46, %47 : vector<2x128xf32>
    %49 = arith.addf %48, %14 : vector<2x128xf32>
    %50 = vector.extract_strided_slice %49 {offsets = [0, 0], sizes = [2, 32], strides = [1, 1]} : vector<2x128xf32> to vector<2x32xf32>
    %51 = arith.negf %50 : vector<2x32xf32>
    %52 = math.exp %51 : vector<2x32xf32>
    %cst_26 = arith.constant 1.000000e+00 : f32
    %53 = vector.broadcast %cst_26 : f32 to vector<2x32xf32>
    %54 = arith.addf %53, %52 : vector<2x32xf32>
    %55 = arith.divf %53, %54 : vector<2x32xf32>
    %56 = vector.extract_strided_slice %49 {offsets = [0, 32], sizes = [2, 32], strides = [1, 1]} : vector<2x128xf32> to vector<2x32xf32>
    %57 = arith.negf %56 : vector<2x32xf32>
    %58 = math.exp %57 : vector<2x32xf32>
    %cst_27 = arith.constant 1.000000e+00 : f32
    %59 = vector.broadcast %cst_27 : f32 to vector<2x32xf32>
    %60 = arith.addf %59, %58 : vector<2x32xf32>
    %61 = arith.divf %59, %60 : vector<2x32xf32>
    %62 = vector.extract_strided_slice %49 {offsets = [0, 64], sizes = [2, 32], strides = [1, 1]} : vector<2x128xf32> to vector<2x32xf32>
    %63 = math.tanh %62 : vector<2x32xf32>
    %64 = vector.extract_strided_slice %49 {offsets = [0, 96], sizes = [2, 32], strides = [1, 1]} : vector<2x128xf32> to vector<2x32xf32>
    %65 = arith.negf %64 : vector<2x32xf32>
    %66 = math.exp %65 : vector<2x32xf32>
    %cst_28 = arith.constant 1.000000e+00 : f32
    %67 = vector.broadcast %cst_28 : f32 to vector<2x32xf32>
    %68 = arith.addf %67, %66 : vector<2x32xf32>
    %69 = arith.divf %67, %68 : vector<2x32xf32>
    %70 = arith.mulf %61, %15 : vector<2x32xf32>
    %71 = arith.mulf %55, %63 : vector<2x32xf32>
    %72 = arith.addf %70, %71 : vector<2x32xf32>
    %73 = math.tanh %72 : vector<2x32xf32>
    %74 = arith.mulf %69, %73 : vector<2x32xf32>
    %c1_i32 = arith.constant 1 : i32
    %75 = arith.index_cast %c1_i32 : i32 to index
    %c0_29 = arith.constant 0 : index
    %c0_30 = arith.constant 0 : index
    %76 = vector.load %arg17[%75, %c0_29, %c0_30] : memref<8x2x128xf32, #tpu.memory_space<vmem>>, vector<1x2x128xf32>
    %77 = vector.shape_cast %76 : vector<1x2x128xf32> to vector<2x128xf32>
    %cst_31 = arith.constant dense<0.000000e+00> : vector<2x128xf32>
    %78 = tpu.matmul %45, %9, %cst_31 {dimension_numbers = #tpu.dot_dimension_numbers<[1], [0], [0], [1], [0, 0, 1, 1], [], []>} : vector<2x32xf32>, vector<32x128xf32>, vector<2x128xf32> -> vector<2x128xf32>
    %79 = arith.addf %77, %78 : vector<2x128xf32>
    %80 = vector.extract_strided_slice %79 {offsets = [0, 0], sizes = [2, 32], strides = [1, 1]} : vector<2x128xf32> to vector<2x32xf32>
    %81 = arith.negf %80 : vector<2x32xf32>
    %82 = math.exp %81 : vector<2x32xf32>
    %cst_32 = arith.constant 1.000000e+00 : f32
    %83 = vector.broadcast %cst_32 : f32 to vector<2x32xf32>
    %84 = arith.addf %83, %82 : vector<2x32xf32>
    %85 = arith.divf %83, %84 : vector<2x32xf32>
    %86 = vector.extract_strided_slice %79 {offsets = [0, 32], sizes = [2, 32], strides = [1, 1]} : vector<2x128xf32> to vector<2x32xf32>
    %87 = arith.negf %86 : vector<2x32xf32>
    %88 = math.exp %87 : vector<2x32xf32>
    %cst_33 = arith.constant 1.000000e+00 : f32
    %89 = vector.broadcast %cst_33 : f32 to vector<2x32xf32>
    %90 = arith.addf %89, %88 : vector<2x32xf32>
    %91 = arith.divf %89, %90 : vector<2x32xf32>
    %92 = vector.extract_strided_slice %79 {offsets = [0, 64], sizes = [2, 32], strides = [1, 1]} : vector<2x128xf32> to vector<2x32xf32>
    %93 = math.tanh %92 : vector<2x32xf32>
    %94 = vector.extract_strided_slice %79 {offsets = [0, 96], sizes = [2, 32], strides = [1, 1]} : vector<2x128xf32> to vector<2x32xf32>
    %95 = arith.negf %94 : vector<2x32xf32>
    %96 = math.exp %95 : vector<2x32xf32>
    %cst_34 = arith.constant 1.000000e+00 : f32
    %97 = vector.broadcast %cst_34 : f32 to vector<2x32xf32>
    %98 = arith.addf %97, %96 : vector<2x32xf32>
    %99 = arith.divf %97, %98 : vector<2x32xf32>
    %100 = arith.mulf %91, %43 : vector<2x32xf32>
    %101 = arith.mulf %85, %93 : vector<2x32xf32>
    %102 = arith.addf %100, %101 : vector<2x32xf32>
    %103 = math.tanh %102 : vector<2x32xf32>
    %104 = arith.mulf %99, %103 : vector<2x32xf32>
    %cst_35 = arith.constant dense<0.000000e+00> : vector<2x128xf32>
    %105 = tpu.matmul %104, %10, %cst_35 {dimension_numbers = #tpu.dot_dimension_numbers<[1], [0], [0], [1], [0, 0, 1, 1], [], []>} : vector<2x32xf32>, vector<32x128xf32>, vector<2x128xf32> -> vector<2x128xf32>
    %cst_36 = arith.constant dense<0.000000e+00> : vector<2x128xf32>
    %106 = tpu.matmul %74, %11, %cst_36 {dimension_numbers = #tpu.dot_dimension_numbers<[1], [0], [0], [1], [0, 0, 1, 1], [], []>} : vector<2x32xf32>, vector<32x128xf32>, vector<2x128xf32> -> vector<2x128xf32>
    %107 = arith.addf %105, %106 : vector<2x128xf32>
    %108 = arith.addf %107, %14 : vector<2x128xf32>
    %109 = vector.extract_strided_slice %108 {offsets = [0, 0], sizes = [2, 32], strides = [1, 1]} : vector<2x128xf32> to vector<2x32xf32>
    %110 = arith.negf %109 : vector<2x32xf32>
    %111 = math.exp %110 : vector<2x32xf32>
    %cst_37 = arith.constant 1.000000e+00 : f32
    %112 = vector.broadcast %cst_37 : f32 to vector<2x32xf32>
    %113 = arith.addf %112, %111 : vector<2x32xf32>
    %114 = arith.divf %112, %113 : vector<2x32xf32>
    %115 = vector.extract_strided_slice %108 {offsets = [0, 32], sizes = [2, 32], strides = [1, 1]} : vector<2x128xf32> to vector<2x32xf32>
    %116 = arith.negf %115 : vector<2x32xf32>
    %117 = math.exp %116 : vector<2x32xf32>
    %cst_38 = arith.constant 1.000000e+00 : f32
    %118 = vector.broadcast %cst_38 : f32 to vector<2x32xf32>
    %119 = arith.addf %118, %117 : vector<2x32xf32>
    %120 = arith.divf %118, %119 : vector<2x32xf32>
    %121 = vector.extract_strided_slice %108 {offsets = [0, 64], sizes = [2, 32], strides = [1, 1]} : vector<2x128xf32> to vector<2x32xf32>
    %122 = math.tanh %121 : vector<2x32xf32>
    %123 = vector.extract_strided_slice %108 {offsets = [0, 96], sizes = [2, 32], strides = [1, 1]} : vector<2x128xf32> to vector<2x32xf32>
    %124 = arith.negf %123 : vector<2x32xf32>
    %125 = math.exp %124 : vector<2x32xf32>
    %cst_39 = arith.constant 1.000000e+00 : f32
    %126 = vector.broadcast %cst_39 : f32 to vector<2x32xf32>
    %127 = arith.addf %126, %125 : vector<2x32xf32>
    %128 = arith.divf %126, %127 : vector<2x32xf32>
    %129 = arith.mulf %120, %72 : vector<2x32xf32>
    %130 = arith.mulf %114, %122 : vector<2x32xf32>
    %131 = arith.addf %129, %130 : vector<2x32xf32>
    %132 = math.tanh %131 : vector<2x32xf32>
    %133 = arith.mulf %128, %132 : vector<2x32xf32>
    %c2_i32 = arith.constant 2 : i32
    %134 = arith.index_cast %c2_i32 : i32 to index
    %c0_40 = arith.constant 0 : index
    %c0_41 = arith.constant 0 : index
    %135 = vector.load %arg17[%134, %c0_40, %c0_41] : memref<8x2x128xf32, #tpu.memory_space<vmem>>, vector<1x2x128xf32>
    %136 = vector.shape_cast %135 : vector<1x2x128xf32> to vector<2x128xf32>
    %cst_42 = arith.constant dense<0.000000e+00> : vector<2x128xf32>
    %137 = tpu.matmul %104, %9, %cst_42 {dimension_numbers = #tpu.dot_dimension_numbers<[1], [0], [0], [1], [0, 0, 1, 1], [], []>} : vector<2x32xf32>, vector<32x128xf32>, vector<2x128xf32> -> vector<2x128xf32>
    %138 = arith.addf %136, %137 : vector<2x128xf32>
    %139 = vector.extract_strided_slice %138 {offsets = [0, 0], sizes = [2, 32], strides = [1, 1]} : vector<2x128xf32> to vector<2x32xf32>
    %140 = arith.negf %139 : vector<2x32xf32>
    %141 = math.exp %140 : vector<2x32xf32>
    %cst_43 = arith.constant 1.000000e+00 : f32
    %142 = vector.broadcast %cst_43 : f32 to vector<2x32xf32>
    %143 = arith.addf %142, %141 : vector<2x32xf32>
    %144 = arith.divf %142, %143 : vector<2x32xf32>
    %145 = vector.extract_strided_slice %138 {offsets = [0, 32], sizes = [2, 32], strides = [1, 1]} : vector<2x128xf32> to vector<2x32xf32>
    %146 = arith.negf %145 : vector<2x32xf32>
    %147 = math.exp %146 : vector<2x32xf32>
    %cst_44 = arith.constant 1.000000e+00 : f32
    %148 = vector.broadcast %cst_44 : f32 to vector<2x32xf32>
    %149 = arith.addf %148, %147 : vector<2x32xf32>
    %150 = arith.divf %148, %149 : vector<2x32xf32>
    %151 = vector.extract_strided_slice %138 {offsets = [0, 64], sizes = [2, 32], strides = [1, 1]} : vector<2x128xf32> to vector<2x32xf32>
    %152 = math.tanh %151 : vector<2x32xf32>
    %153 = vector.extract_strided_slice %138 {offsets = [0, 96], sizes = [2, 32], strides = [1, 1]} : vector<2x128xf32> to vector<2x32xf32>
    %154 = arith.negf %153 : vector<2x32xf32>
    %155 = math.exp %154 : vector<2x32xf32>
    %cst_45 = arith.constant 1.000000e+00 : f32
    %156 = vector.broadcast %cst_45 : f32 to vector<2x32xf32>
    %157 = arith.addf %156, %155 : vector<2x32xf32>
    %158 = arith.divf %156, %157 : vector<2x32xf32>
    %159 = arith.mulf %150, %102 : vector<2x32xf32>
    %160 = arith.mulf %144, %152 : vector<2x32xf32>
    %161 = arith.addf %159, %160 : vector<2x32xf32>
    %162 = math.tanh %161 : vector<2x32xf32>
    %163 = arith.mulf %158, %162 : vector<2x32xf32>
    %cst_46 = arith.constant dense<0.000000e+00> : vector<2x128xf32>
    %164 = tpu.matmul %163, %10, %cst_46 {dimension_numbers = #tpu.dot_dimension_numbers<[1], [0], [0], [1], [0, 0, 1, 1], [], []>} : vector<2x32xf32>, vector<32x128xf32>, vector<2x128xf32> -> vector<2x128xf32>
    %cst_47 = arith.constant dense<0.000000e+00> : vector<2x128xf32>
    %165 = tpu.matmul %133, %11, %cst_47 {dimension_numbers = #tpu.dot_dimension_numbers<[1], [0], [0], [1], [0, 0, 1, 1], [], []>} : vector<2x32xf32>, vector<32x128xf32>, vector<2x128xf32> -> vector<2x128xf32>
    %166 = arith.addf %164, %165 : vector<2x128xf32>
    %167 = arith.addf %166, %14 : vector<2x128xf32>
    %168 = vector.extract_strided_slice %167 {offsets = [0, 0], sizes = [2, 32], strides = [1, 1]} : vector<2x128xf32> to vector<2x32xf32>
    %169 = arith.negf %168 : vector<2x32xf32>
    %170 = math.exp %169 : vector<2x32xf32>
    %cst_48 = arith.constant 1.000000e+00 : f32
    %171 = vector.broadcast %cst_48 : f32 to vector<2x32xf32>
    %172 = arith.addf %171, %170 : vector<2x32xf32>
    %173 = arith.divf %171, %172 : vector<2x32xf32>
    %174 = vector.extract_strided_slice %167 {offsets = [0, 32], sizes = [2, 32], strides = [1, 1]} : vector<2x128xf32> to vector<2x32xf32>
    %175 = arith.negf %174 : vector<2x32xf32>
    %176 = math.exp %175 : vector<2x32xf32>
    %cst_49 = arith.constant 1.000000e+00 : f32
    %177 = vector.broadcast %cst_49 : f32 to vector<2x32xf32>
    %178 = arith.addf %177, %176 : vector<2x32xf32>
    %179 = arith.divf %177, %178 : vector<2x32xf32>
    %180 = vector.extract_strided_slice %167 {offsets = [0, 64], sizes = [2, 32], strides = [1, 1]} : vector<2x128xf32> to vector<2x32xf32>
    %181 = math.tanh %180 : vector<2x32xf32>
    %182 = vector.extract_strided_slice %167 {offsets = [0, 96], sizes = [2, 32], strides = [1, 1]} : vector<2x128xf32> to vector<2x32xf32>
    %183 = arith.negf %182 : vector<2x32xf32>
    %184 = math.exp %183 : vector<2x32xf32>
    %cst_50 = arith.constant 1.000000e+00 : f32
    %185 = vector.broadcast %cst_50 : f32 to vector<2x32xf32>
    %186 = arith.addf %185, %184 : vector<2x32xf32>
    %187 = arith.divf %185, %186 : vector<2x32xf32>
    %188 = arith.mulf %179, %131 : vector<2x32xf32>
    %189 = arith.mulf %173, %181 : vector<2x32xf32>
    %190 = arith.addf %188, %189 : vector<2x32xf32>
    %191 = math.tanh %190 : vector<2x32xf32>
    %192 = arith.mulf %187, %191 : vector<2x32xf32>
    %c3_i32 = arith.constant 3 : i32
    %193 = arith.index_cast %c3_i32 : i32 to index
    %c0_51 = arith.constant 0 : index
    %c0_52 = arith.constant 0 : index
    %194 = vector.load %arg17[%193, %c0_51, %c0_52] : memref<8x2x128xf32, #tpu.memory_space<vmem>>, vector<1x2x128xf32>
    %195 = vector.shape_cast %194 : vector<1x2x128xf32> to vector<2x128xf32>
    %cst_53 = arith.constant dense<0.000000e+00> : vector<2x128xf32>
    %196 = tpu.matmul %163, %9, %cst_53 {dimension_numbers = #tpu.dot_dimension_numbers<[1], [0], [0], [1], [0, 0, 1, 1], [], []>} : vector<2x32xf32>, vector<32x128xf32>, vector<2x128xf32> -> vector<2x128xf32>
    %197 = arith.addf %195, %196 : vector<2x128xf32>
    %198 = vector.extract_strided_slice %197 {offsets = [0, 0], sizes = [2, 32], strides = [1, 1]} : vector<2x128xf32> to vector<2x32xf32>
    %199 = arith.negf %198 : vector<2x32xf32>
    %200 = math.exp %199 : vector<2x32xf32>
    %cst_54 = arith.constant 1.000000e+00 : f32
    %201 = vector.broadcast %cst_54 : f32 to vector<2x32xf32>
    %202 = arith.addf %201, %200 : vector<2x32xf32>
    %203 = arith.divf %201, %202 : vector<2x32xf32>
    %204 = vector.extract_strided_slice %197 {offsets = [0, 32], sizes = [2, 32], strides = [1, 1]} : vector<2x128xf32> to vector<2x32xf32>
    %205 = arith.negf %204 : vector<2x32xf32>
    %206 = math.exp %205 : vector<2x32xf32>
    %cst_55 = arith.constant 1.000000e+00 : f32
    %207 = vector.broadcast %cst_55 : f32 to vector<2x32xf32>
    %208 = arith.addf %207, %206 : vector<2x32xf32>
    %209 = arith.divf %207, %208 : vector<2x32xf32>
    %210 = vector.extract_strided_slice %197 {offsets = [0, 64], sizes = [2, 32], strides = [1, 1]} : vector<2x128xf32> to vector<2x32xf32>
    %211 = math.tanh %210 : vector<2x32xf32>
    %212 = vector.extract_strided_slice %197 {offsets = [0, 96], sizes = [2, 32], strides = [1, 1]} : vector<2x128xf32> to vector<2x32xf32>
    %213 = arith.negf %212 : vector<2x32xf32>
    %214 = math.exp %213 : vector<2x32xf32>
    %cst_56 = arith.constant 1.000000e+00 : f32
    %215 = vector.broadcast %cst_56 : f32 to vector<2x32xf32>
    %216 = arith.addf %215, %214 : vector<2x32xf32>
    %217 = arith.divf %215, %216 : vector<2x32xf32>
    %218 = arith.mulf %209, %161 : vector<2x32xf32>
    %219 = arith.mulf %203, %211 : vector<2x32xf32>
    %220 = arith.addf %218, %219 : vector<2x32xf32>
    %221 = math.tanh %220 : vector<2x32xf32>
    %222 = arith.mulf %217, %221 : vector<2x32xf32>
    %cst_57 = arith.constant dense<0.000000e+00> : vector<2x128xf32>
    %223 = tpu.matmul %222, %10, %cst_57 {dimension_numbers = #tpu.dot_dimension_numbers<[1], [0], [0], [1], [0, 0, 1, 1], [], []>} : vector<2x32xf32>, vector<32x128xf32>, vector<2x128xf32> -> vector<2x128xf32>
    %cst_58 = arith.constant dense<0.000000e+00> : vector<2x128xf32>
    %224 = tpu.matmul %192, %11, %cst_58 {dimension_numbers = #tpu.dot_dimension_numbers<[1], [0], [0], [1], [0, 0, 1, 1], [], []>} : vector<2x32xf32>, vector<32x128xf32>, vector<2x128xf32> -> vector<2x128xf32>
    %225 = arith.addf %223, %224 : vector<2x128xf32>
    %226 = arith.addf %225, %14 : vector<2x128xf32>
    %227 = vector.extract_strided_slice %226 {offsets = [0, 0], sizes = [2, 32], strides = [1, 1]} : vector<2x128xf32> to vector<2x32xf32>
    %228 = arith.negf %227 : vector<2x32xf32>
    %229 = math.exp %228 : vector<2x32xf32>
    %cst_59 = arith.constant 1.000000e+00 : f32
    %230 = vector.broadcast %cst_59 : f32 to vector<2x32xf32>
    %231 = arith.addf %230, %229 : vector<2x32xf32>
    %232 = arith.divf %230, %231 : vector<2x32xf32>
    %233 = vector.extract_strided_slice %226 {offsets = [0, 32], sizes = [2, 32], strides = [1, 1]} : vector<2x128xf32> to vector<2x32xf32>
    %234 = arith.negf %233 : vector<2x32xf32>
    %235 = math.exp %234 : vector<2x32xf32>
    %cst_60 = arith.constant 1.000000e+00 : f32
    %236 = vector.broadcast %cst_60 : f32 to vector<2x32xf32>
    %237 = arith.addf %236, %235 : vector<2x32xf32>
    %238 = arith.divf %236, %237 : vector<2x32xf32>
    %239 = vector.extract_strided_slice %226 {offsets = [0, 64], sizes = [2, 32], strides = [1, 1]} : vector<2x128xf32> to vector<2x32xf32>
    %240 = math.tanh %239 : vector<2x32xf32>
    %241 = vector.extract_strided_slice %226 {offsets = [0, 96], sizes = [2, 32], strides = [1, 1]} : vector<2x128xf32> to vector<2x32xf32>
    %242 = arith.negf %241 : vector<2x32xf32>
    %243 = math.exp %242 : vector<2x32xf32>
    %cst_61 = arith.constant 1.000000e+00 : f32
    %244 = vector.broadcast %cst_61 : f32 to vector<2x32xf32>
    %245 = arith.addf %244, %243 : vector<2x32xf32>
    %246 = arith.divf %244, %245 : vector<2x32xf32>
    %247 = arith.mulf %238, %190 : vector<2x32xf32>
    %248 = arith.mulf %232, %240 : vector<2x32xf32>
    %249 = arith.addf %247, %248 : vector<2x32xf32>
    %250 = math.tanh %249 : vector<2x32xf32>
    %251 = arith.mulf %246, %250 : vector<2x32xf32>
    %c4_i32 = arith.constant 4 : i32
    %252 = arith.index_cast %c4_i32 : i32 to index
    %c0_62 = arith.constant 0 : index
    %c0_63 = arith.constant 0 : index
    %253 = vector.load %arg17[%252, %c0_62, %c0_63] : memref<8x2x128xf32, #tpu.memory_space<vmem>>, vector<1x2x128xf32>
    %254 = vector.shape_cast %253 : vector<1x2x128xf32> to vector<2x128xf32>
    %cst_64 = arith.constant dense<0.000000e+00> : vector<2x128xf32>
    %255 = tpu.matmul %222, %9, %cst_64 {dimension_numbers = #tpu.dot_dimension_numbers<[1], [0], [0], [1], [0, 0, 1, 1], [], []>} : vector<2x32xf32>, vector<32x128xf32>, vector<2x128xf32> -> vector<2x128xf32>
    %256 = arith.addf %254, %255 : vector<2x128xf32>
    %257 = vector.extract_strided_slice %256 {offsets = [0, 0], sizes = [2, 32], strides = [1, 1]} : vector<2x128xf32> to vector<2x32xf32>
    %258 = arith.negf %257 : vector<2x32xf32>
    %259 = math.exp %258 : vector<2x32xf32>
    %cst_65 = arith.constant 1.000000e+00 : f32
    %260 = vector.broadcast %cst_65 : f32 to vector<2x32xf32>
    %261 = arith.addf %260, %259 : vector<2x32xf32>
    %262 = arith.divf %260, %261 : vector<2x32xf32>
    %263 = vector.extract_strided_slice %256 {offsets = [0, 32], sizes = [2, 32], strides = [1, 1]} : vector<2x128xf32> to vector<2x32xf32>
    %264 = arith.negf %263 : vector<2x32xf32>
    %265 = math.exp %264 : vector<2x32xf32>
    %cst_66 = arith.constant 1.000000e+00 : f32
    %266 = vector.broadcast %cst_66 : f32 to vector<2x32xf32>
    %267 = arith.addf %266, %265 : vector<2x32xf32>
    %268 = arith.divf %266, %267 : vector<2x32xf32>
    %269 = vector.extract_strided_slice %256 {offsets = [0, 64], sizes = [2, 32], strides = [1, 1]} : vector<2x128xf32> to vector<2x32xf32>
    %270 = math.tanh %269 : vector<2x32xf32>
    %271 = vector.extract_strided_slice %256 {offsets = [0, 96], sizes = [2, 32], strides = [1, 1]} : vector<2x128xf32> to vector<2x32xf32>
    %272 = arith.negf %271 : vector<2x32xf32>
    %273 = math.exp %272 : vector<2x32xf32>
    %cst_67 = arith.constant 1.000000e+00 : f32
    %274 = vector.broadcast %cst_67 : f32 to vector<2x32xf32>
    %275 = arith.addf %274, %273 : vector<2x32xf32>
    %276 = arith.divf %274, %275 : vector<2x32xf32>
    %277 = arith.mulf %268, %220 : vector<2x32xf32>
    %278 = arith.mulf %262, %270 : vector<2x32xf32>
    %279 = arith.addf %277, %278 : vector<2x32xf32>
    %280 = math.tanh %279 : vector<2x32xf32>
    %281 = arith.mulf %276, %280 : vector<2x32xf32>
    %cst_68 = arith.constant dense<0.000000e+00> : vector<2x128xf32>
    %282 = tpu.matmul %281, %10, %cst_68 {dimension_numbers = #tpu.dot_dimension_numbers<[1], [0], [0], [1], [0, 0, 1, 1], [], []>} : vector<2x32xf32>, vector<32x128xf32>, vector<2x128xf32> -> vector<2x128xf32>
    %cst_69 = arith.constant dense<0.000000e+00> : vector<2x128xf32>
    %283 = tpu.matmul %251, %11, %cst_69 {dimension_numbers = #tpu.dot_dimension_numbers<[1], [0], [0], [1], [0, 0, 1, 1], [], []>} : vector<2x32xf32>, vector<32x128xf32>, vector<2x128xf32> -> vector<2x128xf32>
    %284 = arith.addf %282, %283 : vector<2x128xf32>
    %285 = arith.addf %284, %14 : vector<2x128xf32>
    %286 = vector.extract_strided_slice %285 {offsets = [0, 0], sizes = [2, 32], strides = [1, 1]} : vector<2x128xf32> to vector<2x32xf32>
    %287 = arith.negf %286 : vector<2x32xf32>
    %288 = math.exp %287 : vector<2x32xf32>
    %cst_70 = arith.constant 1.000000e+00 : f32
    %289 = vector.broadcast %cst_70 : f32 to vector<2x32xf32>
    %290 = arith.addf %289, %288 : vector<2x32xf32>
    %291 = arith.divf %289, %290 : vector<2x32xf32>
    %292 = vector.extract_strided_slice %285 {offsets = [0, 32], sizes = [2, 32], strides = [1, 1]} : vector<2x128xf32> to vector<2x32xf32>
    %293 = arith.negf %292 : vector<2x32xf32>
    %294 = math.exp %293 : vector<2x32xf32>
    %cst_71 = arith.constant 1.000000e+00 : f32
    %295 = vector.broadcast %cst_71 : f32 to vector<2x32xf32>
    %296 = arith.addf %295, %294 : vector<2x32xf32>
    %297 = arith.divf %295, %296 : vector<2x32xf32>
    %298 = vector.extract_strided_slice %285 {offsets = [0, 64], sizes = [2, 32], strides = [1, 1]} : vector<2x128xf32> to vector<2x32xf32>
    %299 = math.tanh %298 : vector<2x32xf32>
    %300 = vector.extract_strided_slice %285 {offsets = [0, 96], sizes = [2, 32], strides = [1, 1]} : vector<2x128xf32> to vector<2x32xf32>
    %301 = arith.negf %300 : vector<2x32xf32>
    %302 = math.exp %301 : vector<2x32xf32>
    %cst_72 = arith.constant 1.000000e+00 : f32
    %303 = vector.broadcast %cst_72 : f32 to vector<2x32xf32>
    %304 = arith.addf %303, %302 : vector<2x32xf32>
    %305 = arith.divf %303, %304 : vector<2x32xf32>
    %306 = arith.mulf %297, %249 : vector<2x32xf32>
    %307 = arith.mulf %291, %299 : vector<2x32xf32>
    %308 = arith.addf %306, %307 : vector<2x32xf32>
    %309 = math.tanh %308 : vector<2x32xf32>
    %310 = arith.mulf %305, %309 : vector<2x32xf32>
    %c5_i32 = arith.constant 5 : i32
    %311 = arith.index_cast %c5_i32 : i32 to index
    %c0_73 = arith.constant 0 : index
    %c0_74 = arith.constant 0 : index
    %312 = vector.load %arg17[%311, %c0_73, %c0_74] : memref<8x2x128xf32, #tpu.memory_space<vmem>>, vector<1x2x128xf32>
    %313 = vector.shape_cast %312 : vector<1x2x128xf32> to vector<2x128xf32>
    %cst_75 = arith.constant dense<0.000000e+00> : vector<2x128xf32>
    %314 = tpu.matmul %281, %9, %cst_75 {dimension_numbers = #tpu.dot_dimension_numbers<[1], [0], [0], [1], [0, 0, 1, 1], [], []>} : vector<2x32xf32>, vector<32x128xf32>, vector<2x128xf32> -> vector<2x128xf32>
    %315 = arith.addf %313, %314 : vector<2x128xf32>
    %316 = vector.extract_strided_slice %315 {offsets = [0, 0], sizes = [2, 32], strides = [1, 1]} : vector<2x128xf32> to vector<2x32xf32>
    %317 = arith.negf %316 : vector<2x32xf32>
    %318 = math.exp %317 : vector<2x32xf32>
    %cst_76 = arith.constant 1.000000e+00 : f32
    %319 = vector.broadcast %cst_76 : f32 to vector<2x32xf32>
    %320 = arith.addf %319, %318 : vector<2x32xf32>
    %321 = arith.divf %319, %320 : vector<2x32xf32>
    %322 = vector.extract_strided_slice %315 {offsets = [0, 32], sizes = [2, 32], strides = [1, 1]} : vector<2x128xf32> to vector<2x32xf32>
    %323 = arith.negf %322 : vector<2x32xf32>
    %324 = math.exp %323 : vector<2x32xf32>
    %cst_77 = arith.constant 1.000000e+00 : f32
    %325 = vector.broadcast %cst_77 : f32 to vector<2x32xf32>
    %326 = arith.addf %325, %324 : vector<2x32xf32>
    %327 = arith.divf %325, %326 : vector<2x32xf32>
    %328 = vector.extract_strided_slice %315 {offsets = [0, 64], sizes = [2, 32], strides = [1, 1]} : vector<2x128xf32> to vector<2x32xf32>
    %329 = math.tanh %328 : vector<2x32xf32>
    %330 = vector.extract_strided_slice %315 {offsets = [0, 96], sizes = [2, 32], strides = [1, 1]} : vector<2x128xf32> to vector<2x32xf32>
    %331 = arith.negf %330 : vector<2x32xf32>
    %332 = math.exp %331 : vector<2x32xf32>
    %cst_78 = arith.constant 1.000000e+00 : f32
    %333 = vector.broadcast %cst_78 : f32 to vector<2x32xf32>
    %334 = arith.addf %333, %332 : vector<2x32xf32>
    %335 = arith.divf %333, %334 : vector<2x32xf32>
    %336 = arith.mulf %327, %279 : vector<2x32xf32>
    %337 = arith.mulf %321, %329 : vector<2x32xf32>
    %338 = arith.addf %336, %337 : vector<2x32xf32>
    %339 = math.tanh %338 : vector<2x32xf32>
    %340 = arith.mulf %335, %339 : vector<2x32xf32>
    %cst_79 = arith.constant dense<0.000000e+00> : vector<2x128xf32>
    %341 = tpu.matmul %340, %10, %cst_79 {dimension_numbers = #tpu.dot_dimension_numbers<[1], [0], [0], [1], [0, 0, 1, 1], [], []>} : vector<2x32xf32>, vector<32x128xf32>, vector<2x128xf32> -> vector<2x128xf32>
    %cst_80 = arith.constant dense<0.000000e+00> : vector<2x128xf32>
    %342 = tpu.matmul %310, %11, %cst_80 {dimension_numbers = #tpu.dot_dimension_numbers<[1], [0], [0], [1], [0, 0, 1, 1], [], []>} : vector<2x32xf32>, vector<32x128xf32>, vector<2x128xf32> -> vector<2x128xf32>
    %343 = arith.addf %341, %342 : vector<2x128xf32>
    %344 = arith.addf %343, %14 : vector<2x128xf32>
    %345 = vector.extract_strided_slice %344 {offsets = [0, 0], sizes = [2, 32], strides = [1, 1]} : vector<2x128xf32> to vector<2x32xf32>
    %346 = arith.negf %345 : vector<2x32xf32>
    %347 = math.exp %346 : vector<2x32xf32>
    %cst_81 = arith.constant 1.000000e+00 : f32
    %348 = vector.broadcast %cst_81 : f32 to vector<2x32xf32>
    %349 = arith.addf %348, %347 : vector<2x32xf32>
    %350 = arith.divf %348, %349 : vector<2x32xf32>
    %351 = vector.extract_strided_slice %344 {offsets = [0, 32], sizes = [2, 32], strides = [1, 1]} : vector<2x128xf32> to vector<2x32xf32>
    %352 = arith.negf %351 : vector<2x32xf32>
    %353 = math.exp %352 : vector<2x32xf32>
    %cst_82 = arith.constant 1.000000e+00 : f32
    %354 = vector.broadcast %cst_82 : f32 to vector<2x32xf32>
    %355 = arith.addf %354, %353 : vector<2x32xf32>
    %356 = arith.divf %354, %355 : vector<2x32xf32>
    %357 = vector.extract_strided_slice %344 {offsets = [0, 64], sizes = [2, 32], strides = [1, 1]} : vector<2x128xf32> to vector<2x32xf32>
    %358 = math.tanh %357 : vector<2x32xf32>
    %359 = vector.extract_strided_slice %344 {offsets = [0, 96], sizes = [2, 32], strides = [1, 1]} : vector<2x128xf32> to vector<2x32xf32>
    %360 = arith.negf %359 : vector<2x32xf32>
    %361 = math.exp %360 : vector<2x32xf32>
    %cst_83 = arith.constant 1.000000e+00 : f32
    %362 = vector.broadcast %cst_83 : f32 to vector<2x32xf32>
    %363 = arith.addf %362, %361 : vector<2x32xf32>
    %364 = arith.divf %362, %363 : vector<2x32xf32>
    %365 = arith.mulf %356, %308 : vector<2x32xf32>
    %366 = arith.mulf %350, %358 : vector<2x32xf32>
    %367 = arith.addf %365, %366 : vector<2x32xf32>
    %368 = math.tanh %367 : vector<2x32xf32>
    %369 = arith.mulf %364, %368 : vector<2x32xf32>
    %c6_i32 = arith.constant 6 : i32
    %370 = arith.index_cast %c6_i32 : i32 to index
    %c0_84 = arith.constant 0 : index
    %c0_85 = arith.constant 0 : index
    %371 = vector.load %arg17[%370, %c0_84, %c0_85] : memref<8x2x128xf32, #tpu.memory_space<vmem>>, vector<1x2x128xf32>
    %372 = vector.shape_cast %371 : vector<1x2x128xf32> to vector<2x128xf32>
    %cst_86 = arith.constant dense<0.000000e+00> : vector<2x128xf32>
    %373 = tpu.matmul %340, %9, %cst_86 {dimension_numbers = #tpu.dot_dimension_numbers<[1], [0], [0], [1], [0, 0, 1, 1], [], []>} : vector<2x32xf32>, vector<32x128xf32>, vector<2x128xf32> -> vector<2x128xf32>
    %374 = arith.addf %372, %373 : vector<2x128xf32>
    %375 = vector.extract_strided_slice %374 {offsets = [0, 0], sizes = [2, 32], strides = [1, 1]} : vector<2x128xf32> to vector<2x32xf32>
    %376 = arith.negf %375 : vector<2x32xf32>
    %377 = math.exp %376 : vector<2x32xf32>
    %cst_87 = arith.constant 1.000000e+00 : f32
    %378 = vector.broadcast %cst_87 : f32 to vector<2x32xf32>
    %379 = arith.addf %378, %377 : vector<2x32xf32>
    %380 = arith.divf %378, %379 : vector<2x32xf32>
    %381 = vector.extract_strided_slice %374 {offsets = [0, 32], sizes = [2, 32], strides = [1, 1]} : vector<2x128xf32> to vector<2x32xf32>
    %382 = arith.negf %381 : vector<2x32xf32>
    %383 = math.exp %382 : vector<2x32xf32>
    %cst_88 = arith.constant 1.000000e+00 : f32
    %384 = vector.broadcast %cst_88 : f32 to vector<2x32xf32>
    %385 = arith.addf %384, %383 : vector<2x32xf32>
    %386 = arith.divf %384, %385 : vector<2x32xf32>
    %387 = vector.extract_strided_slice %374 {offsets = [0, 64], sizes = [2, 32], strides = [1, 1]} : vector<2x128xf32> to vector<2x32xf32>
    %388 = math.tanh %387 : vector<2x32xf32>
    %389 = vector.extract_strided_slice %374 {offsets = [0, 96], sizes = [2, 32], strides = [1, 1]} : vector<2x128xf32> to vector<2x32xf32>
    %390 = arith.negf %389 : vector<2x32xf32>
    %391 = math.exp %390 : vector<2x32xf32>
    %cst_89 = arith.constant 1.000000e+00 : f32
    %392 = vector.broadcast %cst_89 : f32 to vector<2x32xf32>
    %393 = arith.addf %392, %391 : vector<2x32xf32>
    %394 = arith.divf %392, %393 : vector<2x32xf32>
    %395 = arith.mulf %386, %338 : vector<2x32xf32>
    %396 = arith.mulf %380, %388 : vector<2x32xf32>
    %397 = arith.addf %395, %396 : vector<2x32xf32>
    %398 = math.tanh %397 : vector<2x32xf32>
    %399 = arith.mulf %394, %398 : vector<2x32xf32>
    %cst_90 = arith.constant dense<0.000000e+00> : vector<2x128xf32>
    %400 = tpu.matmul %399, %10, %cst_90 {dimension_numbers = #tpu.dot_dimension_numbers<[1], [0], [0], [1], [0, 0, 1, 1], [], []>} : vector<2x32xf32>, vector<32x128xf32>, vector<2x128xf32> -> vector<2x128xf32>
    %cst_91 = arith.constant dense<0.000000e+00> : vector<2x128xf32>
    %401 = tpu.matmul %369, %11, %cst_91 {dimension_numbers = #tpu.dot_dimension_numbers<[1], [0], [0], [1], [0, 0, 1, 1], [], []>} : vector<2x32xf32>, vector<32x128xf32>, vector<2x128xf32> -> vector<2x128xf32>
    %402 = arith.addf %400, %401 : vector<2x128xf32>
    %403 = arith.addf %402, %14 : vector<2x128xf32>
    %404 = vector.extract_strided_slice %403 {offsets = [0, 0], sizes = [2, 32], strides = [1, 1]} : vector<2x128xf32> to vector<2x32xf32>
    %405 = arith.negf %404 : vector<2x32xf32>
    %406 = math.exp %405 : vector<2x32xf32>
    %cst_92 = arith.constant 1.000000e+00 : f32
    %407 = vector.broadcast %cst_92 : f32 to vector<2x32xf32>
    %408 = arith.addf %407, %406 : vector<2x32xf32>
    %409 = arith.divf %407, %408 : vector<2x32xf32>
    %410 = vector.extract_strided_slice %403 {offsets = [0, 32], sizes = [2, 32], strides = [1, 1]} : vector<2x128xf32> to vector<2x32xf32>
    %411 = arith.negf %410 : vector<2x32xf32>
    %412 = math.exp %411 : vector<2x32xf32>
    %cst_93 = arith.constant 1.000000e+00 : f32
    %413 = vector.broadcast %cst_93 : f32 to vector<2x32xf32>
    %414 = arith.addf %413, %412 : vector<2x32xf32>
    %415 = arith.divf %413, %414 : vector<2x32xf32>
    %416 = vector.extract_strided_slice %403 {offsets = [0, 64], sizes = [2, 32], strides = [1, 1]} : vector<2x128xf32> to vector<2x32xf32>
    %417 = math.tanh %416 : vector<2x32xf32>
    %418 = vector.extract_strided_slice %403 {offsets = [0, 96], sizes = [2, 32], strides = [1, 1]} : vector<2x128xf32> to vector<2x32xf32>
    %419 = arith.negf %418 : vector<2x32xf32>
    %420 = math.exp %419 : vector<2x32xf32>
    %cst_94 = arith.constant 1.000000e+00 : f32
    %421 = vector.broadcast %cst_94 : f32 to vector<2x32xf32>
    %422 = arith.addf %421, %420 : vector<2x32xf32>
    %423 = arith.divf %421, %422 : vector<2x32xf32>
    %424 = arith.mulf %415, %367 : vector<2x32xf32>
    %425 = arith.mulf %409, %417 : vector<2x32xf32>
    %426 = arith.addf %424, %425 : vector<2x32xf32>
    %427 = math.tanh %426 : vector<2x32xf32>
    %428 = arith.mulf %423, %427 : vector<2x32xf32>
    %c7_i32 = arith.constant 7 : i32
    %429 = arith.index_cast %c7_i32 : i32 to index
    %c0_95 = arith.constant 0 : index
    %c0_96 = arith.constant 0 : index
    %430 = vector.load %arg17[%429, %c0_95, %c0_96] : memref<8x2x128xf32, #tpu.memory_space<vmem>>, vector<1x2x128xf32>
    %431 = vector.shape_cast %430 : vector<1x2x128xf32> to vector<2x128xf32>
    %cst_97 = arith.constant dense<0.000000e+00> : vector<2x128xf32>
    %432 = tpu.matmul %399, %9, %cst_97 {dimension_numbers = #tpu.dot_dimension_numbers<[1], [0], [0], [1], [0, 0, 1, 1], [], []>} : vector<2x32xf32>, vector<32x128xf32>, vector<2x128xf32> -> vector<2x128xf32>
    %433 = arith.addf %431, %432 : vector<2x128xf32>
    %434 = vector.extract_strided_slice %433 {offsets = [0, 0], sizes = [2, 32], strides = [1, 1]} : vector<2x128xf32> to vector<2x32xf32>
    %435 = arith.negf %434 : vector<2x32xf32>
    %436 = math.exp %435 : vector<2x32xf32>
    %cst_98 = arith.constant 1.000000e+00 : f32
    %437 = vector.broadcast %cst_98 : f32 to vector<2x32xf32>
    %438 = arith.addf %437, %436 : vector<2x32xf32>
    %439 = arith.divf %437, %438 : vector<2x32xf32>
    %440 = vector.extract_strided_slice %433 {offsets = [0, 32], sizes = [2, 32], strides = [1, 1]} : vector<2x128xf32> to vector<2x32xf32>
    %441 = arith.negf %440 : vector<2x32xf32>
    %442 = math.exp %441 : vector<2x32xf32>
    %cst_99 = arith.constant 1.000000e+00 : f32
    %443 = vector.broadcast %cst_99 : f32 to vector<2x32xf32>
    %444 = arith.addf %443, %442 : vector<2x32xf32>
    %445 = arith.divf %443, %444 : vector<2x32xf32>
    %446 = vector.extract_strided_slice %433 {offsets = [0, 64], sizes = [2, 32], strides = [1, 1]} : vector<2x128xf32> to vector<2x32xf32>
    %447 = math.tanh %446 : vector<2x32xf32>
    %448 = vector.extract_strided_slice %433 {offsets = [0, 96], sizes = [2, 32], strides = [1, 1]} : vector<2x128xf32> to vector<2x32xf32>
    %449 = arith.negf %448 : vector<2x32xf32>
    %450 = math.exp %449 : vector<2x32xf32>
    %cst_100 = arith.constant 1.000000e+00 : f32
    %451 = vector.broadcast %cst_100 : f32 to vector<2x32xf32>
    %452 = arith.addf %451, %450 : vector<2x32xf32>
    %453 = arith.divf %451, %452 : vector<2x32xf32>
    %454 = arith.mulf %445, %397 : vector<2x32xf32>
    %455 = arith.mulf %439, %447 : vector<2x32xf32>
    %456 = arith.addf %454, %455 : vector<2x32xf32>
    %457 = math.tanh %456 : vector<2x32xf32>
    %458 = arith.mulf %453, %457 : vector<2x32xf32>
    %cst_101 = arith.constant dense<0.000000e+00> : vector<2x128xf32>
    %459 = tpu.matmul %458, %10, %cst_101 {dimension_numbers = #tpu.dot_dimension_numbers<[1], [0], [0], [1], [0, 0, 1, 1], [], []>} : vector<2x32xf32>, vector<32x128xf32>, vector<2x128xf32> -> vector<2x128xf32>
    %cst_102 = arith.constant dense<0.000000e+00> : vector<2x128xf32>
    %460 = tpu.matmul %428, %11, %cst_102 {dimension_numbers = #tpu.dot_dimension_numbers<[1], [0], [0], [1], [0, 0, 1, 1], [], []>} : vector<2x32xf32>, vector<32x128xf32>, vector<2x128xf32> -> vector<2x128xf32>
    %461 = arith.addf %459, %460 : vector<2x128xf32>
    %462 = arith.addf %461, %14 : vector<2x128xf32>
    %463 = vector.extract_strided_slice %462 {offsets = [0, 0], sizes = [2, 32], strides = [1, 1]} : vector<2x128xf32> to vector<2x32xf32>
    %464 = arith.negf %463 : vector<2x32xf32>
    %465 = math.exp %464 : vector<2x32xf32>
    %cst_103 = arith.constant 1.000000e+00 : f32
    %466 = vector.broadcast %cst_103 : f32 to vector<2x32xf32>
    %467 = arith.addf %466, %465 : vector<2x32xf32>
    %468 = arith.divf %466, %467 : vector<2x32xf32>
    %469 = vector.extract_strided_slice %462 {offsets = [0, 32], sizes = [2, 32], strides = [1, 1]} : vector<2x128xf32> to vector<2x32xf32>
    %470 = arith.negf %469 : vector<2x32xf32>
    %471 = math.exp %470 : vector<2x32xf32>
    %cst_104 = arith.constant 1.000000e+00 : f32
    %472 = vector.broadcast %cst_104 : f32 to vector<2x32xf32>
    %473 = arith.addf %472, %471 : vector<2x32xf32>
    %474 = arith.divf %472, %473 : vector<2x32xf32>
    %475 = vector.extract_strided_slice %462 {offsets = [0, 64], sizes = [2, 32], strides = [1, 1]} : vector<2x128xf32> to vector<2x32xf32>
    %476 = math.tanh %475 : vector<2x32xf32>
    %477 = vector.extract_strided_slice %462 {offsets = [0, 96], sizes = [2, 32], strides = [1, 1]} : vector<2x128xf32> to vector<2x32xf32>
    %478 = arith.negf %477 : vector<2x32xf32>
    %479 = math.exp %478 : vector<2x32xf32>
    %cst_105 = arith.constant 1.000000e+00 : f32
    %480 = vector.broadcast %cst_105 : f32 to vector<2x32xf32>
    %481 = arith.addf %480, %479 : vector<2x32xf32>
    %482 = arith.divf %480, %481 : vector<2x32xf32>
    %483 = arith.mulf %474, %426 : vector<2x32xf32>
    %484 = arith.mulf %468, %476 : vector<2x32xf32>
    %485 = arith.addf %483, %484 : vector<2x32xf32>
    %486 = math.tanh %485 : vector<2x32xf32>
    %487 = arith.mulf %482, %486 : vector<2x32xf32>
    %c8_i32 = arith.constant 8 : i32
    %cst_106 = arith.constant dense<0.000000e+00> : vector<2xf32>
    %488 = vector.multi_reduction <add>, %487, %cst_106 [1] : vector<2x32xf32> to vector<2xf32>
    %489 = vector.shape_cast %488 : vector<2xf32> to vector<2x1xf32>
    %cst_107 = arith.constant 3.200000e+01 : f32
    %490 = vector.broadcast %cst_107 : f32 to vector<2x1xf32>
    %491 = arith.divf %489, %490 : vector<2x1xf32>
    %492 = vector.broadcast %491 : vector<2x1xf32> to vector<2x32xf32>
    %493 = arith.subf %487, %492 : vector<2x32xf32>
    %494 = arith.mulf %493, %493 : vector<2x32xf32>
    %cst_108 = arith.constant dense<0.000000e+00> : vector<2xf32>
    %495 = vector.multi_reduction <add>, %494, %cst_108 [1] : vector<2x32xf32> to vector<2xf32>
    %496 = vector.shape_cast %495 : vector<2xf32> to vector<2x1xf32>
    %cst_109 = arith.constant 3.200000e+01 : f32
    %497 = vector.broadcast %cst_109 : f32 to vector<2x1xf32>
    %498 = arith.divf %496, %497 : vector<2x1xf32>
    %499 = vector.broadcast %491 : vector<2x1xf32> to vector<2x32xf32>
    %500 = arith.subf %487, %499 : vector<2x32xf32>
    %cst_110 = arith.constant 9.99999974E-6 : f32
    %501 = vector.broadcast %cst_110 : f32 to vector<2x1xf32>
    %502 = arith.addf %498, %501 : vector<2x1xf32>
    %503 = math.rsqrt %502 : vector<2x1xf32>
    %504 = vector.broadcast %503 : vector<2x1xf32> to vector<2x32xf32>
    %505 = arith.mulf %500, %504 : vector<2x32xf32>
    %c0_111 = arith.constant 0 : index
    %c0_112 = arith.constant 0 : index
    %506 = vector.load %arg7[%c0_111, %c0_112] : memref<1x32xf32, #tpu.memory_space<vmem>>, vector<1x32xf32>
    %507 = vector.broadcast %506 : vector<1x32xf32> to vector<2x32xf32>
    %508 = arith.mulf %505, %507 : vector<2x32xf32>
    %c0_113 = arith.constant 0 : index
    %c0_114 = arith.constant 0 : index
    %509 = vector.load %arg8[%c0_113, %c0_114] : memref<1x32xf32, #tpu.memory_space<vmem>>, vector<1x32xf32>
    %510 = vector.broadcast %509 : vector<1x32xf32> to vector<2x32xf32>
    %511 = arith.addf %508, %510 : vector<2x32xf32>
    %c0_115 = arith.constant 0 : index
    %c0_116 = arith.constant 0 : index
    %512 = vector.load %arg9[%c0_115, %c0_116] : memref<32x8xf32, #tpu.memory_space<vmem>>, vector<32x8xf32>
    %cst_117 = arith.constant dense<0.000000e+00> : vector<2x8xf32>
    %513 = tpu.matmul %511, %512, %cst_117 {dimension_numbers = #tpu.dot_dimension_numbers<[1], [0], [0], [1], [0, 0, 1, 1], [], []>} : vector<2x32xf32>, vector<32x8xf32>, vector<2x8xf32> -> vector<2x8xf32>
    %c0_118 = arith.constant 0 : index
    %c0_119 = arith.constant 0 : index
    %514 = vector.load %arg10[%c0_118, %c0_119] : memref<1x8xf32, #tpu.memory_space<vmem>>, vector<1x8xf32>
    %515 = vector.broadcast %514 : vector<1x8xf32> to vector<2x8xf32>
    %516 = arith.addf %513, %515 : vector<2x8xf32>
    %c0_120 = arith.constant 0 : index
    %c0_121 = arith.constant 0 : index
    %517 = vector.load %arg11[%c0_120, %c0_121] : memref<32x8xf32, #tpu.memory_space<vmem>>, vector<32x8xf32>
    %cst_122 = arith.constant dense<0.000000e+00> : vector<2x8xf32>
    %518 = tpu.matmul %511, %517, %cst_122 {dimension_numbers = #tpu.dot_dimension_numbers<[1], [0], [0], [1], [0, 0, 1, 1], [], []>} : vector<2x32xf32>, vector<32x8xf32>, vector<2x8xf32> -> vector<2x8xf32>
    %c0_123 = arith.constant 0 : index
    %c0_124 = arith.constant 0 : index
    %519 = vector.load %arg12[%c0_123, %c0_124] : memref<1x8xf32, #tpu.memory_space<vmem>>, vector<1x8xf32>
    %520 = vector.broadcast %519 : vector<1x8xf32> to vector<2x8xf32>
    %521 = arith.addf %518, %520 : vector<2x8xf32>
    %c0_125 = arith.constant 0 : index
    %c0_126 = arith.constant 0 : index
    %522 = vector.load %arg14[%c0_125, %c0_126] : memref<2x8xf32, #tpu.memory_space<vmem>>, vector<2x8xf32>
    tpu.vector_store %arg14[%c0_125, %c0_126], %516 {strides = array<i32>} : memref<2x8xf32, #tpu.memory_space<vmem>>, vector<2x8xf32>,
    %c0_127 = arith.constant 0 : index
    %c0_128 = arith.constant 0 : index
    %523 = vector.load %arg15[%c0_127, %c0_128] : memref<2x8xf32, #tpu.memory_space<vmem>>, vector<2x8xf32>
    tpu.vector_store %arg15[%c0_127, %c0_128], %521 {strides = array<i32>} : memref<2x8xf32, #tpu.memory_space<vmem>>, vector<2x8xf32>,
    %c0_129 = arith.constant 0 : index
    %c0_130 = arith.constant 0 : index
    %524 = vector.load %arg13[%c0_129, %c0_130] : memref<2x8xf32, #tpu.memory_space<vmem>>, vector<2x8xf32>
    %cst_131 = arith.constant 5.000000e-01 : f32
    %525 = vector.broadcast %cst_131 : f32 to vector<2x8xf32>
    %526 = arith.mulf %525, %521 : vector<2x8xf32>
    %527 = math.exp %526 : vector<2x8xf32>
    %528 = arith.mulf %524, %527 : vector<2x8xf32>
    %529 = arith.addf %516, %528 : vector<2x8xf32>
    %c0_132 = arith.constant 0 : index
    %c0_133 = arith.constant 0 : index
    %530 = vector.load %arg16[%c0_132, %c0_133] : memref<2x8xf32, #tpu.memory_space<vmem>>, vector<2x8xf32>
    tpu.vector_store %arg16[%c0_132, %c0_133], %529 {strides = array<i32>} : memref<2x8xf32, #tpu.memory_space<vmem>>, vector<2x8xf32>,
    return
  }
}

module attributes {stable_mosaic.version = 11 : i64} {
  func.func @decoder_lstm_kernel(%arg0: memref<8x2x32xf32, #tpu.memory_space<vmem>>, %arg1: memref<2x8xf32, #tpu.memory_space<vmem>>, %arg2: memref<32x128xf32, #tpu.memory_space<vmem>>, %arg3: memref<8x128xf32, #tpu.memory_space<vmem>>, %arg4: memref<32x128xf32, #tpu.memory_space<vmem>>, %arg5: memref<1x128xf32, #tpu.memory_space<vmem>>, %arg6: memref<32x128xf32, #tpu.memory_space<vmem>>, %arg7: memref<32x128xf32, #tpu.memory_space<vmem>>, %arg8: memref<1x128xf32, #tpu.memory_space<vmem>>, %arg9: memref<8x2x32xf32, #tpu.memory_space<vmem>>, %arg10: memref<8x2x128xf32, #tpu.memory_space<vmem>>) attributes {dimension_semantics = [], scalar_prefetch = 0 : i64, scratch_operands = 1 : i64, tpu.core_type = #tpu.core_type<tc>} {
    %c0 = arith.constant 0 : index
    %c0_0 = arith.constant 0 : index
    %0 = vector.load %arg1[%c0, %c0_0] : memref<2x8xf32, #tpu.memory_space<vmem>>, vector<2x8xf32>
    %c0_1 = arith.constant 0 : index
    %c0_2 = arith.constant 0 : index
    %1 = vector.load %arg3[%c0_1, %c0_2] : memref<8x128xf32, #tpu.memory_space<vmem>>, vector<8x128xf32>
    %cst = arith.constant dense<0.000000e+00> : vector<2x128xf32>
    %2 = tpu.matmul %0, %1, %cst {dimension_numbers = #tpu.dot_dimension_numbers<[1], [0], [0], [1], [0, 0, 1, 1], [], []>} : vector<2x8xf32>, vector<8x128xf32>, vector<2x128xf32> -> vector<2x128xf32>
    %c0_3 = arith.constant 0 : index
    %c0_4 = arith.constant 0 : index
    %3 = vector.load %arg5[%c0_3, %c0_4] : memref<1x128xf32, #tpu.memory_space<vmem>>, vector<1x128xf32>
    %4 = vector.broadcast %3 : vector<1x128xf32> to vector<2x128xf32>
    %5 = arith.addf %2, %4 : vector<2x128xf32>
    %c0_5 = arith.constant 0 : index
    %c0_6 = arith.constant 0 : index
    %c0_7 = arith.constant 0 : index
    %6 = vector.load %arg0[%c0_5, %c0_6, %c0_7] : memref<8x2x32xf32, #tpu.memory_space<vmem>>, vector<8x2x32xf32>
    %7 = vector.shape_cast %6 : vector<8x2x32xf32> to vector<16x32xf32>
    %c0_8 = arith.constant 0 : index
    %c0_9 = arith.constant 0 : index
    %8 = vector.load %arg2[%c0_8, %c0_9] : memref<32x128xf32, #tpu.memory_space<vmem>>, vector<32x128xf32>
    %cst_10 = arith.constant dense<0.000000e+00> : vector<16x128xf32>
    %9 = tpu.matmul %7, %8, %cst_10 {dimension_numbers = #tpu.dot_dimension_numbers<[1], [0], [0], [1], [0, 0, 1, 1], [], []>} : vector<16x32xf32>, vector<32x128xf32>, vector<16x128xf32> -> vector<16x128xf32>
    %10 = vector.shape_cast %9 : vector<16x128xf32> to vector<8x2x128xf32>
    %11 = vector.shape_cast %5 : vector<2x128xf32> to vector<1x2x128xf32>
    %12 = vector.broadcast %11 : vector<1x2x128xf32> to vector<8x2x128xf32>
    %13 = arith.addf %10, %12 : vector<8x2x128xf32>
    %c0_11 = arith.constant 0 : index
    %c0_12 = arith.constant 0 : index
    %c0_13 = arith.constant 0 : index
    %14 = vector.load %arg10[%c0_11, %c0_12, %c0_13] : memref<8x2x128xf32, #tpu.memory_space<vmem>>, vector<8x2x128xf32>
    tpu.vector_store %arg10[%c0_11, %c0_12, %c0_13], %13 {strides = array<i32>} : memref<8x2x128xf32, #tpu.memory_space<vmem>>, vector<8x2x128xf32>,
    %c0_14 = arith.constant 0 : index
    %c0_15 = arith.constant 0 : index
    %15 = vector.load %arg4[%c0_14, %c0_15] : memref<32x128xf32, #tpu.memory_space<vmem>>, vector<32x128xf32>
    %c0_16 = arith.constant 0 : index
    %c0_17 = arith.constant 0 : index
    %16 = vector.load %arg6[%c0_16, %c0_17] : memref<32x128xf32, #tpu.memory_space<vmem>>, vector<32x128xf32>
    %c0_18 = arith.constant 0 : index
    %c0_19 = arith.constant 0 : index
    %17 = vector.load %arg7[%c0_18, %c0_19] : memref<32x128xf32, #tpu.memory_space<vmem>>, vector<32x128xf32>
    %c0_20 = arith.constant 0 : index
    %c0_21 = arith.constant 0 : index
    %18 = vector.load %arg8[%c0_20, %c0_21] : memref<1x128xf32, #tpu.memory_space<vmem>>, vector<1x128xf32>
    %19 = vector.shape_cast %18 : vector<1x128xf32> to vector<1x128xf32>
    %20 = vector.broadcast %19 : vector<1x128xf32> to vector<2x128xf32>
    %cst_22 = arith.constant 0.000000e+00 : f32
    %21 = vector.broadcast %cst_22 : f32 to vector<2x32xf32>
    %c0_i32 = arith.constant 0 : i32
    %22 = arith.index_cast %c0_i32 : i32 to index
    %c0_23 = arith.constant 0 : index
    %c0_24 = arith.constant 0 : index
    %23 = vector.load %arg10[%22, %c0_23, %c0_24] : memref<8x2x128xf32, #tpu.memory_space<vmem>>, vector<1x2x128xf32>
    %24 = vector.shape_cast %23 : vector<1x2x128xf32> to vector<2x128xf32>
    %cst_25 = arith.constant dense<0.000000e+00> : vector<2x128xf32>
    %25 = tpu.matmul %21, %15, %cst_25 {dimension_numbers = #tpu.dot_dimension_numbers<[1], [0], [0], [1], [0, 0, 1, 1], [], []>} : vector<2x32xf32>, vector<32x128xf32>, vector<2x128xf32> -> vector<2x128xf32>
    %26 = arith.addf %24, %25 : vector<2x128xf32>
    %27 = vector.extract_strided_slice %26 {offsets = [0, 0], sizes = [2, 32], strides = [1, 1]} : vector<2x128xf32> to vector<2x32xf32>
    %28 = arith.negf %27 : vector<2x32xf32>
    %29 = math.exp %28 : vector<2x32xf32>
    %cst_26 = arith.constant 1.000000e+00 : f32
    %30 = vector.broadcast %cst_26 : f32 to vector<2x32xf32>
    %31 = arith.addf %30, %29 : vector<2x32xf32>
    %32 = arith.divf %30, %31 : vector<2x32xf32>
    %33 = vector.extract_strided_slice %26 {offsets = [0, 32], sizes = [2, 32], strides = [1, 1]} : vector<2x128xf32> to vector<2x32xf32>
    %34 = arith.negf %33 : vector<2x32xf32>
    %35 = math.exp %34 : vector<2x32xf32>
    %cst_27 = arith.constant 1.000000e+00 : f32
    %36 = vector.broadcast %cst_27 : f32 to vector<2x32xf32>
    %37 = arith.addf %36, %35 : vector<2x32xf32>
    %38 = arith.divf %36, %37 : vector<2x32xf32>
    %39 = vector.extract_strided_slice %26 {offsets = [0, 64], sizes = [2, 32], strides = [1, 1]} : vector<2x128xf32> to vector<2x32xf32>
    %40 = math.tanh %39 : vector<2x32xf32>
    %41 = vector.extract_strided_slice %26 {offsets = [0, 96], sizes = [2, 32], strides = [1, 1]} : vector<2x128xf32> to vector<2x32xf32>
    %42 = arith.negf %41 : vector<2x32xf32>
    %43 = math.exp %42 : vector<2x32xf32>
    %cst_28 = arith.constant 1.000000e+00 : f32
    %44 = vector.broadcast %cst_28 : f32 to vector<2x32xf32>
    %45 = arith.addf %44, %43 : vector<2x32xf32>
    %46 = arith.divf %44, %45 : vector<2x32xf32>
    %47 = arith.mulf %38, %21 : vector<2x32xf32>
    %48 = arith.mulf %32, %40 : vector<2x32xf32>
    %49 = arith.addf %47, %48 : vector<2x32xf32>
    %50 = math.tanh %49 : vector<2x32xf32>
    %51 = arith.mulf %46, %50 : vector<2x32xf32>
    %cst_29 = arith.constant dense<0.000000e+00> : vector<2x128xf32>
    %52 = tpu.matmul %51, %16, %cst_29 {dimension_numbers = #tpu.dot_dimension_numbers<[1], [0], [0], [1], [0, 0, 1, 1], [], []>} : vector<2x32xf32>, vector<32x128xf32>, vector<2x128xf32> -> vector<2x128xf32>
    %cst_30 = arith.constant dense<0.000000e+00> : vector<2x128xf32>
    %53 = tpu.matmul %21, %17, %cst_30 {dimension_numbers = #tpu.dot_dimension_numbers<[1], [0], [0], [1], [0, 0, 1, 1], [], []>} : vector<2x32xf32>, vector<32x128xf32>, vector<2x128xf32> -> vector<2x128xf32>
    %54 = arith.addf %52, %53 : vector<2x128xf32>
    %55 = arith.addf %54, %20 : vector<2x128xf32>
    %56 = vector.extract_strided_slice %55 {offsets = [0, 0], sizes = [2, 32], strides = [1, 1]} : vector<2x128xf32> to vector<2x32xf32>
    %57 = arith.negf %56 : vector<2x32xf32>
    %58 = math.exp %57 : vector<2x32xf32>
    %cst_31 = arith.constant 1.000000e+00 : f32
    %59 = vector.broadcast %cst_31 : f32 to vector<2x32xf32>
    %60 = arith.addf %59, %58 : vector<2x32xf32>
    %61 = arith.divf %59, %60 : vector<2x32xf32>
    %62 = vector.extract_strided_slice %55 {offsets = [0, 32], sizes = [2, 32], strides = [1, 1]} : vector<2x128xf32> to vector<2x32xf32>
    %63 = arith.negf %62 : vector<2x32xf32>
    %64 = math.exp %63 : vector<2x32xf32>
    %cst_32 = arith.constant 1.000000e+00 : f32
    %65 = vector.broadcast %cst_32 : f32 to vector<2x32xf32>
    %66 = arith.addf %65, %64 : vector<2x32xf32>
    %67 = arith.divf %65, %66 : vector<2x32xf32>
    %68 = vector.extract_strided_slice %55 {offsets = [0, 64], sizes = [2, 32], strides = [1, 1]} : vector<2x128xf32> to vector<2x32xf32>
    %69 = math.tanh %68 : vector<2x32xf32>
    %70 = vector.extract_strided_slice %55 {offsets = [0, 96], sizes = [2, 32], strides = [1, 1]} : vector<2x128xf32> to vector<2x32xf32>
    %71 = arith.negf %70 : vector<2x32xf32>
    %72 = math.exp %71 : vector<2x32xf32>
    %cst_33 = arith.constant 1.000000e+00 : f32
    %73 = vector.broadcast %cst_33 : f32 to vector<2x32xf32>
    %74 = arith.addf %73, %72 : vector<2x32xf32>
    %75 = arith.divf %73, %74 : vector<2x32xf32>
    %76 = arith.mulf %67, %21 : vector<2x32xf32>
    %77 = arith.mulf %61, %69 : vector<2x32xf32>
    %78 = arith.addf %76, %77 : vector<2x32xf32>
    %79 = math.tanh %78 : vector<2x32xf32>
    %80 = arith.mulf %75, %79 : vector<2x32xf32>
    %81 = arith.index_cast %c0_i32 : i32 to index
    %c0_34 = arith.constant 0 : index
    %c0_35 = arith.constant 0 : index
    %82 = vector.load %arg9[%81, %c0_34, %c0_35] : memref<8x2x32xf32, #tpu.memory_space<vmem>>, vector<1x2x32xf32>
    %83 = vector.shape_cast %82 : vector<1x2x32xf32> to vector<2x32xf32>
    %84 = vector.shape_cast %80 : vector<2x32xf32> to vector<1x2x32xf32>
    tpu.vector_store %arg9[%81, %c0_34, %c0_35], %84 {strides = array<i32>} : memref<8x2x32xf32, #tpu.memory_space<vmem>>, vector<1x2x32xf32>,
    %c1_i32 = arith.constant 1 : i32
    %85 = arith.index_cast %c1_i32 : i32 to index
    %c0_36 = arith.constant 0 : index
    %c0_37 = arith.constant 0 : index
    %86 = vector.load %arg10[%85, %c0_36, %c0_37] : memref<8x2x128xf32, #tpu.memory_space<vmem>>, vector<1x2x128xf32>
    %87 = vector.shape_cast %86 : vector<1x2x128xf32> to vector<2x128xf32>
    %cst_38 = arith.constant dense<0.000000e+00> : vector<2x128xf32>
    %88 = tpu.matmul %51, %15, %cst_38 {dimension_numbers = #tpu.dot_dimension_numbers<[1], [0], [0], [1], [0, 0, 1, 1], [], []>} : vector<2x32xf32>, vector<32x128xf32>, vector<2x128xf32> -> vector<2x128xf32>
    %89 = arith.addf %87, %88 : vector<2x128xf32>
    %90 = vector.extract_strided_slice %89 {offsets = [0, 0], sizes = [2, 32], strides = [1, 1]} : vector<2x128xf32> to vector<2x32xf32>
    %91 = arith.negf %90 : vector<2x32xf32>
    %92 = math.exp %91 : vector<2x32xf32>
    %cst_39 = arith.constant 1.000000e+00 : f32
    %93 = vector.broadcast %cst_39 : f32 to vector<2x32xf32>
    %94 = arith.addf %93, %92 : vector<2x32xf32>
    %95 = arith.divf %93, %94 : vector<2x32xf32>
    %96 = vector.extract_strided_slice %89 {offsets = [0, 32], sizes = [2, 32], strides = [1, 1]} : vector<2x128xf32> to vector<2x32xf32>
    %97 = arith.negf %96 : vector<2x32xf32>
    %98 = math.exp %97 : vector<2x32xf32>
    %cst_40 = arith.constant 1.000000e+00 : f32
    %99 = vector.broadcast %cst_40 : f32 to vector<2x32xf32>
    %100 = arith.addf %99, %98 : vector<2x32xf32>
    %101 = arith.divf %99, %100 : vector<2x32xf32>
    %102 = vector.extract_strided_slice %89 {offsets = [0, 64], sizes = [2, 32], strides = [1, 1]} : vector<2x128xf32> to vector<2x32xf32>
    %103 = math.tanh %102 : vector<2x32xf32>
    %104 = vector.extract_strided_slice %89 {offsets = [0, 96], sizes = [2, 32], strides = [1, 1]} : vector<2x128xf32> to vector<2x32xf32>
    %105 = arith.negf %104 : vector<2x32xf32>
    %106 = math.exp %105 : vector<2x32xf32>
    %cst_41 = arith.constant 1.000000e+00 : f32
    %107 = vector.broadcast %cst_41 : f32 to vector<2x32xf32>
    %108 = arith.addf %107, %106 : vector<2x32xf32>
    %109 = arith.divf %107, %108 : vector<2x32xf32>
    %110 = arith.mulf %101, %49 : vector<2x32xf32>
    %111 = arith.mulf %95, %103 : vector<2x32xf32>
    %112 = arith.addf %110, %111 : vector<2x32xf32>
    %113 = math.tanh %112 : vector<2x32xf32>
    %114 = arith.mulf %109, %113 : vector<2x32xf32>
    %cst_42 = arith.constant dense<0.000000e+00> : vector<2x128xf32>
    %115 = tpu.matmul %114, %16, %cst_42 {dimension_numbers = #tpu.dot_dimension_numbers<[1], [0], [0], [1], [0, 0, 1, 1], [], []>} : vector<2x32xf32>, vector<32x128xf32>, vector<2x128xf32> -> vector<2x128xf32>
    %cst_43 = arith.constant dense<0.000000e+00> : vector<2x128xf32>
    %116 = tpu.matmul %80, %17, %cst_43 {dimension_numbers = #tpu.dot_dimension_numbers<[1], [0], [0], [1], [0, 0, 1, 1], [], []>} : vector<2x32xf32>, vector<32x128xf32>, vector<2x128xf32> -> vector<2x128xf32>
    %117 = arith.addf %115, %116 : vector<2x128xf32>
    %118 = arith.addf %117, %20 : vector<2x128xf32>
    %119 = vector.extract_strided_slice %118 {offsets = [0, 0], sizes = [2, 32], strides = [1, 1]} : vector<2x128xf32> to vector<2x32xf32>
    %120 = arith.negf %119 : vector<2x32xf32>
    %121 = math.exp %120 : vector<2x32xf32>
    %cst_44 = arith.constant 1.000000e+00 : f32
    %122 = vector.broadcast %cst_44 : f32 to vector<2x32xf32>
    %123 = arith.addf %122, %121 : vector<2x32xf32>
    %124 = arith.divf %122, %123 : vector<2x32xf32>
    %125 = vector.extract_strided_slice %118 {offsets = [0, 32], sizes = [2, 32], strides = [1, 1]} : vector<2x128xf32> to vector<2x32xf32>
    %126 = arith.negf %125 : vector<2x32xf32>
    %127 = math.exp %126 : vector<2x32xf32>
    %cst_45 = arith.constant 1.000000e+00 : f32
    %128 = vector.broadcast %cst_45 : f32 to vector<2x32xf32>
    %129 = arith.addf %128, %127 : vector<2x32xf32>
    %130 = arith.divf %128, %129 : vector<2x32xf32>
    %131 = vector.extract_strided_slice %118 {offsets = [0, 64], sizes = [2, 32], strides = [1, 1]} : vector<2x128xf32> to vector<2x32xf32>
    %132 = math.tanh %131 : vector<2x32xf32>
    %133 = vector.extract_strided_slice %118 {offsets = [0, 96], sizes = [2, 32], strides = [1, 1]} : vector<2x128xf32> to vector<2x32xf32>
    %134 = arith.negf %133 : vector<2x32xf32>
    %135 = math.exp %134 : vector<2x32xf32>
    %cst_46 = arith.constant 1.000000e+00 : f32
    %136 = vector.broadcast %cst_46 : f32 to vector<2x32xf32>
    %137 = arith.addf %136, %135 : vector<2x32xf32>
    %138 = arith.divf %136, %137 : vector<2x32xf32>
    %139 = arith.mulf %130, %78 : vector<2x32xf32>
    %140 = arith.mulf %124, %132 : vector<2x32xf32>
    %141 = arith.addf %139, %140 : vector<2x32xf32>
    %142 = math.tanh %141 : vector<2x32xf32>
    %143 = arith.mulf %138, %142 : vector<2x32xf32>
    %144 = arith.index_cast %c1_i32 : i32 to index
    %c0_47 = arith.constant 0 : index
    %c0_48 = arith.constant 0 : index
    %145 = vector.load %arg9[%144, %c0_47, %c0_48] : memref<8x2x32xf32, #tpu.memory_space<vmem>>, vector<1x2x32xf32>
    %146 = vector.shape_cast %145 : vector<1x2x32xf32> to vector<2x32xf32>
    %147 = vector.shape_cast %143 : vector<2x32xf32> to vector<1x2x32xf32>
    tpu.vector_store %arg9[%144, %c0_47, %c0_48], %147 {strides = array<i32>} : memref<8x2x32xf32, #tpu.memory_space<vmem>>, vector<1x2x32xf32>,
    %c2_i32 = arith.constant 2 : i32
    %148 = arith.index_cast %c2_i32 : i32 to index
    %c0_49 = arith.constant 0 : index
    %c0_50 = arith.constant 0 : index
    %149 = vector.load %arg10[%148, %c0_49, %c0_50] : memref<8x2x128xf32, #tpu.memory_space<vmem>>, vector<1x2x128xf32>
    %150 = vector.shape_cast %149 : vector<1x2x128xf32> to vector<2x128xf32>
    %cst_51 = arith.constant dense<0.000000e+00> : vector<2x128xf32>
    %151 = tpu.matmul %114, %15, %cst_51 {dimension_numbers = #tpu.dot_dimension_numbers<[1], [0], [0], [1], [0, 0, 1, 1], [], []>} : vector<2x32xf32>, vector<32x128xf32>, vector<2x128xf32> -> vector<2x128xf32>
    %152 = arith.addf %150, %151 : vector<2x128xf32>
    %153 = vector.extract_strided_slice %152 {offsets = [0, 0], sizes = [2, 32], strides = [1, 1]} : vector<2x128xf32> to vector<2x32xf32>
    %154 = arith.negf %153 : vector<2x32xf32>
    %155 = math.exp %154 : vector<2x32xf32>
    %cst_52 = arith.constant 1.000000e+00 : f32
    %156 = vector.broadcast %cst_52 : f32 to vector<2x32xf32>
    %157 = arith.addf %156, %155 : vector<2x32xf32>
    %158 = arith.divf %156, %157 : vector<2x32xf32>
    %159 = vector.extract_strided_slice %152 {offsets = [0, 32], sizes = [2, 32], strides = [1, 1]} : vector<2x128xf32> to vector<2x32xf32>
    %160 = arith.negf %159 : vector<2x32xf32>
    %161 = math.exp %160 : vector<2x32xf32>
    %cst_53 = arith.constant 1.000000e+00 : f32
    %162 = vector.broadcast %cst_53 : f32 to vector<2x32xf32>
    %163 = arith.addf %162, %161 : vector<2x32xf32>
    %164 = arith.divf %162, %163 : vector<2x32xf32>
    %165 = vector.extract_strided_slice %152 {offsets = [0, 64], sizes = [2, 32], strides = [1, 1]} : vector<2x128xf32> to vector<2x32xf32>
    %166 = math.tanh %165 : vector<2x32xf32>
    %167 = vector.extract_strided_slice %152 {offsets = [0, 96], sizes = [2, 32], strides = [1, 1]} : vector<2x128xf32> to vector<2x32xf32>
    %168 = arith.negf %167 : vector<2x32xf32>
    %169 = math.exp %168 : vector<2x32xf32>
    %cst_54 = arith.constant 1.000000e+00 : f32
    %170 = vector.broadcast %cst_54 : f32 to vector<2x32xf32>
    %171 = arith.addf %170, %169 : vector<2x32xf32>
    %172 = arith.divf %170, %171 : vector<2x32xf32>
    %173 = arith.mulf %164, %112 : vector<2x32xf32>
    %174 = arith.mulf %158, %166 : vector<2x32xf32>
    %175 = arith.addf %173, %174 : vector<2x32xf32>
    %176 = math.tanh %175 : vector<2x32xf32>
    %177 = arith.mulf %172, %176 : vector<2x32xf32>
    %cst_55 = arith.constant dense<0.000000e+00> : vector<2x128xf32>
    %178 = tpu.matmul %177, %16, %cst_55 {dimension_numbers = #tpu.dot_dimension_numbers<[1], [0], [0], [1], [0, 0, 1, 1], [], []>} : vector<2x32xf32>, vector<32x128xf32>, vector<2x128xf32> -> vector<2x128xf32>
    %cst_56 = arith.constant dense<0.000000e+00> : vector<2x128xf32>
    %179 = tpu.matmul %143, %17, %cst_56 {dimension_numbers = #tpu.dot_dimension_numbers<[1], [0], [0], [1], [0, 0, 1, 1], [], []>} : vector<2x32xf32>, vector<32x128xf32>, vector<2x128xf32> -> vector<2x128xf32>
    %180 = arith.addf %178, %179 : vector<2x128xf32>
    %181 = arith.addf %180, %20 : vector<2x128xf32>
    %182 = vector.extract_strided_slice %181 {offsets = [0, 0], sizes = [2, 32], strides = [1, 1]} : vector<2x128xf32> to vector<2x32xf32>
    %183 = arith.negf %182 : vector<2x32xf32>
    %184 = math.exp %183 : vector<2x32xf32>
    %cst_57 = arith.constant 1.000000e+00 : f32
    %185 = vector.broadcast %cst_57 : f32 to vector<2x32xf32>
    %186 = arith.addf %185, %184 : vector<2x32xf32>
    %187 = arith.divf %185, %186 : vector<2x32xf32>
    %188 = vector.extract_strided_slice %181 {offsets = [0, 32], sizes = [2, 32], strides = [1, 1]} : vector<2x128xf32> to vector<2x32xf32>
    %189 = arith.negf %188 : vector<2x32xf32>
    %190 = math.exp %189 : vector<2x32xf32>
    %cst_58 = arith.constant 1.000000e+00 : f32
    %191 = vector.broadcast %cst_58 : f32 to vector<2x32xf32>
    %192 = arith.addf %191, %190 : vector<2x32xf32>
    %193 = arith.divf %191, %192 : vector<2x32xf32>
    %194 = vector.extract_strided_slice %181 {offsets = [0, 64], sizes = [2, 32], strides = [1, 1]} : vector<2x128xf32> to vector<2x32xf32>
    %195 = math.tanh %194 : vector<2x32xf32>
    %196 = vector.extract_strided_slice %181 {offsets = [0, 96], sizes = [2, 32], strides = [1, 1]} : vector<2x128xf32> to vector<2x32xf32>
    %197 = arith.negf %196 : vector<2x32xf32>
    %198 = math.exp %197 : vector<2x32xf32>
    %cst_59 = arith.constant 1.000000e+00 : f32
    %199 = vector.broadcast %cst_59 : f32 to vector<2x32xf32>
    %200 = arith.addf %199, %198 : vector<2x32xf32>
    %201 = arith.divf %199, %200 : vector<2x32xf32>
    %202 = arith.mulf %193, %141 : vector<2x32xf32>
    %203 = arith.mulf %187, %195 : vector<2x32xf32>
    %204 = arith.addf %202, %203 : vector<2x32xf32>
    %205 = math.tanh %204 : vector<2x32xf32>
    %206 = arith.mulf %201, %205 : vector<2x32xf32>
    %207 = arith.index_cast %c2_i32 : i32 to index
    %c0_60 = arith.constant 0 : index
    %c0_61 = arith.constant 0 : index
    %208 = vector.load %arg9[%207, %c0_60, %c0_61] : memref<8x2x32xf32, #tpu.memory_space<vmem>>, vector<1x2x32xf32>
    %209 = vector.shape_cast %208 : vector<1x2x32xf32> to vector<2x32xf32>
    %210 = vector.shape_cast %206 : vector<2x32xf32> to vector<1x2x32xf32>
    tpu.vector_store %arg9[%207, %c0_60, %c0_61], %210 {strides = array<i32>} : memref<8x2x32xf32, #tpu.memory_space<vmem>>, vector<1x2x32xf32>,
    %c3_i32 = arith.constant 3 : i32
    %211 = arith.index_cast %c3_i32 : i32 to index
    %c0_62 = arith.constant 0 : index
    %c0_63 = arith.constant 0 : index
    %212 = vector.load %arg10[%211, %c0_62, %c0_63] : memref<8x2x128xf32, #tpu.memory_space<vmem>>, vector<1x2x128xf32>
    %213 = vector.shape_cast %212 : vector<1x2x128xf32> to vector<2x128xf32>
    %cst_64 = arith.constant dense<0.000000e+00> : vector<2x128xf32>
    %214 = tpu.matmul %177, %15, %cst_64 {dimension_numbers = #tpu.dot_dimension_numbers<[1], [0], [0], [1], [0, 0, 1, 1], [], []>} : vector<2x32xf32>, vector<32x128xf32>, vector<2x128xf32> -> vector<2x128xf32>
    %215 = arith.addf %213, %214 : vector<2x128xf32>
    %216 = vector.extract_strided_slice %215 {offsets = [0, 0], sizes = [2, 32], strides = [1, 1]} : vector<2x128xf32> to vector<2x32xf32>
    %217 = arith.negf %216 : vector<2x32xf32>
    %218 = math.exp %217 : vector<2x32xf32>
    %cst_65 = arith.constant 1.000000e+00 : f32
    %219 = vector.broadcast %cst_65 : f32 to vector<2x32xf32>
    %220 = arith.addf %219, %218 : vector<2x32xf32>
    %221 = arith.divf %219, %220 : vector<2x32xf32>
    %222 = vector.extract_strided_slice %215 {offsets = [0, 32], sizes = [2, 32], strides = [1, 1]} : vector<2x128xf32> to vector<2x32xf32>
    %223 = arith.negf %222 : vector<2x32xf32>
    %224 = math.exp %223 : vector<2x32xf32>
    %cst_66 = arith.constant 1.000000e+00 : f32
    %225 = vector.broadcast %cst_66 : f32 to vector<2x32xf32>
    %226 = arith.addf %225, %224 : vector<2x32xf32>
    %227 = arith.divf %225, %226 : vector<2x32xf32>
    %228 = vector.extract_strided_slice %215 {offsets = [0, 64], sizes = [2, 32], strides = [1, 1]} : vector<2x128xf32> to vector<2x32xf32>
    %229 = math.tanh %228 : vector<2x32xf32>
    %230 = vector.extract_strided_slice %215 {offsets = [0, 96], sizes = [2, 32], strides = [1, 1]} : vector<2x128xf32> to vector<2x32xf32>
    %231 = arith.negf %230 : vector<2x32xf32>
    %232 = math.exp %231 : vector<2x32xf32>
    %cst_67 = arith.constant 1.000000e+00 : f32
    %233 = vector.broadcast %cst_67 : f32 to vector<2x32xf32>
    %234 = arith.addf %233, %232 : vector<2x32xf32>
    %235 = arith.divf %233, %234 : vector<2x32xf32>
    %236 = arith.mulf %227, %175 : vector<2x32xf32>
    %237 = arith.mulf %221, %229 : vector<2x32xf32>
    %238 = arith.addf %236, %237 : vector<2x32xf32>
    %239 = math.tanh %238 : vector<2x32xf32>
    %240 = arith.mulf %235, %239 : vector<2x32xf32>
    %cst_68 = arith.constant dense<0.000000e+00> : vector<2x128xf32>
    %241 = tpu.matmul %240, %16, %cst_68 {dimension_numbers = #tpu.dot_dimension_numbers<[1], [0], [0], [1], [0, 0, 1, 1], [], []>} : vector<2x32xf32>, vector<32x128xf32>, vector<2x128xf32> -> vector<2x128xf32>
    %cst_69 = arith.constant dense<0.000000e+00> : vector<2x128xf32>
    %242 = tpu.matmul %206, %17, %cst_69 {dimension_numbers = #tpu.dot_dimension_numbers<[1], [0], [0], [1], [0, 0, 1, 1], [], []>} : vector<2x32xf32>, vector<32x128xf32>, vector<2x128xf32> -> vector<2x128xf32>
    %243 = arith.addf %241, %242 : vector<2x128xf32>
    %244 = arith.addf %243, %20 : vector<2x128xf32>
    %245 = vector.extract_strided_slice %244 {offsets = [0, 0], sizes = [2, 32], strides = [1, 1]} : vector<2x128xf32> to vector<2x32xf32>
    %246 = arith.negf %245 : vector<2x32xf32>
    %247 = math.exp %246 : vector<2x32xf32>
    %cst_70 = arith.constant 1.000000e+00 : f32
    %248 = vector.broadcast %cst_70 : f32 to vector<2x32xf32>
    %249 = arith.addf %248, %247 : vector<2x32xf32>
    %250 = arith.divf %248, %249 : vector<2x32xf32>
    %251 = vector.extract_strided_slice %244 {offsets = [0, 32], sizes = [2, 32], strides = [1, 1]} : vector<2x128xf32> to vector<2x32xf32>
    %252 = arith.negf %251 : vector<2x32xf32>
    %253 = math.exp %252 : vector<2x32xf32>
    %cst_71 = arith.constant 1.000000e+00 : f32
    %254 = vector.broadcast %cst_71 : f32 to vector<2x32xf32>
    %255 = arith.addf %254, %253 : vector<2x32xf32>
    %256 = arith.divf %254, %255 : vector<2x32xf32>
    %257 = vector.extract_strided_slice %244 {offsets = [0, 64], sizes = [2, 32], strides = [1, 1]} : vector<2x128xf32> to vector<2x32xf32>
    %258 = math.tanh %257 : vector<2x32xf32>
    %259 = vector.extract_strided_slice %244 {offsets = [0, 96], sizes = [2, 32], strides = [1, 1]} : vector<2x128xf32> to vector<2x32xf32>
    %260 = arith.negf %259 : vector<2x32xf32>
    %261 = math.exp %260 : vector<2x32xf32>
    %cst_72 = arith.constant 1.000000e+00 : f32
    %262 = vector.broadcast %cst_72 : f32 to vector<2x32xf32>
    %263 = arith.addf %262, %261 : vector<2x32xf32>
    %264 = arith.divf %262, %263 : vector<2x32xf32>
    %265 = arith.mulf %256, %204 : vector<2x32xf32>
    %266 = arith.mulf %250, %258 : vector<2x32xf32>
    %267 = arith.addf %265, %266 : vector<2x32xf32>
    %268 = math.tanh %267 : vector<2x32xf32>
    %269 = arith.mulf %264, %268 : vector<2x32xf32>
    %270 = arith.index_cast %c3_i32 : i32 to index
    %c0_73 = arith.constant 0 : index
    %c0_74 = arith.constant 0 : index
    %271 = vector.load %arg9[%270, %c0_73, %c0_74] : memref<8x2x32xf32, #tpu.memory_space<vmem>>, vector<1x2x32xf32>
    %272 = vector.shape_cast %271 : vector<1x2x32xf32> to vector<2x32xf32>
    %273 = vector.shape_cast %269 : vector<2x32xf32> to vector<1x2x32xf32>
    tpu.vector_store %arg9[%270, %c0_73, %c0_74], %273 {strides = array<i32>} : memref<8x2x32xf32, #tpu.memory_space<vmem>>, vector<1x2x32xf32>,
    %c4_i32 = arith.constant 4 : i32
    %274 = arith.index_cast %c4_i32 : i32 to index
    %c0_75 = arith.constant 0 : index
    %c0_76 = arith.constant 0 : index
    %275 = vector.load %arg10[%274, %c0_75, %c0_76] : memref<8x2x128xf32, #tpu.memory_space<vmem>>, vector<1x2x128xf32>
    %276 = vector.shape_cast %275 : vector<1x2x128xf32> to vector<2x128xf32>
    %cst_77 = arith.constant dense<0.000000e+00> : vector<2x128xf32>
    %277 = tpu.matmul %240, %15, %cst_77 {dimension_numbers = #tpu.dot_dimension_numbers<[1], [0], [0], [1], [0, 0, 1, 1], [], []>} : vector<2x32xf32>, vector<32x128xf32>, vector<2x128xf32> -> vector<2x128xf32>
    %278 = arith.addf %276, %277 : vector<2x128xf32>
    %279 = vector.extract_strided_slice %278 {offsets = [0, 0], sizes = [2, 32], strides = [1, 1]} : vector<2x128xf32> to vector<2x32xf32>
    %280 = arith.negf %279 : vector<2x32xf32>
    %281 = math.exp %280 : vector<2x32xf32>
    %cst_78 = arith.constant 1.000000e+00 : f32
    %282 = vector.broadcast %cst_78 : f32 to vector<2x32xf32>
    %283 = arith.addf %282, %281 : vector<2x32xf32>
    %284 = arith.divf %282, %283 : vector<2x32xf32>
    %285 = vector.extract_strided_slice %278 {offsets = [0, 32], sizes = [2, 32], strides = [1, 1]} : vector<2x128xf32> to vector<2x32xf32>
    %286 = arith.negf %285 : vector<2x32xf32>
    %287 = math.exp %286 : vector<2x32xf32>
    %cst_79 = arith.constant 1.000000e+00 : f32
    %288 = vector.broadcast %cst_79 : f32 to vector<2x32xf32>
    %289 = arith.addf %288, %287 : vector<2x32xf32>
    %290 = arith.divf %288, %289 : vector<2x32xf32>
    %291 = vector.extract_strided_slice %278 {offsets = [0, 64], sizes = [2, 32], strides = [1, 1]} : vector<2x128xf32> to vector<2x32xf32>
    %292 = math.tanh %291 : vector<2x32xf32>
    %293 = vector.extract_strided_slice %278 {offsets = [0, 96], sizes = [2, 32], strides = [1, 1]} : vector<2x128xf32> to vector<2x32xf32>
    %294 = arith.negf %293 : vector<2x32xf32>
    %295 = math.exp %294 : vector<2x32xf32>
    %cst_80 = arith.constant 1.000000e+00 : f32
    %296 = vector.broadcast %cst_80 : f32 to vector<2x32xf32>
    %297 = arith.addf %296, %295 : vector<2x32xf32>
    %298 = arith.divf %296, %297 : vector<2x32xf32>
    %299 = arith.mulf %290, %238 : vector<2x32xf32>
    %300 = arith.mulf %284, %292 : vector<2x32xf32>
    %301 = arith.addf %299, %300 : vector<2x32xf32>
    %302 = math.tanh %301 : vector<2x32xf32>
    %303 = arith.mulf %298, %302 : vector<2x32xf32>
    %cst_81 = arith.constant dense<0.000000e+00> : vector<2x128xf32>
    %304 = tpu.matmul %303, %16, %cst_81 {dimension_numbers = #tpu.dot_dimension_numbers<[1], [0], [0], [1], [0, 0, 1, 1], [], []>} : vector<2x32xf32>, vector<32x128xf32>, vector<2x128xf32> -> vector<2x128xf32>
    %cst_82 = arith.constant dense<0.000000e+00> : vector<2x128xf32>
    %305 = tpu.matmul %269, %17, %cst_82 {dimension_numbers = #tpu.dot_dimension_numbers<[1], [0], [0], [1], [0, 0, 1, 1], [], []>} : vector<2x32xf32>, vector<32x128xf32>, vector<2x128xf32> -> vector<2x128xf32>
    %306 = arith.addf %304, %305 : vector<2x128xf32>
    %307 = arith.addf %306, %20 : vector<2x128xf32>
    %308 = vector.extract_strided_slice %307 {offsets = [0, 0], sizes = [2, 32], strides = [1, 1]} : vector<2x128xf32> to vector<2x32xf32>
    %309 = arith.negf %308 : vector<2x32xf32>
    %310 = math.exp %309 : vector<2x32xf32>
    %cst_83 = arith.constant 1.000000e+00 : f32
    %311 = vector.broadcast %cst_83 : f32 to vector<2x32xf32>
    %312 = arith.addf %311, %310 : vector<2x32xf32>
    %313 = arith.divf %311, %312 : vector<2x32xf32>
    %314 = vector.extract_strided_slice %307 {offsets = [0, 32], sizes = [2, 32], strides = [1, 1]} : vector<2x128xf32> to vector<2x32xf32>
    %315 = arith.negf %314 : vector<2x32xf32>
    %316 = math.exp %315 : vector<2x32xf32>
    %cst_84 = arith.constant 1.000000e+00 : f32
    %317 = vector.broadcast %cst_84 : f32 to vector<2x32xf32>
    %318 = arith.addf %317, %316 : vector<2x32xf32>
    %319 = arith.divf %317, %318 : vector<2x32xf32>
    %320 = vector.extract_strided_slice %307 {offsets = [0, 64], sizes = [2, 32], strides = [1, 1]} : vector<2x128xf32> to vector<2x32xf32>
    %321 = math.tanh %320 : vector<2x32xf32>
    %322 = vector.extract_strided_slice %307 {offsets = [0, 96], sizes = [2, 32], strides = [1, 1]} : vector<2x128xf32> to vector<2x32xf32>
    %323 = arith.negf %322 : vector<2x32xf32>
    %324 = math.exp %323 : vector<2x32xf32>
    %cst_85 = arith.constant 1.000000e+00 : f32
    %325 = vector.broadcast %cst_85 : f32 to vector<2x32xf32>
    %326 = arith.addf %325, %324 : vector<2x32xf32>
    %327 = arith.divf %325, %326 : vector<2x32xf32>
    %328 = arith.mulf %319, %267 : vector<2x32xf32>
    %329 = arith.mulf %313, %321 : vector<2x32xf32>
    %330 = arith.addf %328, %329 : vector<2x32xf32>
    %331 = math.tanh %330 : vector<2x32xf32>
    %332 = arith.mulf %327, %331 : vector<2x32xf32>
    %333 = arith.index_cast %c4_i32 : i32 to index
    %c0_86 = arith.constant 0 : index
    %c0_87 = arith.constant 0 : index
    %334 = vector.load %arg9[%333, %c0_86, %c0_87] : memref<8x2x32xf32, #tpu.memory_space<vmem>>, vector<1x2x32xf32>
    %335 = vector.shape_cast %334 : vector<1x2x32xf32> to vector<2x32xf32>
    %336 = vector.shape_cast %332 : vector<2x32xf32> to vector<1x2x32xf32>
    tpu.vector_store %arg9[%333, %c0_86, %c0_87], %336 {strides = array<i32>} : memref<8x2x32xf32, #tpu.memory_space<vmem>>, vector<1x2x32xf32>,
    %c5_i32 = arith.constant 5 : i32
    %337 = arith.index_cast %c5_i32 : i32 to index
    %c0_88 = arith.constant 0 : index
    %c0_89 = arith.constant 0 : index
    %338 = vector.load %arg10[%337, %c0_88, %c0_89] : memref<8x2x128xf32, #tpu.memory_space<vmem>>, vector<1x2x128xf32>
    %339 = vector.shape_cast %338 : vector<1x2x128xf32> to vector<2x128xf32>
    %cst_90 = arith.constant dense<0.000000e+00> : vector<2x128xf32>
    %340 = tpu.matmul %303, %15, %cst_90 {dimension_numbers = #tpu.dot_dimension_numbers<[1], [0], [0], [1], [0, 0, 1, 1], [], []>} : vector<2x32xf32>, vector<32x128xf32>, vector<2x128xf32> -> vector<2x128xf32>
    %341 = arith.addf %339, %340 : vector<2x128xf32>
    %342 = vector.extract_strided_slice %341 {offsets = [0, 0], sizes = [2, 32], strides = [1, 1]} : vector<2x128xf32> to vector<2x32xf32>
    %343 = arith.negf %342 : vector<2x32xf32>
    %344 = math.exp %343 : vector<2x32xf32>
    %cst_91 = arith.constant 1.000000e+00 : f32
    %345 = vector.broadcast %cst_91 : f32 to vector<2x32xf32>
    %346 = arith.addf %345, %344 : vector<2x32xf32>
    %347 = arith.divf %345, %346 : vector<2x32xf32>
    %348 = vector.extract_strided_slice %341 {offsets = [0, 32], sizes = [2, 32], strides = [1, 1]} : vector<2x128xf32> to vector<2x32xf32>
    %349 = arith.negf %348 : vector<2x32xf32>
    %350 = math.exp %349 : vector<2x32xf32>
    %cst_92 = arith.constant 1.000000e+00 : f32
    %351 = vector.broadcast %cst_92 : f32 to vector<2x32xf32>
    %352 = arith.addf %351, %350 : vector<2x32xf32>
    %353 = arith.divf %351, %352 : vector<2x32xf32>
    %354 = vector.extract_strided_slice %341 {offsets = [0, 64], sizes = [2, 32], strides = [1, 1]} : vector<2x128xf32> to vector<2x32xf32>
    %355 = math.tanh %354 : vector<2x32xf32>
    %356 = vector.extract_strided_slice %341 {offsets = [0, 96], sizes = [2, 32], strides = [1, 1]} : vector<2x128xf32> to vector<2x32xf32>
    %357 = arith.negf %356 : vector<2x32xf32>
    %358 = math.exp %357 : vector<2x32xf32>
    %cst_93 = arith.constant 1.000000e+00 : f32
    %359 = vector.broadcast %cst_93 : f32 to vector<2x32xf32>
    %360 = arith.addf %359, %358 : vector<2x32xf32>
    %361 = arith.divf %359, %360 : vector<2x32xf32>
    %362 = arith.mulf %353, %301 : vector<2x32xf32>
    %363 = arith.mulf %347, %355 : vector<2x32xf32>
    %364 = arith.addf %362, %363 : vector<2x32xf32>
    %365 = math.tanh %364 : vector<2x32xf32>
    %366 = arith.mulf %361, %365 : vector<2x32xf32>
    %cst_94 = arith.constant dense<0.000000e+00> : vector<2x128xf32>
    %367 = tpu.matmul %366, %16, %cst_94 {dimension_numbers = #tpu.dot_dimension_numbers<[1], [0], [0], [1], [0, 0, 1, 1], [], []>} : vector<2x32xf32>, vector<32x128xf32>, vector<2x128xf32> -> vector<2x128xf32>
    %cst_95 = arith.constant dense<0.000000e+00> : vector<2x128xf32>
    %368 = tpu.matmul %332, %17, %cst_95 {dimension_numbers = #tpu.dot_dimension_numbers<[1], [0], [0], [1], [0, 0, 1, 1], [], []>} : vector<2x32xf32>, vector<32x128xf32>, vector<2x128xf32> -> vector<2x128xf32>
    %369 = arith.addf %367, %368 : vector<2x128xf32>
    %370 = arith.addf %369, %20 : vector<2x128xf32>
    %371 = vector.extract_strided_slice %370 {offsets = [0, 0], sizes = [2, 32], strides = [1, 1]} : vector<2x128xf32> to vector<2x32xf32>
    %372 = arith.negf %371 : vector<2x32xf32>
    %373 = math.exp %372 : vector<2x32xf32>
    %cst_96 = arith.constant 1.000000e+00 : f32
    %374 = vector.broadcast %cst_96 : f32 to vector<2x32xf32>
    %375 = arith.addf %374, %373 : vector<2x32xf32>
    %376 = arith.divf %374, %375 : vector<2x32xf32>
    %377 = vector.extract_strided_slice %370 {offsets = [0, 32], sizes = [2, 32], strides = [1, 1]} : vector<2x128xf32> to vector<2x32xf32>
    %378 = arith.negf %377 : vector<2x32xf32>
    %379 = math.exp %378 : vector<2x32xf32>
    %cst_97 = arith.constant 1.000000e+00 : f32
    %380 = vector.broadcast %cst_97 : f32 to vector<2x32xf32>
    %381 = arith.addf %380, %379 : vector<2x32xf32>
    %382 = arith.divf %380, %381 : vector<2x32xf32>
    %383 = vector.extract_strided_slice %370 {offsets = [0, 64], sizes = [2, 32], strides = [1, 1]} : vector<2x128xf32> to vector<2x32xf32>
    %384 = math.tanh %383 : vector<2x32xf32>
    %385 = vector.extract_strided_slice %370 {offsets = [0, 96], sizes = [2, 32], strides = [1, 1]} : vector<2x128xf32> to vector<2x32xf32>
    %386 = arith.negf %385 : vector<2x32xf32>
    %387 = math.exp %386 : vector<2x32xf32>
    %cst_98 = arith.constant 1.000000e+00 : f32
    %388 = vector.broadcast %cst_98 : f32 to vector<2x32xf32>
    %389 = arith.addf %388, %387 : vector<2x32xf32>
    %390 = arith.divf %388, %389 : vector<2x32xf32>
    %391 = arith.mulf %382, %330 : vector<2x32xf32>
    %392 = arith.mulf %376, %384 : vector<2x32xf32>
    %393 = arith.addf %391, %392 : vector<2x32xf32>
    %394 = math.tanh %393 : vector<2x32xf32>
    %395 = arith.mulf %390, %394 : vector<2x32xf32>
    %396 = arith.index_cast %c5_i32 : i32 to index
    %c0_99 = arith.constant 0 : index
    %c0_100 = arith.constant 0 : index
    %397 = vector.load %arg9[%396, %c0_99, %c0_100] : memref<8x2x32xf32, #tpu.memory_space<vmem>>, vector<1x2x32xf32>
    %398 = vector.shape_cast %397 : vector<1x2x32xf32> to vector<2x32xf32>
    %399 = vector.shape_cast %395 : vector<2x32xf32> to vector<1x2x32xf32>
    tpu.vector_store %arg9[%396, %c0_99, %c0_100], %399 {strides = array<i32>} : memref<8x2x32xf32, #tpu.memory_space<vmem>>, vector<1x2x32xf32>,
    %c6_i32 = arith.constant 6 : i32
    %400 = arith.index_cast %c6_i32 : i32 to index
    %c0_101 = arith.constant 0 : index
    %c0_102 = arith.constant 0 : index
    %401 = vector.load %arg10[%400, %c0_101, %c0_102] : memref<8x2x128xf32, #tpu.memory_space<vmem>>, vector<1x2x128xf32>
    %402 = vector.shape_cast %401 : vector<1x2x128xf32> to vector<2x128xf32>
    %cst_103 = arith.constant dense<0.000000e+00> : vector<2x128xf32>
    %403 = tpu.matmul %366, %15, %cst_103 {dimension_numbers = #tpu.dot_dimension_numbers<[1], [0], [0], [1], [0, 0, 1, 1], [], []>} : vector<2x32xf32>, vector<32x128xf32>, vector<2x128xf32> -> vector<2x128xf32>
    %404 = arith.addf %402, %403 : vector<2x128xf32>
    %405 = vector.extract_strided_slice %404 {offsets = [0, 0], sizes = [2, 32], strides = [1, 1]} : vector<2x128xf32> to vector<2x32xf32>
    %406 = arith.negf %405 : vector<2x32xf32>
    %407 = math.exp %406 : vector<2x32xf32>
    %cst_104 = arith.constant 1.000000e+00 : f32
    %408 = vector.broadcast %cst_104 : f32 to vector<2x32xf32>
    %409 = arith.addf %408, %407 : vector<2x32xf32>
    %410 = arith.divf %408, %409 : vector<2x32xf32>
    %411 = vector.extract_strided_slice %404 {offsets = [0, 32], sizes = [2, 32], strides = [1, 1]} : vector<2x128xf32> to vector<2x32xf32>
    %412 = arith.negf %411 : vector<2x32xf32>
    %413 = math.exp %412 : vector<2x32xf32>
    %cst_105 = arith.constant 1.000000e+00 : f32
    %414 = vector.broadcast %cst_105 : f32 to vector<2x32xf32>
    %415 = arith.addf %414, %413 : vector<2x32xf32>
    %416 = arith.divf %414, %415 : vector<2x32xf32>
    %417 = vector.extract_strided_slice %404 {offsets = [0, 64], sizes = [2, 32], strides = [1, 1]} : vector<2x128xf32> to vector<2x32xf32>
    %418 = math.tanh %417 : vector<2x32xf32>
    %419 = vector.extract_strided_slice %404 {offsets = [0, 96], sizes = [2, 32], strides = [1, 1]} : vector<2x128xf32> to vector<2x32xf32>
    %420 = arith.negf %419 : vector<2x32xf32>
    %421 = math.exp %420 : vector<2x32xf32>
    %cst_106 = arith.constant 1.000000e+00 : f32
    %422 = vector.broadcast %cst_106 : f32 to vector<2x32xf32>
    %423 = arith.addf %422, %421 : vector<2x32xf32>
    %424 = arith.divf %422, %423 : vector<2x32xf32>
    %425 = arith.mulf %416, %364 : vector<2x32xf32>
    %426 = arith.mulf %410, %418 : vector<2x32xf32>
    %427 = arith.addf %425, %426 : vector<2x32xf32>
    %428 = math.tanh %427 : vector<2x32xf32>
    %429 = arith.mulf %424, %428 : vector<2x32xf32>
    %cst_107 = arith.constant dense<0.000000e+00> : vector<2x128xf32>
    %430 = tpu.matmul %429, %16, %cst_107 {dimension_numbers = #tpu.dot_dimension_numbers<[1], [0], [0], [1], [0, 0, 1, 1], [], []>} : vector<2x32xf32>, vector<32x128xf32>, vector<2x128xf32> -> vector<2x128xf32>
    %cst_108 = arith.constant dense<0.000000e+00> : vector<2x128xf32>
    %431 = tpu.matmul %395, %17, %cst_108 {dimension_numbers = #tpu.dot_dimension_numbers<[1], [0], [0], [1], [0, 0, 1, 1], [], []>} : vector<2x32xf32>, vector<32x128xf32>, vector<2x128xf32> -> vector<2x128xf32>
    %432 = arith.addf %430, %431 : vector<2x128xf32>
    %433 = arith.addf %432, %20 : vector<2x128xf32>
    %434 = vector.extract_strided_slice %433 {offsets = [0, 0], sizes = [2, 32], strides = [1, 1]} : vector<2x128xf32> to vector<2x32xf32>
    %435 = arith.negf %434 : vector<2x32xf32>
    %436 = math.exp %435 : vector<2x32xf32>
    %cst_109 = arith.constant 1.000000e+00 : f32
    %437 = vector.broadcast %cst_109 : f32 to vector<2x32xf32>
    %438 = arith.addf %437, %436 : vector<2x32xf32>
    %439 = arith.divf %437, %438 : vector<2x32xf32>
    %440 = vector.extract_strided_slice %433 {offsets = [0, 32], sizes = [2, 32], strides = [1, 1]} : vector<2x128xf32> to vector<2x32xf32>
    %441 = arith.negf %440 : vector<2x32xf32>
    %442 = math.exp %441 : vector<2x32xf32>
    %cst_110 = arith.constant 1.000000e+00 : f32
    %443 = vector.broadcast %cst_110 : f32 to vector<2x32xf32>
    %444 = arith.addf %443, %442 : vector<2x32xf32>
    %445 = arith.divf %443, %444 : vector<2x32xf32>
    %446 = vector.extract_strided_slice %433 {offsets = [0, 64], sizes = [2, 32], strides = [1, 1]} : vector<2x128xf32> to vector<2x32xf32>
    %447 = math.tanh %446 : vector<2x32xf32>
    %448 = vector.extract_strided_slice %433 {offsets = [0, 96], sizes = [2, 32], strides = [1, 1]} : vector<2x128xf32> to vector<2x32xf32>
    %449 = arith.negf %448 : vector<2x32xf32>
    %450 = math.exp %449 : vector<2x32xf32>
    %cst_111 = arith.constant 1.000000e+00 : f32
    %451 = vector.broadcast %cst_111 : f32 to vector<2x32xf32>
    %452 = arith.addf %451, %450 : vector<2x32xf32>
    %453 = arith.divf %451, %452 : vector<2x32xf32>
    %454 = arith.mulf %445, %393 : vector<2x32xf32>
    %455 = arith.mulf %439, %447 : vector<2x32xf32>
    %456 = arith.addf %454, %455 : vector<2x32xf32>
    %457 = math.tanh %456 : vector<2x32xf32>
    %458 = arith.mulf %453, %457 : vector<2x32xf32>
    %459 = arith.index_cast %c6_i32 : i32 to index
    %c0_112 = arith.constant 0 : index
    %c0_113 = arith.constant 0 : index
    %460 = vector.load %arg9[%459, %c0_112, %c0_113] : memref<8x2x32xf32, #tpu.memory_space<vmem>>, vector<1x2x32xf32>
    %461 = vector.shape_cast %460 : vector<1x2x32xf32> to vector<2x32xf32>
    %462 = vector.shape_cast %458 : vector<2x32xf32> to vector<1x2x32xf32>
    tpu.vector_store %arg9[%459, %c0_112, %c0_113], %462 {strides = array<i32>} : memref<8x2x32xf32, #tpu.memory_space<vmem>>, vector<1x2x32xf32>,
    %c7_i32 = arith.constant 7 : i32
    %463 = arith.index_cast %c7_i32 : i32 to index
    %c0_114 = arith.constant 0 : index
    %c0_115 = arith.constant 0 : index
    %464 = vector.load %arg10[%463, %c0_114, %c0_115] : memref<8x2x128xf32, #tpu.memory_space<vmem>>, vector<1x2x128xf32>
    %465 = vector.shape_cast %464 : vector<1x2x128xf32> to vector<2x128xf32>
    %cst_116 = arith.constant dense<0.000000e+00> : vector<2x128xf32>
    %466 = tpu.matmul %429, %15, %cst_116 {dimension_numbers = #tpu.dot_dimension_numbers<[1], [0], [0], [1], [0, 0, 1, 1], [], []>} : vector<2x32xf32>, vector<32x128xf32>, vector<2x128xf32> -> vector<2x128xf32>
    %467 = arith.addf %465, %466 : vector<2x128xf32>
    %468 = vector.extract_strided_slice %467 {offsets = [0, 0], sizes = [2, 32], strides = [1, 1]} : vector<2x128xf32> to vector<2x32xf32>
    %469 = arith.negf %468 : vector<2x32xf32>
    %470 = math.exp %469 : vector<2x32xf32>
    %cst_117 = arith.constant 1.000000e+00 : f32
    %471 = vector.broadcast %cst_117 : f32 to vector<2x32xf32>
    %472 = arith.addf %471, %470 : vector<2x32xf32>
    %473 = arith.divf %471, %472 : vector<2x32xf32>
    %474 = vector.extract_strided_slice %467 {offsets = [0, 32], sizes = [2, 32], strides = [1, 1]} : vector<2x128xf32> to vector<2x32xf32>
    %475 = arith.negf %474 : vector<2x32xf32>
    %476 = math.exp %475 : vector<2x32xf32>
    %cst_118 = arith.constant 1.000000e+00 : f32
    %477 = vector.broadcast %cst_118 : f32 to vector<2x32xf32>
    %478 = arith.addf %477, %476 : vector<2x32xf32>
    %479 = arith.divf %477, %478 : vector<2x32xf32>
    %480 = vector.extract_strided_slice %467 {offsets = [0, 64], sizes = [2, 32], strides = [1, 1]} : vector<2x128xf32> to vector<2x32xf32>
    %481 = math.tanh %480 : vector<2x32xf32>
    %482 = vector.extract_strided_slice %467 {offsets = [0, 96], sizes = [2, 32], strides = [1, 1]} : vector<2x128xf32> to vector<2x32xf32>
    %483 = arith.negf %482 : vector<2x32xf32>
    %484 = math.exp %483 : vector<2x32xf32>
    %cst_119 = arith.constant 1.000000e+00 : f32
    %485 = vector.broadcast %cst_119 : f32 to vector<2x32xf32>
    %486 = arith.addf %485, %484 : vector<2x32xf32>
    %487 = arith.divf %485, %486 : vector<2x32xf32>
    %488 = arith.mulf %479, %427 : vector<2x32xf32>
    %489 = arith.mulf %473, %481 : vector<2x32xf32>
    %490 = arith.addf %488, %489 : vector<2x32xf32>
    %491 = math.tanh %490 : vector<2x32xf32>
    %492 = arith.mulf %487, %491 : vector<2x32xf32>
    %cst_120 = arith.constant dense<0.000000e+00> : vector<2x128xf32>
    %493 = tpu.matmul %492, %16, %cst_120 {dimension_numbers = #tpu.dot_dimension_numbers<[1], [0], [0], [1], [0, 0, 1, 1], [], []>} : vector<2x32xf32>, vector<32x128xf32>, vector<2x128xf32> -> vector<2x128xf32>
    %cst_121 = arith.constant dense<0.000000e+00> : vector<2x128xf32>
    %494 = tpu.matmul %458, %17, %cst_121 {dimension_numbers = #tpu.dot_dimension_numbers<[1], [0], [0], [1], [0, 0, 1, 1], [], []>} : vector<2x32xf32>, vector<32x128xf32>, vector<2x128xf32> -> vector<2x128xf32>
    %495 = arith.addf %493, %494 : vector<2x128xf32>
    %496 = arith.addf %495, %20 : vector<2x128xf32>
    %497 = vector.extract_strided_slice %496 {offsets = [0, 0], sizes = [2, 32], strides = [1, 1]} : vector<2x128xf32> to vector<2x32xf32>
    %498 = arith.negf %497 : vector<2x32xf32>
    %499 = math.exp %498 : vector<2x32xf32>
    %cst_122 = arith.constant 1.000000e+00 : f32
    %500 = vector.broadcast %cst_122 : f32 to vector<2x32xf32>
    %501 = arith.addf %500, %499 : vector<2x32xf32>
    %502 = arith.divf %500, %501 : vector<2x32xf32>
    %503 = vector.extract_strided_slice %496 {offsets = [0, 32], sizes = [2, 32], strides = [1, 1]} : vector<2x128xf32> to vector<2x32xf32>
    %504 = arith.negf %503 : vector<2x32xf32>
    %505 = math.exp %504 : vector<2x32xf32>
    %cst_123 = arith.constant 1.000000e+00 : f32
    %506 = vector.broadcast %cst_123 : f32 to vector<2x32xf32>
    %507 = arith.addf %506, %505 : vector<2x32xf32>
    %508 = arith.divf %506, %507 : vector<2x32xf32>
    %509 = vector.extract_strided_slice %496 {offsets = [0, 64], sizes = [2, 32], strides = [1, 1]} : vector<2x128xf32> to vector<2x32xf32>
    %510 = math.tanh %509 : vector<2x32xf32>
    %511 = vector.extract_strided_slice %496 {offsets = [0, 96], sizes = [2, 32], strides = [1, 1]} : vector<2x128xf32> to vector<2x32xf32>
    %512 = arith.negf %511 : vector<2x32xf32>
    %513 = math.exp %512 : vector<2x32xf32>
    %cst_124 = arith.constant 1.000000e+00 : f32
    %514 = vector.broadcast %cst_124 : f32 to vector<2x32xf32>
    %515 = arith.addf %514, %513 : vector<2x32xf32>
    %516 = arith.divf %514, %515 : vector<2x32xf32>
    %517 = arith.mulf %508, %456 : vector<2x32xf32>
    %518 = arith.mulf %502, %510 : vector<2x32xf32>
    %519 = arith.addf %517, %518 : vector<2x32xf32>
    %520 = math.tanh %519 : vector<2x32xf32>
    %521 = arith.mulf %516, %520 : vector<2x32xf32>
    %522 = arith.index_cast %c7_i32 : i32 to index
    %c0_125 = arith.constant 0 : index
    %c0_126 = arith.constant 0 : index
    %523 = vector.load %arg9[%522, %c0_125, %c0_126] : memref<8x2x32xf32, #tpu.memory_space<vmem>>, vector<1x2x32xf32>
    %524 = vector.shape_cast %523 : vector<1x2x32xf32> to vector<2x32xf32>
    %525 = vector.shape_cast %521 : vector<2x32xf32> to vector<1x2x32xf32>
    tpu.vector_store %arg9[%522, %c0_125, %c0_126], %525 {strides = array<i32>} : memref<8x2x32xf32, #tpu.memory_space<vmem>>, vector<1x2x32xf32>,
    %c8_i32 = arith.constant 8 : i32
    return
  }
}

</mosaic_0001>

<llo_original>
// kernel: vae_forward.3
$region0: #{vae_forward.3}
  #allocation0 [shape = 'u32[]', space=smem, size = 0x4, offset = 0x4, fixed_abs, tag = 'smem constant byte address 0x4 - core index']
  #allocation1 [shape = 'u32[144,128]{1,0:T(1,128)}', space=vmem, size = 0x12000, scoped, tag = 'internal scratch']
  #allocation2 [shape = 'f32[8,2,128]{2,1,0:T(2,128)}', space=vmem, size = 0x2000, scoped, tag = 'scratch operand']
  %s0 = inlined_call_operand.vmem [shape: f32[8,2,32], index: 0, kind: input, shape index: {}]
  %s1 = inlined_call_operand.vmem [shape: f32[2,8], index: 1, kind: input, shape index: {}]
  %s2 = inlined_call_operand.vmem [shape: f32[32,128], index: 2, kind: input, shape index: {}]
  %s3 = inlined_call_operand.vmem [shape: f32[8,128], index: 3, kind: input, shape index: {}]
  %s4 = inlined_call_operand.vmem [shape: f32[32,128], index: 4, kind: input, shape index: {}]
  %s5 = inlined_call_operand.vmem [shape: f32[1,128], index: 5, kind: input, shape index: {}]
  %s6 = inlined_call_operand.vmem [shape: f32[32,128], index: 6, kind: input, shape index: {}]
  %s7 = inlined_call_operand.vmem [shape: f32[32,128], index: 7, kind: input, shape index: {}]
  %s8 = inlined_call_operand.vmem [shape: f32[1,128], index: 8, kind: input, shape index: {}]
  %s9 = inlined_call_operand.vmem [shape: f32[8,2,32], index: 9, kind: output, shape index: {}]
  %s10 = sld [smem:[#allocation0]]
  $region46: #{vae_forward.3} parent=0
    _
  %s12 = ssub.s32 1, %s10
  %s13 = scalar_select 0, %s12, %s10
  // Predicated region
  $region2: #{vae_forward.3} parent=0 // pred_check
    _
  $region3: #{vae_forward.3} parent=0 // pred_check_branch
    %15 = sbr.rel (0) target = $region5
  $region4: #{vae_forward.3} parent=0 // pred_region
    _
  $region5: #{vae_forward.3} parent=0 // pred_fallthru
    _
  // Predicated region
  $region6: #{vae_forward.3} parent=0 // pred_check
    _
  $region7: #{vae_forward.3} parent=0 // pred_check_branch
    %17 = sbr.rel (0) target = $region9
  $region8: #{vae_forward.3} parent=0 // pred_region
    _
  $region9: #{vae_forward.3} parent=0 // pred_fallthru
    _
  // Predicated region
  $region10: #{vae_forward.3} parent=0 // pred_check
    _
  $region11: #{vae_forward.3} parent=0 // pred_check_branch
    %19 = sbr.rel (0) target = $region13
  $region12: #{vae_forward.3} parent=0 // pred_region
    _
  $region13: #{vae_forward.3} parent=0 // pred_fallthru
    _
  // Predicated region
  $region14: #{vae_forward.3} parent=0 // pred_check
    _
  $region15: #{vae_forward.3} parent=0 // pred_check_branch
    %21 = sbr.rel (0) target = $region17
  $region16: #{vae_forward.3} parent=0 // pred_region
    _
  $region17: #{vae_forward.3} parent=0 // pred_fallthru
    _
  // Predicated region
  $region18: #{vae_forward.3} parent=0 // pred_check
    _
  $region19: #{vae_forward.3} parent=0 // pred_check_branch
    %23 = sbr.rel (0) target = $region21
  $region20: #{vae_forward.3} parent=0 // pred_region
    _
  $region21: #{vae_forward.3} parent=0 // pred_fallthru
    _
  // Predicated region
  $region22: #{vae_forward.3} parent=0 // pred_check
    _
  $region23: #{vae_forward.3} parent=0 // pred_check_branch
    %25 = sbr.rel (0) target = $region25
  $region24: #{vae_forward.3} parent=0 // pred_region
    _
  $region25: #{vae_forward.3} parent=0 // pred_fallthru
    _
  // Predicated region
  $region26: #{vae_forward.3} parent=0 // pred_check
    _
  $region27: #{vae_forward.3} parent=0 // pred_check_branch
    %27 = sbr.rel (0) target = $region29
  $region28: #{vae_forward.3} parent=0 // pred_region
    _
  $region29: #{vae_forward.3} parent=0 // pred_fallthru
    _
  // Predicated region
  $region30: #{vae_forward.3} parent=0 // pred_check
    _
  $region31: #{vae_forward.3} parent=0 // pred_check_branch
    %29 = sbr.rel (0) target = $region33
  $region32: #{vae_forward.3} parent=0 // pred_region
    _
  $region33: #{vae_forward.3} parent=0 // pred_fallthru
    _
  // Predicated region
  $region34: #{vae_forward.3} parent=0 // pred_check
    _
  $region35: #{vae_forward.3} parent=0 // pred_check_branch
    %31 = sbr.rel (0) target = $region37
  $region36: #{vae_forward.3} parent=0 // pred_region
    _
  $region37: #{vae_forward.3} parent=0 // pred_fallthru
    _
  %v32 = vld [vmem:[%s1] sm:$0x3]
  %v33 = vld [vmem:[%s3] sm:$0xff]
  %v34 = vld [vmem:[%s5] sm:$0x1]
  %v36 = vlaneseq
  %v37 = vshrl.u32 %v36, 7
  %v38 = vsub.s32 0, %v37
  %v39 = vrot.slane %v34, %v38
  %vm41 = vcmask 64512
  %v43 = vsel %vm41, %v32, 0
  %45 = vmatprep.subr.mxu0 0.0
  %46 = vmatpush1.msra.mxu0 0.0
  %47 = vmatprep.subr.mxu0 0.0
  %48 = vmatpush1.msra.mxu0 0.0
  %49 = vmatprep.subr.mxu0 0.0
  %50 = vmatpush1.msra.mxu0 0.0
  %51 = vmatprep.subr.mxu0 0.0
  %52 = vmatpush1.msra.mxu0 0.0
  %53 = vmatprep.subr.mxu0 0.0
  %54 = vmatpush1.msra.mxu0 0.0
  %55 = vmatprep.subr.mxu0 0.0
  %56 = vmatpush1.msra.mxu0 0.0
  %57 = vmatprep.subr.mxu0 0.0
  %58 = vmatpush1.msra.mxu0 0.0
  %59 = vmatprep.subr.mxu0 0.0
  %60 = vmatpush1.msra.mxu0 0.0
  %61 = vmatprep.subr.mxu0 0.0
  %62 = vmatpush1.msra.mxu0 0.0
  %63 = vmatprep.subr.mxu0 0.0
  %64 = vmatpush1.msra.mxu0 0.0
  %65 = vmatprep.subr.mxu0 0.0
  %66 = vmatpush1.msra.mxu0 0.0
  %67 = vmatprep.subr.mxu0 0.0
  %68 = vmatpush1.msra.mxu0 0.0
  %69 = vmatprep.subr.mxu0 0.0
  %70 = vmatpush1.msra.mxu0 0.0
  %71 = vmatprep.subr.mxu0 0.0
  %72 = vmatpush1.msra.mxu0 0.0
  %73 = vmatprep.subr.mxu0 0.0
  %74 = vmatpush1.msra.mxu0 0.0
  %75 = vmatprep.subr.mxu0 0.0
  %76 = vmatpush1.msra.mxu0 %v33
  %77 = vmatprep.subr.mxu0 0.0
  %78 = vmatpush2.msra.mxu0 0.0
  %79 = vmatprep.subr.mxu0 0.0
  %80 = vmatpush2.msra.mxu0 0.0
  %81 = vmatprep.subr.mxu0 0.0
  %82 = vmatpush2.msra.mxu0 0.0
  %83 = vmatprep.subr.mxu0 0.0
  %84 = vmatpush2.msra.mxu0 0.0
  %85 = vmatprep.subr.mxu0 0.0
  %86 = vmatpush2.msra.mxu0 0.0
  %87 = vmatprep.subr.mxu0 0.0
  %88 = vmatpush2.msra.mxu0 0.0
  %89 = vmatprep.subr.mxu0 0.0
  %90 = vmatpush2.msra.mxu0 0.0
  %91 = vmatprep.subr.mxu0 0.0
  %92 = vmatpush2.msra.mxu0 0.0
  %93 = vmatprep.subr.mxu0 0.0
  %94 = vmatpush2.msra.mxu0 0.0
  %95 = vmatprep.subr.mxu0 0.0
  %96 = vmatpush2.msra.mxu0 0.0
  %97 = vmatprep.subr.mxu0 0.0
  %98 = vmatpush2.msra.mxu0 0.0
  %99 = vmatprep.subr.mxu0 0.0
  %100 = vmatpush2.msra.mxu0 0.0
  %101 = vmatprep.subr.mxu0 0.0
  %102 = vmatpush2.msra.mxu0 0.0
  %103 = vmatprep.subr.mxu0 0.0
  %104 = vmatpush2.msra.mxu0 0.0
  %105 = vmatprep.subr.mxu0 0.0
  %106 = vmatpush2.msra.mxu0 0.0
  %107 = vmatprep.subr.mxu0 0.0
  %108 = vmatpush2.msra.mxu0 0.0
  %109 = vmatprep.mubr.f32.mxu0 0.0
  %110 = vmatmul.mubr.f32.gmra.mxu0 %v43
  %v111 = vpop.f32.mrf.mxu0
  %v112 = vadd.f32 %v39, %v111
  %v113 = vpop.f32.mrf.mxu0
  %114 = vdwg.mxu0
  %v115 = vld [vmem:[%s0] sm:$0x3]
  %v116 = vld [vmem:[%s0 + $0x2] sm:$0x3]
  %v117 = vld [vmem:[%s0 + $0x4] sm:$0x3]
  %v118 = vld [vmem:[%s0 + $0x6] sm:$0x3]
  %v119 = vld [vmem:[%s0 + $0x8] sm:$0x3]
  %v120 = vld [vmem:[%s0 + $0xa] sm:$0x3]
  %v121 = vld [vmem:[%s0 + $0xc] sm:$0x3]
  %v122 = vld [vmem:[%s0 + $0xe] sm:$0x3]
  %v123 = vld [vmem:[%s2] sm:$0xff]
  %v124 = vld [vmem:[%s2 + $0x8] sm:$0xff]
  %v125 = vld [vmem:[%s2 + $0x10] sm:$0xff]
  %v126 = vld [vmem:[%s2 + $0x18] sm:$0xff]
  %v135 = vcombine.low %v115, %v116
  %v136 = vcombine.low %v117, %v118
  %v138 = vunpack.c.l.s4 1983009808
  %v139 = vunpack.c.0.s8 %v138
  %v140 = vlaneseq
  %v141 = vshrl.u32 %v140, 7
  %v142 = vsub.s32 %v139, %v141
  %v143 = vrot.slane %v135, %v142
  %v145 = vunpack.c.l.s4 1983009808
  %v146 = vunpack.c.0.s8 %v145
  %v147 = vlaneseq
  %v148 = vshrl.u32 %v147, 7
  %v149 = vsub.s32 %v146, %v148
  %v150 = vrot.slane %v136, %v149
  %v151 = vcombine.low %v143, %v150
  %v152 = vcombine.low %v119, %v120
  %v153 = vcombine.low %v121, %v122
  %v155 = vunpack.c.l.s4 1983009808
  %v156 = vunpack.c.0.s8 %v155
  %v157 = vlaneseq
  %v158 = vshrl.u32 %v157, 7
  %v159 = vsub.s32 %v156, %v158
  %v160 = vrot.slane %v152, %v159
  %v162 = vunpack.c.l.s4 1983009808
  %v163 = vunpack.c.0.s8 %v162
  %v164 = vlaneseq
  %v165 = vshrl.u32 %v164, 7
  %v166 = vsub.s32 %v163, %v165
  %v167 = vrot.slane %v153, %v166
  %v168 = vcombine.low %v160, %v167
  %vm169 = vcmask 261120
  %v170 = vsel %vm169, %v151, 0
  %v172 = vsel %vm169, %v168, 0
  %174 = vmatprep.subr.mxu0 0.0
  %175 = vmatpush1.msra.mxu0 0.0
  %176 = vmatprep.subr.mxu0 0.0
  %177 = vmatpush1.msra.mxu0 0.0
  %178 = vmatprep.subr.mxu0 0.0
  %179 = vmatpush1.msra.mxu0 0.0
  %180 = vmatprep.subr.mxu0 0.0
  %181 = vmatpush1.msra.mxu0 0.0
  %182 = vmatprep.subr.mxu0 0.0
  %183 = vmatpush1.msra.mxu0 0.0
  %184 = vmatprep.subr.mxu0 0.0
  %185 = vmatpush1.msra.mxu0 0.0
  %186 = vmatprep.subr.mxu0 0.0
  %187 = vmatpush1.msra.mxu0 0.0
  %188 = vmatprep.subr.mxu0 0.0
  %189 = vmatpush1.msra.mxu0 0.0
  %190 = vmatprep.subr.mxu0 0.0
  %191 = vmatpush1.msra.mxu0 0.0
  %192 = vmatprep.subr.mxu0 0.0
  %193 = vmatpush1.msra.mxu0 0.0
  %194 = vmatprep.subr.mxu0 0.0
  %195 = vmatpush1.msra.mxu0 0.0
  %196 = vmatprep.subr.mxu0 0.0
  %197 = vmatpush1.msra.mxu0 0.0
  %198 = vmatprep.subr.mxu0 0.0
  %199 = vmatpush1.msra.mxu0 %v126
  %200 = vmatprep.subr.mxu0 0.0
  %201 = vmatpush1.msra.mxu0 %v125
  %202 = vmatprep.subr.mxu0 0.0
  %203 = vmatpush1.msra.mxu0 %v124
  %204 = vmatprep.subr.mxu0 0.0
  %205 = vmatpush1.msra.mxu0 %v123
  %206 = vmatprep.subr.mxu0 0.0
  %207 = vmatpush2.msra.mxu0 0.0
  %208 = vmatprep.subr.mxu0 0.0
  %209 = vmatpush2.msra.mxu0 0.0
  %210 = vmatprep.subr.mxu0 0.0
  %211 = vmatpush2.msra.mxu0 0.0
  %212 = vmatprep.subr.mxu0 0.0
  %213 = vmatpush2.msra.mxu0 0.0
  %214 = vmatprep.subr.mxu0 0.0
  %215 = vmatpush2.msra.mxu0 0.0
  %216 = vmatprep.subr.mxu0 0.0
  %217 = vmatpush2.msra.mxu0 0.0
  %218 = vmatprep.subr.mxu0 0.0
  %219 = vmatpush2.msra.mxu0 0.0
  %220 = vmatprep.subr.mxu0 0.0
  %221 = vmatpush2.msra.mxu0 0.0
  %222 = vmatprep.subr.mxu0 0.0
  %223 = vmatpush2.msra.mxu0 0.0
  %224 = vmatprep.subr.mxu0 0.0
  %225 = vmatpush2.msra.mxu0 0.0
  %226 = vmatprep.subr.mxu0 0.0
  %227 = vmatpush2.msra.mxu0 0.0
  %228 = vmatprep.subr.mxu0 0.0
  %229 = vmatpush2.msra.mxu0 0.0
  %230 = vmatprep.subr.mxu0 0.0
  %231 = vmatpush2.msra.mxu0 0.0
  %232 = vmatprep.subr.mxu0 0.0
  %233 = vmatpush2.msra.mxu0 0.0
  %234 = vmatprep.subr.mxu0 0.0
  %235 = vmatpush2.msra.mxu0 0.0
  %236 = vmatprep.subr.mxu0 0.0
  %237 = vmatpush2.msra.mxu0 0.0
  %238 = vmatprep.mubr.f32.mxu0 0.0
  %239 = vmatmul.mubr.f32.gmra.mxu0 %v170
  %v240 = vpop.f32.mrf.mxu0
  %v241 = vadd.f32 0.0, %v240
  %v242 = vpop.f32.mrf.mxu0
  %243 = vmatprep.mubr.f32.mxu0 0.0
  %244 = vmatmul.mubr.f32.gmra.mxu0 %v172
  %v245 = vpop.f32.mrf.mxu0
  %v246 = vadd.f32 0.0, %v245
  %v247 = vpop.f32.mrf.mxu0
  %248 = vdwg.mxu0
  %v251 = vcombine.high %v241, %v241
  %v253 = vunpack.c.l.s4 1983009808
  %v254 = vunpack.c.0.s8 %v253
  %v255 = vlaneseq
  %v256 = vshrl.u32 %v255, 7
  %v257 = vsub.s32 %v254, %v256
  %v258 = vrot.slane %v241, %v257
  %v260 = vunpack.c.l.s4 1983009808
  %v261 = vunpack.c.0.s8 %v260
  %v262 = vlaneseq
  %v263 = vshrl.u32 %v262, 7
  %v264 = vsub.s32 %v261, %v263
  %v265 = vrot.slane %v251, %v264
  %v266 = vcombine.high %v258, %v258
  %v267 = vcombine.high %v265, %v265
  %v268 = vcombine.high %v246, %v246
  %v270 = vunpack.c.l.s4 1983009808
  %v271 = vunpack.c.0.s8 %v270
  %v272 = vlaneseq
  %v273 = vshrl.u32 %v272, 7
  %v274 = vsub.s32 %v271, %v273
  %v275 = vrot.slane %v246, %v274
  %v277 = vunpack.c.l.s4 1983009808
  %v278 = vunpack.c.0.s8 %v277
  %v279 = vlaneseq
  %v280 = vshrl.u32 %v279, 7
  %v281 = vsub.s32 %v278, %v280
  %v282 = vrot.slane %v268, %v281
  %v283 = vcombine.high %v275, %v275
  %v284 = vcombine.high %v282, %v282
  %v293 = vadd.f32 %v258, %v112
  %v294 = vadd.f32 %v266, %v112
  %v295 = vadd.f32 %v265, %v112
  %v296 = vadd.f32 %v267, %v112
  %v297 = vadd.f32 %v275, %v112
  %v298 = vadd.f32 %v283, %v112
  %v299 = vadd.f32 %v282, %v112
  %v300 = vadd.f32 %v284, %v112
  %301 = vst [vmem:[#allocation2] sm:$0x3] %v293
  %302 = vst [vmem:[#allocation2 + $0x2] sm:$0x3] %v294
  %303 = vst [vmem:[#allocation2 + $0x4] sm:$0x3] %v295
  %304 = vst [vmem:[#allocation2 + $0x6] sm:$0x3] %v296
  %305 = vst [vmem:[#allocation2 + $0x8] sm:$0x3] %v297
  %306 = vst [vmem:[#allocation2 + $0xa] sm:$0x3] %v298
  %307 = vst [vmem:[#allocation2 + $0xc] sm:$0x3] %v299
  %308 = vst [vmem:[#allocation2 + $0xe] sm:$0x3] %v300
  %v309 = vld [vmem:[%s4] sm:$0xff]
  %v310 = vld [vmem:[%s4 + $0x8] sm:$0xff]
  %v311 = vld [vmem:[%s4 + $0x10] sm:$0xff]
  %v312 = vld [vmem:[%s4 + $0x18] sm:$0xff]
  %v313 = vld [vmem:[%s6] sm:$0xff]
  %v314 = vld [vmem:[%s6 + $0x8] sm:$0xff]
  %v315 = vld [vmem:[%s6 + $0x10] sm:$0xff]
  %v316 = vld [vmem:[%s6 + $0x18] sm:$0xff]
  %v317 = vld [vmem:[%s7] sm:$0xff]
  %v318 = vld [vmem:[%s7 + $0x8] sm:$0xff]
  %v319 = vld [vmem:[%s7 + $0x10] sm:$0xff]
  %v320 = vld [vmem:[%s7 + $0x18] sm:$0xff]
  %v321 = vld [vmem:[%s8] sm:$0x1]
  %v323 = vlaneseq
  %v324 = vshrl.u32 %v323, 7
  %v325 = vsub.s32 0, %v324
  %v326 = vrot.slane %v321, %v325
  %v328 = vld [vmem:[#allocation2] sm:$0x3]
  %v330 = vsel %vm169, 0.0, 0
  %332 = vmatprep.subr.mxu0 0.0
  %333 = vmatpush1.msra.mxu0 0.0
  %334 = vmatprep.subr.mxu0 0.0
  %335 = vmatpush1.msra.mxu0 0.0
  %336 = vmatprep.subr.mxu0 0.0
  %337 = vmatpush1.msra.mxu0 0.0
  %338 = vmatprep.subr.mxu0 0.0
  %339 = vmatpush1.msra.mxu0 0.0
  %340 = vmatprep.subr.mxu0 0.0
  %341 = vmatpush1.msra.mxu0 0.0
  %342 = vmatprep.subr.mxu0 0.0
  %343 = vmatpush1.msra.mxu0 0.0
  %344 = vmatprep.subr.mxu0 0.0
  %345 = vmatpush1.msra.mxu0 0.0
  %346 = vmatprep.subr.mxu0 0.0
  %347 = vmatpush1.msra.mxu0 0.0
  %348 = vmatprep.subr.mxu0 0.0
  %349 = vmatpush1.msra.mxu0 0.0
  %350 = vmatprep.subr.mxu0 0.0
  %351 = vmatpush1.msra.mxu0 0.0
  %352 = vmatprep.subr.mxu0 0.0
  %353 = vmatpush1.msra.mxu0 0.0
  %354 = vmatprep.subr.mxu0 0.0
  %355 = vmatpush1.msra.mxu0 0.0
  %356 = vmatprep.subr.mxu0 0.0
  %357 = vmatpush1.msra.mxu0 %v312
  %358 = vmatprep.subr.mxu0 0.0
  %359 = vmatpush1.msra.mxu0 %v311
  %360 = vmatprep.subr.mxu0 0.0
  %361 = vmatpush1.msra.mxu0 %v310
  %362 = vmatprep.subr.mxu0 0.0
  %363 = vmatpush1.msra.mxu0 %v309
  %364 = vmatprep.subr.mxu0 0.0
  %365 = vmatpush2.msra.mxu0 0.0
  %366 = vmatprep.subr.mxu0 0.0
  %367 = vmatpush2.msra.mxu0 0.0
  %368 = vmatprep.subr.mxu0 0.0
  %369 = vmatpush2.msra.mxu0 0.0
  %370 = vmatprep.subr.mxu0 0.0
  %371 = vmatpush2.msra.mxu0 0.0
  %372 = vmatprep.subr.mxu0 0.0
  %373 = vmatpush2.msra.mxu0 0.0
  %374 = vmatprep.subr.mxu0 0.0
  %375 = vmatpush2.msra.mxu0 0.0
  %376 = vmatprep.subr.mxu0 0.0
  %377 = vmatpush2.msra.mxu0 0.0
  %378 = vmatprep.subr.mxu0 0.0
  %379 = vmatpush2.msra.mxu0 0.0
  %380 = vmatprep.subr.mxu0 0.0
  %381 = vmatpush2.msra.mxu0 0.0
  %382 = vmatprep.subr.mxu0 0.0
  %383 = vmatpush2.msra.mxu0 0.0
  %384 = vmatprep.subr.mxu0 0.0
  %385 = vmatpush2.msra.mxu0 0.0
  %386 = vmatprep.subr.mxu0 0.0
  %387 = vmatpush2.msra.mxu0 0.0
  %388 = vmatprep.subr.mxu0 0.0
  %389 = vmatpush2.msra.mxu0 0.0
  %390 = vmatprep.subr.mxu0 0.0
  %391 = vmatpush2.msra.mxu0 0.0
  %392 = vmatprep.subr.mxu0 0.0
  %393 = vmatpush2.msra.mxu0 0.0
  %394 = vmatprep.subr.mxu0 0.0
  %395 = vmatpush2.msra.mxu0 0.0
  %396 = vmatprep.mubr.f32.mxu0 0.0
  %397 = vmatmul.mubr.f32.gmra.mxu0 %v330
  %v398 = vpop.f32.mrf.mxu0
  %v399 = vadd.f32 0.0, %v398
  %v400 = vpop.f32.mrf.mxu0
  %401 = vdwg.mxu0
  %v402 = vadd.f32 %v328, %v399
  %v403 = vxor.u32 %v402, 2147483648
  %v404 = vmul.f32 %v403, 1.442695
  %v405 = vpow.pop %v404
  %v406 = vadd.f32 %v405, 1.0
  %v407 = vrcp.pop %v406
  %v408 = vmul.f32 1.0, %v407
  %v409 = vtanh.pop %v402
  %v410 = vmul.f32 %v408, 0.0
  %412 = vrot.lane.b32.xlu0 %v409, 64
  %v413 = vpop.permute.xlu0 %412
  %v415 = vmul.f32 %v408, %v413
  %417 = vrot.lane.b32.xlu0 %v415, 32
  %v418 = vpop.permute.xlu0 %417
  %v420 = vadd.f32 %v410, %v418
  %v421 = vtanh.pop %v420
  %423 = vrot.lane.b32.xlu0 %v421, 64
  %v424 = vpop.permute.xlu0 %423
  %v426 = vmul.f32 %v408, %v424
  %427 = vmatprep.subr.mxu0 0.0
  %428 = vmatpush1.msra.mxu0 0.0
  %429 = vmatprep.subr.mxu0 0.0
  %430 = vmatpush1.msra.mxu0 0.0
  %431 = vmatprep.subr.mxu0 0.0
  %432 = vmatpush1.msra.mxu0 0.0
  %433 = vmatprep.subr.mxu0 0.0
  %434 = vmatpush1.msra.mxu0 0.0
  %435 = vmatprep.subr.mxu0 0.0
  %436 = vmatpush1.msra.mxu0 0.0
  %437 = vmatprep.subr.mxu0 0.0
  %438 = vmatpush1.msra.mxu0 0.0
  %439 = vmatprep.subr.mxu0 0.0
  %440 = vmatpush1.msra.mxu0 0.0
  %441 = vmatprep.subr.mxu0 0.0
  %442 = vmatpush1.msra.mxu0 0.0
  %443 = vmatprep.subr.mxu0 0.0
  %444 = vmatpush1.msra.mxu0 0.0
  %445 = vmatprep.subr.mxu0 0.0
  %446 = vmatpush1.msra.mxu0 0.0
  %447 = vmatprep.subr.mxu0 0.0
  %448 = vmatpush1.msra.mxu0 0.0
  %449 = vmatprep.subr.mxu0 0.0
  %450 = vmatpush1.msra.mxu0 0.0
  %451 = vmatprep.subr.mxu0 0.0
  %452 = vmatpush1.msra.mxu0 %v320
  %453 = vmatprep.subr.mxu0 0.0
  %454 = vmatpush1.msra.mxu0 %v319
  %455 = vmatprep.subr.mxu0 0.0
  %456 = vmatpush1.msra.mxu0 %v318
  %457 = vmatprep.subr.mxu0 0.0
  %458 = vmatpush1.msra.mxu0 %v317
  %459 = vmatprep.subr.mxu0 0.0
  %460 = vmatpush2.msra.mxu0 0.0
  %461 = vmatprep.subr.mxu0 0.0
  %462 = vmatpush2.msra.mxu0 0.0
  %463 = vmatprep.subr.mxu0 0.0
  %464 = vmatpush2.msra.mxu0 0.0
  %465 = vmatprep.subr.mxu0 0.0
  %466 = vmatpush2.msra.mxu0 0.0
  %467 = vmatprep.subr.mxu0 0.0
  %468 = vmatpush2.msra.mxu0 0.0
  %469 = vmatprep.subr.mxu0 0.0
  %470 = vmatpush2.msra.mxu0 0.0
  %471 = vmatprep.subr.mxu0 0.0
  %472 = vmatpush2.msra.mxu0 0.0
  %473 = vmatprep.subr.mxu0 0.0
  %474 = vmatpush2.msra.mxu0 0.0
  %475 = vmatprep.subr.mxu0 0.0
  %476 = vmatpush2.msra.mxu0 0.0
  %477 = vmatprep.subr.mxu0 0.0
  %478 = vmatpush2.msra.mxu0 0.0
  %479 = vmatprep.subr.mxu0 0.0
  %480 = vmatpush2.msra.mxu0 0.0
  %481 = vmatprep.subr.mxu0 0.0
  %482 = vmatpush2.msra.mxu0 0.0
  %483 = vmatprep.subr.mxu0 0.0
  %484 = vmatpush2.msra.mxu0 0.0
  %485 = vmatprep.subr.mxu0 0.0
  %486 = vmatpush2.msra.mxu0 0.0
  %487 = vmatprep.subr.mxu0 0.0
  %488 = vmatpush2.msra.mxu0 0.0
  %489 = vmatprep.subr.mxu0 0.0
  %490 = vmatpush2.msra.mxu0 0.0
  %491 = vmatprep.mubr.f32.mxu0 0.0
  %492 = vmatmul.mubr.f32.gmra.mxu0 %v330
  %v493 = vpop.f32.mrf.mxu0
  %v494 = vadd.f32 0.0, %v493
  %v495 = vpop.f32.mrf.mxu0
  %496 = vdwg.mxu0
  %498 = vrot.lane.b32.xlu0 %v426, 32
  %v499 = vpop.permute.xlu0 %498
  %v500 = vsel %vm169, %v499, 0
  %502 = vmatprep.subr.mxu0 0.0
  %503 = vmatpush1.msra.mxu0 0.0
  %504 = vmatprep.subr.mxu0 0.0
  %505 = vmatpush1.msra.mxu0 0.0
  %506 = vmatprep.subr.mxu0 0.0
  %507 = vmatpush1.msra.mxu0 0.0
  %508 = vmatprep.subr.mxu0 0.0
  %509 = vmatpush1.msra.mxu0 0.0
  %510 = vmatprep.subr.mxu0 0.0
  %511 = vmatpush1.msra.mxu0 0.0
  %512 = vmatprep.subr.mxu0 0.0
  %513 = vmatpush1.msra.mxu0 0.0
  %514 = vmatprep.subr.mxu0 0.0
  %515 = vmatpush1.msra.mxu0 0.0
  %516 = vmatprep.subr.mxu0 0.0
  %517 = vmatpush1.msra.mxu0 0.0
  %518 = vmatprep.subr.mxu0 0.0
  %519 = vmatpush1.msra.mxu0 0.0
  %520 = vmatprep.subr.mxu0 0.0
  %521 = vmatpush1.msra.mxu0 0.0
  %522 = vmatprep.subr.mxu0 0.0
  %523 = vmatpush1.msra.mxu0 0.0
  %524 = vmatprep.subr.mxu0 0.0
  %525 = vmatpush1.msra.mxu0 0.0
  %526 = vmatprep.subr.mxu0 0.0
  %527 = vmatpush1.msra.mxu0 %v316
  %528 = vmatprep.subr.mxu0 0.0
  %529 = vmatpush1.msra.mxu0 %v315
  %530 = vmatprep.subr.mxu0 0.0
  %531 = vmatpush1.msra.mxu0 %v314
  %532 = vmatprep.subr.mxu0 0.0
  %533 = vmatpush1.msra.mxu0 %v313
  %534 = vmatprep.subr.mxu0 0.0
  %535 = vmatpush2.msra.mxu0 0.0
  %536 = vmatprep.subr.mxu0 0.0
  %537 = vmatpush2.msra.mxu0 0.0
  %538 = vmatprep.subr.mxu0 0.0
  %539 = vmatpush2.msra.mxu0 0.0
  %540 = vmatprep.subr.mxu0 0.0
  %541 = vmatpush2.msra.mxu0 0.0
  %542 = vmatprep.subr.mxu0 0.0
  %543 = vmatpush2.msra.mxu0 0.0
  %544 = vmatprep.subr.mxu0 0.0
  %545 = vmatpush2.msra.mxu0 0.0
  %546 = vmatprep.subr.mxu0 0.0
  %547 = vmatpush2.msra.mxu0 0.0
  %548 = vmatprep.subr.mxu0 0.0
  %549 = vmatpush2.msra.mxu0 0.0
  %550 = vmatprep.subr.mxu0 0.0
  %551 = vmatpush2.msra.mxu0 0.0
  %552 = vmatprep.subr.mxu0 0.0
  %553 = vmatpush2.msra.mxu0 0.0
  %554 = vmatprep.subr.mxu0 0.0
  %555 = vmatpush2.msra.mxu0 0.0
  %556 = vmatprep.subr.mxu0 0.0
  %557 = vmatpush2.msra.mxu0 0.0
  %558 = vmatprep.subr.mxu0 0.0
  %559 = vmatpush2.msra.mxu0 0.0
  %560 = vmatprep.subr.mxu0 0.0
  %561 = vmatpush2.msra.mxu0 0.0
  %562 = vmatprep.subr.mxu0 0.0
  %563 = vmatpush2.msra.mxu0 0.0
  %564 = vmatprep.subr.mxu0 0.0
  %565 = vmatpush2.msra.mxu0 0.0
  %566 = vmatprep.mubr.f32.mxu0 0.0
  %567 = vmatmul.mubr.f32.gmra.mxu0 %v500
  %v568 = vpop.f32.mrf.mxu0
  %v569 = vadd.f32 %v494, %v568
  %v570 = vpop.f32.mrf.mxu0
  %571 = vdwg.mxu0
  %v572 = vadd.f32 %v569, %v326
  %v573 = vxor.u32 %v572, 2147483648
  %v574 = vmul.f32 %v573, 1.442695
  %v575 = vpow.pop %v574
  %v576 = vadd.f32 %v575, 1.0
  %v577 = vrcp.pop %v576
  %v578 = vmul.f32 1.0, %v577
  %v579 = vtanh.pop %v572
  %v580 = vmul.f32 %v578, 0.0
  %582 = vrot.lane.b32.xlu0 %v579, 64
  %v583 = vpop.permute.xlu0 %582
  %v585 = vmul.f32 %v578, %v583
  %587 = vrot.lane.b32.xlu0 %v585, 32
  %v588 = vpop.permute.xlu0 %587
  %v590 = vadd.f32 %v580, %v588
  %v591 = vtanh.pop %v590
  %593 = vrot.lane.b32.xlu0 %v591, 64
  %v594 = vpop.permute.xlu0 %593
  %v596 = vmul.f32 %v578, %v594
  %598 = vrot.lane.b32.xlu0 %v596, 32
  %v599 = vpop.permute.xlu0 %598
  %vm601 = vcmask 254976
  %602 = vst.msk [vmem:[%s9] sm:$0x3] %vm601, %v599
  %s603 = scalar_lea.vmem [#allocation2], 2
  %v604 = vld [vmem:[%s603] sm:$0x3]
  %605 = vmatprep.subr.mxu0 0.0
  %606 = vmatpush1.msra.mxu0 0.0
  %607 = vmatprep.subr.mxu0 0.0
  %608 = vmatpush1.msra.mxu0 0.0
  %609 = vmatprep.subr.mxu0 0.0
  %610 = vmatpush1.msra.mxu0 0.0
  %611 = vmatprep.subr.mxu0 0.0
  %612 = vmatpush1.msra.mxu0 0.0
  %613 = vmatprep.subr.mxu0 0.0
  %614 = vmatpush1.msra.mxu0 0.0
  %615 = vmatprep.subr.mxu0 0.0
  %616 = vmatpush1.msra.mxu0 0.0
  %617 = vmatprep.subr.mxu0 0.0
  %618 = vmatpush1.msra.mxu0 0.0
  %619 = vmatprep.subr.mxu0 0.0
  %620 = vmatpush1.msra.mxu0 0.0
  %621 = vmatprep.subr.mxu0 0.0
  %622 = vmatpush1.msra.mxu0 0.0
  %623 = vmatprep.subr.mxu0 0.0
  %624 = vmatpush1.msra.mxu0 0.0
  %625 = vmatprep.subr.mxu0 0.0
  %626 = vmatpush1.msra.mxu0 0.0
  %627 = vmatprep.subr.mxu0 0.0
  %628 = vmatpush1.msra.mxu0 0.0
  %629 = vmatprep.subr.mxu0 0.0
  %630 = vmatpush1.msra.mxu0 %v312
  %631 = vmatprep.subr.mxu0 0.0
  %632 = vmatpush1.msra.mxu0 %v311
  %633 = vmatprep.subr.mxu0 0.0
  %634 = vmatpush1.msra.mxu0 %v310
  %635 = vmatprep.subr.mxu0 0.0
  %636 = vmatpush1.msra.mxu0 %v309
  %637 = vmatprep.subr.mxu0 0.0
  %638 = vmatpush2.msra.mxu0 0.0
  %639 = vmatprep.subr.mxu0 0.0
  %640 = vmatpush2.msra.mxu0 0.0
  %641 = vmatprep.subr.mxu0 0.0
  %642 = vmatpush2.msra.mxu0 0.0
  %643 = vmatprep.subr.mxu0 0.0
  %644 = vmatpush2.msra.mxu0 0.0
  %645 = vmatprep.subr.mxu0 0.0
  %646 = vmatpush2.msra.mxu0 0.0
  %647 = vmatprep.subr.mxu0 0.0
  %648 = vmatpush2.msra.mxu0 0.0
  %649 = vmatprep.subr.mxu0 0.0
  %650 = vmatpush2.msra.mxu0 0.0
  %651 = vmatprep.subr.mxu0 0.0
  %652 = vmatpush2.msra.mxu0 0.0
  %653 = vmatprep.subr.mxu0 0.0
  %654 = vmatpush2.msra.mxu0 0.0
  %655 = vmatprep.subr.mxu0 0.0
  %656 = vmatpush2.msra.mxu0 0.0
  %657 = vmatprep.subr.mxu0 0.0
  %658 = vmatpush2.msra.mxu0 0.0
  %659 = vmatprep.subr.mxu0 0.0
  %660 = vmatpush2.msra.mxu0 0.0
  %661 = vmatprep.subr.mxu0 0.0
  %662 = vmatpush2.msra.mxu0 0.0
  %663 = vmatprep.subr.mxu0 0.0
  %664 = vmatpush2.msra.mxu0 0.0
  %665 = vmatprep.subr.mxu0 0.0
  %666 = vmatpush2.msra.mxu0 0.0
  %667 = vmatprep.subr.mxu0 0.0
  %668 = vmatpush2.msra.mxu0 0.0
  %669 = vmatprep.mubr.f32.mxu0 0.0
  %670 = vmatmul.mubr.f32.gmra.mxu0 %v500
  %v671 = vpop.f32.mrf.mxu0
  %v672 = vadd.f32 0.0, %v671
  %v673 = vpop.f32.mrf.mxu0
  %674 = vdwg.mxu0
  %v675 = vadd.f32 %v604, %v672
  %v676 = vxor.u32 %v675, 2147483648
  %v677 = vmul.f32 %v676, 1.442695
  %v678 = vpow.pop %v677
  %v679 = vadd.f32 %v678, 1.0
  %v680 = vrcp.pop %v679
  %v681 = vmul.f32 1.0, %v680
  %v682 = vtanh.pop %v675
  %v683 = vmul.f32 %v681, %v420
  %685 = vrot.lane.b32.xlu0 %v682, 64
  %v686 = vpop.permute.xlu0 %685
  %v688 = vmul.f32 %v681, %v686
  %690 = vrot.lane.b32.xlu0 %v688, 32
  %v691 = vpop.permute.xlu0 %690
  %v693 = vadd.f32 %v683, %v691
  %v694 = vtanh.pop %v693
  %696 = vrot.lane.b32.xlu0 %v694, 64
  %v697 = vpop.permute.xlu0 %696
  %v699 = vmul.f32 %v681, %v697
  %v700 = vsel %vm169, %v599, 0
  %702 = vmatprep.subr.mxu0 0.0
  %703 = vmatpush1.msra.mxu0 0.0
  %704 = vmatprep.subr.mxu0 0.0
  %705 = vmatpush1.msra.mxu0 0.0
  %706 = vmatprep.subr.mxu0 0.0
  %707 = vmatpush1.msra.mxu0 0.0
  %708 = vmatprep.subr.mxu0 0.0
  %709 = vmatpush1.msra.mxu0 0.0
  %710 = vmatprep.subr.mxu0 0.0
  %711 = vmatpush1.msra.mxu0 0.0
  %712 = vmatprep.subr.mxu0 0.0
  %713 = vmatpush1.msra.mxu0 0.0
  %714 = vmatprep.subr.mxu0 0.0
  %715 = vmatpush1.msra.mxu0 0.0
  %716 = vmatprep.subr.mxu0 0.0
  %717 = vmatpush1.msra.mxu0 0.0
  %718 = vmatprep.subr.mxu0 0.0
  %719 = vmatpush1.msra.mxu0 0.0
  %720 = vmatprep.subr.mxu0 0.0
  %721 = vmatpush1.msra.mxu0 0.0
  %722 = vmatprep.subr.mxu0 0.0
  %723 = vmatpush1.msra.mxu0 0.0
  %724 = vmatprep.subr.mxu0 0.0
  %725 = vmatpush1.msra.mxu0 0.0
  %726 = vmatprep.subr.mxu0 0.0
  %727 = vmatpush1.msra.mxu0 %v320
  %728 = vmatprep.subr.mxu0 0.0
  %729 = vmatpush1.msra.mxu0 %v319
  %730 = vmatprep.subr.mxu0 0.0
  %731 = vmatpush1.msra.mxu0 %v318
  %732 = vmatprep.subr.mxu0 0.0
  %733 = vmatpush1.msra.mxu0 %v317
  %734 = vmatprep.subr.mxu0 0.0
  %735 = vmatpush2.msra.mxu0 0.0
  %736 = vmatprep.subr.mxu0 0.0
  %737 = vmatpush2.msra.mxu0 0.0
  %738 = vmatprep.subr.mxu0 0.0
  %739 = vmatpush2.msra.mxu0 0.0
  %740 = vmatprep.subr.mxu0 0.0
  %741 = vmatpush2.msra.mxu0 0.0
  %742 = vmatprep.subr.mxu0 0.0
  %743 = vmatpush2.msra.mxu0 0.0
  %744 = vmatprep.subr.mxu0 0.0
  %745 = vmatpush2.msra.mxu0 0.0
  %746 = vmatprep.subr.mxu0 0.0
  %747 = vmatpush2.msra.mxu0 0.0
  %748 = vmatprep.subr.mxu0 0.0
  %749 = vmatpush2.msra.mxu0 0.0
  %750 = vmatprep.subr.mxu0 0.0
  %751 = vmatpush2.msra.mxu0 0.0
  %752 = vmatprep.subr.mxu0 0.0
  %753 = vmatpush2.msra.mxu0 0.0
  %754 = vmatprep.subr.mxu0 0.0
  %755 = vmatpush2.msra.mxu0 0.0
  %756 = vmatprep.subr.mxu0 0.0
  %757 = vmatpush2.msra.mxu0 0.0
  %758 = vmatprep.subr.mxu0 0.0
  %759 = vmatpush2.msra.mxu0 0.0
  %760 = vmatprep.subr.mxu0 0.0
  %761 = vmatpush2.msra.mxu0 0.0
  %762 = vmatprep.subr.mxu0 0.0
  %763 = vmatpush2.msra.mxu0 0.0
  %764 = vmatprep.subr.mxu0 0.0
  %765 = vmatpush2.msra.mxu0 0.0
  %766 = vmatprep.mubr.f32.mxu0 0.0
  %767 = vmatmul.mubr.f32.gmra.mxu0 %v700
  %v768 = vpop.f32.mrf.mxu0
  %v769 = vadd.f32 0.0, %v768
  %v770 = vpop.f32.mrf.mxu0
  %771 = vdwg.mxu0
  %773 = vrot.lane.b32.xlu0 %v699, 32
  %v774 = vpop.permute.xlu0 %773
  %v775 = vsel %vm169, %v774, 0
  %777 = vmatprep.subr.mxu0 0.0
  %778 = vmatpush1.msra.mxu0 0.0
  %779 = vmatprep.subr.mxu0 0.0
  %780 = vmatpush1.msra.mxu0 0.0
  %781 = vmatprep.subr.mxu0 0.0
  %782 = vmatpush1.msra.mxu0 0.0
  %783 = vmatprep.subr.mxu0 0.0
  %784 = vmatpush1.msra.mxu0 0.0
  %785 = vmatprep.subr.mxu0 0.0
  %786 = vmatpush1.msra.mxu0 0.0
  %787 = vmatprep.subr.mxu0 0.0
  %788 = vmatpush1.msra.mxu0 0.0
  %789 = vmatprep.subr.mxu0 0.0
  %790 = vmatpush1.msra.mxu0 0.0
  %791 = vmatprep.subr.mxu0 0.0
  %792 = vmatpush1.msra.mxu0 0.0
  %793 = vmatprep.subr.mxu0 0.0
  %794 = vmatpush1.msra.mxu0 0.0
  %795 = vmatprep.subr.mxu0 0.0
  %796 = vmatpush1.msra.mxu0 0.0
  %797 = vmatprep.subr.mxu0 0.0
  %798 = vmatpush1.msra.mxu0 0.0
  %799 = vmatprep.subr.mxu0 0.0
  %800 = vmatpush1.msra.mxu0 0.0
  %801 = vmatprep.subr.mxu0 0.0
  %802 = vmatpush1.msra.mxu0 %v316
  %803 = vmatprep.subr.mxu0 0.0
  %804 = vmatpush1.msra.mxu0 %v315
  %805 = vmatprep.subr.mxu0 0.0
  %806 = vmatpush1.msra.mxu0 %v314
  %807 = vmatprep.subr.mxu0 0.0
  %808 = vmatpush1.msra.mxu0 %v313
  %809 = vmatprep.subr.mxu0 0.0
  %810 = vmatpush2.msra.mxu0 0.0
  %811 = vmatprep.subr.mxu0 0.0
  %812 = vmatpush2.msra.mxu0 0.0
  %813 = vmatprep.subr.mxu0 0.0
  %814 = vmatpush2.msra.mxu0 0.0
  %815 = vmatprep.subr.mxu0 0.0
  %816 = vmatpush2.msra.mxu0 0.0
  %817 = vmatprep.subr.mxu0 0.0
  %818 = vmatpush2.msra.mxu0 0.0
  %819 = vmatprep.subr.mxu0 0.0
  %820 = vmatpush2.msra.mxu0 0.0
  %821 = vmatprep.subr.mxu0 0.0
  %822 = vmatpush2.msra.mxu0 0.0
  %823 = vmatprep.subr.mxu0 0.0
  %824 = vmatpush2.msra.mxu0 0.0
  %825 = vmatprep.subr.mxu0 0.0
  %826 = vmatpush2.msra.mxu0 0.0
  %827 = vmatprep.subr.mxu0 0.0
  %828 = vmatpush2.msra.mxu0 0.0
  %829 = vmatprep.subr.mxu0 0.0
  %830 = vmatpush2.msra.mxu0 0.0
  %831 = vmatprep.subr.mxu0 0.0
  %832 = vmatpush2.msra.mxu0 0.0
  %833 = vmatprep.subr.mxu0 0.0
  %834 = vmatpush2.msra.mxu0 0.0
  %835 = vmatprep.subr.mxu0 0.0
  %836 = vmatpush2.msra.mxu0 0.0
  %837 = vmatprep.subr.mxu0 0.0
  %838 = vmatpush2.msra.mxu0 0.0
  %839 = vmatprep.subr.mxu0 0.0
  %840 = vmatpush2.msra.mxu0 0.0
  %841 = vmatprep.mubr.f32.mxu0 0.0
  %842 = vmatmul.mubr.f32.gmra.mxu0 %v775
  %v843 = vpop.f32.mrf.mxu0
  %v844 = vadd.f32 %v769, %v843
  %v845 = vpop.f32.mrf.mxu0
  %846 = vdwg.mxu0
  %v847 = vadd.f32 %v844, %v326
  %v848 = vxor.u32 %v847, 2147483648
  %v849 = vmul.f32 %v848, 1.442695
  %v850 = vpow.pop %v849
  %v851 = vadd.f32 %v850, 1.0
  %v852 = vrcp.pop %v851
  %v853 = vmul.f32 1.0, %v852
  %v854 = vtanh.pop %v847
  %v855 = vmul.f32 %v853, %v590
  %857 = vrot.lane.b32.xlu0 %v854, 64
  %v858 = vpop.permute.xlu0 %857
  %v860 = vmul.f32 %v853, %v858
  %862 = vrot.lane.b32.xlu0 %v860, 32
  %v863 = vpop.permute.xlu0 %862
  %v865 = vadd.f32 %v855, %v863
  %v866 = vtanh.pop %v865
  %868 = vrot.lane.b32.xlu0 %v866, 64
  %v869 = vpop.permute.xlu0 %868
  %v871 = vmul.f32 %v853, %v869
  %873 = vrot.lane.b32.xlu0 %v871, 32
  %v874 = vpop.permute.xlu0 %873
  %s876 = scalar_lea.vmem %s9, 2
  %877 = vst.msk [vmem:[%s876] sm:$0x3] %vm601, %v874
  %s878 = scalar_lea.vmem [#allocation2], 4
  %v879 = vld [vmem:[%s878] sm:$0x3]
  %880 = vmatprep.subr.mxu0 0.0
  %881 = vmatpush1.msra.mxu0 0.0
  %882 = vmatprep.subr.mxu0 0.0
  %883 = vmatpush1.msra.mxu0 0.0
  %884 = vmatprep.subr.mxu0 0.0
  %885 = vmatpush1.msra.mxu0 0.0
  %886 = vmatprep.subr.mxu0 0.0
  %887 = vmatpush1.msra.mxu0 0.0
  %888 = vmatprep.subr.mxu0 0.0
  %889 = vmatpush1.msra.mxu0 0.0
  %890 = vmatprep.subr.mxu0 0.0
  %891 = vmatpush1.msra.mxu0 0.0
  %892 = vmatprep.subr.mxu0 0.0
  %893 = vmatpush1.msra.mxu0 0.0
  %894 = vmatprep.subr.mxu0 0.0
  %895 = vmatpush1.msra.mxu0 0.0
  %896 = vmatprep.subr.mxu0 0.0
  %897 = vmatpush1.msra.mxu0 0.0
  %898 = vmatprep.subr.mxu0 0.0
  %899 = vmatpush1.msra.mxu0 0.0
  %900 = vmatprep.subr.mxu0 0.0
  %901 = vmatpush1.msra.mxu0 0.0
  %902 = vmatprep.subr.mxu0 0.0
  %903 = vmatpush1.msra.mxu0 0.0
  %904 = vmatprep.subr.mxu0 0.0
  %905 = vmatpush1.msra.mxu0 %v312
  %906 = vmatprep.subr.mxu0 0.0
  %907 = vmatpush1.msra.mxu0 %v311
  %908 = vmatprep.subr.mxu0 0.0
  %909 = vmatpush1.msra.mxu0 %v310
  %910 = vmatprep.subr.mxu0 0.0
  %911 = vmatpush1.msra.mxu0 %v309
  %912 = vmatprep.subr.mxu0 0.0
  %913 = vmatpush2.msra.mxu0 0.0
  %914 = vmatprep.subr.mxu0 0.0
  %915 = vmatpush2.msra.mxu0 0.0
  %916 = vmatprep.subr.mxu0 0.0
  %917 = vmatpush2.msra.mxu0 0.0
  %918 = vmatprep.subr.mxu0 0.0
  %919 = vmatpush2.msra.mxu0 0.0
  %920 = vmatprep.subr.mxu0 0.0
  %921 = vmatpush2.msra.mxu0 0.0
  %922 = vmatprep.subr.mxu0 0.0
  %923 = vmatpush2.msra.mxu0 0.0
  %924 = vmatprep.subr.mxu0 0.0
  %925 = vmatpush2.msra.mxu0 0.0
  %926 = vmatprep.subr.mxu0 0.0
  %927 = vmatpush2.msra.mxu0 0.0
  %928 = vmatprep.subr.mxu0 0.0
  %929 = vmatpush2.msra.mxu0 0.0
  %930 = vmatprep.subr.mxu0 0.0
  %931 = vmatpush2.msra.mxu0 0.0
  %932 = vmatprep.subr.mxu0 0.0
  %933 = vmatpush2.msra.mxu0 0.0
  %934 = vmatprep.subr.mxu0 0.0
  %935 = vmatpush2.msra.mxu0 0.0
  %936 = vmatprep.subr.mxu0 0.0
  %937 = vmatpush2.msra.mxu0 0.0
  %938 = vmatprep.subr.mxu0 0.0
  %939 = vmatpush2.msra.mxu0 0.0
  %940 = vmatprep.subr.mxu0 0.0
  %941 = vmatpush2.msra.mxu0 0.0
  %942 = vmatprep.subr.mxu0 0.0
  %943 = vmatpush2.msra.mxu0 0.0
  %944 = vmatprep.mubr.f32.mxu0 0.0
  %945 = vmatmul.mubr.f32.gmra.mxu0 %v775
  %v946 = vpop.f32.mrf.mxu0
  %v947 = vadd.f32 0.0, %v946
  %v948 = vpop.f32.mrf.mxu0
  %949 = vdwg.mxu0
  %v950 = vadd.f32 %v879, %v947
  %v951 = vxor.u32 %v950, 2147483648
  %v952 = vmul.f32 %v951, 1.442695
  %v953 = vpow.pop %v952
  %v954 = vadd.f32 %v953, 1.0
  %v955 = vrcp.pop %v954
  %v956 = vmul.f32 1.0, %v955
  %v957 = vtanh.pop %v950
  %v958 = vmul.f32 %v956, %v693
  %960 = vrot.lane.b32.xlu0 %v957, 64
  %v961 = vpop.permute.xlu0 %960
  %v963 = vmul.f32 %v956, %v961
  %965 = vrot.lane.b32.xlu0 %v963, 32
  %v966 = vpop.permute.xlu0 %965
  %v968 = vadd.f32 %v958, %v966
  %v969 = vtanh.pop %v968
  %971 = vrot.lane.b32.xlu0 %v969, 64
  %v972 = vpop.permute.xlu0 %971
  %v974 = vmul.f32 %v956, %v972
  %v975 = vsel %vm169, %v874, 0
  %977 = vmatprep.subr.mxu0 0.0
  %978 = vmatpush1.msra.mxu0 0.0
  %979 = vmatprep.subr.mxu0 0.0
  %980 = vmatpush1.msra.mxu0 0.0
  %981 = vmatprep.subr.mxu0 0.0
  %982 = vmatpush1.msra.mxu0 0.0
  %983 = vmatprep.subr.mxu0 0.0
  %984 = vmatpush1.msra.mxu0 0.0
  %985 = vmatprep.subr.mxu0 0.0
  %986 = vmatpush1.msra.mxu0 0.0
  %987 = vmatprep.subr.mxu0 0.0
  %988 = vmatpush1.msra.mxu0 0.0
  %989 = vmatprep.subr.mxu0 0.0
  %990 = vmatpush1.msra.mxu0 0.0
  %991 = vmatprep.subr.mxu0 0.0
  %992 = vmatpush1.msra.mxu0 0.0
  %993 = vmatprep.subr.mxu0 0.0
  %994 = vmatpush1.msra.mxu0 0.0
  %995 = vmatprep.subr.mxu0 0.0
  %996 = vmatpush1.msra.mxu0 0.0
  %997 = vmatprep.subr.mxu0 0.0
  %998 = vmatpush1.msra.mxu0 0.0
  %999 = vmatprep.subr.mxu0 0.0
  %1000 = vmatpush1.msra.mxu0 0.0
  %1001 = vmatprep.subr.mxu0 0.0
  %1002 = vmatpush1.msra.mxu0 %v320
  %1003 = vmatprep.subr.mxu0 0.0
  %1004 = vmatpush1.msra.mxu0 %v319
  %1005 = vmatprep.subr.mxu0 0.0
  %1006 = vmatpush1.msra.mxu0 %v318
  %1007 = vmatprep.subr.mxu0 0.0
  %1008 = vmatpush1.msra.mxu0 %v317
  %1009 = vmatprep.subr.mxu0 0.0
  %1010 = vmatpush2.msra.mxu0 0.0
  %1011 = vmatprep.subr.mxu0 0.0
  %1012 = vmatpush2.msra.mxu0 0.0
  %1013 = vmatprep.subr.mxu0 0.0
  %1014 = vmatpush2.msra.mxu0 0.0
  %1015 = vmatprep.subr.mxu0 0.0
  %1016 = vmatpush2.msra.mxu0 0.0
  %1017 = vmatprep.subr.mxu0 0.0
  %1018 = vmatpush2.msra.mxu0 0.0
  %1019 = vmatprep.subr.mxu0 0.0
  %1020 = vmatpush2.msra.mxu0 0.0
  %1021 = vmatprep.subr.mxu0 0.0
  %1022 = vmatpush2.msra.mxu0 0.0
  %1023 = vmatprep.subr.mxu0 0.0
  %1024 = vmatpush2.msra.mxu0 0.0
  %1025 = vmatprep.subr.mxu0 0.0
  %1026 = vmatpush2.msra.mxu0 0.0
  %1027 = vmatprep.subr.mxu0 0.0
  %1028 = vmatpush2.msra.mxu0 0.0
  %1029 = vmatprep.subr.mxu0 0.0
  %1030 = vmatpush2.msra.mxu0 0.0
  %1031 = vmatprep.subr.mxu0 0.0
  %1032 = vmatpush2.msra.mxu0 0.0
  %1033 = vmatprep.subr.mxu0 0.0
  %1034 = vmatpush2.msra.mxu0 0.0
  %1035 = vmatprep.subr.mxu0 0.0
  %1036 = vmatpush2.msra.mxu0 0.0
  %1037 = vmatprep.subr.mxu0 0.0
  %1038 = vmatpush2.msra.mxu0 0.0
  %1039 = vmatprep.subr.mxu0 0.0
  %1040 = vmatpush2.msra.mxu0 0.0
  %1041 = vmatprep.mubr.f32.mxu0 0.0
  %1042 = vmatmul.mubr.f32.gmra.mxu0 %v975
  %v1043 = vpop.f32.mrf.mxu0
  %v1044 = vadd.f32 0.0, %v1043
  %v1045 = vpop.f32.mrf.mxu0
  %1046 = vdwg.mxu0
  %1048 = vrot.lane.b32.xlu0 %v974, 32
  %v1049 = vpop.permute.xlu0 %1048
  %v1050 = vsel %vm169, %v1049, 0
  %1052 = vmatprep.subr.mxu0 0.0
  %1053 = vmatpush1.msra.mxu0 0.0
  %1054 = vmatprep.subr.mxu0 0.0
  %1055 = vmatpush1.msra.mxu0 0.0
  %1056 = vmatprep.subr.mxu0 0.0
  %1057 = vmatpush1.msra.mxu0 0.0
  %1058 = vmatprep.subr.mxu0 0.0
  %1059 = vmatpush1.msra.mxu0 0.0
  %1060 = vmatprep.subr.mxu0 0.0
  %1061 = vmatpush1.msra.mxu0 0.0
  %1062 = vmatprep.subr.mxu0 0.0
  %1063 = vmatpush1.msra.mxu0 0.0
  %1064 = vmatprep.subr.mxu0 0.0
  %1065 = vmatpush1.msra.mxu0 0.0
  %1066 = vmatprep.subr.mxu0 0.0
  %1067 = vmatpush1.msra.mxu0 0.0
  %1068 = vmatprep.subr.mxu0 0.0
  %1069 = vmatpush1.msra.mxu0 0.0
  %1070 = vmatprep.subr.mxu0 0.0
  %1071 = vmatpush1.msra.mxu0 0.0
  %1072 = vmatprep.subr.mxu0 0.0
  %1073 = vmatpush1.msra.mxu0 0.0
  %1074 = vmatprep.subr.mxu0 0.0
  %1075 = vmatpush1.msra.mxu0 0.0
  %1076 = vmatprep.subr.mxu0 0.0
  %1077 = vmatpush1.msra.mxu0 %v316
  %1078 = vmatprep.subr.mxu0 0.0
  %1079 = vmatpush1.msra.mxu0 %v315
  %1080 = vmatprep.subr.mxu0 0.0
  %1081 = vmatpush1.msra.mxu0 %v314
  %1082 = vmatprep.subr.mxu0 0.0
  %1083 = vmatpush1.msra.mxu0 %v313
  %1084 = vmatprep.subr.mxu0 0.0
  %1085 = vmatpush2.msra.mxu0 0.0
  %1086 = vmatprep.subr.mxu0 0.0
  %1087 = vmatpush2.msra.mxu0 0.0
  %1088 = vmatprep.subr.mxu0 0.0
  %1089 = vmatpush2.msra.mxu0 0.0
  %1090 = vmatprep.subr.mxu0 0.0
  %1091 = vmatpush2.msra.mxu0 0.0
  %1092 = vmatprep.subr.mxu0 0.0
  %1093 = vmatpush2.msra.mxu0 0.0
  %1094 = vmatprep.subr.mxu0 0.0
  %1095 = vmatpush2.msra.mxu0 0.0
  %1096 = vmatprep.subr.mxu0 0.0
  %1097 = vmatpush2.msra.mxu0 0.0
  %1098 = vmatprep.subr.mxu0 0.0
  %1099 = vmatpush2.msra.mxu0 0.0
  %1100 = vmatprep.subr.mxu0 0.0
  %1101 = vmatpush2.msra.mxu0 0.0
  %1102 = vmatprep.subr.mxu0 0.0
  %1103 = vmatpush2.msra.mxu0 0.0
  %1104 = vmatprep.subr.mxu0 0.0
  %1105 = vmatpush2.msra.mxu0 0.0
  %1106 = vmatprep.subr.mxu0 0.0
  %1107 = vmatpush2.msra.mxu0 0.0
  %1108 = vmatprep.subr.mxu0 0.0
  %1109 = vmatpush2.msra.mxu0 0.0
  %1110 = vmatprep.subr.mxu0 0.0
  %1111 = vmatpush2.msra.mxu0 0.0
  %1112 = vmatprep.subr.mxu0 0.0
  %1113 = vmatpush2.msra.mxu0 0.0
  %1114 = vmatprep.subr.mxu0 0.0
  %1115 = vmatpush2.msra.mxu0 0.0
  %1116 = vmatprep.mubr.f32.mxu0 0.0
  %1117 = vmatmul.mubr.f32.gmra.mxu0 %v1050
  %v1118 = vpop.f32.mrf.mxu0
  %v1119 = vadd.f32 %v1044, %v1118
  %v1120 = vpop.f32.mrf.mxu0
  %1121 = vdwg.mxu0
  %v1122 = vadd.f32 %v1119, %v326
  %v1123 = vxor.u32 %v1122, 2147483648
  %v1124 = vmul.f32 %v1123, 1.442695
  %v1125 = vpow.pop %v1124
  %v1126 = vadd.f32 %v1125, 1.0
  %v1127 = vrcp.pop %v1126
  %v1128 = vmul.f32 1.0, %v1127
  %v1129 = vtanh.pop %v1122
  %v1130 = vmul.f32 %v1128, %v865
  %1132 = vrot.lane.b32.xlu0 %v1129, 64
  %v1133 = vpop.permute.xlu0 %1132
  %v1135 = vmul.f32 %v1128, %v1133
  %1137 = vrot.lane.b32.xlu0 %v1135, 32
  %v1138 = vpop.permute.xlu0 %1137
  %v1140 = vadd.f32 %v1130, %v1138
  %v1141 = vtanh.pop %v1140
  %1143 = vrot.lane.b32.xlu0 %v1141, 64
  %v1144 = vpop.permute.xlu0 %1143
  %v1146 = vmul.f32 %v1128, %v1144
  %1148 = vrot.lane.b32.xlu0 %v1146, 32
  %v1149 = vpop.permute.xlu0 %1148
  %s1151 = scalar_lea.vmem %s9, 4
  %1152 = vst.msk [vmem:[%s1151] sm:$0x3] %vm601, %v1149
  %s1153 = scalar_lea.vmem [#allocation2], 6
  %v1154 = vld [vmem:[%s1153] sm:$0x3]
  %1155 = vmatprep.subr.mxu0 0.0
  %1156 = vmatpush1.msra.mxu0 0.0
  %1157 = vmatprep.subr.mxu0 0.0
  %1158 = vmatpush1.msra.mxu0 0.0
  %1159 = vmatprep.subr.mxu0 0.0
  %1160 = vmatpush1.msra.mxu0 0.0
  %1161 = vmatprep.subr.mxu0 0.0
  %1162 = vmatpush1.msra.mxu0 0.0
  %1163 = vmatprep.subr.mxu0 0.0
  %1164 = vmatpush1.msra.mxu0 0.0
  %1165 = vmatprep.subr.mxu0 0.0
  %1166 = vmatpush1.msra.mxu0 0.0
  %1167 = vmatprep.subr.mxu0 0.0
  %1168 = vmatpush1.msra.mxu0 0.0
  %1169 = vmatprep.subr.mxu0 0.0
  %1170 = vmatpush1.msra.mxu0 0.0
  %1171 = vmatprep.subr.mxu0 0.0
  %1172 = vmatpush1.msra.mxu0 0.0
  %1173 = vmatprep.subr.mxu0 0.0
  %1174 = vmatpush1.msra.mxu0 0.0
  %1175 = vmatprep.subr.mxu0 0.0
  %1176 = vmatpush1.msra.mxu0 0.0
  %1177 = vmatprep.subr.mxu0 0.0
  %1178 = vmatpush1.msra.mxu0 0.0
  %1179 = vmatprep.subr.mxu0 0.0
  %1180 = vmatpush1.msra.mxu0 %v312
  %1181 = vmatprep.subr.mxu0 0.0
  %1182 = vmatpush1.msra.mxu0 %v311
  %1183 = vmatprep.subr.mxu0 0.0
  %1184 = vmatpush1.msra.mxu0 %v310
  %1185 = vmatprep.subr.mxu0 0.0
  %1186 = vmatpush1.msra.mxu0 %v309
  %1187 = vmatprep.subr.mxu0 0.0
  %1188 = vmatpush2.msra.mxu0 0.0
  %1189 = vmatprep.subr.mxu0 0.0
  %1190 = vmatpush2.msra.mxu0 0.0
  %1191 = vmatprep.subr.mxu0 0.0
  %1192 = vmatpush2.msra.mxu0 0.0
  %1193 = vmatprep.subr.mxu0 0.0
  %1194 = vmatpush2.msra.mxu0 0.0
  %1195 = vmatprep.subr.mxu0 0.0
  %1196 = vmatpush2.msra.mxu0 0.0
  %1197 = vmatprep.subr.mxu0 0.0
  %1198 = vmatpush2.msra.mxu0 0.0
  %1199 = vmatprep.subr.mxu0 0.0
  %1200 = vmatpush2.msra.mxu0 0.0
  %1201 = vmatprep.subr.mxu0 0.0
  %1202 = vmatpush2.msra.mxu0 0.0
  %1203 = vmatprep.subr.mxu0 0.0
  %1204 = vmatpush2.msra.mxu0 0.0
  %1205 = vmatprep.subr.mxu0 0.0
  %1206 = vmatpush2.msra.mxu0 0.0
  %1207 = vmatprep.subr.mxu0 0.0
  %1208 = vmatpush2.msra.mxu0 0.0
  %1209 = vmatprep.subr.mxu0 0.0
  %1210 = vmatpush2.msra.mxu0 0.0
  %1211 = vmatprep.subr.mxu0 0.0
  %1212 = vmatpush2.msra.mxu0 0.0
  %1213 = vmatprep.subr.mxu0 0.0
  %1214 = vmatpush2.msra.mxu0 0.0
  %1215 = vmatprep.subr.mxu0 0.0
  %1216 = vmatpush2.msra.mxu0 0.0
  %1217 = vmatprep.subr.mxu0 0.0
  %1218 = vmatpush2.msra.mxu0 0.0
  %1219 = vmatprep.mubr.f32.mxu0 0.0
  %1220 = vmatmul.mubr.f32.gmra.mxu0 %v1050
  %v1221 = vpop.f32.mrf.mxu0
  %v1222 = vadd.f32 0.0, %v1221
  %v1223 = vpop.f32.mrf.mxu0
  %1224 = vdwg.mxu0
  %v1225 = vadd.f32 %v1154, %v1222
  %v1226 = vxor.u32 %v1225, 2147483648
  %v1227 = vmul.f32 %v1226, 1.442695
  %v1228 = vpow.pop %v1227
  %v1229 = vadd.f32 %v1228, 1.0
  %v1230 = vrcp.pop %v1229
  %v1231 = vmul.f32 1.0, %v1230
  %v1232 = vtanh.pop %v1225
  %v1233 = vmul.f32 %v1231, %v968
  %1235 = vrot.lane.b32.xlu0 %v1232, 64
  %v1236 = vpop.permute.xlu0 %1235
  %v1238 = vmul.f32 %v1231, %v1236
  %1240 = vrot.lane.b32.xlu0 %v1238, 32
  %v1241 = vpop.permute.xlu0 %1240
  %v1243 = vadd.f32 %v1233, %v1241
  %v1244 = vtanh.pop %v1243
  %1246 = vrot.lane.b32.xlu0 %v1244, 64
  %v1247 = vpop.permute.xlu0 %1246
  %v1249 = vmul.f32 %v1231, %v1247
  %v1250 = vsel %vm169, %v1149, 0
  %1252 = vmatprep.subr.mxu0 0.0
  %1253 = vmatpush1.msra.mxu0 0.0
  %1254 = vmatprep.subr.mxu0 0.0
  %1255 = vmatpush1.msra.mxu0 0.0
  %1256 = vmatprep.subr.mxu0 0.0
  %1257 = vmatpush1.msra.mxu0 0.0
  %1258 = vmatprep.subr.mxu0 0.0
  %1259 = vmatpush1.msra.mxu0 0.0
  %1260 = vmatprep.subr.mxu0 0.0
  %1261 = vmatpush1.msra.mxu0 0.0
  %1262 = vmatprep.subr.mxu0 0.0
  %1263 = vmatpush1.msra.mxu0 0.0
  %1264 = vmatprep.subr.mxu0 0.0
  %1265 = vmatpush1.msra.mxu0 0.0
  %1266 = vmatprep.subr.mxu0 0.0
  %1267 = vmatpush1.msra.mxu0 0.0
  %1268 = vmatprep.subr.mxu0 0.0
  %1269 = vmatpush1.msra.mxu0 0.0
  %1270 = vmatprep.subr.mxu0 0.0
  %1271 = vmatpush1.msra.mxu0 0.0
  %1272 = vmatprep.subr.mxu0 0.0
  %1273 = vmatpush1.msra.mxu0 0.0
  %1274 = vmatprep.subr.mxu0 0.0
  %1275 = vmatpush1.msra.mxu0 0.0
  %1276 = vmatprep.subr.mxu0 0.0
  %1277 = vmatpush1.msra.mxu0 %v320
  %1278 = vmatprep.subr.mxu0 0.0
  %1279 = vmatpush1.msra.mxu0 %v319
  %1280 = vmatprep.subr.mxu0 0.0
  %1281 = vmatpush1.msra.mxu0 %v318
  %1282 = vmatprep.subr.mxu0 0.0
  %1283 = vmatpush1.msra.mxu0 %v317
  %1284 = vmatprep.subr.mxu0 0.0
  %1285 = vmatpush2.msra.mxu0 0.0
  %1286 = vmatprep.subr.mxu0 0.0
  %1287 = vmatpush2.msra.mxu0 0.0
  %1288 = vmatprep.subr.mxu0 0.0
  %1289 = vmatpush2.msra.mxu0 0.0
  %1290 = vmatprep.subr.mxu0 0.0
  %1291 = vmatpush2.msra.mxu0 0.0
  %1292 = vmatprep.subr.mxu0 0.0
  %1293 = vmatpush2.msra.mxu0 0.0
  %1294 = vmatprep.subr.mxu0 0.0
  %1295 = vmatpush2.msra.mxu0 0.0
  %1296 = vmatprep.subr.mxu0 0.0
  %1297 = vmatpush2.msra.mxu0 0.0
  %1298 = vmatprep.subr.mxu0 0.0
  %1299 = vmatpush2.msra.mxu0 0.0
  %1300 = vmatprep.subr.mxu0 0.0
  %1301 = vmatpush2.msra.mxu0 0.0
  %1302 = vmatprep.subr.mxu0 0.0
  %1303 = vmatpush2.msra.mxu0 0.0
  %1304 = vmatprep.subr.mxu0 0.0
  %1305 = vmatpush2.msra.mxu0 0.0
  %1306 = vmatprep.subr.mxu0 0.0
  %1307 = vmatpush2.msra.mxu0 0.0
  %1308 = vmatprep.subr.mxu0 0.0
  %1309 = vmatpush2.msra.mxu0 0.0
  %1310 = vmatprep.subr.mxu0 0.0
  %1311 = vmatpush2.msra.mxu0 0.0
  %1312 = vmatprep.subr.mxu0 0.0
  %1313 = vmatpush2.msra.mxu0 0.0
  %1314 = vmatprep.subr.mxu0 0.0
  %1315 = vmatpush2.msra.mxu0 0.0
  %1316 = vmatprep.mubr.f32.mxu0 0.0
  %1317 = vmatmul.mubr.f32.gmra.mxu0 %v1250
  %v1318 = vpop.f32.mrf.mxu0
  %v1319 = vadd.f32 0.0, %v1318
  %v1320 = vpop.f32.mrf.mxu0
  %1321 = vdwg.mxu0
  %1323 = vrot.lane.b32.xlu0 %v1249, 32
  %v1324 = vpop.permute.xlu0 %1323
  %v1325 = vsel %vm169, %v1324, 0
  %1327 = vmatprep.subr.mxu0 0.0
  %1328 = vmatpush1.msra.mxu0 0.0
  %1329 = vmatprep.subr.mxu0 0.0
  %1330 = vmatpush1.msra.mxu0 0.0
  %1331 = vmatprep.subr.mxu0 0.0
  %1332 = vmatpush1.msra.mxu0 0.0
  %1333 = vmatprep.subr.mxu0 0.0
  %1334 = vmatpush1.msra.mxu0 0.0
  %1335 = vmatprep.subr.mxu0 0.0
  %1336 = vmatpush1.msra.mxu0 0.0
  %1337 = vmatprep.subr.mxu0 0.0
  %1338 = vmatpush1.msra.mxu0 0.0
  %1339 = vmatprep.subr.mxu0 0.0
  %1340 = vmatpush1.msra.mxu0 0.0
  %1341 = vmatprep.subr.mxu0 0.0
  %1342 = vmatpush1.msra.mxu0 0.0
  %1343 = vmatprep.subr.mxu0 0.0
  %1344 = vmatpush1.msra.mxu0 0.0
  %1345 = vmatprep.subr.mxu0 0.0
  %1346 = vmatpush1.msra.mxu0 0.0
  %1347 = vmatprep.subr.mxu0 0.0
  %1348 = vmatpush1.msra.mxu0 0.0
  %1349 = vmatprep.subr.mxu0 0.0
  %1350 = vmatpush1.msra.mxu0 0.0
  %1351 = vmatprep.subr.mxu0 0.0
  %1352 = vmatpush1.msra.mxu0 %v316
  %1353 = vmatprep.subr.mxu0 0.0
  %1354 = vmatpush1.msra.mxu0 %v315
  %1355 = vmatprep.subr.mxu0 0.0
  %1356 = vmatpush1.msra.mxu0 %v314
  %1357 = vmatprep.subr.mxu0 0.0
  %1358 = vmatpush1.msra.mxu0 %v313
  %1359 = vmatprep.subr.mxu0 0.0
  %1360 = vmatpush2.msra.mxu0 0.0
  %1361 = vmatprep.subr.mxu0 0.0
  %1362 = vmatpush2.msra.mxu0 0.0
  %1363 = vmatprep.subr.mxu0 0.0
  %1364 = vmatpush2.msra.mxu0 0.0
  %1365 = vmatprep.subr.mxu0 0.0
  %1366 = vmatpush2.msra.mxu0 0.0
  %1367 = vmatprep.subr.mxu0 0.0
  %1368 = vmatpush2.msra.mxu0 0.0
  %1369 = vmatprep.subr.mxu0 0.0
  %1370 = vmatpush2.msra.mxu0 0.0
  %1371 = vmatprep.subr.mxu0 0.0
  %1372 = vmatpush2.msra.mxu0 0.0
  %1373 = vmatprep.subr.mxu0 0.0
  %1374 = vmatpush2.msra.mxu0 0.0
  %1375 = vmatprep.subr.mxu0 0.0
  %1376 = vmatpush2.msra.mxu0 0.0
  %1377 = vmatprep.subr.mxu0 0.0
  %1378 = vmatpush2.msra.mxu0 0.0
  %1379 = vmatprep.subr.mxu0 0.0
  %1380 = vmatpush2.msra.mxu0 0.0
  %1381 = vmatprep.subr.mxu0 0.0
  %1382 = vmatpush2.msra.mxu0 0.0
  %1383 = vmatprep.subr.mxu0 0.0
  %1384 = vmatpush2.msra.mxu0 0.0
  %1385 = vmatprep.subr.mxu0 0.0
  %1386 = vmatpush2.msra.mxu0 0.0
  %1387 = vmatprep.subr.mxu0 0.0
  %1388 = vmatpush2.msra.mxu0 0.0
  %1389 = vmatprep.subr.mxu0 0.0
  %1390 = vmatpush2.msra.mxu0 0.0
  %1391 = vmatprep.mubr.f32.mxu0 0.0
  %1392 = vmatmul.mubr.f32.gmra.mxu0 %v1325
  %v1393 = vpop.f32.mrf.mxu0
  %v1394 = vadd.f32 %v1319, %v1393
  %v1395 = vpop.f32.mrf.mxu0
  %1396 = vdwg.mxu0
  %v1397 = vadd.f32 %v1394, %v326
  %v1398 = vxor.u32 %v1397, 2147483648
  %v1399 = vmul.f32 %v1398, 1.442695
  %v1400 = vpow.pop %v1399
  %v1401 = vadd.f32 %v1400, 1.0
  %v1402 = vrcp.pop %v1401
  %v1403 = vmul.f32 1.0, %v1402
  %v1404 = vtanh.pop %v1397
  %v1405 = vmul.f32 %v1403, %v1140
  %1407 = vrot.lane.b32.xlu0 %v1404, 64
  %v1408 = vpop.permute.xlu0 %1407
  %v1410 = vmul.f32 %v1403, %v1408
  %1412 = vrot.lane.b32.xlu0 %v1410, 32
  %v1413 = vpop.permute.xlu0 %1412
  %v1415 = vadd.f32 %v1405, %v1413
  %v1416 = vtanh.pop %v1415
  %1418 = vrot.lane.b32.xlu0 %v1416, 64
  %v1419 = vpop.permute.xlu0 %1418
  %v1421 = vmul.f32 %v1403, %v1419
  %1423 = vrot.lane.b32.xlu0 %v1421, 32
  %v1424 = vpop.permute.xlu0 %1423
  %s1426 = scalar_lea.vmem %s9, 6
  %1427 = vst.msk [vmem:[%s1426] sm:$0x3] %vm601, %v1424
  %s1428 = scalar_lea.vmem [#allocation2], 8
  %v1429 = vld [vmem:[%s1428] sm:$0x3]
  %1430 = vmatprep.subr.mxu0 0.0
  %1431 = vmatpush1.msra.mxu0 0.0
  %1432 = vmatprep.subr.mxu0 0.0
  %1433 = vmatpush1.msra.mxu0 0.0
  %1434 = vmatprep.subr.mxu0 0.0
  %1435 = vmatpush1.msra.mxu0 0.0
  %1436 = vmatprep.subr.mxu0 0.0
  %1437 = vmatpush1.msra.mxu0 0.0
  %1438 = vmatprep.subr.mxu0 0.0
  %1439 = vmatpush1.msra.mxu0 0.0
  %1440 = vmatprep.subr.mxu0 0.0
  %1441 = vmatpush1.msra.mxu0 0.0
  %1442 = vmatprep.subr.mxu0 0.0
  %1443 = vmatpush1.msra.mxu0 0.0
  %1444 = vmatprep.subr.mxu0 0.0
  %1445 = vmatpush1.msra.mxu0 0.0
  %1446 = vmatprep.subr.mxu0 0.0
  %1447 = vmatpush1.msra.mxu0 0.0
  %1448 = vmatprep.subr.mxu0 0.0
  %1449 = vmatpush1.msra.mxu0 0.0
  %1450 = vmatprep.subr.mxu0 0.0
  %1451 = vmatpush1.msra.mxu0 0.0
  %1452 = vmatprep.subr.mxu0 0.0
  %1453 = vmatpush1.msra.mxu0 0.0
  %1454 = vmatprep.subr.mxu0 0.0
  %1455 = vmatpush1.msra.mxu0 %v312
  %1456 = vmatprep.subr.mxu0 0.0
  %1457 = vmatpush1.msra.mxu0 %v311
  %1458 = vmatprep.subr.mxu0 0.0
  %1459 = vmatpush1.msra.mxu0 %v310
  %1460 = vmatprep.subr.mxu0 0.0
  %1461 = vmatpush1.msra.mxu0 %v309
  %1462 = vmatprep.subr.mxu0 0.0
  %1463 = vmatpush2.msra.mxu0 0.0
  %1464 = vmatprep.subr.mxu0 0.0
  %1465 = vmatpush2.msra.mxu0 0.0
  %1466 = vmatprep.subr.mxu0 0.0
  %1467 = vmatpush2.msra.mxu0 0.0
  %1468 = vmatprep.subr.mxu0 0.0
  %1469 = vmatpush2.msra.mxu0 0.0
  %1470 = vmatprep.subr.mxu0 0.0
  %1471 = vmatpush2.msra.mxu0 0.0
  %1472 = vmatprep.subr.mxu0 0.0
  %1473 = vmatpush2.msra.mxu0 0.0
  %1474 = vmatprep.subr.mxu0 0.0
  %1475 = vmatpush2.msra.mxu0 0.0
  %1476 = vmatprep.subr.mxu0 0.0
  %1477 = vmatpush2.msra.mxu0 0.0
  %1478 = vmatprep.subr.mxu0 0.0
  %1479 = vmatpush2.msra.mxu0 0.0
  %1480 = vmatprep.subr.mxu0 0.0
  %1481 = vmatpush2.msra.mxu0 0.0
  %1482 = vmatprep.subr.mxu0 0.0
  %1483 = vmatpush2.msra.mxu0 0.0
  %1484 = vmatprep.subr.mxu0 0.0
  %1485 = vmatpush2.msra.mxu0 0.0
  %1486 = vmatprep.subr.mxu0 0.0
  %1487 = vmatpush2.msra.mxu0 0.0
  %1488 = vmatprep.subr.mxu0 0.0
  %1489 = vmatpush2.msra.mxu0 0.0
  %1490 = vmatprep.subr.mxu0 0.0
  %1491 = vmatpush2.msra.mxu0 0.0
  %1492 = vmatprep.subr.mxu0 0.0
  %1493 = vmatpush2.msra.mxu0 0.0
  %1494 = vmatprep.mubr.f32.mxu0 0.0
  %1495 = vmatmul.mubr.f32.gmra.mxu0 %v1325
  %v1496 = vpop.f32.mrf.mxu0
  %v1497 = vadd.f32 0.0, %v1496
  %v1498 = vpop.f32.mrf.mxu0
  %1499 = vdwg.mxu0
  %v1500 = vadd.f32 %v1429, %v1497
  %v1501 = vxor.u32 %v1500, 2147483648
  %v1502 = vmul.f32 %v1501, 1.442695
  %v1503 = vpow.pop %v1502
  %v1504 = vadd.f32 %v1503, 1.0
  %v1505 = vrcp.pop %v1504
  %v1506 = vmul.f32 1.0, %v1505
  %v1507 = vtanh.pop %v1500
  %v1508 = vmul.f32 %v1506, %v1243
  %1510 = vrot.lane.b32.xlu0 %v1507, 64
  %v1511 = vpop.permute.xlu0 %1510
  %v1513 = vmul.f32 %v1506, %v1511
  %1515 = vrot.lane.b32.xlu0 %v1513, 32
  %v1516 = vpop.permute.xlu0 %1515
  %v1518 = vadd.f32 %v1508, %v1516
  %v1519 = vtanh.pop %v1518
  %1521 = vrot.lane.b32.xlu0 %v1519, 64
  %v1522 = vpop.permute.xlu0 %1521
  %v1524 = vmul.f32 %v1506, %v1522
  %v1525 = vsel %vm169, %v1424, 0
  %1527 = vmatprep.subr.mxu0 0.0
  %1528 = vmatpush1.msra.mxu0 0.0
  %1529 = vmatprep.subr.mxu0 0.0
  %1530 = vmatpush1.msra.mxu0 0.0
  %1531 = vmatprep.subr.mxu0 0.0
  %1532 = vmatpush1.msra.mxu0 0.0
  %1533 = vmatprep.subr.mxu0 0.0
  %1534 = vmatpush1.msra.mxu0 0.0
  %1535 = vmatprep.subr.mxu0 0.0
  %1536 = vmatpush1.msra.mxu0 0.0
  %1537 = vmatprep.subr.mxu0 0.0
  %1538 = vmatpush1.msra.mxu0 0.0
  %1539 = vmatprep.subr.mxu0 0.0
  %1540 = vmatpush1.msra.mxu0 0.0
  %1541 = vmatprep.subr.mxu0 0.0
  %1542 = vmatpush1.msra.mxu0 0.0
  %1543 = vmatprep.subr.mxu0 0.0
  %1544 = vmatpush1.msra.mxu0 0.0
  %1545 = vmatprep.subr.mxu0 0.0
  %1546 = vmatpush1.msra.mxu0 0.0
  %1547 = vmatprep.subr.mxu0 0.0
  %1548 = vmatpush1.msra.mxu0 0.0
  %1549 = vmatprep.subr.mxu0 0.0
  %1550 = vmatpush1.msra.mxu0 0.0
  %1551 = vmatprep.subr.mxu0 0.0
  %1552 = vmatpush1.msra.mxu0 %v320
  %1553 = vmatprep.subr.mxu0 0.0
  %1554 = vmatpush1.msra.mxu0 %v319
  %1555 = vmatprep.subr.mxu0 0.0
  %1556 = vmatpush1.msra.mxu0 %v318
  %1557 = vmatprep.subr.mxu0 0.0
  %1558 = vmatpush1.msra.mxu0 %v317
  %1559 = vmatprep.subr.mxu0 0.0
  %1560 = vmatpush2.msra.mxu0 0.0
  %1561 = vmatprep.subr.mxu0 0.0
  %1562 = vmatpush2.msra.mxu0 0.0
  %1563 = vmatprep.subr.mxu0 0.0
  %1564 = vmatpush2.msra.mxu0 0.0
  %1565 = vmatprep.subr.mxu0 0.0
  %1566 = vmatpush2.msra.mxu0 0.0
  %1567 = vmatprep.subr.mxu0 0.0
  %1568 = vmatpush2.msra.mxu0 0.0
  %1569 = vmatprep.subr.mxu0 0.0
  %1570 = vmatpush2.msra.mxu0 0.0
  %1571 = vmatprep.subr.mxu0 0.0
  %1572 = vmatpush2.msra.mxu0 0.0
  %1573 = vmatprep.subr.mxu0 0.0
  %1574 = vmatpush2.msra.mxu0 0.0
  %1575 = vmatprep.subr.mxu0 0.0
  %1576 = vmatpush2.msra.mxu0 0.0
  %1577 = vmatprep.subr.mxu0 0.0
  %1578 = vmatpush2.msra.mxu0 0.0
  %1579 = vmatprep.subr.mxu0 0.0
  %1580 = vmatpush2.msra.mxu0 0.0
  %1581 = vmatprep.subr.mxu0 0.0
  %1582 = vmatpush2.msra.mxu0 0.0
  %1583 = vmatprep.subr.mxu0 0.0
  %1584 = vmatpush2.msra.mxu0 0.0
  %1585 = vmatprep.subr.mxu0 0.0
  %1586 = vmatpush2.msra.mxu0 0.0
  %1587 = vmatprep.subr.mxu0 0.0
  %1588 = vmatpush2.msra.mxu0 0.0
  %1589 = vmatprep.subr.mxu0 0.0
  %1590 = vmatpush2.msra.mxu0 0.0
  %1591 = vmatprep.mubr.f32.mxu0 0.0
  %1592 = vmatmul.mubr.f32.gmra.mxu0 %v1525
  %v1593 = vpop.f32.mrf.mxu0
  %v1594 = vadd.f32 0.0, %v1593
  %v1595 = vpop.f32.mrf.mxu0
  %1596 = vdwg.mxu0
  %1598 = vrot.lane.b32.xlu0 %v1524, 32
  %v1599 = vpop.permute.xlu0 %1598
  %v1600 = vsel %vm169, %v1599, 0
  %1602 = vmatprep.subr.mxu0 0.0
  %1603 = vmatpush1.msra.mxu0 0.0
  %1604 = vmatprep.subr.mxu0 0.0
  %1605 = vmatpush1.msra.mxu0 0.0
  %1606 = vmatprep.subr.mxu0 0.0
  %1607 = vmatpush1.msra.mxu0 0.0
  %1608 = vmatprep.subr.mxu0 0.0
  %1609 = vmatpush1.msra.mxu0 0.0
  %1610 = vmatprep.subr.mxu0 0.0
  %1611 = vmatpush1.msra.mxu0 0.0
  %1612 = vmatprep.subr.mxu0 0.0
  %1613 = vmatpush1.msra.mxu0 0.0
  %1614 = vmatprep.subr.mxu0 0.0
  %1615 = vmatpush1.msra.mxu0 0.0
  %1616 = vmatprep.subr.mxu0 0.0
  %1617 = vmatpush1.msra.mxu0 0.0
  %1618 = vmatprep.subr.mxu0 0.0
  %1619 = vmatpush1.msra.mxu0 0.0
  %1620 = vmatprep.subr.mxu0 0.0
  %1621 = vmatpush1.msra.mxu0 0.0
  %1622 = vmatprep.subr.mxu0 0.0
  %1623 = vmatpush1.msra.mxu0 0.0
  %1624 = vmatprep.subr.mxu0 0.0
  %1625 = vmatpush1.msra.mxu0 0.0
  %1626 = vmatprep.subr.mxu0 0.0
  %1627 = vmatpush1.msra.mxu0 %v316
  %1628 = vmatprep.subr.mxu0 0.0
  %1629 = vmatpush1.msra.mxu0 %v315
  %1630 = vmatprep.subr.mxu0 0.0
  %1631 = vmatpush1.msra.mxu0 %v314
  %1632 = vmatprep.subr.mxu0 0.0
  %1633 = vmatpush1.msra.mxu0 %v313
  %1634 = vmatprep.subr.mxu0 0.0
  %1635 = vmatpush2.msra.mxu0 0.0
  %1636 = vmatprep.subr.mxu0 0.0
  %1637 = vmatpush2.msra.mxu0 0.0
  %1638 = vmatprep.subr.mxu0 0.0
  %1639 = vmatpush2.msra.mxu0 0.0
  %1640 = vmatprep.subr.mxu0 0.0
  %1641 = vmatpush2.msra.mxu0 0.0
  %1642 = vmatprep.subr.mxu0 0.0
  %1643 = vmatpush2.msra.mxu0 0.0
  %1644 = vmatprep.subr.mxu0 0.0
  %1645 = vmatpush2.msra.mxu0 0.0
  %1646 = vmatprep.subr.mxu0 0.0
  %1647 = vmatpush2.msra.mxu0 0.0
  %1648 = vmatprep.subr.mxu0 0.0
  %1649 = vmatpush2.msra.mxu0 0.0
  %1650 = vmatprep.subr.mxu0 0.0
  %1651 = vmatpush2.msra.mxu0 0.0
  %1652 = vmatprep.subr.mxu0 0.0
  %1653 = vmatpush2.msra.mxu0 0.0
  %1654 = vmatprep.subr.mxu0 0.0
  %1655 = vmatpush2.msra.mxu0 0.0
  %1656 = vmatprep.subr.mxu0 0.0
  %1657 = vmatpush2.msra.mxu0 0.0
  %1658 = vmatprep.subr.mxu0 0.0
  %1659 = vmatpush2.msra.mxu0 0.0
  %1660 = vmatprep.subr.mxu0 0.0
  %1661 = vmatpush2.msra.mxu0 0.0
  %1662 = vmatprep.subr.mxu0 0.0
  %1663 = vmatpush2.msra.mxu0 0.0
  %1664 = vmatprep.subr.mxu0 0.0
  %1665 = vmatpush2.msra.mxu0 0.0
  %1666 = vmatprep.mubr.f32.mxu0 0.0
  %1667 = vmatmul.mubr.f32.gmra.mxu0 %v1600
  %v1668 = vpop.f32.mrf.mxu0
  %v1669 = vadd.f32 %v1594, %v1668
  %v1670 = vpop.f32.mrf.mxu0
  %1671 = vdwg.mxu0
  %v1672 = vadd.f32 %v1669, %v326
  %v1673 = vxor.u32 %v1672, 2147483648
  %v1674 = vmul.f32 %v1673, 1.442695
  %v1675 = vpow.pop %v1674
  %v1676 = vadd.f32 %v1675, 1.0
  %v1677 = vrcp.pop %v1676
  %v1678 = vmul.f32 1.0, %v1677
  %v1679 = vtanh.pop %v1672
  %v1680 = vmul.f32 %v1678, %v1415
  %1682 = vrot.lane.b32.xlu0 %v1679, 64
  %v1683 = vpop.permute.xlu0 %1682
  %v1685 = vmul.f32 %v1678, %v1683
  %1687 = vrot.lane.b32.xlu0 %v1685, 32
  %v1688 = vpop.permute.xlu0 %1687
  %v1690 = vadd.f32 %v1680, %v1688
  %v1691 = vtanh.pop %v1690
  %1693 = vrot.lane.b32.xlu0 %v1691, 64
  %v1694 = vpop.permute.xlu0 %1693
  %v1696 = vmul.f32 %v1678, %v1694
  %1698 = vrot.lane.b32.xlu0 %v1696, 32
  %v1699 = vpop.permute.xlu0 %1698
  %s1701 = scalar_lea.vmem %s9, 8
  %1702 = vst.msk [vmem:[%s1701] sm:$0x3] %vm601, %v1699
  %s1703 = scalar_lea.vmem [#allocation2], 10
  %v1704 = vld [vmem:[%s1703] sm:$0x3]
  %1705 = vmatprep.subr.mxu0 0.0
  %1706 = vmatpush1.msra.mxu0 0.0
  %1707 = vmatprep.subr.mxu0 0.0
  %1708 = vmatpush1.msra.mxu0 0.0
  %1709 = vmatprep.subr.mxu0 0.0
  %1710 = vmatpush1.msra.mxu0 0.0
  %1711 = vmatprep.subr.mxu0 0.0
  %1712 = vmatpush1.msra.mxu0 0.0
  %1713 = vmatprep.subr.mxu0 0.0
  %1714 = vmatpush1.msra.mxu0 0.0
  %1715 = vmatprep.subr.mxu0 0.0
  %1716 = vmatpush1.msra.mxu0 0.0
  %1717 = vmatprep.subr.mxu0 0.0
  %1718 = vmatpush1.msra.mxu0 0.0
  %1719 = vmatprep.subr.mxu0 0.0
  %1720 = vmatpush1.msra.mxu0 0.0
  %1721 = vmatprep.subr.mxu0 0.0
  %1722 = vmatpush1.msra.mxu0 0.0
  %1723 = vmatprep.subr.mxu0 0.0
  %1724 = vmatpush1.msra.mxu0 0.0
  %1725 = vmatprep.subr.mxu0 0.0
  %1726 = vmatpush1.msra.mxu0 0.0
  %1727 = vmatprep.subr.mxu0 0.0
  %1728 = vmatpush1.msra.mxu0 0.0
  %1729 = vmatprep.subr.mxu0 0.0
  %1730 = vmatpush1.msra.mxu0 %v312
  %1731 = vmatprep.subr.mxu0 0.0
  %1732 = vmatpush1.msra.mxu0 %v311
  %1733 = vmatprep.subr.mxu0 0.0
  %1734 = vmatpush1.msra.mxu0 %v310
  %1735 = vmatprep.subr.mxu0 0.0
  %1736 = vmatpush1.msra.mxu0 %v309
  %1737 = vmatprep.subr.mxu0 0.0
  %1738 = vmatpush2.msra.mxu0 0.0
  %1739 = vmatprep.subr.mxu0 0.0
  %1740 = vmatpush2.msra.mxu0 0.0
  %1741 = vmatprep.subr.mxu0 0.0
  %1742 = vmatpush2.msra.mxu0 0.0
  %1743 = vmatprep.subr.mxu0 0.0
  %1744 = vmatpush2.msra.mxu0 0.0
  %1745 = vmatprep.subr.mxu0 0.0
  %1746 = vmatpush2.msra.mxu0 0.0
  %1747 = vmatprep.subr.mxu0 0.0
  %1748 = vmatpush2.msra.mxu0 0.0
  %1749 = vmatprep.subr.mxu0 0.0
  %1750 = vmatpush2.msra.mxu0 0.0
  %1751 = vmatprep.subr.mxu0 0.0
  %1752 = vmatpush2.msra.mxu0 0.0
  %1753 = vmatprep.subr.mxu0 0.0
  %1754 = vmatpush2.msra.mxu0 0.0
  %1755 = vmatprep.subr.mxu0 0.0
  %1756 = vmatpush2.msra.mxu0 0.0
  %1757 = vmatprep.subr.mxu0 0.0
  %1758 = vmatpush2.msra.mxu0 0.0
  %1759 = vmatprep.subr.mxu0 0.0
  %1760 = vmatpush2.msra.mxu0 0.0
  %1761 = vmatprep.subr.mxu0 0.0
  %1762 = vmatpush2.msra.mxu0 0.0
  %1763 = vmatprep.subr.mxu0 0.0
  %1764 = vmatpush2.msra.mxu0 0.0
  %1765 = vmatprep.subr.mxu0 0.0
  %1766 = vmatpush2.msra.mxu0 0.0
  %1767 = vmatprep.subr.mxu0 0.0
  %1768 = vmatpush2.msra.mxu0 0.0
  %1769 = vmatprep.mubr.f32.mxu0 0.0
  %1770 = vmatmul.mubr.f32.gmra.mxu0 %v1600
  %v1771 = vpop.f32.mrf.mxu0
  %v1772 = vadd.f32 0.0, %v1771
  %v1773 = vpop.f32.mrf.mxu0
  %1774 = vdwg.mxu0
  %v1775 = vadd.f32 %v1704, %v1772
  %v1776 = vxor.u32 %v1775, 2147483648
  %v1777 = vmul.f32 %v1776, 1.442695
  %v1778 = vpow.pop %v1777
  %v1779 = vadd.f32 %v1778, 1.0
  %v1780 = vrcp.pop %v1779
  %v1781 = vmul.f32 1.0, %v1780
  %v1782 = vtanh.pop %v1775
  %v1783 = vmul.f32 %v1781, %v1518
  %1785 = vrot.lane.b32.xlu0 %v1782, 64
  %v1786 = vpop.permute.xlu0 %1785
  %v1788 = vmul.f32 %v1781, %v1786
  %1790 = vrot.lane.b32.xlu0 %v1788, 32
  %v1791 = vpop.permute.xlu0 %1790
  %v1793 = vadd.f32 %v1783, %v1791
  %v1794 = vtanh.pop %v1793
  %1796 = vrot.lane.b32.xlu0 %v1794, 64
  %v1797 = vpop.permute.xlu0 %1796
  %v1799 = vmul.f32 %v1781, %v1797
  %v1800 = vsel %vm169, %v1699, 0
  %1802 = vmatprep.subr.mxu0 0.0
  %1803 = vmatpush1.msra.mxu0 0.0
  %1804 = vmatprep.subr.mxu0 0.0
  %1805 = vmatpush1.msra.mxu0 0.0
  %1806 = vmatprep.subr.mxu0 0.0
  %1807 = vmatpush1.msra.mxu0 0.0
  %1808 = vmatprep.subr.mxu0 0.0
  %1809 = vmatpush1.msra.mxu0 0.0
  %1810 = vmatprep.subr.mxu0 0.0
  %1811 = vmatpush1.msra.mxu0 0.0
  %1812 = vmatprep.subr.mxu0 0.0
  %1813 = vmatpush1.msra.mxu0 0.0
  %1814 = vmatprep.subr.mxu0 0.0
  %1815 = vmatpush1.msra.mxu0 0.0
  %1816 = vmatprep.subr.mxu0 0.0
  %1817 = vmatpush1.msra.mxu0 0.0
  %1818 = vmatprep.subr.mxu0 0.0
  %1819 = vmatpush1.msra.mxu0 0.0
  %1820 = vmatprep.subr.mxu0 0.0
  %1821 = vmatpush1.msra.mxu0 0.0
  %1822 = vmatprep.subr.mxu0 0.0
  %1823 = vmatpush1.msra.mxu0 0.0
  %1824 = vmatprep.subr.mxu0 0.0
  %1825 = vmatpush1.msra.mxu0 0.0
  %1826 = vmatprep.subr.mxu0 0.0
  %1827 = vmatpush1.msra.mxu0 %v320
  %1828 = vmatprep.subr.mxu0 0.0
  %1829 = vmatpush1.msra.mxu0 %v319
  %1830 = vmatprep.subr.mxu0 0.0
  %1831 = vmatpush1.msra.mxu0 %v318
  %1832 = vmatprep.subr.mxu0 0.0
  %1833 = vmatpush1.msra.mxu0 %v317
  %1834 = vmatprep.subr.mxu0 0.0
  %1835 = vmatpush2.msra.mxu0 0.0
  %1836 = vmatprep.subr.mxu0 0.0
  %1837 = vmatpush2.msra.mxu0 0.0
  %1838 = vmatprep.subr.mxu0 0.0
  %1839 = vmatpush2.msra.mxu0 0.0
  %1840 = vmatprep.subr.mxu0 0.0
  %1841 = vmatpush2.msra.mxu0 0.0
  %1842 = vmatprep.subr.mxu0 0.0
  %1843 = vmatpush2.msra.mxu0 0.0
  %1844 = vmatprep.subr.mxu0 0.0
  %1845 = vmatpush2.msra.mxu0 0.0
  %1846 = vmatprep.subr.mxu0 0.0
  %1847 = vmatpush2.msra.mxu0 0.0
  %1848 = vmatprep.subr.mxu0 0.0
  %1849 = vmatpush2.msra.mxu0 0.0
  %1850 = vmatprep.subr.mxu0 0.0
  %1851 = vmatpush2.msra.mxu0 0.0
  %1852 = vmatprep.subr.mxu0 0.0
  %1853 = vmatpush2.msra.mxu0 0.0
  %1854 = vmatprep.subr.mxu0 0.0
  %1855 = vmatpush2.msra.mxu0 0.0
  %1856 = vmatprep.subr.mxu0 0.0
  %1857 = vmatpush2.msra.mxu0 0.0
  %1858 = vmatprep.subr.mxu0 0.0
  %1859 = vmatpush2.msra.mxu0 0.0
  %1860 = vmatprep.subr.mxu0 0.0
  %1861 = vmatpush2.msra.mxu0 0.0
  %1862 = vmatprep.subr.mxu0 0.0
  %1863 = vmatpush2.msra.mxu0 0.0
  %1864 = vmatprep.subr.mxu0 0.0
  %1865 = vmatpush2.msra.mxu0 0.0
  %1866 = vmatprep.mubr.f32.mxu0 0.0
  %1867 = vmatmul.mubr.f32.gmra.mxu0 %v1800
  %v1868 = vpop.f32.mrf.mxu0
  %v1869 = vadd.f32 0.0, %v1868
  %v1870 = vpop.f32.mrf.mxu0
  %1871 = vdwg.mxu0
  %1873 = vrot.lane.b32.xlu0 %v1799, 32
  %v1874 = vpop.permute.xlu0 %1873
  %v1875 = vsel %vm169, %v1874, 0
  %1877 = vmatprep.subr.mxu0 0.0
  %1878 = vmatpush1.msra.mxu0 0.0
  %1879 = vmatprep.subr.mxu0 0.0
  %1880 = vmatpush1.msra.mxu0 0.0
  %1881 = vmatprep.subr.mxu0 0.0
  %1882 = vmatpush1.msra.mxu0 0.0
  %1883 = vmatprep.subr.mxu0 0.0
  %1884 = vmatpush1.msra.mxu0 0.0
  %1885 = vmatprep.subr.mxu0 0.0
  %1886 = vmatpush1.msra.mxu0 0.0
  %1887 = vmatprep.subr.mxu0 0.0
  %1888 = vmatpush1.msra.mxu0 0.0
  %1889 = vmatprep.subr.mxu0 0.0
  %1890 = vmatpush1.msra.mxu0 0.0
  %1891 = vmatprep.subr.mxu0 0.0
  %1892 = vmatpush1.msra.mxu0 0.0
  %1893 = vmatprep.subr.mxu0 0.0
  %1894 = vmatpush1.msra.mxu0 0.0
  %1895 = vmatprep.subr.mxu0 0.0
  %1896 = vmatpush1.msra.mxu0 0.0
  %1897 = vmatprep.subr.mxu0 0.0
  %1898 = vmatpush1.msra.mxu0 0.0
  %1899 = vmatprep.subr.mxu0 0.0
  %1900 = vmatpush1.msra.mxu0 0.0
  %1901 = vmatprep.subr.mxu0 0.0
  %1902 = vmatpush1.msra.mxu0 %v316
  %1903 = vmatprep.subr.mxu0 0.0
  %1904 = vmatpush1.msra.mxu0 %v315
  %1905 = vmatprep.subr.mxu0 0.0
  %1906 = vmatpush1.msra.mxu0 %v314
  %1907 = vmatprep.subr.mxu0 0.0
  %1908 = vmatpush1.msra.mxu0 %v313
  %1909 = vmatprep.subr.mxu0 0.0
  %1910 = vmatpush2.msra.mxu0 0.0
  %1911 = vmatprep.subr.mxu0 0.0
  %1912 = vmatpush2.msra.mxu0 0.0
  %1913 = vmatprep.subr.mxu0 0.0
  %1914 = vmatpush2.msra.mxu0 0.0
  %1915 = vmatprep.subr.mxu0 0.0
  %1916 = vmatpush2.msra.mxu0 0.0
  %1917 = vmatprep.subr.mxu0 0.0
  %1918 = vmatpush2.msra.mxu0 0.0
  %1919 = vmatprep.subr.mxu0 0.0
  %1920 = vmatpush2.msra.mxu0 0.0
  %1921 = vmatprep.subr.mxu0 0.0
  %1922 = vmatpush2.msra.mxu0 0.0
  %1923 = vmatprep.subr.mxu0 0.0
  %1924 = vmatpush2.msra.mxu0 0.0
  %1925 = vmatprep.subr.mxu0 0.0
  %1926 = vmatpush2.msra.mxu0 0.0
  %1927 = vmatprep.subr.mxu0 0.0
  %1928 = vmatpush2.msra.mxu0 0.0
  %1929 = vmatprep.subr.mxu0 0.0
  %1930 = vmatpush2.msra.mxu0 0.0
  %1931 = vmatprep.subr.mxu0 0.0
  %1932 = vmatpush2.msra.mxu0 0.0
  %1933 = vmatprep.subr.mxu0 0.0
  %1934 = vmatpush2.msra.mxu0 0.0
  %1935 = vmatprep.subr.mxu0 0.0
  %1936 = vmatpush2.msra.mxu0 0.0
  %1937 = vmatprep.subr.mxu0 0.0
  %1938 = vmatpush2.msra.mxu0 0.0
  %1939 = vmatprep.subr.mxu0 0.0
  %1940 = vmatpush2.msra.mxu0 0.0
  %1941 = vmatprep.mubr.f32.mxu0 0.0
  %1942 = vmatmul.mubr.f32.gmra.mxu0 %v1875
  %v1943 = vpop.f32.mrf.mxu0
  %v1944 = vadd.f32 %v1869, %v1943
  %v1945 = vpop.f32.mrf.mxu0
  %1946 = vdwg.mxu0
  %v1947 = vadd.f32 %v1944, %v326
  %v1948 = vxor.u32 %v1947, 2147483648
  %v1949 = vmul.f32 %v1948, 1.442695
  %v1950 = vpow.pop %v1949
  %v1951 = vadd.f32 %v1950, 1.0
  %v1952 = vrcp.pop %v1951
  %v1953 = vmul.f32 1.0, %v1952
  %v1954 = vtanh.pop %v1947
  %v1955 = vmul.f32 %v1953, %v1690
  %1957 = vrot.lane.b32.xlu0 %v1954, 64
  %v1958 = vpop.permute.xlu0 %1957
  %v1960 = vmul.f32 %v1953, %v1958
  %1962 = vrot.lane.b32.xlu0 %v1960, 32
  %v1963 = vpop.permute.xlu0 %1962
  %v1965 = vadd.f32 %v1955, %v1963
  %v1966 = vtanh.pop %v1965
  %1968 = vrot.lane.b32.xlu0 %v1966, 64
  %v1969 = vpop.permute.xlu0 %1968
  %v1971 = vmul.f32 %v1953, %v1969
  %1973 = vrot.lane.b32.xlu0 %v1971, 32
  %v1974 = vpop.permute.xlu0 %1973
  %s1976 = scalar_lea.vmem %s9, 10
  %1977 = vst.msk [vmem:[%s1976] sm:$0x3] %vm601, %v1974
  %s1978 = scalar_lea.vmem [#allocation2], 12
  %v1979 = vld [vmem:[%s1978] sm:$0x3]
  %1980 = vmatprep.subr.mxu0 0.0
  %1981 = vmatpush1.msra.mxu0 0.0
  %1982 = vmatprep.subr.mxu0 0.0
  %1983 = vmatpush1.msra.mxu0 0.0
  %1984 = vmatprep.subr.mxu0 0.0
  %1985 = vmatpush1.msra.mxu0 0.0
  %1986 = vmatprep.subr.mxu0 0.0
  %1987 = vmatpush1.msra.mxu0 0.0
  %1988 = vmatprep.subr.mxu0 0.0
  %1989 = vmatpush1.msra.mxu0 0.0
  %1990 = vmatprep.subr.mxu0 0.0
  %1991 = vmatpush1.msra.mxu0 0.0
  %1992 = vmatprep.subr.mxu0 0.0
  %1993 = vmatpush1.msra.mxu0 0.0
  %1994 = vmatprep.subr.mxu0 0.0
  %1995 = vmatpush1.msra.mxu0 0.0
  %1996 = vmatprep.subr.mxu0 0.0
  %1997 = vmatpush1.msra.mxu0 0.0
  %1998 = vmatprep.subr.mxu0 0.0
  %1999 = vmatpush1.msra.mxu0 0.0
  %2000 = vmatprep.subr.mxu0 0.0
  %2001 = vmatpush1.msra.mxu0 0.0
  %2002 = vmatprep.subr.mxu0 0.0
  %2003 = vmatpush1.msra.mxu0 0.0
  %2004 = vmatprep.subr.mxu0 0.0
  %2005 = vmatpush1.msra.mxu0 %v312
  %2006 = vmatprep.subr.mxu0 0.0
  %2007 = vmatpush1.msra.mxu0 %v311
  %2008 = vmatprep.subr.mxu0 0.0
  %2009 = vmatpush1.msra.mxu0 %v310
  %2010 = vmatprep.subr.mxu0 0.0
  %2011 = vmatpush1.msra.mxu0 %v309
  %2012 = vmatprep.subr.mxu0 0.0
  %2013 = vmatpush2.msra.mxu0 0.0
  %2014 = vmatprep.subr.mxu0 0.0
  %2015 = vmatpush2.msra.mxu0 0.0
  %2016 = vmatprep.subr.mxu0 0.0
  %2017 = vmatpush2.msra.mxu0 0.0
  %2018 = vmatprep.subr.mxu0 0.0
  %2019 = vmatpush2.msra.mxu0 0.0
  %2020 = vmatprep.subr.mxu0 0.0
  %2021 = vmatpush2.msra.mxu0 0.0
  %2022 = vmatprep.subr.mxu0 0.0
  %2023 = vmatpush2.msra.mxu0 0.0
  %2024 = vmatprep.subr.mxu0 0.0
  %2025 = vmatpush2.msra.mxu0 0.0
  %2026 = vmatprep.subr.mxu0 0.0
  %2027 = vmatpush2.msra.mxu0 0.0
  %2028 = vmatprep.subr.mxu0 0.0
  %2029 = vmatpush2.msra.mxu0 0.0
  %2030 = vmatprep.subr.mxu0 0.0
  %2031 = vmatpush2.msra.mxu0 0.0
  %2032 = vmatprep.subr.mxu0 0.0
  %2033 = vmatpush2.msra.mxu0 0.0
  %2034 = vmatprep.subr.mxu0 0.0
  %2035 = vmatpush2.msra.mxu0 0.0
  %2036 = vmatprep.subr.mxu0 0.0
  %2037 = vmatpush2.msra.mxu0 0.0
  %2038 = vmatprep.subr.mxu0 0.0
  %2039 = vmatpush2.msra.mxu0 0.0
  %2040 = vmatprep.subr.mxu0 0.0
  %2041 = vmatpush2.msra.mxu0 0.0
  %2042 = vmatprep.subr.mxu0 0.0
  %2043 = vmatpush2.msra.mxu0 0.0
  %2044 = vmatprep.mubr.f32.mxu0 0.0
  %2045 = vmatmul.mubr.f32.gmra.mxu0 %v1875
  %v2046 = vpop.f32.mrf.mxu0
  %v2047 = vadd.f32 0.0, %v2046
  %v2048 = vpop.f32.mrf.mxu0
  %2049 = vdwg.mxu0
  %v2050 = vadd.f32 %v1979, %v2047
  %v2051 = vxor.u32 %v2050, 2147483648
  %v2052 = vmul.f32 %v2051, 1.442695
  %v2053 = vpow.pop %v2052
  %v2054 = vadd.f32 %v2053, 1.0
  %v2055 = vrcp.pop %v2054
  %v2056 = vmul.f32 1.0, %v2055
  %v2057 = vtanh.pop %v2050
  %v2058 = vmul.f32 %v2056, %v1793
  %2060 = vrot.lane.b32.xlu0 %v2057, 64
  %v2061 = vpop.permute.xlu0 %2060
  %v2063 = vmul.f32 %v2056, %v2061
  %2065 = vrot.lane.b32.xlu0 %v2063, 32
  %v2066 = vpop.permute.xlu0 %2065
  %v2068 = vadd.f32 %v2058, %v2066
  %v2069 = vtanh.pop %v2068
  %2071 = vrot.lane.b32.xlu0 %v2069, 64
  %v2072 = vpop.permute.xlu0 %2071
  %v2074 = vmul.f32 %v2056, %v2072
  %v2075 = vsel %vm169, %v1974, 0
  %2077 = vmatprep.subr.mxu0 0.0
  %2078 = vmatpush1.msra.mxu0 0.0
  %2079 = vmatprep.subr.mxu0 0.0
  %2080 = vmatpush1.msra.mxu0 0.0
  %2081 = vmatprep.subr.mxu0 0.0
  %2082 = vmatpush1.msra.mxu0 0.0
  %2083 = vmatprep.subr.mxu0 0.0
  %2084 = vmatpush1.msra.mxu0 0.0
  %2085 = vmatprep.subr.mxu0 0.0
  %2086 = vmatpush1.msra.mxu0 0.0
  %2087 = vmatprep.subr.mxu0 0.0
  %2088 = vmatpush1.msra.mxu0 0.0
  %2089 = vmatprep.subr.mxu0 0.0
  %2090 = vmatpush1.msra.mxu0 0.0
  %2091 = vmatprep.subr.mxu0 0.0
  %2092 = vmatpush1.msra.mxu0 0.0
  %2093 = vmatprep.subr.mxu0 0.0
  %2094 = vmatpush1.msra.mxu0 0.0
  %2095 = vmatprep.subr.mxu0 0.0
  %2096 = vmatpush1.msra.mxu0 0.0
  %2097 = vmatprep.subr.mxu0 0.0
  %2098 = vmatpush1.msra.mxu0 0.0
  %2099 = vmatprep.subr.mxu0 0.0
  %2100 = vmatpush1.msra.mxu0 0.0
  %2101 = vmatprep.subr.mxu0 0.0
  %2102 = vmatpush1.msra.mxu0 %v320
  %2103 = vmatprep.subr.mxu0 0.0
  %2104 = vmatpush1.msra.mxu0 %v319
  %2105 = vmatprep.subr.mxu0 0.0
  %2106 = vmatpush1.msra.mxu0 %v318
  %2107 = vmatprep.subr.mxu0 0.0
  %2108 = vmatpush1.msra.mxu0 %v317
  %2109 = vmatprep.subr.mxu0 0.0
  %2110 = vmatpush2.msra.mxu0 0.0
  %2111 = vmatprep.subr.mxu0 0.0
  %2112 = vmatpush2.msra.mxu0 0.0
  %2113 = vmatprep.subr.mxu0 0.0
  %2114 = vmatpush2.msra.mxu0 0.0
  %2115 = vmatprep.subr.mxu0 0.0
  %2116 = vmatpush2.msra.mxu0 0.0
  %2117 = vmatprep.subr.mxu0 0.0
  %2118 = vmatpush2.msra.mxu0 0.0
  %2119 = vmatprep.subr.mxu0 0.0
  %2120 = vmatpush2.msra.mxu0 0.0
  %2121 = vmatprep.subr.mxu0 0.0
  %2122 = vmatpush2.msra.mxu0 0.0
  %2123 = vmatprep.subr.mxu0 0.0
  %2124 = vmatpush2.msra.mxu0 0.0
  %2125 = vmatprep.subr.mxu0 0.0
  %2126 = vmatpush2.msra.mxu0 0.0
  %2127 = vmatprep.subr.mxu0 0.0
  %2128 = vmatpush2.msra.mxu0 0.0
  %2129 = vmatprep.subr.mxu0 0.0
  %2130 = vmatpush2.msra.mxu0 0.0
  %2131 = vmatprep.subr.mxu0 0.0
  %2132 = vmatpush2.msra.mxu0 0.0
  %2133 = vmatprep.subr.mxu0 0.0
  %2134 = vmatpush2.msra.mxu0 0.0
  %2135 = vmatprep.subr.mxu0 0.0
  %2136 = vmatpush2.msra.mxu0 0.0
  %2137 = vmatprep.subr.mxu0 0.0
  %2138 = vmatpush2.msra.mxu0 0.0
  %2139 = vmatprep.subr.mxu0 0.0
  %2140 = vmatpush2.msra.mxu0 0.0
  %2141 = vmatprep.mubr.f32.mxu0 0.0
  %2142 = vmatmul.mubr.f32.gmra.mxu0 %v2075
  %v2143 = vpop.f32.mrf.mxu0
  %v2144 = vadd.f32 0.0, %v2143
  %v2145 = vpop.f32.mrf.mxu0
  %2146 = vdwg.mxu0
  %2148 = vrot.lane.b32.xlu0 %v2074, 32
  %v2149 = vpop.permute.xlu0 %2148
  %v2150 = vsel %vm169, %v2149, 0
  %2152 = vmatprep.subr.mxu0 0.0
  %2153 = vmatpush1.msra.mxu0 0.0
  %2154 = vmatprep.subr.mxu0 0.0
  %2155 = vmatpush1.msra.mxu0 0.0
  %2156 = vmatprep.subr.mxu0 0.0
  %2157 = vmatpush1.msra.mxu0 0.0
  %2158 = vmatprep.subr.mxu0 0.0
  %2159 = vmatpush1.msra.mxu0 0.0
  %2160 = vmatprep.subr.mxu0 0.0
  %2161 = vmatpush1.msra.mxu0 0.0
  %2162 = vmatprep.subr.mxu0 0.0
  %2163 = vmatpush1.msra.mxu0 0.0
  %2164 = vmatprep.subr.mxu0 0.0
  %2165 = vmatpush1.msra.mxu0 0.0
  %2166 = vmatprep.subr.mxu0 0.0
  %2167 = vmatpush1.msra.mxu0 0.0
  %2168 = vmatprep.subr.mxu0 0.0
  %2169 = vmatpush1.msra.mxu0 0.0
  %2170 = vmatprep.subr.mxu0 0.0
  %2171 = vmatpush1.msra.mxu0 0.0
  %2172 = vmatprep.subr.mxu0 0.0
  %2173 = vmatpush1.msra.mxu0 0.0
  %2174 = vmatprep.subr.mxu0 0.0
  %2175 = vmatpush1.msra.mxu0 0.0
  %2176 = vmatprep.subr.mxu0 0.0
  %2177 = vmatpush1.msra.mxu0 %v316
  %2178 = vmatprep.subr.mxu0 0.0
  %2179 = vmatpush1.msra.mxu0 %v315
  %2180 = vmatprep.subr.mxu0 0.0
  %2181 = vmatpush1.msra.mxu0 %v314
  %2182 = vmatprep.subr.mxu0 0.0
  %2183 = vmatpush1.msra.mxu0 %v313
  %2184 = vmatprep.subr.mxu0 0.0
  %2185 = vmatpush2.msra.mxu0 0.0
  %2186 = vmatprep.subr.mxu0 0.0
  %2187 = vmatpush2.msra.mxu0 0.0
  %2188 = vmatprep.subr.mxu0 0.0
  %2189 = vmatpush2.msra.mxu0 0.0
  %2190 = vmatprep.subr.mxu0 0.0
  %2191 = vmatpush2.msra.mxu0 0.0
  %2192 = vmatprep.subr.mxu0 0.0
  %2193 = vmatpush2.msra.mxu0 0.0
  %2194 = vmatprep.subr.mxu0 0.0
  %2195 = vmatpush2.msra.mxu0 0.0
  %2196 = vmatprep.subr.mxu0 0.0
  %2197 = vmatpush2.msra.mxu0 0.0
  %2198 = vmatprep.subr.mxu0 0.0
  %2199 = vmatpush2.msra.mxu0 0.0
  %2200 = vmatprep.subr.mxu0 0.0
  %2201 = vmatpush2.msra.mxu0 0.0
  %2202 = vmatprep.subr.mxu0 0.0
  %2203 = vmatpush2.msra.mxu0 0.0
  %2204 = vmatprep.subr.mxu0 0.0
  %2205 = vmatpush2.msra.mxu0 0.0
  %2206 = vmatprep.subr.mxu0 0.0
  %2207 = vmatpush2.msra.mxu0 0.0
  %2208 = vmatprep.subr.mxu0 0.0
  %2209 = vmatpush2.msra.mxu0 0.0
  %2210 = vmatprep.subr.mxu0 0.0
  %2211 = vmatpush2.msra.mxu0 0.0
  %2212 = vmatprep.subr.mxu0 0.0
  %2213 = vmatpush2.msra.mxu0 0.0
  %2214 = vmatprep.subr.mxu0 0.0
  %2215 = vmatpush2.msra.mxu0 0.0
  %2216 = vmatprep.mubr.f32.mxu0 0.0
  %2217 = vmatmul.mubr.f32.gmra.mxu0 %v2150
  %v2218 = vpop.f32.mrf.mxu0
  %v2219 = vadd.f32 %v2144, %v2218
  %v2220 = vpop.f32.mrf.mxu0
  %2221 = vdwg.mxu0
  %v2222 = vadd.f32 %v2219, %v326
  %v2223 = vxor.u32 %v2222, 2147483648
  %v2224 = vmul.f32 %v2223, 1.442695
  %v2225 = vpow.pop %v2224
  %v2226 = vadd.f32 %v2225, 1.0
  %v2227 = vrcp.pop %v2226
  %v2228 = vmul.f32 1.0, %v2227
  %v2229 = vtanh.pop %v2222
  %v2230 = vmul.f32 %v2228, %v1965
  %2232 = vrot.lane.b32.xlu0 %v2229, 64
  %v2233 = vpop.permute.xlu0 %2232
  %v2235 = vmul.f32 %v2228, %v2233
  %2237 = vrot.lane.b32.xlu0 %v2235, 32
  %v2238 = vpop.permute.xlu0 %2237
  %v2240 = vadd.f32 %v2230, %v2238
  %v2241 = vtanh.pop %v2240
  %2243 = vrot.lane.b32.xlu0 %v2241, 64
  %v2244 = vpop.permute.xlu0 %2243
  %v2246 = vmul.f32 %v2228, %v2244
  %2248 = vrot.lane.b32.xlu0 %v2246, 32
  %v2249 = vpop.permute.xlu0 %2248
  %s2251 = scalar_lea.vmem %s9, 12
  %2252 = vst.msk [vmem:[%s2251] sm:$0x3] %vm601, %v2249
  %s2253 = scalar_lea.vmem [#allocation2], 14
  %v2254 = vld [vmem:[%s2253] sm:$0x3]
  %2255 = vmatprep.subr.mxu0 0.0
  %2256 = vmatpush1.msra.mxu0 0.0
  %2257 = vmatprep.subr.mxu0 0.0
  %2258 = vmatpush1.msra.mxu0 0.0
  %2259 = vmatprep.subr.mxu0 0.0
  %2260 = vmatpush1.msra.mxu0 0.0
  %2261 = vmatprep.subr.mxu0 0.0
  %2262 = vmatpush1.msra.mxu0 0.0
  %2263 = vmatprep.subr.mxu0 0.0
  %2264 = vmatpush1.msra.mxu0 0.0
  %2265 = vmatprep.subr.mxu0 0.0
  %2266 = vmatpush1.msra.mxu0 0.0
  %2267 = vmatprep.subr.mxu0 0.0
  %2268 = vmatpush1.msra.mxu0 0.0
  %2269 = vmatprep.subr.mxu0 0.0
  %2270 = vmatpush1.msra.mxu0 0.0
  %2271 = vmatprep.subr.mxu0 0.0
  %2272 = vmatpush1.msra.mxu0 0.0
  %2273 = vmatprep.subr.mxu0 0.0
  %2274 = vmatpush1.msra.mxu0 0.0
  %2275 = vmatprep.subr.mxu0 0.0
  %2276 = vmatpush1.msra.mxu0 0.0
  %2277 = vmatprep.subr.mxu0 0.0
  %2278 = vmatpush1.msra.mxu0 0.0
  %2279 = vmatprep.subr.mxu0 0.0
  %2280 = vmatpush1.msra.mxu0 %v312
  %2281 = vmatprep.subr.mxu0 0.0
  %2282 = vmatpush1.msra.mxu0 %v311
  %2283 = vmatprep.subr.mxu0 0.0
  %2284 = vmatpush1.msra.mxu0 %v310
  %2285 = vmatprep.subr.mxu0 0.0
  %2286 = vmatpush1.msra.mxu0 %v309
  %2287 = vmatprep.subr.mxu0 0.0
  %2288 = vmatpush2.msra.mxu0 0.0
  %2289 = vmatprep.subr.mxu0 0.0
  %2290 = vmatpush2.msra.mxu0 0.0
  %2291 = vmatprep.subr.mxu0 0.0
  %2292 = vmatpush2.msra.mxu0 0.0
  %2293 = vmatprep.subr.mxu0 0.0
  %2294 = vmatpush2.msra.mxu0 0.0
  %2295 = vmatprep.subr.mxu0 0.0
  %2296 = vmatpush2.msra.mxu0 0.0
  %2297 = vmatprep.subr.mxu0 0.0
  %2298 = vmatpush2.msra.mxu0 0.0
  %2299 = vmatprep.subr.mxu0 0.0
  %2300 = vmatpush2.msra.mxu0 0.0
  %2301 = vmatprep.subr.mxu0 0.0
  %2302 = vmatpush2.msra.mxu0 0.0
  %2303 = vmatprep.subr.mxu0 0.0
  %2304 = vmatpush2.msra.mxu0 0.0
  %2305 = vmatprep.subr.mxu0 0.0
  %2306 = vmatpush2.msra.mxu0 0.0
  %2307 = vmatprep.subr.mxu0 0.0
  %2308 = vmatpush2.msra.mxu0 0.0
  %2309 = vmatprep.subr.mxu0 0.0
  %2310 = vmatpush2.msra.mxu0 0.0
  %2311 = vmatprep.subr.mxu0 0.0
  %2312 = vmatpush2.msra.mxu0 0.0
  %2313 = vmatprep.subr.mxu0 0.0
  %2314 = vmatpush2.msra.mxu0 0.0
  %2315 = vmatprep.subr.mxu0 0.0
  %2316 = vmatpush2.msra.mxu0 0.0
  %2317 = vmatprep.subr.mxu0 0.0
  %2318 = vmatpush2.msra.mxu0 0.0
  %2319 = vmatprep.mubr.f32.mxu0 0.0
  %2320 = vmatmul.mubr.f32.gmra.mxu0 %v2150
  %v2321 = vpop.f32.mrf.mxu0
  %v2322 = vadd.f32 0.0, %v2321
  %v2323 = vpop.f32.mrf.mxu0
  %2324 = vdwg.mxu0
  %v2325 = vadd.f32 %v2254, %v2322
  %v2326 = vxor.u32 %v2325, 2147483648
  %v2327 = vmul.f32 %v2326, 1.442695
  %v2328 = vpow.pop %v2327
  %v2329 = vadd.f32 %v2328, 1.0
  %v2330 = vrcp.pop %v2329
  %v2331 = vmul.f32 1.0, %v2330
  %v2332 = vtanh.pop %v2325
  %v2333 = vmul.f32 %v2331, %v2068
  %2335 = vrot.lane.b32.xlu0 %v2332, 64
  %v2336 = vpop.permute.xlu0 %2335
  %v2338 = vmul.f32 %v2331, %v2336
  %2340 = vrot.lane.b32.xlu0 %v2338, 32
  %v2341 = vpop.permute.xlu0 %2340
  %v2343 = vadd.f32 %v2333, %v2341
  %v2344 = vtanh.pop %v2343
  %2346 = vrot.lane.b32.xlu0 %v2344, 64
  %v2347 = vpop.permute.xlu0 %2346
  %v2349 = vmul.f32 %v2331, %v2347
  %v2350 = vsel %vm169, %v2249, 0
  %2352 = vmatprep.subr.mxu0 0.0
  %2353 = vmatpush1.msra.mxu0 0.0
  %2354 = vmatprep.subr.mxu0 0.0
  %2355 = vmatpush1.msra.mxu0 0.0
  %2356 = vmatprep.subr.mxu0 0.0
  %2357 = vmatpush1.msra.mxu0 0.0
  %2358 = vmatprep.subr.mxu0 0.0
  %2359 = vmatpush1.msra.mxu0 0.0
  %2360 = vmatprep.subr.mxu0 0.0
  %2361 = vmatpush1.msra.mxu0 0.0
  %2362 = vmatprep.subr.mxu0 0.0
  %2363 = vmatpush1.msra.mxu0 0.0
  %2364 = vmatprep.subr.mxu0 0.0
  %2365 = vmatpush1.msra.mxu0 0.0
  %2366 = vmatprep.subr.mxu0 0.0
  %2367 = vmatpush1.msra.mxu0 0.0
  %2368 = vmatprep.subr.mxu0 0.0
  %2369 = vmatpush1.msra.mxu0 0.0
  %2370 = vmatprep.subr.mxu0 0.0
  %2371 = vmatpush1.msra.mxu0 0.0
  %2372 = vmatprep.subr.mxu0 0.0
  %2373 = vmatpush1.msra.mxu0 0.0
  %2374 = vmatprep.subr.mxu0 0.0
  %2375 = vmatpush1.msra.mxu0 0.0
  %2376 = vmatprep.subr.mxu0 0.0
  %2377 = vmatpush1.msra.mxu0 %v320
  %2378 = vmatprep.subr.mxu0 0.0
  %2379 = vmatpush1.msra.mxu0 %v319
  %2380 = vmatprep.subr.mxu0 0.0
  %2381 = vmatpush1.msra.mxu0 %v318
  %2382 = vmatprep.subr.mxu0 0.0
  %2383 = vmatpush1.msra.mxu0 %v317
  %2384 = vmatprep.subr.mxu0 0.0
  %2385 = vmatpush2.msra.mxu0 0.0
  %2386 = vmatprep.subr.mxu0 0.0
  %2387 = vmatpush2.msra.mxu0 0.0
  %2388 = vmatprep.subr.mxu0 0.0
  %2389 = vmatpush2.msra.mxu0 0.0
  %2390 = vmatprep.subr.mxu0 0.0
  %2391 = vmatpush2.msra.mxu0 0.0
  %2392 = vmatprep.subr.mxu0 0.0
  %2393 = vmatpush2.msra.mxu0 0.0
  %2394 = vmatprep.subr.mxu0 0.0
  %2395 = vmatpush2.msra.mxu0 0.0
  %2396 = vmatprep.subr.mxu0 0.0
  %2397 = vmatpush2.msra.mxu0 0.0
  %2398 = vmatprep.subr.mxu0 0.0
  %2399 = vmatpush2.msra.mxu0 0.0
  %2400 = vmatprep.subr.mxu0 0.0
  %2401 = vmatpush2.msra.mxu0 0.0
  %2402 = vmatprep.subr.mxu0 0.0
  %2403 = vmatpush2.msra.mxu0 0.0
  %2404 = vmatprep.subr.mxu0 0.0
  %2405 = vmatpush2.msra.mxu0 0.0
  %2406 = vmatprep.subr.mxu0 0.0
  %2407 = vmatpush2.msra.mxu0 0.0
  %2408 = vmatprep.subr.mxu0 0.0
  %2409 = vmatpush2.msra.mxu0 0.0
  %2410 = vmatprep.subr.mxu0 0.0
  %2411 = vmatpush2.msra.mxu0 0.0
  %2412 = vmatprep.subr.mxu0 0.0
  %2413 = vmatpush2.msra.mxu0 0.0
  %2414 = vmatprep.subr.mxu0 0.0
  %2415 = vmatpush2.msra.mxu0 0.0
  %2416 = vmatprep.mubr.f32.mxu0 0.0
  %2417 = vmatmul.mubr.f32.gmra.mxu0 %v2350
  %v2418 = vpop.f32.mrf.mxu0
  %v2419 = vadd.f32 0.0, %v2418
  %v2420 = vpop.f32.mrf.mxu0
  %2421 = vdwg.mxu0
  %2423 = vrot.lane.b32.xlu0 %v2349, 32
  %v2424 = vpop.permute.xlu0 %2423
  %v2425 = vsel %vm169, %v2424, 0
  %2427 = vmatprep.subr.mxu0 0.0
  %2428 = vmatpush1.msra.mxu0 0.0
  %2429 = vmatprep.subr.mxu0 0.0
  %2430 = vmatpush1.msra.mxu0 0.0
  %2431 = vmatprep.subr.mxu0 0.0
  %2432 = vmatpush1.msra.mxu0 0.0
  %2433 = vmatprep.subr.mxu0 0.0
  %2434 = vmatpush1.msra.mxu0 0.0
  %2435 = vmatprep.subr.mxu0 0.0
  %2436 = vmatpush1.msra.mxu0 0.0
  %2437 = vmatprep.subr.mxu0 0.0
  %2438 = vmatpush1.msra.mxu0 0.0
  %2439 = vmatprep.subr.mxu0 0.0
  %2440 = vmatpush1.msra.mxu0 0.0
  %2441 = vmatprep.subr.mxu0 0.0
  %2442 = vmatpush1.msra.mxu0 0.0
  %2443 = vmatprep.subr.mxu0 0.0
  %2444 = vmatpush1.msra.mxu0 0.0
  %2445 = vmatprep.subr.mxu0 0.0
  %2446 = vmatpush1.msra.mxu0 0.0
  %2447 = vmatprep.subr.mxu0 0.0
  %2448 = vmatpush1.msra.mxu0 0.0
  %2449 = vmatprep.subr.mxu0 0.0
  %2450 = vmatpush1.msra.mxu0 0.0
  %2451 = vmatprep.subr.mxu0 0.0
  %2452 = vmatpush1.msra.mxu0 %v316
  %2453 = vmatprep.subr.mxu0 0.0
  %2454 = vmatpush1.msra.mxu0 %v315
  %2455 = vmatprep.subr.mxu0 0.0
  %2456 = vmatpush1.msra.mxu0 %v314
  %2457 = vmatprep.subr.mxu0 0.0
  %2458 = vmatpush1.msra.mxu0 %v313
  %2459 = vmatprep.subr.mxu0 0.0
  %2460 = vmatpush2.msra.mxu0 0.0
  %2461 = vmatprep.subr.mxu0 0.0
  %2462 = vmatpush2.msra.mxu0 0.0
  %2463 = vmatprep.subr.mxu0 0.0
  %2464 = vmatpush2.msra.mxu0 0.0
  %2465 = vmatprep.subr.mxu0 0.0
  %2466 = vmatpush2.msra.mxu0 0.0
  %2467 = vmatprep.subr.mxu0 0.0
  %2468 = vmatpush2.msra.mxu0 0.0
  %2469 = vmatprep.subr.mxu0 0.0
  %2470 = vmatpush2.msra.mxu0 0.0
  %2471 = vmatprep.subr.mxu0 0.0
  %2472 = vmatpush2.msra.mxu0 0.0
  %2473 = vmatprep.subr.mxu0 0.0
  %2474 = vmatpush2.msra.mxu0 0.0
  %2475 = vmatprep.subr.mxu0 0.0
  %2476 = vmatpush2.msra.mxu0 0.0
  %2477 = vmatprep.subr.mxu0 0.0
  %2478 = vmatpush2.msra.mxu0 0.0
  %2479 = vmatprep.subr.mxu0 0.0
  %2480 = vmatpush2.msra.mxu0 0.0
  %2481 = vmatprep.subr.mxu0 0.0
  %2482 = vmatpush2.msra.mxu0 0.0
  %2483 = vmatprep.subr.mxu0 0.0
  %2484 = vmatpush2.msra.mxu0 0.0
  %2485 = vmatprep.subr.mxu0 0.0
  %2486 = vmatpush2.msra.mxu0 0.0
  %2487 = vmatprep.subr.mxu0 0.0
  %2488 = vmatpush2.msra.mxu0 0.0
  %2489 = vmatprep.subr.mxu0 0.0
  %2490 = vmatpush2.msra.mxu0 0.0
  %2491 = vmatprep.mubr.f32.mxu0 0.0
  %2492 = vmatmul.mubr.f32.gmra.mxu0 %v2425
  %v2493 = vpop.f32.mrf.mxu0
  %v2494 = vadd.f32 %v2419, %v2493
  %v2495 = vpop.f32.mrf.mxu0
  %2496 = vdwg.mxu0
  %v2497 = vadd.f32 %v2494, %v326
  %v2498 = vxor.u32 %v2497, 2147483648
  %v2499 = vmul.f32 %v2498, 1.442695
  %v2500 = vpow.pop %v2499
  %v2501 = vadd.f32 %v2500, 1.0
  %v2502 = vrcp.pop %v2501
  %v2503 = vmul.f32 1.0, %v2502
  %v2504 = vtanh.pop %v2497
  %v2505 = vmul.f32 %v2503, %v2240
  %2507 = vrot.lane.b32.xlu0 %v2504, 64
  %v2508 = vpop.permute.xlu0 %2507
  %v2510 = vmul.f32 %v2503, %v2508
  %2512 = vrot.lane.b32.xlu0 %v2510, 32
  %v2513 = vpop.permute.xlu0 %2512
  %v2515 = vadd.f32 %v2505, %v2513
  %v2516 = vtanh.pop %v2515
  %2518 = vrot.lane.b32.xlu0 %v2516, 64
  %v2519 = vpop.permute.xlu0 %2518
  %v2521 = vmul.f32 %v2503, %v2519
  %2523 = vrot.lane.b32.xlu0 %v2521, 32
  %v2524 = vpop.permute.xlu0 %2523
  %s2526 = scalar_lea.vmem %s9, 14
  %2527 = vst.msk [vmem:[%s2526] sm:$0x3] %vm601, %v2524
  // Predicated region
  $region38: #{vae_forward.3} parent=0 // pred_check
    _
  $region39: #{vae_forward.3} parent=0 // pred_check_branch
    %2529 = sbr.rel (0) target = $region41
  $region40: #{vae_forward.3} parent=0 // pred_region
    _
  $region41: #{vae_forward.3} parent=0 // pred_fallthru
    _
  // Predicated region
  $region42: #{vae_forward.3} parent=0 // pred_check
    _
  $region43: #{vae_forward.3} parent=0 // pred_check_branch
    %2531 = sbr.rel (0) target = $region45
  $region44: #{vae_forward.3} parent=0 // pred_region
    _
  $region45: #{vae_forward.3} parent=0 // pred_fallthru
    _

// kernel: vae_forward.2
$region0: #{vae_forward.2}
  #allocation0 [shape = 'u32[]', space=smem, size = 0x4, offset = 0x4, fixed_abs, tag = 'smem constant byte address 0x4 - core index']
  #allocation1 [shape = 'u32[144,128]{1,0:T(1,128)}', space=vmem, size = 0x12000, scoped, tag = 'internal scratch']
  #allocation2 [shape = 'f32[8,2,128]{2,1,0:T(2,128)}', space=vmem, size = 0x2000, scoped, tag = 'scratch operand']
  %s0 = inlined_call_operand.vmem [shape: f32[8,2,32], index: 0, kind: input, shape index: {}]
  %s1 = inlined_call_operand.vmem [shape: f32[32,128], index: 1, kind: input, shape index: {}]
  %s2 = inlined_call_operand.vmem [shape: f32[32,128], index: 2, kind: input, shape index: {}]
  %s3 = inlined_call_operand.vmem [shape: f32[1,128], index: 3, kind: input, shape index: {}]
  %s4 = inlined_call_operand.vmem [shape: f32[32,128], index: 4, kind: input, shape index: {}]
  %s5 = inlined_call_operand.vmem [shape: f32[32,128], index: 5, kind: input, shape index: {}]
  %s6 = inlined_call_operand.vmem [shape: f32[1,128], index: 6, kind: input, shape index: {}]
  %s7 = inlined_call_operand.vmem [shape: f32[1,32], index: 7, kind: input, shape index: {}]
  %s8 = inlined_call_operand.vmem [shape: f32[1,32], index: 8, kind: input, shape index: {}]
  %s9 = inlined_call_operand.vmem [shape: f32[32,8], index: 9, kind: input, shape index: {}]
  %s10 = inlined_call_operand.vmem [shape: f32[1,8], index: 10, kind: input, shape index: {}]
  %s11 = inlined_call_operand.vmem [shape: f32[32,8], index: 11, kind: input, shape index: {}]
  %s12 = inlined_call_operand.vmem [shape: f32[1,8], index: 12, kind: input, shape index: {}]
  %s13 = inlined_call_operand.vmem [shape: f32[2,8], index: 13, kind: input, shape index: {}]
  %s14 = inlined_call_operand.hbm [shape: f32[2,8], index: 14, kind: output, shape index: {0}]
  %s15 = inlined_call_operand.hbm [shape: f32[2,8], index: 15, kind: output, shape index: {1}]
  %s16 = inlined_call_operand.vmem [shape: f32[2,8], index: 16, kind: output, shape index: {2}]
  %17 = xla_tuple %s14, %s15, %s16
  %s18 = sld [smem:[#allocation0]]
  $region82: #{vae_forward.2} parent=0
    _
  %s20 = ssub.s32 1, %s18
  %s21 = scalar_select 0, %s20, %s18
  $region1: #{vae_forward.2} parent=0
    #allocation3 [shape = 'u8[1024]{0}', space=vmem, size = 0x400, scoped, tag = 'output window, operand 0, single buffered']
    #allocation4 [shape = 's32[1]{0}', space=sflag, size = 0x4, scoped, tag = 'scoped memory for vae_forward.2']
    #allocation5 [shape = 'u8[1024]{0}', space=vmem, size = 0x400, scoped, tag = 'output window, operand 1, single buffered']
    #allocation6 [shape = 's32[1]{0}', space=sflag, size = 0x4, scoped, tag = 'scoped memory for vae_forward.2']
    %22 = vsyncpa [#allocation4], 0
    %23 = vsyncpa [#allocation6], 0
    // Predicated region
    $region2: #{vae_forward.2} parent=1 // pred_check
      _
    $region3: #{vae_forward.2} parent=1 // pred_check_branch
      %25 = sbr.rel (0) target = $region5
    $region4: #{vae_forward.2} parent=1 // pred_region
      _
    $region5: #{vae_forward.2} parent=1 // pred_fallthru
      _
    // Predicated region
    $region6: #{vae_forward.2} parent=1 // pred_check
      _
    $region7: #{vae_forward.2} parent=1 // pred_check_branch
      %27 = sbr.rel (0) target = $region9
    $region8: #{vae_forward.2} parent=1 // pred_region
      _
    $region9: #{vae_forward.2} parent=1 // pred_fallthru
      _
    // Predicated region
    $region10: #{vae_forward.2} parent=1 // pred_check
      _
    $region11: #{vae_forward.2} parent=1 // pred_check_branch
      %29 = sbr.rel (0) target = $region13
    $region12: #{vae_forward.2} parent=1 // pred_region
      _
    $region13: #{vae_forward.2} parent=1 // pred_fallthru
      _
    // Predicated region
    $region14: #{vae_forward.2} parent=1 // pred_check
      _
    $region15: #{vae_forward.2} parent=1 // pred_check_branch
      %31 = sbr.rel (0) target = $region17
    $region16: #{vae_forward.2} parent=1 // pred_region
      _
    $region17: #{vae_forward.2} parent=1 // pred_fallthru
      _
    // Predicated region
    $region18: #{vae_forward.2} parent=1 // pred_check
      _
    $region19: #{vae_forward.2} parent=1 // pred_check_branch
      %33 = sbr.rel (0) target = $region21
    $region20: #{vae_forward.2} parent=1 // pred_region
      _
    $region21: #{vae_forward.2} parent=1 // pred_fallthru
      _
    // Predicated region
    $region22: #{vae_forward.2} parent=1 // pred_check
      _
    $region23: #{vae_forward.2} parent=1 // pred_check_branch
      %35 = sbr.rel (0) target = $region25
    $region24: #{vae_forward.2} parent=1 // pred_region
      _
    $region25: #{vae_forward.2} parent=1 // pred_fallthru
      _
    // Predicated region
    $region26: #{vae_forward.2} parent=1 // pred_check
      _
    $region27: #{vae_forward.2} parent=1 // pred_check_branch
      %37 = sbr.rel (0) target = $region29
    $region28: #{vae_forward.2} parent=1 // pred_region
      _
    $region29: #{vae_forward.2} parent=1 // pred_fallthru
      _
    // Predicated region
    $region30: #{vae_forward.2} parent=1 // pred_check
      _
    $region31: #{vae_forward.2} parent=1 // pred_check_branch
      %39 = sbr.rel (0) target = $region33
    $region32: #{vae_forward.2} parent=1 // pred_region
      _
    $region33: #{vae_forward.2} parent=1 // pred_fallthru
      _
    // Predicated region
    $region34: #{vae_forward.2} parent=1 // pred_check
      _
    $region35: #{vae_forward.2} parent=1 // pred_check_branch
      %41 = sbr.rel (0) target = $region37
    $region36: #{vae_forward.2} parent=1 // pred_region
      _
    $region37: #{vae_forward.2} parent=1 // pred_fallthru
      _
    // Predicated region
    $region38: #{vae_forward.2} parent=1 // pred_check
      _
    $region39: #{vae_forward.2} parent=1 // pred_check_branch
      %43 = sbr.rel (0) target = $region41
    $region40: #{vae_forward.2} parent=1 // pred_region
      _
    $region41: #{vae_forward.2} parent=1 // pred_fallthru
      _
    // Predicated region
    $region42: #{vae_forward.2} parent=1 // pred_check
      _
    $region43: #{vae_forward.2} parent=1 // pred_check_branch
      %45 = sbr.rel (0) target = $region45
    $region44: #{vae_forward.2} parent=1 // pred_region
      _
    $region45: #{vae_forward.2} parent=1 // pred_fallthru
      _
    // Predicated region
    $region46: #{vae_forward.2} parent=1 // pred_check
      _
    $region47: #{vae_forward.2} parent=1 // pred_check_branch
      %47 = sbr.rel (0) target = $region49
    $region48: #{vae_forward.2} parent=1 // pred_region
      _
    $region49: #{vae_forward.2} parent=1 // pred_fallthru
      _
    // Predicated region
    $region50: #{vae_forward.2} parent=1 // pred_check
      _
    $region51: #{vae_forward.2} parent=1 // pred_check_branch
      %49 = sbr.rel (0) target = $region53
    $region52: #{vae_forward.2} parent=1 // pred_region
      _
    $region53: #{vae_forward.2} parent=1 // pred_fallthru
      _
    // Predicated region
    $region54: #{vae_forward.2} parent=1 // pred_check
      _
    $region55: #{vae_forward.2} parent=1 // pred_check_branch
      %51 = sbr.rel (0) target = $region57
    $region56: #{vae_forward.2} parent=1 // pred_region
      _
    $region57: #{vae_forward.2} parent=1 // pred_fallthru
      _
    %v52 = vld [vmem:[%s0] sm:$0x3]
    %v53 = vld [vmem:[%s0 + $0x2] sm:$0x3]
    %v54 = vld [vmem:[%s0 + $0x4] sm:$0x3]
    %v55 = vld [vmem:[%s0 + $0x6] sm:$0x3]
    %v56 = vld [vmem:[%s0 + $0x8] sm:$0x3]
    %v57 = vld [vmem:[%s0 + $0xa] sm:$0x3]
    %v58 = vld [vmem:[%s0 + $0xc] sm:$0x3]
    %v59 = vld [vmem:[%s0 + $0xe] sm:$0x3]
    %v60 = vld [vmem:[%s1] sm:$0xff]
    %v61 = vld [vmem:[%s1 + $0x8] sm:$0xff]
    %v62 = vld [vmem:[%s1 + $0x10] sm:$0xff]
    %v63 = vld [vmem:[%s1 + $0x18] sm:$0xff]
    %v64 = vld [vmem:[%s3] sm:$0x1]
    %v66 = vlaneseq
    %v67 = vshrl.u32 %v66, 7
    %v68 = vsub.s32 0, %v67
    %v69 = vrot.slane %v64, %v68
    %v79 = vcombine.low %v52, %v53
    %v80 = vcombine.low %v54, %v55
    %v82 = vunpack.c.l.s4 1983009808
    %v83 = vunpack.c.0.s8 %v82
    %v84 = vlaneseq
    %v85 = vshrl.u32 %v84, 7
    %v86 = vsub.s32 %v83, %v85
    %v87 = vrot.slane %v79, %v86
    %v89 = vunpack.c.l.s4 1983009808
    %v90 = vunpack.c.0.s8 %v89
    %v91 = vlaneseq
    %v92 = vshrl.u32 %v91, 7
    %v93 = vsub.s32 %v90, %v92
    %v94 = vrot.slane %v80, %v93
    %v95 = vcombine.low %v87, %v94
    %v96 = vcombine.low %v56, %v57
    %v97 = vcombine.low %v58, %v59
    %v99 = vunpack.c.l.s4 1983009808
    %v100 = vunpack.c.0.s8 %v99
    %v101 = vlaneseq
    %v102 = vshrl.u32 %v101, 7
    %v103 = vsub.s32 %v100, %v102
    %v104 = vrot.slane %v96, %v103
    %v106 = vunpack.c.l.s4 1983009808
    %v107 = vunpack.c.0.s8 %v106
    %v108 = vlaneseq
    %v109 = vshrl.u32 %v108, 7
    %v110 = vsub.s32 %v107, %v109
    %v111 = vrot.slane %v97, %v110
    %v112 = vcombine.low %v104, %v111
    %vm113 = vcmask 261120
    %v114 = vsel %vm113, %v95, 0
    %v116 = vsel %vm113, %v112, 0
    %118 = vmatprep.subr.mxu0 0.0
    %119 = vmatpush1.msra.mxu0 0.0
    %120 = vmatprep.subr.mxu0 0.0
    %121 = vmatpush1.msra.mxu0 0.0
    %122 = vmatprep.subr.mxu0 0.0
    %123 = vmatpush1.msra.mxu0 0.0
    %124 = vmatprep.subr.mxu0 0.0
    %125 = vmatpush1.msra.mxu0 0.0
    %126 = vmatprep.subr.mxu0 0.0
    %127 = vmatpush1.msra.mxu0 0.0
    %128 = vmatprep.subr.mxu0 0.0
    %129 = vmatpush1.msra.mxu0 0.0
    %130 = vmatprep.subr.mxu0 0.0
    %131 = vmatpush1.msra.mxu0 0.0
    %132 = vmatprep.subr.mxu0 0.0
    %133 = vmatpush1.msra.mxu0 0.0
    %134 = vmatprep.subr.mxu0 0.0
    %135 = vmatpush1.msra.mxu0 0.0
    %136 = vmatprep.subr.mxu0 0.0
    %137 = vmatpush1.msra.mxu0 0.0
    %138 = vmatprep.subr.mxu0 0.0
    %139 = vmatpush1.msra.mxu0 0.0
    %140 = vmatprep.subr.mxu0 0.0
    %141 = vmatpush1.msra.mxu0 0.0
    %142 = vmatprep.subr.mxu0 0.0
    %143 = vmatpush1.msra.mxu0 %v63
    %144 = vmatprep.subr.mxu0 0.0
    %145 = vmatpush1.msra.mxu0 %v62
    %146 = vmatprep.subr.mxu0 0.0
    %147 = vmatpush1.msra.mxu0 %v61
    %148 = vmatprep.subr.mxu0 0.0
    %149 = vmatpush1.msra.mxu0 %v60
    %150 = vmatprep.subr.mxu0 0.0
    %151 = vmatpush2.msra.mxu0 0.0
    %152 = vmatprep.subr.mxu0 0.0
    %153 = vmatpush2.msra.mxu0 0.0
    %154 = vmatprep.subr.mxu0 0.0
    %155 = vmatpush2.msra.mxu0 0.0
    %156 = vmatprep.subr.mxu0 0.0
    %157 = vmatpush2.msra.mxu0 0.0
    %158 = vmatprep.subr.mxu0 0.0
    %159 = vmatpush2.msra.mxu0 0.0
    %160 = vmatprep.subr.mxu0 0.0
    %161 = vmatpush2.msra.mxu0 0.0
    %162 = vmatprep.subr.mxu0 0.0
    %163 = vmatpush2.msra.mxu0 0.0
    %164 = vmatprep.subr.mxu0 0.0
    %165 = vmatpush2.msra.mxu0 0.0
    %166 = vmatprep.subr.mxu0 0.0
    %167 = vmatpush2.msra.mxu0 0.0
    %168 = vmatprep.subr.mxu0 0.0
    %169 = vmatpush2.msra.mxu0 0.0
    %170 = vmatprep.subr.mxu0 0.0
    %171 = vmatpush2.msra.mxu0 0.0
    %172 = vmatprep.subr.mxu0 0.0
    %173 = vmatpush2.msra.mxu0 0.0
    %174 = vmatprep.subr.mxu0 0.0
    %175 = vmatpush2.msra.mxu0 0.0
    %176 = vmatprep.subr.mxu0 0.0
    %177 = vmatpush2.msra.mxu0 0.0
    %178 = vmatprep.subr.mxu0 0.0
    %179 = vmatpush2.msra.mxu0 0.0
    %180 = vmatprep.subr.mxu0 0.0
    %181 = vmatpush2.msra.mxu0 0.0
    %182 = vmatprep.mubr.f32.mxu0 0.0
    %183 = vmatmul.mubr.f32.gmra.mxu0 %v114
    %v184 = vpop.f32.mrf.mxu0
    %v185 = vadd.f32 %v69, %v184
    %v186 = vpop.f32.mrf.mxu0
    %187 = vmatprep.mubr.f32.mxu0 0.0
    %188 = vmatmul.mubr.f32.gmra.mxu0 %v116
    %v189 = vpop.f32.mrf.mxu0
    %v190 = vadd.f32 %v69, %v189
    %v191 = vpop.f32.mrf.mxu0
    %192 = vdwg.mxu0
    %v195 = vcombine.high %v185, %v185
    %v197 = vunpack.c.l.s4 1983009808
    %v198 = vunpack.c.0.s8 %v197
    %v199 = vlaneseq
    %v200 = vshrl.u32 %v199, 7
    %v201 = vsub.s32 %v198, %v200
    %v202 = vrot.slane %v185, %v201
    %v204 = vunpack.c.l.s4 1983009808
    %v205 = vunpack.c.0.s8 %v204
    %v206 = vlaneseq
    %v207 = vshrl.u32 %v206, 7
    %v208 = vsub.s32 %v205, %v207
    %v209 = vrot.slane %v195, %v208
    %v210 = vcombine.high %v202, %v202
    %v211 = vcombine.high %v209, %v209
    %v212 = vcombine.high %v190, %v190
    %v214 = vunpack.c.l.s4 1983009808
    %v215 = vunpack.c.0.s8 %v214
    %v216 = vlaneseq
    %v217 = vshrl.u32 %v216, 7
    %v218 = vsub.s32 %v215, %v217
    %v219 = vrot.slane %v190, %v218
    %v221 = vunpack.c.l.s4 1983009808
    %v222 = vunpack.c.0.s8 %v221
    %v223 = vlaneseq
    %v224 = vshrl.u32 %v223, 7
    %v225 = vsub.s32 %v222, %v224
    %v226 = vrot.slane %v212, %v225
    %v227 = vcombine.high %v219, %v219
    %v228 = vcombine.high %v226, %v226
    %237 = vst [vmem:[#allocation2] sm:$0x3] %v202
    %238 = vst [vmem:[#allocation2 + $0x2] sm:$0x3] %v210
    %239 = vst [vmem:[#allocation2 + $0x4] sm:$0x3] %v209
    %240 = vst [vmem:[#allocation2 + $0x6] sm:$0x3] %v211
    %241 = vst [vmem:[#allocation2 + $0x8] sm:$0x3] %v219
    %242 = vst [vmem:[#allocation2 + $0xa] sm:$0x3] %v227
    %243 = vst [vmem:[#allocation2 + $0xc] sm:$0x3] %v226
    %244 = vst [vmem:[#allocation2 + $0xe] sm:$0x3] %v228
    %v245 = vld [vmem:[%s2] sm:$0xff]
    %v246 = vld [vmem:[%s2 + $0x8] sm:$0xff]
    %v247 = vld [vmem:[%s2 + $0x10] sm:$0xff]
    %v248 = vld [vmem:[%s2 + $0x18] sm:$0xff]
    %v249 = vld [vmem:[%s4] sm:$0xff]
    %v250 = vld [vmem:[%s4 + $0x8] sm:$0xff]
    %v251 = vld [vmem:[%s4 + $0x10] sm:$0xff]
    %v252 = vld [vmem:[%s4 + $0x18] sm:$0xff]
    %v253 = vld [vmem:[%s5] sm:$0xff]
    %v254 = vld [vmem:[%s5 + $0x8] sm:$0xff]
    %v255 = vld [vmem:[%s5 + $0x10] sm:$0xff]
    %v256 = vld [vmem:[%s5 + $0x18] sm:$0xff]
    %v257 = vld [vmem:[%s6] sm:$0x1]
    %v259 = vlaneseq
    %v260 = vshrl.u32 %v259, 7
    %v261 = vsub.s32 0, %v260
    %v262 = vrot.slane %v257, %v261
    %v264 = vld [vmem:[#allocation2] sm:$0x3]
    %v266 = vsel %vm113, 0.0, 0
    %268 = vmatprep.subr.mxu0 0.0
    %269 = vmatpush1.msra.mxu0 0.0
    %270 = vmatprep.subr.mxu0 0.0
    %271 = vmatpush1.msra.mxu0 0.0
    %272 = vmatprep.subr.mxu0 0.0
    %273 = vmatpush1.msra.mxu0 0.0
    %274 = vmatprep.subr.mxu0 0.0
    %275 = vmatpush1.msra.mxu0 0.0
    %276 = vmatprep.subr.mxu0 0.0
    %277 = vmatpush1.msra.mxu0 0.0
    %278 = vmatprep.subr.mxu0 0.0
    %279 = vmatpush1.msra.mxu0 0.0
    %280 = vmatprep.subr.mxu0 0.0
    %281 = vmatpush1.msra.mxu0 0.0
    %282 = vmatprep.subr.mxu0 0.0
    %283 = vmatpush1.msra.mxu0 0.0
    %284 = vmatprep.subr.mxu0 0.0
    %285 = vmatpush1.msra.mxu0 0.0
    %286 = vmatprep.subr.mxu0 0.0
    %287 = vmatpush1.msra.mxu0 0.0
    %288 = vmatprep.subr.mxu0 0.0
    %289 = vmatpush1.msra.mxu0 0.0
    %290 = vmatprep.subr.mxu0 0.0
    %291 = vmatpush1.msra.mxu0 0.0
    %292 = vmatprep.subr.mxu0 0.0
    %293 = vmatpush1.msra.mxu0 %v248
    %294 = vmatprep.subr.mxu0 0.0
    %295 = vmatpush1.msra.mxu0 %v247
    %296 = vmatprep.subr.mxu0 0.0
    %297 = vmatpush1.msra.mxu0 %v246
    %298 = vmatprep.subr.mxu0 0.0
    %299 = vmatpush1.msra.mxu0 %v245
    %300 = vmatprep.subr.mxu0 0.0
    %301 = vmatpush2.msra.mxu0 0.0
    %302 = vmatprep.subr.mxu0 0.0
    %303 = vmatpush2.msra.mxu0 0.0
    %304 = vmatprep.subr.mxu0 0.0
    %305 = vmatpush2.msra.mxu0 0.0
    %306 = vmatprep.subr.mxu0 0.0
    %307 = vmatpush2.msra.mxu0 0.0
    %308 = vmatprep.subr.mxu0 0.0
    %309 = vmatpush2.msra.mxu0 0.0
    %310 = vmatprep.subr.mxu0 0.0
    %311 = vmatpush2.msra.mxu0 0.0
    %312 = vmatprep.subr.mxu0 0.0
    %313 = vmatpush2.msra.mxu0 0.0
    %314 = vmatprep.subr.mxu0 0.0
    %315 = vmatpush2.msra.mxu0 0.0
    %316 = vmatprep.subr.mxu0 0.0
    %317 = vmatpush2.msra.mxu0 0.0
    %318 = vmatprep.subr.mxu0 0.0
    %319 = vmatpush2.msra.mxu0 0.0
    %320 = vmatprep.subr.mxu0 0.0
    %321 = vmatpush2.msra.mxu0 0.0
    %322 = vmatprep.subr.mxu0 0.0
    %323 = vmatpush2.msra.mxu0 0.0
    %324 = vmatprep.subr.mxu0 0.0
    %325 = vmatpush2.msra.mxu0 0.0
    %326 = vmatprep.subr.mxu0 0.0
    %327 = vmatpush2.msra.mxu0 0.0
    %328 = vmatprep.subr.mxu0 0.0
    %329 = vmatpush2.msra.mxu0 0.0
    %330 = vmatprep.subr.mxu0 0.0
    %331 = vmatpush2.msra.mxu0 0.0
    %332 = vmatprep.mubr.f32.mxu0 0.0
    %333 = vmatmul.mubr.f32.gmra.mxu0 %v266
    %v334 = vpop.f32.mrf.mxu0
    %v335 = vadd.f32 0.0, %v334
    %v336 = vpop.f32.mrf.mxu0
    %337 = vdwg.mxu0
    %v338 = vadd.f32 %v264, %v335
    %v339 = vxor.u32 %v338, 2147483648
    %v340 = vmul.f32 %v339, 1.442695
    %v341 = vpow.pop %v340
    %v342 = vadd.f32 %v341, 1.0
    %v343 = vrcp.pop %v342
    %v344 = vmul.f32 1.0, %v343
    %v345 = vtanh.pop %v338
    %v346 = vmul.f32 %v344, 0.0
    %348 = vrot.lane.b32.xlu0 %v345, 64
    %v349 = vpop.permute.xlu0 %348
    %v351 = vmul.f32 %v344, %v349
    %353 = vrot.lane.b32.xlu0 %v351, 32
    %v354 = vpop.permute.xlu0 %353
    %v356 = vadd.f32 %v346, %v354
    %v357 = vtanh.pop %v356
    %359 = vrot.lane.b32.xlu0 %v357, 64
    %v360 = vpop.permute.xlu0 %359
    %v362 = vmul.f32 %v344, %v360
    %363 = vmatprep.subr.mxu0 0.0
    %364 = vmatpush1.msra.mxu0 0.0
    %365 = vmatprep.subr.mxu0 0.0
    %366 = vmatpush1.msra.mxu0 0.0
    %367 = vmatprep.subr.mxu0 0.0
    %368 = vmatpush1.msra.mxu0 0.0
    %369 = vmatprep.subr.mxu0 0.0
    %370 = vmatpush1.msra.mxu0 0.0
    %371 = vmatprep.subr.mxu0 0.0
    %372 = vmatpush1.msra.mxu0 0.0
    %373 = vmatprep.subr.mxu0 0.0
    %374 = vmatpush1.msra.mxu0 0.0
    %375 = vmatprep.subr.mxu0 0.0
    %376 = vmatpush1.msra.mxu0 0.0
    %377 = vmatprep.subr.mxu0 0.0
    %378 = vmatpush1.msra.mxu0 0.0
    %379 = vmatprep.subr.mxu0 0.0
    %380 = vmatpush1.msra.mxu0 0.0
    %381 = vmatprep.subr.mxu0 0.0
    %382 = vmatpush1.msra.mxu0 0.0
    %383 = vmatprep.subr.mxu0 0.0
    %384 = vmatpush1.msra.mxu0 0.0
    %385 = vmatprep.subr.mxu0 0.0
    %386 = vmatpush1.msra.mxu0 0.0
    %387 = vmatprep.subr.mxu0 0.0
    %388 = vmatpush1.msra.mxu0 %v256
    %389 = vmatprep.subr.mxu0 0.0
    %390 = vmatpush1.msra.mxu0 %v255
    %391 = vmatprep.subr.mxu0 0.0
    %392 = vmatpush1.msra.mxu0 %v254
    %393 = vmatprep.subr.mxu0 0.0
    %394 = vmatpush1.msra.mxu0 %v253
    %395 = vmatprep.subr.mxu0 0.0
    %396 = vmatpush2.msra.mxu0 0.0
    %397 = vmatprep.subr.mxu0 0.0
    %398 = vmatpush2.msra.mxu0 0.0
    %399 = vmatprep.subr.mxu0 0.0
    %400 = vmatpush2.msra.mxu0 0.0
    %401 = vmatprep.subr.mxu0 0.0
    %402 = vmatpush2.msra.mxu0 0.0
    %403 = vmatprep.subr.mxu0 0.0
    %404 = vmatpush2.msra.mxu0 0.0
    %405 = vmatprep.subr.mxu0 0.0
    %406 = vmatpush2.msra.mxu0 0.0
    %407 = vmatprep.subr.mxu0 0.0
    %408 = vmatpush2.msra.mxu0 0.0
    %409 = vmatprep.subr.mxu0 0.0
    %410 = vmatpush2.msra.mxu0 0.0
    %411 = vmatprep.subr.mxu0 0.0
    %412 = vmatpush2.msra.mxu0 0.0
    %413 = vmatprep.subr.mxu0 0.0
    %414 = vmatpush2.msra.mxu0 0.0
    %415 = vmatprep.subr.mxu0 0.0
    %416 = vmatpush2.msra.mxu0 0.0
    %417 = vmatprep.subr.mxu0 0.0
    %418 = vmatpush2.msra.mxu0 0.0
    %419 = vmatprep.subr.mxu0 0.0
    %420 = vmatpush2.msra.mxu0 0.0
    %421 = vmatprep.subr.mxu0 0.0
    %422 = vmatpush2.msra.mxu0 0.0
    %423 = vmatprep.subr.mxu0 0.0
    %424 = vmatpush2.msra.mxu0 0.0
    %425 = vmatprep.subr.mxu0 0.0
    %426 = vmatpush2.msra.mxu0 0.0
    %427 = vmatprep.mubr.f32.mxu0 0.0
    %428 = vmatmul.mubr.f32.gmra.mxu0 %v266
    %v429 = vpop.f32.mrf.mxu0
    %v430 = vadd.f32 0.0, %v429
    %v431 = vpop.f32.mrf.mxu0
    %432 = vdwg.mxu0
    %434 = vrot.lane.b32.xlu0 %v362, 32
    %v435 = vpop.permute.xlu0 %434
    %v436 = vsel %vm113, %v435, 0
    %438 = vmatprep.subr.mxu0 0.0
    %439 = vmatpush1.msra.mxu0 0.0
    %440 = vmatprep.subr.mxu0 0.0
    %441 = vmatpush1.msra.mxu0 0.0
    %442 = vmatprep.subr.mxu0 0.0
    %443 = vmatpush1.msra.mxu0 0.0
    %444 = vmatprep.subr.mxu0 0.0
    %445 = vmatpush1.msra.mxu0 0.0
    %446 = vmatprep.subr.mxu0 0.0
    %447 = vmatpush1.msra.mxu0 0.0
    %448 = vmatprep.subr.mxu0 0.0
    %449 = vmatpush1.msra.mxu0 0.0
    %450 = vmatprep.subr.mxu0 0.0
    %451 = vmatpush1.msra.mxu0 0.0
    %452 = vmatprep.subr.mxu0 0.0
    %453 = vmatpush1.msra.mxu0 0.0
    %454 = vmatprep.subr.mxu0 0.0
    %455 = vmatpush1.msra.mxu0 0.0
    %456 = vmatprep.subr.mxu0 0.0
    %457 = vmatpush1.msra.mxu0 0.0
    %458 = vmatprep.subr.mxu0 0.0
    %459 = vmatpush1.msra.mxu0 0.0
    %460 = vmatprep.subr.mxu0 0.0
    %461 = vmatpush1.msra.mxu0 0.0
    %462 = vmatprep.subr.mxu0 0.0
    %463 = vmatpush1.msra.mxu0 %v252
    %464 = vmatprep.subr.mxu0 0.0
    %465 = vmatpush1.msra.mxu0 %v251
    %466 = vmatprep.subr.mxu0 0.0
    %467 = vmatpush1.msra.mxu0 %v250
    %468 = vmatprep.subr.mxu0 0.0
    %469 = vmatpush1.msra.mxu0 %v249
    %470 = vmatprep.subr.mxu0 0.0
    %471 = vmatpush2.msra.mxu0 0.0
    %472 = vmatprep.subr.mxu0 0.0
    %473 = vmatpush2.msra.mxu0 0.0
    %474 = vmatprep.subr.mxu0 0.0
    %475 = vmatpush2.msra.mxu0 0.0
    %476 = vmatprep.subr.mxu0 0.0
    %477 = vmatpush2.msra.mxu0 0.0
    %478 = vmatprep.subr.mxu0 0.0
    %479 = vmatpush2.msra.mxu0 0.0
    %480 = vmatprep.subr.mxu0 0.0
    %481 = vmatpush2.msra.mxu0 0.0
    %482 = vmatprep.subr.mxu0 0.0
    %483 = vmatpush2.msra.mxu0 0.0
    %484 = vmatprep.subr.mxu0 0.0
    %485 = vmatpush2.msra.mxu0 0.0
    %486 = vmatprep.subr.mxu0 0.0
    %487 = vmatpush2.msra.mxu0 0.0
    %488 = vmatprep.subr.mxu0 0.0
    %489 = vmatpush2.msra.mxu0 0.0
    %490 = vmatprep.subr.mxu0 0.0
    %491 = vmatpush2.msra.mxu0 0.0
    %492 = vmatprep.subr.mxu0 0.0
    %493 = vmatpush2.msra.mxu0 0.0
    %494 = vmatprep.subr.mxu0 0.0
    %495 = vmatpush2.msra.mxu0 0.0
    %496 = vmatprep.subr.mxu0 0.0
    %497 = vmatpush2.msra.mxu0 0.0
    %498 = vmatprep.subr.mxu0 0.0
    %499 = vmatpush2.msra.mxu0 0.0
    %500 = vmatprep.subr.mxu0 0.0
    %501 = vmatpush2.msra.mxu0 0.0
    %502 = vmatprep.mubr.f32.mxu0 0.0
    %503 = vmatmul.mubr.f32.gmra.mxu0 %v436
    %v504 = vpop.f32.mrf.mxu0
    %v505 = vadd.f32 %v430, %v504
    %v506 = vpop.f32.mrf.mxu0
    %507 = vdwg.mxu0
    %v508 = vadd.f32 %v505, %v262
    %v509 = vxor.u32 %v508, 2147483648
    %v510 = vmul.f32 %v509, 1.442695
    %v511 = vpow.pop %v510
    %v512 = vadd.f32 %v511, 1.0
    %v513 = vrcp.pop %v512
    %v514 = vmul.f32 1.0, %v513
    %v515 = vtanh.pop %v508
    %v516 = vmul.f32 %v514, 0.0
    %518 = vrot.lane.b32.xlu0 %v515, 64
    %v519 = vpop.permute.xlu0 %518
    %v521 = vmul.f32 %v514, %v519
    %523 = vrot.lane.b32.xlu0 %v521, 32
    %v524 = vpop.permute.xlu0 %523
    %v526 = vadd.f32 %v516, %v524
    %v527 = vtanh.pop %v526
    %529 = vrot.lane.b32.xlu0 %v527, 64
    %v530 = vpop.permute.xlu0 %529
    %v532 = vmul.f32 %v514, %v530
    %s533 = scalar_lea.vmem [#allocation2], 2
    %v534 = vld [vmem:[%s533] sm:$0x3]
    %535 = vmatprep.subr.mxu0 0.0
    %536 = vmatpush1.msra.mxu0 0.0
    %537 = vmatprep.subr.mxu0 0.0
    %538 = vmatpush1.msra.mxu0 0.0
    %539 = vmatprep.subr.mxu0 0.0
    %540 = vmatpush1.msra.mxu0 0.0
    %541 = vmatprep.subr.mxu0 0.0
    %542 = vmatpush1.msra.mxu0 0.0
    %543 = vmatprep.subr.mxu0 0.0
    %544 = vmatpush1.msra.mxu0 0.0
    %545 = vmatprep.subr.mxu0 0.0
    %546 = vmatpush1.msra.mxu0 0.0
    %547 = vmatprep.subr.mxu0 0.0
    %548 = vmatpush1.msra.mxu0 0.0
    %549 = vmatprep.subr.mxu0 0.0
    %550 = vmatpush1.msra.mxu0 0.0
    %551 = vmatprep.subr.mxu0 0.0
    %552 = vmatpush1.msra.mxu0 0.0
    %553 = vmatprep.subr.mxu0 0.0
    %554 = vmatpush1.msra.mxu0 0.0
    %555 = vmatprep.subr.mxu0 0.0
    %556 = vmatpush1.msra.mxu0 0.0
    %557 = vmatprep.subr.mxu0 0.0
    %558 = vmatpush1.msra.mxu0 0.0
    %559 = vmatprep.subr.mxu0 0.0
    %560 = vmatpush1.msra.mxu0 %v248
    %561 = vmatprep.subr.mxu0 0.0
    %562 = vmatpush1.msra.mxu0 %v247
    %563 = vmatprep.subr.mxu0 0.0
    %564 = vmatpush1.msra.mxu0 %v246
    %565 = vmatprep.subr.mxu0 0.0
    %566 = vmatpush1.msra.mxu0 %v245
    %567 = vmatprep.subr.mxu0 0.0
    %568 = vmatpush2.msra.mxu0 0.0
    %569 = vmatprep.subr.mxu0 0.0
    %570 = vmatpush2.msra.mxu0 0.0
    %571 = vmatprep.subr.mxu0 0.0
    %572 = vmatpush2.msra.mxu0 0.0
    %573 = vmatprep.subr.mxu0 0.0
    %574 = vmatpush2.msra.mxu0 0.0
    %575 = vmatprep.subr.mxu0 0.0
    %576 = vmatpush2.msra.mxu0 0.0
    %577 = vmatprep.subr.mxu0 0.0
    %578 = vmatpush2.msra.mxu0 0.0
    %579 = vmatprep.subr.mxu0 0.0
    %580 = vmatpush2.msra.mxu0 0.0
    %581 = vmatprep.subr.mxu0 0.0
    %582 = vmatpush2.msra.mxu0 0.0
    %583 = vmatprep.subr.mxu0 0.0
    %584 = vmatpush2.msra.mxu0 0.0
    %585 = vmatprep.subr.mxu0 0.0
    %586 = vmatpush2.msra.mxu0 0.0
    %587 = vmatprep.subr.mxu0 0.0
    %588 = vmatpush2.msra.mxu0 0.0
    %589 = vmatprep.subr.mxu0 0.0
    %590 = vmatpush2.msra.mxu0 0.0
    %591 = vmatprep.subr.mxu0 0.0
    %592 = vmatpush2.msra.mxu0 0.0
    %593 = vmatprep.subr.mxu0 0.0
    %594 = vmatpush2.msra.mxu0 0.0
    %595 = vmatprep.subr.mxu0 0.0
    %596 = vmatpush2.msra.mxu0 0.0
    %597 = vmatprep.subr.mxu0 0.0
    %598 = vmatpush2.msra.mxu0 0.0
    %599 = vmatprep.mubr.f32.mxu0 0.0
    %600 = vmatmul.mubr.f32.gmra.mxu0 %v436
    %v601 = vpop.f32.mrf.mxu0
    %v602 = vadd.f32 0.0, %v601
    %v603 = vpop.f32.mrf.mxu0
    %604 = vdwg.mxu0
    %v605 = vadd.f32 %v534, %v602
    %v606 = vxor.u32 %v605, 2147483648
    %v607 = vmul.f32 %v606, 1.442695
    %v608 = vpow.pop %v607
    %v609 = vadd.f32 %v608, 1.0
    %v610 = vrcp.pop %v609
    %v611 = vmul.f32 1.0, %v610
    %v612 = vtanh.pop %v605
    %v613 = vmul.f32 %v611, %v356
    %615 = vrot.lane.b32.xlu0 %v612, 64
    %v616 = vpop.permute.xlu0 %615
    %v618 = vmul.f32 %v611, %v616
    %620 = vrot.lane.b32.xlu0 %v618, 32
    %v621 = vpop.permute.xlu0 %620
    %v623 = vadd.f32 %v613, %v621
    %v624 = vtanh.pop %v623
    %626 = vrot.lane.b32.xlu0 %v624, 64
    %v627 = vpop.permute.xlu0 %626
    %v629 = vmul.f32 %v611, %v627
    %631 = vrot.lane.b32.xlu0 %v532, 32
    %v632 = vpop.permute.xlu0 %631
    %v633 = vsel %vm113, %v632, 0
    %635 = vmatprep.subr.mxu0 0.0
    %636 = vmatpush1.msra.mxu0 0.0
    %637 = vmatprep.subr.mxu0 0.0
    %638 = vmatpush1.msra.mxu0 0.0
    %639 = vmatprep.subr.mxu0 0.0
    %640 = vmatpush1.msra.mxu0 0.0
    %641 = vmatprep.subr.mxu0 0.0
    %642 = vmatpush1.msra.mxu0 0.0
    %643 = vmatprep.subr.mxu0 0.0
    %644 = vmatpush1.msra.mxu0 0.0
    %645 = vmatprep.subr.mxu0 0.0
    %646 = vmatpush1.msra.mxu0 0.0
    %647 = vmatprep.subr.mxu0 0.0
    %648 = vmatpush1.msra.mxu0 0.0
    %649 = vmatprep.subr.mxu0 0.0
    %650 = vmatpush1.msra.mxu0 0.0
    %651 = vmatprep.subr.mxu0 0.0
    %652 = vmatpush1.msra.mxu0 0.0
    %653 = vmatprep.subr.mxu0 0.0
    %654 = vmatpush1.msra.mxu0 0.0
    %655 = vmatprep.subr.mxu0 0.0
    %656 = vmatpush1.msra.mxu0 0.0
    %657 = vmatprep.subr.mxu0 0.0
    %658 = vmatpush1.msra.mxu0 0.0
    %659 = vmatprep.subr.mxu0 0.0
    %660 = vmatpush1.msra.mxu0 %v256
    %661 = vmatprep.subr.mxu0 0.0
    %662 = vmatpush1.msra.mxu0 %v255
    %663 = vmatprep.subr.mxu0 0.0
    %664 = vmatpush1.msra.mxu0 %v254
    %665 = vmatprep.subr.mxu0 0.0
    %666 = vmatpush1.msra.mxu0 %v253
    %667 = vmatprep.subr.mxu0 0.0
    %668 = vmatpush2.msra.mxu0 0.0
    %669 = vmatprep.subr.mxu0 0.0
    %670 = vmatpush2.msra.mxu0 0.0
    %671 = vmatprep.subr.mxu0 0.0
    %672 = vmatpush2.msra.mxu0 0.0
    %673 = vmatprep.subr.mxu0 0.0
    %674 = vmatpush2.msra.mxu0 0.0
    %675 = vmatprep.subr.mxu0 0.0
    %676 = vmatpush2.msra.mxu0 0.0
    %677 = vmatprep.subr.mxu0 0.0
    %678 = vmatpush2.msra.mxu0 0.0
    %679 = vmatprep.subr.mxu0 0.0
    %680 = vmatpush2.msra.mxu0 0.0
    %681 = vmatprep.subr.mxu0 0.0
    %682 = vmatpush2.msra.mxu0 0.0
    %683 = vmatprep.subr.mxu0 0.0
    %684 = vmatpush2.msra.mxu0 0.0
    %685 = vmatprep.subr.mxu0 0.0
    %686 = vmatpush2.msra.mxu0 0.0
    %687 = vmatprep.subr.mxu0 0.0
    %688 = vmatpush2.msra.mxu0 0.0
    %689 = vmatprep.subr.mxu0 0.0
    %690 = vmatpush2.msra.mxu0 0.0
    %691 = vmatprep.subr.mxu0 0.0
    %692 = vmatpush2.msra.mxu0 0.0
    %693 = vmatprep.subr.mxu0 0.0
    %694 = vmatpush2.msra.mxu0 0.0
    %695 = vmatprep.subr.mxu0 0.0
    %696 = vmatpush2.msra.mxu0 0.0
    %697 = vmatprep.subr.mxu0 0.0
    %698 = vmatpush2.msra.mxu0 0.0
    %699 = vmatprep.mubr.f32.mxu0 0.0
    %700 = vmatmul.mubr.f32.gmra.mxu0 %v633
    %v701 = vpop.f32.mrf.mxu0
    %v702 = vadd.f32 0.0, %v701
    %v703 = vpop.f32.mrf.mxu0
    %704 = vdwg.mxu0
    %706 = vrot.lane.b32.xlu0 %v629, 32
    %v707 = vpop.permute.xlu0 %706
    %v708 = vsel %vm113, %v707, 0
    %710 = vmatprep.subr.mxu0 0.0
    %711 = vmatpush1.msra.mxu0 0.0
    %712 = vmatprep.subr.mxu0 0.0
    %713 = vmatpush1.msra.mxu0 0.0
    %714 = vmatprep.subr.mxu0 0.0
    %715 = vmatpush1.msra.mxu0 0.0
    %716 = vmatprep.subr.mxu0 0.0
    %717 = vmatpush1.msra.mxu0 0.0
    %718 = vmatprep.subr.mxu0 0.0
    %719 = vmatpush1.msra.mxu0 0.0
    %720 = vmatprep.subr.mxu0 0.0
    %721 = vmatpush1.msra.mxu0 0.0
    %722 = vmatprep.subr.mxu0 0.0
    %723 = vmatpush1.msra.mxu0 0.0
    %724 = vmatprep.subr.mxu0 0.0
    %725 = vmatpush1.msra.mxu0 0.0
    %726 = vmatprep.subr.mxu0 0.0
    %727 = vmatpush1.msra.mxu0 0.0
    %728 = vmatprep.subr.mxu0 0.0
    %729 = vmatpush1.msra.mxu0 0.0
    %730 = vmatprep.subr.mxu0 0.0
    %731 = vmatpush1.msra.mxu0 0.0
    %732 = vmatprep.subr.mxu0 0.0
    %733 = vmatpush1.msra.mxu0 0.0
    %734 = vmatprep.subr.mxu0 0.0
    %735 = vmatpush1.msra.mxu0 %v252
    %736 = vmatprep.subr.mxu0 0.0
    %737 = vmatpush1.msra.mxu0 %v251
    %738 = vmatprep.subr.mxu0 0.0
    %739 = vmatpush1.msra.mxu0 %v250
    %740 = vmatprep.subr.mxu0 0.0
    %741 = vmatpush1.msra.mxu0 %v249
    %742 = vmatprep.subr.mxu0 0.0
    %743 = vmatpush2.msra.mxu0 0.0
    %744 = vmatprep.subr.mxu0 0.0
    %745 = vmatpush2.msra.mxu0 0.0
    %746 = vmatprep.subr.mxu0 0.0
    %747 = vmatpush2.msra.mxu0 0.0
    %748 = vmatprep.subr.mxu0 0.0
    %749 = vmatpush2.msra.mxu0 0.0
    %750 = vmatprep.subr.mxu0 0.0
    %751 = vmatpush2.msra.mxu0 0.0
    %752 = vmatprep.subr.mxu0 0.0
    %753 = vmatpush2.msra.mxu0 0.0
    %754 = vmatprep.subr.mxu0 0.0
    %755 = vmatpush2.msra.mxu0 0.0
    %756 = vmatprep.subr.mxu0 0.0
    %757 = vmatpush2.msra.mxu0 0.0
    %758 = vmatprep.subr.mxu0 0.0
    %759 = vmatpush2.msra.mxu0 0.0
    %760 = vmatprep.subr.mxu0 0.0
    %761 = vmatpush2.msra.mxu0 0.0
    %762 = vmatprep.subr.mxu0 0.0
    %763 = vmatpush2.msra.mxu0 0.0
    %764 = vmatprep.subr.mxu0 0.0
    %765 = vmatpush2.msra.mxu0 0.0
    %766 = vmatprep.subr.mxu0 0.0
    %767 = vmatpush2.msra.mxu0 0.0
    %768 = vmatprep.subr.mxu0 0.0
    %769 = vmatpush2.msra.mxu0 0.0
    %770 = vmatprep.subr.mxu0 0.0
    %771 = vmatpush2.msra.mxu0 0.0
    %772 = vmatprep.subr.mxu0 0.0
    %773 = vmatpush2.msra.mxu0 0.0
    %774 = vmatprep.mubr.f32.mxu0 0.0
    %775 = vmatmul.mubr.f32.gmra.mxu0 %v708
    %v776 = vpop.f32.mrf.mxu0
    %v777 = vadd.f32 %v702, %v776
    %v778 = vpop.f32.mrf.mxu0
    %779 = vdwg.mxu0
    %v780 = vadd.f32 %v777, %v262
    %v781 = vxor.u32 %v780, 2147483648
    %v782 = vmul.f32 %v781, 1.442695
    %v783 = vpow.pop %v782
    %v784 = vadd.f32 %v783, 1.0
    %v785 = vrcp.pop %v784
    %v786 = vmul.f32 1.0, %v785
    %v787 = vtanh.pop %v780
    %v788 = vmul.f32 %v786, %v526
    %790 = vrot.lane.b32.xlu0 %v787, 64
    %v791 = vpop.permute.xlu0 %790
    %v793 = vmul.f32 %v786, %v791
    %795 = vrot.lane.b32.xlu0 %v793, 32
    %v796 = vpop.permute.xlu0 %795
    %v798 = vadd.f32 %v788, %v796
    %v799 = vtanh.pop %v798
    %801 = vrot.lane.b32.xlu0 %v799, 64
    %v802 = vpop.permute.xlu0 %801
    %v804 = vmul.f32 %v786, %v802
    %s805 = scalar_lea.vmem [#allocation2], 4
    %v806 = vld [vmem:[%s805] sm:$0x3]
    %807 = vmatprep.subr.mxu0 0.0
    %808 = vmatpush1.msra.mxu0 0.0
    %809 = vmatprep.subr.mxu0 0.0
    %810 = vmatpush1.msra.mxu0 0.0
    %811 = vmatprep.subr.mxu0 0.0
    %812 = vmatpush1.msra.mxu0 0.0
    %813 = vmatprep.subr.mxu0 0.0
    %814 = vmatpush1.msra.mxu0 0.0
    %815 = vmatprep.subr.mxu0 0.0
    %816 = vmatpush1.msra.mxu0 0.0
    %817 = vmatprep.subr.mxu0 0.0
    %818 = vmatpush1.msra.mxu0 0.0
    %819 = vmatprep.subr.mxu0 0.0
    %820 = vmatpush1.msra.mxu0 0.0
    %821 = vmatprep.subr.mxu0 0.0
    %822 = vmatpush1.msra.mxu0 0.0
    %823 = vmatprep.subr.mxu0 0.0
    %824 = vmatpush1.msra.mxu0 0.0
    %825 = vmatprep.subr.mxu0 0.0
    %826 = vmatpush1.msra.mxu0 0.0
    %827 = vmatprep.subr.mxu0 0.0
    %828 = vmatpush1.msra.mxu0 0.0
    %829 = vmatprep.subr.mxu0 0.0
    %830 = vmatpush1.msra.mxu0 0.0
    %831 = vmatprep.subr.mxu0 0.0
    %832 = vmatpush1.msra.mxu0 %v248
    %833 = vmatprep.subr.mxu0 0.0
    %834 = vmatpush1.msra.mxu0 %v247
    %835 = vmatprep.subr.mxu0 0.0
    %836 = vmatpush1.msra.mxu0 %v246
    %837 = vmatprep.subr.mxu0 0.0
    %838 = vmatpush1.msra.mxu0 %v245
    %839 = vmatprep.subr.mxu0 0.0
    %840 = vmatpush2.msra.mxu0 0.0
    %841 = vmatprep.subr.mxu0 0.0
    %842 = vmatpush2.msra.mxu0 0.0
    %843 = vmatprep.subr.mxu0 0.0
    %844 = vmatpush2.msra.mxu0 0.0
    %845 = vmatprep.subr.mxu0 0.0
    %846 = vmatpush2.msra.mxu0 0.0
    %847 = vmatprep.subr.mxu0 0.0
    %848 = vmatpush2.msra.mxu0 0.0
    %849 = vmatprep.subr.mxu0 0.0
    %850 = vmatpush2.msra.mxu0 0.0
    %851 = vmatprep.subr.mxu0 0.0
    %852 = vmatpush2.msra.mxu0 0.0
    %853 = vmatprep.subr.mxu0 0.0
    %854 = vmatpush2.msra.mxu0 0.0
    %855 = vmatprep.subr.mxu0 0.0
    %856 = vmatpush2.msra.mxu0 0.0
    %857 = vmatprep.subr.mxu0 0.0
    %858 = vmatpush2.msra.mxu0 0.0
    %859 = vmatprep.subr.mxu0 0.0
    %860 = vmatpush2.msra.mxu0 0.0
    %861 = vmatprep.subr.mxu0 0.0
    %862 = vmatpush2.msra.mxu0 0.0
    %863 = vmatprep.subr.mxu0 0.0
    %864 = vmatpush2.msra.mxu0 0.0
    %865 = vmatprep.subr.mxu0 0.0
    %866 = vmatpush2.msra.mxu0 0.0
    %867 = vmatprep.subr.mxu0 0.0
    %868 = vmatpush2.msra.mxu0 0.0
    %869 = vmatprep.subr.mxu0 0.0
    %870 = vmatpush2.msra.mxu0 0.0
    %871 = vmatprep.mubr.f32.mxu0 0.0
    %872 = vmatmul.mubr.f32.gmra.mxu0 %v708
    %v873 = vpop.f32.mrf.mxu0
    %v874 = vadd.f32 0.0, %v873
    %v875 = vpop.f32.mrf.mxu0
    %876 = vdwg.mxu0
    %v877 = vadd.f32 %v806, %v874
    %v878 = vxor.u32 %v877, 2147483648
    %v879 = vmul.f32 %v878, 1.442695
    %v880 = vpow.pop %v879
    %v881 = vadd.f32 %v880, 1.0
    %v882 = vrcp.pop %v881
    %v883 = vmul.f32 1.0, %v882
    %v884 = vtanh.pop %v877
    %v885 = vmul.f32 %v883, %v623
    %887 = vrot.lane.b32.xlu0 %v884, 64
    %v888 = vpop.permute.xlu0 %887
    %v890 = vmul.f32 %v883, %v888
    %892 = vrot.lane.b32.xlu0 %v890, 32
    %v893 = vpop.permute.xlu0 %892
    %v895 = vadd.f32 %v885, %v893
    %v896 = vtanh.pop %v895
    %898 = vrot.lane.b32.xlu0 %v896, 64
    %v899 = vpop.permute.xlu0 %898
    %v901 = vmul.f32 %v883, %v899
    %903 = vrot.lane.b32.xlu0 %v804, 32
    %v904 = vpop.permute.xlu0 %903
    %v905 = vsel %vm113, %v904, 0
    %907 = vmatprep.subr.mxu0 0.0
    %908 = vmatpush1.msra.mxu0 0.0
    %909 = vmatprep.subr.mxu0 0.0
    %910 = vmatpush1.msra.mxu0 0.0
    %911 = vmatprep.subr.mxu0 0.0
    %912 = vmatpush1.msra.mxu0 0.0
    %913 = vmatprep.subr.mxu0 0.0
    %914 = vmatpush1.msra.mxu0 0.0
    %915 = vmatprep.subr.mxu0 0.0
    %916 = vmatpush1.msra.mxu0 0.0
    %917 = vmatprep.subr.mxu0 0.0
    %918 = vmatpush1.msra.mxu0 0.0
    %919 = vmatprep.subr.mxu0 0.0
    %920 = vmatpush1.msra.mxu0 0.0
    %921 = vmatprep.subr.mxu0 0.0
    %922 = vmatpush1.msra.mxu0 0.0
    %923 = vmatprep.subr.mxu0 0.0
    %924 = vmatpush1.msra.mxu0 0.0
    %925 = vmatprep.subr.mxu0 0.0
    %926 = vmatpush1.msra.mxu0 0.0
    %927 = vmatprep.subr.mxu0 0.0
    %928 = vmatpush1.msra.mxu0 0.0
    %929 = vmatprep.subr.mxu0 0.0
    %930 = vmatpush1.msra.mxu0 0.0
    %931 = vmatprep.subr.mxu0 0.0
    %932 = vmatpush1.msra.mxu0 %v256
    %933 = vmatprep.subr.mxu0 0.0
    %934 = vmatpush1.msra.mxu0 %v255
    %935 = vmatprep.subr.mxu0 0.0
    %936 = vmatpush1.msra.mxu0 %v254
    %937 = vmatprep.subr.mxu0 0.0
    %938 = vmatpush1.msra.mxu0 %v253
    %939 = vmatprep.subr.mxu0 0.0
    %940 = vmatpush2.msra.mxu0 0.0
    %941 = vmatprep.subr.mxu0 0.0
    %942 = vmatpush2.msra.mxu0 0.0
    %943 = vmatprep.subr.mxu0 0.0
    %944 = vmatpush2.msra.mxu0 0.0
    %945 = vmatprep.subr.mxu0 0.0
    %946 = vmatpush2.msra.mxu0 0.0
    %947 = vmatprep.subr.mxu0 0.0
    %948 = vmatpush2.msra.mxu0 0.0
    %949 = vmatprep.subr.mxu0 0.0
    %950 = vmatpush2.msra.mxu0 0.0
    %951 = vmatprep.subr.mxu0 0.0
    %952 = vmatpush2.msra.mxu0 0.0
    %953 = vmatprep.subr.mxu0 0.0
    %954 = vmatpush2.msra.mxu0 0.0
    %955 = vmatprep.subr.mxu0 0.0
    %956 = vmatpush2.msra.mxu0 0.0
    %957 = vmatprep.subr.mxu0 0.0
    %958 = vmatpush2.msra.mxu0 0.0
    %959 = vmatprep.subr.mxu0 0.0
    %960 = vmatpush2.msra.mxu0 0.0
    %961 = vmatprep.subr.mxu0 0.0
    %962 = vmatpush2.msra.mxu0 0.0
    %963 = vmatprep.subr.mxu0 0.0
    %964 = vmatpush2.msra.mxu0 0.0
    %965 = vmatprep.subr.mxu0 0.0
    %966 = vmatpush2.msra.mxu0 0.0
    %967 = vmatprep.subr.mxu0 0.0
    %968 = vmatpush2.msra.mxu0 0.0
    %969 = vmatprep.subr.mxu0 0.0
    %970 = vmatpush2.msra.mxu0 0.0
    %971 = vmatprep.mubr.f32.mxu0 0.0
    %972 = vmatmul.mubr.f32.gmra.mxu0 %v905
    %v973 = vpop.f32.mrf.mxu0
    %v974 = vadd.f32 0.0, %v973
    %v975 = vpop.f32.mrf.mxu0
    %976 = vdwg.mxu0
    %978 = vrot.lane.b32.xlu0 %v901, 32
    %v979 = vpop.permute.xlu0 %978
    %v980 = vsel %vm113, %v979, 0
    %982 = vmatprep.subr.mxu0 0.0
    %983 = vmatpush1.msra.mxu0 0.0
    %984 = vmatprep.subr.mxu0 0.0
    %985 = vmatpush1.msra.mxu0 0.0
    %986 = vmatprep.subr.mxu0 0.0
    %987 = vmatpush1.msra.mxu0 0.0
    %988 = vmatprep.subr.mxu0 0.0
    %989 = vmatpush1.msra.mxu0 0.0
    %990 = vmatprep.subr.mxu0 0.0
    %991 = vmatpush1.msra.mxu0 0.0
    %992 = vmatprep.subr.mxu0 0.0
    %993 = vmatpush1.msra.mxu0 0.0
    %994 = vmatprep.subr.mxu0 0.0
    %995 = vmatpush1.msra.mxu0 0.0
    %996 = vmatprep.subr.mxu0 0.0
    %997 = vmatpush1.msra.mxu0 0.0
    %998 = vmatprep.subr.mxu0 0.0
    %999 = vmatpush1.msra.mxu0 0.0
    %1000 = vmatprep.subr.mxu0 0.0
    %1001 = vmatpush1.msra.mxu0 0.0
    %1002 = vmatprep.subr.mxu0 0.0
    %1003 = vmatpush1.msra.mxu0 0.0
    %1004 = vmatprep.subr.mxu0 0.0
    %1005 = vmatpush1.msra.mxu0 0.0
    %1006 = vmatprep.subr.mxu0 0.0
    %1007 = vmatpush1.msra.mxu0 %v252
    %1008 = vmatprep.subr.mxu0 0.0
    %1009 = vmatpush1.msra.mxu0 %v251
    %1010 = vmatprep.subr.mxu0 0.0
    %1011 = vmatpush1.msra.mxu0 %v250
    %1012 = vmatprep.subr.mxu0 0.0
    %1013 = vmatpush1.msra.mxu0 %v249
    %1014 = vmatprep.subr.mxu0 0.0
    %1015 = vmatpush2.msra.mxu0 0.0
    %1016 = vmatprep.subr.mxu0 0.0
    %1017 = vmatpush2.msra.mxu0 0.0
    %1018 = vmatprep.subr.mxu0 0.0
    %1019 = vmatpush2.msra.mxu0 0.0
    %1020 = vmatprep.subr.mxu0 0.0
    %1021 = vmatpush2.msra.mxu0 0.0
    %1022 = vmatprep.subr.mxu0 0.0
    %1023 = vmatpush2.msra.mxu0 0.0
    %1024 = vmatprep.subr.mxu0 0.0
    %1025 = vmatpush2.msra.mxu0 0.0
    %1026 = vmatprep.subr.mxu0 0.0
    %1027 = vmatpush2.msra.mxu0 0.0
    %1028 = vmatprep.subr.mxu0 0.0
    %1029 = vmatpush2.msra.mxu0 0.0
    %1030 = vmatprep.subr.mxu0 0.0
    %1031 = vmatpush2.msra.mxu0 0.0
    %1032 = vmatprep.subr.mxu0 0.0
    %1033 = vmatpush2.msra.mxu0 0.0
    %1034 = vmatprep.subr.mxu0 0.0
    %1035 = vmatpush2.msra.mxu0 0.0
    %1036 = vmatprep.subr.mxu0 0.0
    %1037 = vmatpush2.msra.mxu0 0.0
    %1038 = vmatprep.subr.mxu0 0.0
    %1039 = vmatpush2.msra.mxu0 0.0
    %1040 = vmatprep.subr.mxu0 0.0
    %1041 = vmatpush2.msra.mxu0 0.0
    %1042 = vmatprep.subr.mxu0 0.0
    %1043 = vmatpush2.msra.mxu0 0.0
    %1044 = vmatprep.subr.mxu0 0.0
    %1045 = vmatpush2.msra.mxu0 0.0
    %1046 = vmatprep.mubr.f32.mxu0 0.0
    %1047 = vmatmul.mubr.f32.gmra.mxu0 %v980
    %v1048 = vpop.f32.mrf.mxu0
    %v1049 = vadd.f32 %v974, %v1048
    %v1050 = vpop.f32.mrf.mxu0
    %1051 = vdwg.mxu0
    %v1052 = vadd.f32 %v1049, %v262
    %v1053 = vxor.u32 %v1052, 2147483648
    %v1054 = vmul.f32 %v1053, 1.442695
    %v1055 = vpow.pop %v1054
    %v1056 = vadd.f32 %v1055, 1.0
    %v1057 = vrcp.pop %v1056
    %v1058 = vmul.f32 1.0, %v1057
    %v1059 = vtanh.pop %v1052
    %v1060 = vmul.f32 %v1058, %v798
    %1062 = vrot.lane.b32.xlu0 %v1059, 64
    %v1063 = vpop.permute.xlu0 %1062
    %v1065 = vmul.f32 %v1058, %v1063
    %1067 = vrot.lane.b32.xlu0 %v1065, 32
    %v1068 = vpop.permute.xlu0 %1067
    %v1070 = vadd.f32 %v1060, %v1068
    %v1071 = vtanh.pop %v1070
    %1073 = vrot.lane.b32.xlu0 %v1071, 64
    %v1074 = vpop.permute.xlu0 %1073
    %v1076 = vmul.f32 %v1058, %v1074
    %s1077 = scalar_lea.vmem [#allocation2], 6
    %v1078 = vld [vmem:[%s1077] sm:$0x3]
    %1079 = vmatprep.subr.mxu0 0.0
    %1080 = vmatpush1.msra.mxu0 0.0
    %1081 = vmatprep.subr.mxu0 0.0
    %1082 = vmatpush1.msra.mxu0 0.0
    %1083 = vmatprep.subr.mxu0 0.0
    %1084 = vmatpush1.msra.mxu0 0.0
    %1085 = vmatprep.subr.mxu0 0.0
    %1086 = vmatpush1.msra.mxu0 0.0
    %1087 = vmatprep.subr.mxu0 0.0
    %1088 = vmatpush1.msra.mxu0 0.0
    %1089 = vmatprep.subr.mxu0 0.0
    %1090 = vmatpush1.msra.mxu0 0.0
    %1091 = vmatprep.subr.mxu0 0.0
    %1092 = vmatpush1.msra.mxu0 0.0
    %1093 = vmatprep.subr.mxu0 0.0
    %1094 = vmatpush1.msra.mxu0 0.0
    %1095 = vmatprep.subr.mxu0 0.0
    %1096 = vmatpush1.msra.mxu0 0.0
    %1097 = vmatprep.subr.mxu0 0.0
    %1098 = vmatpush1.msra.mxu0 0.0
    %1099 = vmatprep.subr.mxu0 0.0
    %1100 = vmatpush1.msra.mxu0 0.0
    %1101 = vmatprep.subr.mxu0 0.0
    %1102 = vmatpush1.msra.mxu0 0.0
    %1103 = vmatprep.subr.mxu0 0.0
    %1104 = vmatpush1.msra.mxu0 %v248
    %1105 = vmatprep.subr.mxu0 0.0
    %1106 = vmatpush1.msra.mxu0 %v247
    %1107 = vmatprep.subr.mxu0 0.0
    %1108 = vmatpush1.msra.mxu0 %v246
    %1109 = vmatprep.subr.mxu0 0.0
    %1110 = vmatpush1.msra.mxu0 %v245
    %1111 = vmatprep.subr.mxu0 0.0
    %1112 = vmatpush2.msra.mxu0 0.0
    %1113 = vmatprep.subr.mxu0 0.0
    %1114 = vmatpush2.msra.mxu0 0.0
    %1115 = vmatprep.subr.mxu0 0.0
    %1116 = vmatpush2.msra.mxu0 0.0
    %1117 = vmatprep.subr.mxu0 0.0
    %1118 = vmatpush2.msra.mxu0 0.0
    %1119 = vmatprep.subr.mxu0 0.0
    %1120 = vmatpush2.msra.mxu0 0.0
    %1121 = vmatprep.subr.mxu0 0.0
    %1122 = vmatpush2.msra.mxu0 0.0
    %1123 = vmatprep.subr.mxu0 0.0
    %1124 = vmatpush2.msra.mxu0 0.0
    %1125 = vmatprep.subr.mxu0 0.0
    %1126 = vmatpush2.msra.mxu0 0.0
    %1127 = vmatprep.subr.mxu0 0.0
    %1128 = vmatpush2.msra.mxu0 0.0
    %1129 = vmatprep.subr.mxu0 0.0
    %1130 = vmatpush2.msra.mxu0 0.0
    %1131 = vmatprep.subr.mxu0 0.0
    %1132 = vmatpush2.msra.mxu0 0.0
    %1133 = vmatprep.subr.mxu0 0.0
    %1134 = vmatpush2.msra.mxu0 0.0
    %1135 = vmatprep.subr.mxu0 0.0
    %1136 = vmatpush2.msra.mxu0 0.0
    %1137 = vmatprep.subr.mxu0 0.0
    %1138 = vmatpush2.msra.mxu0 0.0
    %1139 = vmatprep.subr.mxu0 0.0
    %1140 = vmatpush2.msra.mxu0 0.0
    %1141 = vmatprep.subr.mxu0 0.0
    %1142 = vmatpush2.msra.mxu0 0.0
    %1143 = vmatprep.mubr.f32.mxu0 0.0
    %1144 = vmatmul.mubr.f32.gmra.mxu0 %v980
    %v1145 = vpop.f32.mrf.mxu0
    %v1146 = vadd.f32 0.0, %v1145
    %v1147 = vpop.f32.mrf.mxu0
    %1148 = vdwg.mxu0
    %v1149 = vadd.f32 %v1078, %v1146
    %v1150 = vxor.u32 %v1149, 2147483648
    %v1151 = vmul.f32 %v1150, 1.442695
    %v1152 = vpow.pop %v1151
    %v1153 = vadd.f32 %v1152, 1.0
    %v1154 = vrcp.pop %v1153
    %v1155 = vmul.f32 1.0, %v1154
    %v1156 = vtanh.pop %v1149
    %v1157 = vmul.f32 %v1155, %v895
    %1159 = vrot.lane.b32.xlu0 %v1156, 64
    %v1160 = vpop.permute.xlu0 %1159
    %v1162 = vmul.f32 %v1155, %v1160
    %1164 = vrot.lane.b32.xlu0 %v1162, 32
    %v1165 = vpop.permute.xlu0 %1164
    %v1167 = vadd.f32 %v1157, %v1165
    %v1168 = vtanh.pop %v1167
    %1170 = vrot.lane.b32.xlu0 %v1168, 64
    %v1171 = vpop.permute.xlu0 %1170
    %v1173 = vmul.f32 %v1155, %v1171
    %1175 = vrot.lane.b32.xlu0 %v1076, 32
    %v1176 = vpop.permute.xlu0 %1175
    %v1177 = vsel %vm113, %v1176, 0
    %1179 = vmatprep.subr.mxu0 0.0
    %1180 = vmatpush1.msra.mxu0 0.0
    %1181 = vmatprep.subr.mxu0 0.0
    %1182 = vmatpush1.msra.mxu0 0.0
    %1183 = vmatprep.subr.mxu0 0.0
    %1184 = vmatpush1.msra.mxu0 0.0
    %1185 = vmatprep.subr.mxu0 0.0
    %1186 = vmatpush1.msra.mxu0 0.0
    %1187 = vmatprep.subr.mxu0 0.0
    %1188 = vmatpush1.msra.mxu0 0.0
    %1189 = vmatprep.subr.mxu0 0.0
    %1190 = vmatpush1.msra.mxu0 0.0
    %1191 = vmatprep.subr.mxu0 0.0
    %1192 = vmatpush1.msra.mxu0 0.0
    %1193 = vmatprep.subr.mxu0 0.0
    %1194 = vmatpush1.msra.mxu0 0.0
    %1195 = vmatprep.subr.mxu0 0.0
    %1196 = vmatpush1.msra.mxu0 0.0
    %1197 = vmatprep.subr.mxu0 0.0
    %1198 = vmatpush1.msra.mxu0 0.0
    %1199 = vmatprep.subr.mxu0 0.0
    %1200 = vmatpush1.msra.mxu0 0.0
    %1201 = vmatprep.subr.mxu0 0.0
    %1202 = vmatpush1.msra.mxu0 0.0
    %1203 = vmatprep.subr.mxu0 0.0
    %1204 = vmatpush1.msra.mxu0 %v256
    %1205 = vmatprep.subr.mxu0 0.0
    %1206 = vmatpush1.msra.mxu0 %v255
    %1207 = vmatprep.subr.mxu0 0.0
    %1208 = vmatpush1.msra.mxu0 %v254
    %1209 = vmatprep.subr.mxu0 0.0
    %1210 = vmatpush1.msra.mxu0 %v253
    %1211 = vmatprep.subr.mxu0 0.0
    %1212 = vmatpush2.msra.mxu0 0.0
    %1213 = vmatprep.subr.mxu0 0.0
    %1214 = vmatpush2.msra.mxu0 0.0
    %1215 = vmatprep.subr.mxu0 0.0
    %1216 = vmatpush2.msra.mxu0 0.0
    %1217 = vmatprep.subr.mxu0 0.0
    %1218 = vmatpush2.msra.mxu0 0.0
    %1219 = vmatprep.subr.mxu0 0.0
    %1220 = vmatpush2.msra.mxu0 0.0
    %1221 = vmatprep.subr.mxu0 0.0
    %1222 = vmatpush2.msra.mxu0 0.0
    %1223 = vmatprep.subr.mxu0 0.0
    %1224 = vmatpush2.msra.mxu0 0.0
    %1225 = vmatprep.subr.mxu0 0.0
    %1226 = vmatpush2.msra.mxu0 0.0
    %1227 = vmatprep.subr.mxu0 0.0
    %1228 = vmatpush2.msra.mxu0 0.0
    %1229 = vmatprep.subr.mxu0 0.0
    %1230 = vmatpush2.msra.mxu0 0.0
    %1231 = vmatprep.subr.mxu0 0.0
    %1232 = vmatpush2.msra.mxu0 0.0
    %1233 = vmatprep.subr.mxu0 0.0
    %1234 = vmatpush2.msra.mxu0 0.0
    %1235 = vmatprep.subr.mxu0 0.0
    %1236 = vmatpush2.msra.mxu0 0.0
    %1237 = vmatprep.subr.mxu0 0.0
    %1238 = vmatpush2.msra.mxu0 0.0
    %1239 = vmatprep.subr.mxu0 0.0
    %1240 = vmatpush2.msra.mxu0 0.0
    %1241 = vmatprep.subr.mxu0 0.0
    %1242 = vmatpush2.msra.mxu0 0.0
    %1243 = vmatprep.mubr.f32.mxu0 0.0
    %1244 = vmatmul.mubr.f32.gmra.mxu0 %v1177
    %v1245 = vpop.f32.mrf.mxu0
    %v1246 = vadd.f32 0.0, %v1245
    %v1247 = vpop.f32.mrf.mxu0
    %1248 = vdwg.mxu0
    %1250 = vrot.lane.b32.xlu0 %v1173, 32
    %v1251 = vpop.permute.xlu0 %1250
    %v1252 = vsel %vm113, %v1251, 0
    %1254 = vmatprep.subr.mxu0 0.0
    %1255 = vmatpush1.msra.mxu0 0.0
    %1256 = vmatprep.subr.mxu0 0.0
    %1257 = vmatpush1.msra.mxu0 0.0
    %1258 = vmatprep.subr.mxu0 0.0
    %1259 = vmatpush1.msra.mxu0 0.0
    %1260 = vmatprep.subr.mxu0 0.0
    %1261 = vmatpush1.msra.mxu0 0.0
    %1262 = vmatprep.subr.mxu0 0.0
    %1263 = vmatpush1.msra.mxu0 0.0
    %1264 = vmatprep.subr.mxu0 0.0
    %1265 = vmatpush1.msra.mxu0 0.0
    %1266 = vmatprep.subr.mxu0 0.0
    %1267 = vmatpush1.msra.mxu0 0.0
    %1268 = vmatprep.subr.mxu0 0.0
    %1269 = vmatpush1.msra.mxu0 0.0
    %1270 = vmatprep.subr.mxu0 0.0
    %1271 = vmatpush1.msra.mxu0 0.0
    %1272 = vmatprep.subr.mxu0 0.0
    %1273 = vmatpush1.msra.mxu0 0.0
    %1274 = vmatprep.subr.mxu0 0.0
    %1275 = vmatpush1.msra.mxu0 0.0
    %1276 = vmatprep.subr.mxu0 0.0
    %1277 = vmatpush1.msra.mxu0 0.0
    %1278 = vmatprep.subr.mxu0 0.0
    %1279 = vmatpush1.msra.mxu0 %v252
    %1280 = vmatprep.subr.mxu0 0.0
    %1281 = vmatpush1.msra.mxu0 %v251
    %1282 = vmatprep.subr.mxu0 0.0
    %1283 = vmatpush1.msra.mxu0 %v250
    %1284 = vmatprep.subr.mxu0 0.0
    %1285 = vmatpush1.msra.mxu0 %v249
    %1286 = vmatprep.subr.mxu0 0.0
    %1287 = vmatpush2.msra.mxu0 0.0
    %1288 = vmatprep.subr.mxu0 0.0
    %1289 = vmatpush2.msra.mxu0 0.0
    %1290 = vmatprep.subr.mxu0 0.0
    %1291 = vmatpush2.msra.mxu0 0.0
    %1292 = vmatprep.subr.mxu0 0.0
    %1293 = vmatpush2.msra.mxu0 0.0
    %1294 = vmatprep.subr.mxu0 0.0
    %1295 = vmatpush2.msra.mxu0 0.0
    %1296 = vmatprep.subr.mxu0 0.0
    %1297 = vmatpush2.msra.mxu0 0.0
    %1298 = vmatprep.subr.mxu0 0.0
    %1299 = vmatpush2.msra.mxu0 0.0
    %1300 = vmatprep.subr.mxu0 0.0
    %1301 = vmatpush2.msra.mxu0 0.0
    %1302 = vmatprep.subr.mxu0 0.0
    %1303 = vmatpush2.msra.mxu0 0.0
    %1304 = vmatprep.subr.mxu0 0.0
    %1305 = vmatpush2.msra.mxu0 0.0
    %1306 = vmatprep.subr.mxu0 0.0
    %1307 = vmatpush2.msra.mxu0 0.0
    %1308 = vmatprep.subr.mxu0 0.0
    %1309 = vmatpush2.msra.mxu0 0.0
    %1310 = vmatprep.subr.mxu0 0.0
    %1311 = vmatpush2.msra.mxu0 0.0
    %1312 = vmatprep.subr.mxu0 0.0
    %1313 = vmatpush2.msra.mxu0 0.0
    %1314 = vmatprep.subr.mxu0 0.0
    %1315 = vmatpush2.msra.mxu0 0.0
    %1316 = vmatprep.subr.mxu0 0.0
    %1317 = vmatpush2.msra.mxu0 0.0
    %1318 = vmatprep.mubr.f32.mxu0 0.0
    %1319 = vmatmul.mubr.f32.gmra.mxu0 %v1252
    %v1320 = vpop.f32.mrf.mxu0
    %v1321 = vadd.f32 %v1246, %v1320
    %v1322 = vpop.f32.mrf.mxu0
    %1323 = vdwg.mxu0
    %v1324 = vadd.f32 %v1321, %v262
    %v1325 = vxor.u32 %v1324, 2147483648
    %v1326 = vmul.f32 %v1325, 1.442695
    %v1327 = vpow.pop %v1326
    %v1328 = vadd.f32 %v1327, 1.0
    %v1329 = vrcp.pop %v1328
    %v1330 = vmul.f32 1.0, %v1329
    %v1331 = vtanh.pop %v1324
    %v1332 = vmul.f32 %v1330, %v1070
    %1334 = vrot.lane.b32.xlu0 %v1331, 64
    %v1335 = vpop.permute.xlu0 %1334
    %v1337 = vmul.f32 %v1330, %v1335
    %1339 = vrot.lane.b32.xlu0 %v1337, 32
    %v1340 = vpop.permute.xlu0 %1339
    %v1342 = vadd.f32 %v1332, %v1340
    %v1343 = vtanh.pop %v1342
    %1345 = vrot.lane.b32.xlu0 %v1343, 64
    %v1346 = vpop.permute.xlu0 %1345
    %v1348 = vmul.f32 %v1330, %v1346
    %s1349 = scalar_lea.vmem [#allocation2], 8
    %v1350 = vld [vmem:[%s1349] sm:$0x3]
    %1351 = vmatprep.subr.mxu0 0.0
    %1352 = vmatpush1.msra.mxu0 0.0
    %1353 = vmatprep.subr.mxu0 0.0
    %1354 = vmatpush1.msra.mxu0 0.0
    %1355 = vmatprep.subr.mxu0 0.0
    %1356 = vmatpush1.msra.mxu0 0.0
    %1357 = vmatprep.subr.mxu0 0.0
    %1358 = vmatpush1.msra.mxu0 0.0
    %1359 = vmatprep.subr.mxu0 0.0
    %1360 = vmatpush1.msra.mxu0 0.0
    %1361 = vmatprep.subr.mxu0 0.0
    %1362 = vmatpush1.msra.mxu0 0.0
    %1363 = vmatprep.subr.mxu0 0.0
    %1364 = vmatpush1.msra.mxu0 0.0
    %1365 = vmatprep.subr.mxu0 0.0
    %1366 = vmatpush1.msra.mxu0 0.0
    %1367 = vmatprep.subr.mxu0 0.0
    %1368 = vmatpush1.msra.mxu0 0.0
    %1369 = vmatprep.subr.mxu0 0.0
    %1370 = vmatpush1.msra.mxu0 0.0
    %1371 = vmatprep.subr.mxu0 0.0
    %1372 = vmatpush1.msra.mxu0 0.0
    %1373 = vmatprep.subr.mxu0 0.0
    %1374 = vmatpush1.msra.mxu0 0.0
    %1375 = vmatprep.subr.mxu0 0.0
    %1376 = vmatpush1.msra.mxu0 %v248
    %1377 = vmatprep.subr.mxu0 0.0
    %1378 = vmatpush1.msra.mxu0 %v247
    %1379 = vmatprep.subr.mxu0 0.0
    %1380 = vmatpush1.msra.mxu0 %v246
    %1381 = vmatprep.subr.mxu0 0.0
    %1382 = vmatpush1.msra.mxu0 %v245
    %1383 = vmatprep.subr.mxu0 0.0
    %1384 = vmatpush2.msra.mxu0 0.0
    %1385 = vmatprep.subr.mxu0 0.0
    %1386 = vmatpush2.msra.mxu0 0.0
    %1387 = vmatprep.subr.mxu0 0.0
    %1388 = vmatpush2.msra.mxu0 0.0
    %1389 = vmatprep.subr.mxu0 0.0
    %1390 = vmatpush2.msra.mxu0 0.0
    %1391 = vmatprep.subr.mxu0 0.0
    %1392 = vmatpush2.msra.mxu0 0.0
    %1393 = vmatprep.subr.mxu0 0.0
    %1394 = vmatpush2.msra.mxu0 0.0
    %1395 = vmatprep.subr.mxu0 0.0
    %1396 = vmatpush2.msra.mxu0 0.0
    %1397 = vmatprep.subr.mxu0 0.0
    %1398 = vmatpush2.msra.mxu0 0.0
    %1399 = vmatprep.subr.mxu0 0.0
    %1400 = vmatpush2.msra.mxu0 0.0
    %1401 = vmatprep.subr.mxu0 0.0
    %1402 = vmatpush2.msra.mxu0 0.0
    %1403 = vmatprep.subr.mxu0 0.0
    %1404 = vmatpush2.msra.mxu0 0.0
    %1405 = vmatprep.subr.mxu0 0.0
    %1406 = vmatpush2.msra.mxu0 0.0
    %1407 = vmatprep.subr.mxu0 0.0
    %1408 = vmatpush2.msra.mxu0 0.0
    %1409 = vmatprep.subr.mxu0 0.0
    %1410 = vmatpush2.msra.mxu0 0.0
    %1411 = vmatprep.subr.mxu0 0.0
    %1412 = vmatpush2.msra.mxu0 0.0
    %1413 = vmatprep.subr.mxu0 0.0
    %1414 = vmatpush2.msra.mxu0 0.0
    %1415 = vmatprep.mubr.f32.mxu0 0.0
    %1416 = vmatmul.mubr.f32.gmra.mxu0 %v1252
    %v1417 = vpop.f32.mrf.mxu0
    %v1418 = vadd.f32 0.0, %v1417
    %v1419 = vpop.f32.mrf.mxu0
    %1420 = vdwg.mxu0
    %v1421 = vadd.f32 %v1350, %v1418
    %v1422 = vxor.u32 %v1421, 2147483648
    %v1423 = vmul.f32 %v1422, 1.442695
    %v1424 = vpow.pop %v1423
    %v1425 = vadd.f32 %v1424, 1.0
    %v1426 = vrcp.pop %v1425
    %v1427 = vmul.f32 1.0, %v1426
    %v1428 = vtanh.pop %v1421
    %v1429 = vmul.f32 %v1427, %v1167
    %1431 = vrot.lane.b32.xlu0 %v1428, 64
    %v1432 = vpop.permute.xlu0 %1431
    %v1434 = vmul.f32 %v1427, %v1432
    %1436 = vrot.lane.b32.xlu0 %v1434, 32
    %v1437 = vpop.permute.xlu0 %1436
    %v1439 = vadd.f32 %v1429, %v1437
    %v1440 = vtanh.pop %v1439
    %1442 = vrot.lane.b32.xlu0 %v1440, 64
    %v1443 = vpop.permute.xlu0 %1442
    %v1445 = vmul.f32 %v1427, %v1443
    %1447 = vrot.lane.b32.xlu0 %v1348, 32
    %v1448 = vpop.permute.xlu0 %1447
    %v1449 = vsel %vm113, %v1448, 0
    %1451 = vmatprep.subr.mxu0 0.0
    %1452 = vmatpush1.msra.mxu0 0.0
    %1453 = vmatprep.subr.mxu0 0.0
    %1454 = vmatpush1.msra.mxu0 0.0
    %1455 = vmatprep.subr.mxu0 0.0
    %1456 = vmatpush1.msra.mxu0 0.0
    %1457 = vmatprep.subr.mxu0 0.0
    %1458 = vmatpush1.msra.mxu0 0.0
    %1459 = vmatprep.subr.mxu0 0.0
    %1460 = vmatpush1.msra.mxu0 0.0
    %1461 = vmatprep.subr.mxu0 0.0
    %1462 = vmatpush1.msra.mxu0 0.0
    %1463 = vmatprep.subr.mxu0 0.0
    %1464 = vmatpush1.msra.mxu0 0.0
    %1465 = vmatprep.subr.mxu0 0.0
    %1466 = vmatpush1.msra.mxu0 0.0
    %1467 = vmatprep.subr.mxu0 0.0
    %1468 = vmatpush1.msra.mxu0 0.0
    %1469 = vmatprep.subr.mxu0 0.0
    %1470 = vmatpush1.msra.mxu0 0.0
    %1471 = vmatprep.subr.mxu0 0.0
    %1472 = vmatpush1.msra.mxu0 0.0
    %1473 = vmatprep.subr.mxu0 0.0
    %1474 = vmatpush1.msra.mxu0 0.0
    %1475 = vmatprep.subr.mxu0 0.0
    %1476 = vmatpush1.msra.mxu0 %v256
    %1477 = vmatprep.subr.mxu0 0.0
    %1478 = vmatpush1.msra.mxu0 %v255
    %1479 = vmatprep.subr.mxu0 0.0
    %1480 = vmatpush1.msra.mxu0 %v254
    %1481 = vmatprep.subr.mxu0 0.0
    %1482 = vmatpush1.msra.mxu0 %v253
    %1483 = vmatprep.subr.mxu0 0.0
    %1484 = vmatpush2.msra.mxu0 0.0
    %1485 = vmatprep.subr.mxu0 0.0
    %1486 = vmatpush2.msra.mxu0 0.0
    %1487 = vmatprep.subr.mxu0 0.0
    %1488 = vmatpush2.msra.mxu0 0.0
    %1489 = vmatprep.subr.mxu0 0.0
    %1490 = vmatpush2.msra.mxu0 0.0
    %1491 = vmatprep.subr.mxu0 0.0
    %1492 = vmatpush2.msra.mxu0 0.0
    %1493 = vmatprep.subr.mxu0 0.0
    %1494 = vmatpush2.msra.mxu0 0.0
    %1495 = vmatprep.subr.mxu0 0.0
    %1496 = vmatpush2.msra.mxu0 0.0
    %1497 = vmatprep.subr.mxu0 0.0
    %1498 = vmatpush2.msra.mxu0 0.0
    %1499 = vmatprep.subr.mxu0 0.0
    %1500 = vmatpush2.msra.mxu0 0.0
    %1501 = vmatprep.subr.mxu0 0.0
    %1502 = vmatpush2.msra.mxu0 0.0
    %1503 = vmatprep.subr.mxu0 0.0
    %1504 = vmatpush2.msra.mxu0 0.0
    %1505 = vmatprep.subr.mxu0 0.0
    %1506 = vmatpush2.msra.mxu0 0.0
    %1507 = vmatprep.subr.mxu0 0.0
    %1508 = vmatpush2.msra.mxu0 0.0
    %1509 = vmatprep.subr.mxu0 0.0
    %1510 = vmatpush2.msra.mxu0 0.0
    %1511 = vmatprep.subr.mxu0 0.0
    %1512 = vmatpush2.msra.mxu0 0.0
    %1513 = vmatprep.subr.mxu0 0.0
    %1514 = vmatpush2.msra.mxu0 0.0
    %1515 = vmatprep.mubr.f32.mxu0 0.0
    %1516 = vmatmul.mubr.f32.gmra.mxu0 %v1449
    %v1517 = vpop.f32.mrf.mxu0
    %v1518 = vadd.f32 0.0, %v1517
    %v1519 = vpop.f32.mrf.mxu0
    %1520 = vdwg.mxu0
    %1522 = vrot.lane.b32.xlu0 %v1445, 32
    %v1523 = vpop.permute.xlu0 %1522
    %v1524 = vsel %vm113, %v1523, 0
    %1526 = vmatprep.subr.mxu0 0.0
    %1527 = vmatpush1.msra.mxu0 0.0
    %1528 = vmatprep.subr.mxu0 0.0
    %1529 = vmatpush1.msra.mxu0 0.0
    %1530 = vmatprep.subr.mxu0 0.0
    %1531 = vmatpush1.msra.mxu0 0.0
    %1532 = vmatprep.subr.mxu0 0.0
    %1533 = vmatpush1.msra.mxu0 0.0
    %1534 = vmatprep.subr.mxu0 0.0
    %1535 = vmatpush1.msra.mxu0 0.0
    %1536 = vmatprep.subr.mxu0 0.0
    %1537 = vmatpush1.msra.mxu0 0.0
    %1538 = vmatprep.subr.mxu0 0.0
    %1539 = vmatpush1.msra.mxu0 0.0
    %1540 = vmatprep.subr.mxu0 0.0
    %1541 = vmatpush1.msra.mxu0 0.0
    %1542 = vmatprep.subr.mxu0 0.0
    %1543 = vmatpush1.msra.mxu0 0.0
    %1544 = vmatprep.subr.mxu0 0.0
    %1545 = vmatpush1.msra.mxu0 0.0
    %1546 = vmatprep.subr.mxu0 0.0
    %1547 = vmatpush1.msra.mxu0 0.0
    %1548 = vmatprep.subr.mxu0 0.0
    %1549 = vmatpush1.msra.mxu0 0.0
    %1550 = vmatprep.subr.mxu0 0.0
    %1551 = vmatpush1.msra.mxu0 %v252
    %1552 = vmatprep.subr.mxu0 0.0
    %1553 = vmatpush1.msra.mxu0 %v251
    %1554 = vmatprep.subr.mxu0 0.0
    %1555 = vmatpush1.msra.mxu0 %v250
    %1556 = vmatprep.subr.mxu0 0.0
    %1557 = vmatpush1.msra.mxu0 %v249
    %1558 = vmatprep.subr.mxu0 0.0
    %1559 = vmatpush2.msra.mxu0 0.0
    %1560 = vmatprep.subr.mxu0 0.0
    %1561 = vmatpush2.msra.mxu0 0.0
    %1562 = vmatprep.subr.mxu0 0.0
    %1563 = vmatpush2.msra.mxu0 0.0
    %1564 = vmatprep.subr.mxu0 0.0
    %1565 = vmatpush2.msra.mxu0 0.0
    %1566 = vmatprep.subr.mxu0 0.0
    %1567 = vmatpush2.msra.mxu0 0.0
    %1568 = vmatprep.subr.mxu0 0.0
    %1569 = vmatpush2.msra.mxu0 0.0
    %1570 = vmatprep.subr.mxu0 0.0
    %1571 = vmatpush2.msra.mxu0 0.0
    %1572 = vmatprep.subr.mxu0 0.0
    %1573 = vmatpush2.msra.mxu0 0.0
    %1574 = vmatprep.subr.mxu0 0.0
    %1575 = vmatpush2.msra.mxu0 0.0
    %1576 = vmatprep.subr.mxu0 0.0
    %1577 = vmatpush2.msra.mxu0 0.0
    %1578 = vmatprep.subr.mxu0 0.0
    %1579 = vmatpush2.msra.mxu0 0.0
    %1580 = vmatprep.subr.mxu0 0.0
    %1581 = vmatpush2.msra.mxu0 0.0
    %1582 = vmatprep.subr.mxu0 0.0
    %1583 = vmatpush2.msra.mxu0 0.0
    %1584 = vmatprep.subr.mxu0 0.0
    %1585 = vmatpush2.msra.mxu0 0.0
    %1586 = vmatprep.subr.mxu0 0.0
    %1587 = vmatpush2.msra.mxu0 0.0
    %1588 = vmatprep.subr.mxu0 0.0
    %1589 = vmatpush2.msra.mxu0 0.0
    %1590 = vmatprep.mubr.f32.mxu0 0.0
    %1591 = vmatmul.mubr.f32.gmra.mxu0 %v1524
    %v1592 = vpop.f32.mrf.mxu0
    %v1593 = vadd.f32 %v1518, %v1592
    %v1594 = vpop.f32.mrf.mxu0
    %1595 = vdwg.mxu0
    %v1596 = vadd.f32 %v1593, %v262
    %v1597 = vxor.u32 %v1596, 2147483648
    %v1598 = vmul.f32 %v1597, 1.442695
    %v1599 = vpow.pop %v1598
    %v1600 = vadd.f32 %v1599, 1.0
    %v1601 = vrcp.pop %v1600
    %v1602 = vmul.f32 1.0, %v1601
    %v1603 = vtanh.pop %v1596
    %v1604 = vmul.f32 %v1602, %v1342
    %1606 = vrot.lane.b32.xlu0 %v1603, 64
    %v1607 = vpop.permute.xlu0 %1606
    %v1609 = vmul.f32 %v1602, %v1607
    %1611 = vrot.lane.b32.xlu0 %v1609, 32
    %v1612 = vpop.permute.xlu0 %1611
    %v1614 = vadd.f32 %v1604, %v1612
    %v1615 = vtanh.pop %v1614
    %1617 = vrot.lane.b32.xlu0 %v1615, 64
    %v1618 = vpop.permute.xlu0 %1617
    %v1620 = vmul.f32 %v1602, %v1618
    %s1621 = scalar_lea.vmem [#allocation2], 10
    %v1622 = vld [vmem:[%s1621] sm:$0x3]
    %1623 = vmatprep.subr.mxu0 0.0
    %1624 = vmatpush1.msra.mxu0 0.0
    %1625 = vmatprep.subr.mxu0 0.0
    %1626 = vmatpush1.msra.mxu0 0.0
    %1627 = vmatprep.subr.mxu0 0.0
    %1628 = vmatpush1.msra.mxu0 0.0
    %1629 = vmatprep.subr.mxu0 0.0
    %1630 = vmatpush1.msra.mxu0 0.0
    %1631 = vmatprep.subr.mxu0 0.0
    %1632 = vmatpush1.msra.mxu0 0.0
    %1633 = vmatprep.subr.mxu0 0.0
    %1634 = vmatpush1.msra.mxu0 0.0
    %1635 = vmatprep.subr.mxu0 0.0
    %1636 = vmatpush1.msra.mxu0 0.0
    %1637 = vmatprep.subr.mxu0 0.0
    %1638 = vmatpush1.msra.mxu0 0.0
    %1639 = vmatprep.subr.mxu0 0.0
    %1640 = vmatpush1.msra.mxu0 0.0
    %1641 = vmatprep.subr.mxu0 0.0
    %1642 = vmatpush1.msra.mxu0 0.0
    %1643 = vmatprep.subr.mxu0 0.0
    %1644 = vmatpush1.msra.mxu0 0.0
    %1645 = vmatprep.subr.mxu0 0.0
    %1646 = vmatpush1.msra.mxu0 0.0
    %1647 = vmatprep.subr.mxu0 0.0
    %1648 = vmatpush1.msra.mxu0 %v248
    %1649 = vmatprep.subr.mxu0 0.0
    %1650 = vmatpush1.msra.mxu0 %v247
    %1651 = vmatprep.subr.mxu0 0.0
    %1652 = vmatpush1.msra.mxu0 %v246
    %1653 = vmatprep.subr.mxu0 0.0
    %1654 = vmatpush1.msra.mxu0 %v245
    %1655 = vmatprep.subr.mxu0 0.0
    %1656 = vmatpush2.msra.mxu0 0.0
    %1657 = vmatprep.subr.mxu0 0.0
    %1658 = vmatpush2.msra.mxu0 0.0
    %1659 = vmatprep.subr.mxu0 0.0
    %1660 = vmatpush2.msra.mxu0 0.0
    %1661 = vmatprep.subr.mxu0 0.0
    %1662 = vmatpush2.msra.mxu0 0.0
    %1663 = vmatprep.subr.mxu0 0.0
    %1664 = vmatpush2.msra.mxu0 0.0
    %1665 = vmatprep.subr.mxu0 0.0
    %1666 = vmatpush2.msra.mxu0 0.0
    %1667 = vmatprep.subr.mxu0 0.0
    %1668 = vmatpush2.msra.mxu0 0.0
    %1669 = vmatprep.subr.mxu0 0.0
    %1670 = vmatpush2.msra.mxu0 0.0
    %1671 = vmatprep.subr.mxu0 0.0
    %1672 = vmatpush2.msra.mxu0 0.0
    %1673 = vmatprep.subr.mxu0 0.0
    %1674 = vmatpush2.msra.mxu0 0.0
    %1675 = vmatprep.subr.mxu0 0.0
    %1676 = vmatpush2.msra.mxu0 0.0
    %1677 = vmatprep.subr.mxu0 0.0
    %1678 = vmatpush2.msra.mxu0 0.0
    %1679 = vmatprep.subr.mxu0 0.0
    %1680 = vmatpush2.msra.mxu0 0.0
    %1681 = vmatprep.subr.mxu0 0.0
    %1682 = vmatpush2.msra.mxu0 0.0
    %1683 = vmatprep.subr.mxu0 0.0
    %1684 = vmatpush2.msra.mxu0 0.0
    %1685 = vmatprep.subr.mxu0 0.0
    %1686 = vmatpush2.msra.mxu0 0.0
    %1687 = vmatprep.mubr.f32.mxu0 0.0
    %1688 = vmatmul.mubr.f32.gmra.mxu0 %v1524
    %v1689 = vpop.f32.mrf.mxu0
    %v1690 = vadd.f32 0.0, %v1689
    %v1691 = vpop.f32.mrf.mxu0
    %1692 = vdwg.mxu0
    %v1693 = vadd.f32 %v1622, %v1690
    %v1694 = vxor.u32 %v1693, 2147483648
    %v1695 = vmul.f32 %v1694, 1.442695
    %v1696 = vpow.pop %v1695
    %v1697 = vadd.f32 %v1696, 1.0
    %v1698 = vrcp.pop %v1697
    %v1699 = vmul.f32 1.0, %v1698
    %v1700 = vtanh.pop %v1693
    %v1701 = vmul.f32 %v1699, %v1439
    %1703 = vrot.lane.b32.xlu0 %v1700, 64
    %v1704 = vpop.permute.xlu0 %1703
    %v1706 = vmul.f32 %v1699, %v1704
    %1708 = vrot.lane.b32.xlu0 %v1706, 32
    %v1709 = vpop.permute.xlu0 %1708
    %v1711 = vadd.f32 %v1701, %v1709
    %v1712 = vtanh.pop %v1711
    %1714 = vrot.lane.b32.xlu0 %v1712, 64
    %v1715 = vpop.permute.xlu0 %1714
    %v1717 = vmul.f32 %v1699, %v1715
    %1719 = vrot.lane.b32.xlu0 %v1620, 32
    %v1720 = vpop.permute.xlu0 %1719
    %v1721 = vsel %vm113, %v1720, 0
    %1723 = vmatprep.subr.mxu0 0.0
    %1724 = vmatpush1.msra.mxu0 0.0
    %1725 = vmatprep.subr.mxu0 0.0
    %1726 = vmatpush1.msra.mxu0 0.0
    %1727 = vmatprep.subr.mxu0 0.0
    %1728 = vmatpush1.msra.mxu0 0.0
    %1729 = vmatprep.subr.mxu0 0.0
    %1730 = vmatpush1.msra.mxu0 0.0
    %1731 = vmatprep.subr.mxu0 0.0
    %1732 = vmatpush1.msra.mxu0 0.0
    %1733 = vmatprep.subr.mxu0 0.0
    %1734 = vmatpush1.msra.mxu0 0.0
    %1735 = vmatprep.subr.mxu0 0.0
    %1736 = vmatpush1.msra.mxu0 0.0
    %1737 = vmatprep.subr.mxu0 0.0
    %1738 = vmatpush1.msra.mxu0 0.0
    %1739 = vmatprep.subr.mxu0 0.0
    %1740 = vmatpush1.msra.mxu0 0.0
    %1741 = vmatprep.subr.mxu0 0.0
    %1742 = vmatpush1.msra.mxu0 0.0
    %1743 = vmatprep.subr.mxu0 0.0
    %1744 = vmatpush1.msra.mxu0 0.0
    %1745 = vmatprep.subr.mxu0 0.0
    %1746 = vmatpush1.msra.mxu0 0.0
    %1747 = vmatprep.subr.mxu0 0.0
    %1748 = vmatpush1.msra.mxu0 %v256
    %1749 = vmatprep.subr.mxu0 0.0
    %1750 = vmatpush1.msra.mxu0 %v255
    %1751 = vmatprep.subr.mxu0 0.0
    %1752 = vmatpush1.msra.mxu0 %v254
    %1753 = vmatprep.subr.mxu0 0.0
    %1754 = vmatpush1.msra.mxu0 %v253
    %1755 = vmatprep.subr.mxu0 0.0
    %1756 = vmatpush2.msra.mxu0 0.0
    %1757 = vmatprep.subr.mxu0 0.0
    %1758 = vmatpush2.msra.mxu0 0.0
    %1759 = vmatprep.subr.mxu0 0.0
    %1760 = vmatpush2.msra.mxu0 0.0
    %1761 = vmatprep.subr.mxu0 0.0
    %1762 = vmatpush2.msra.mxu0 0.0
    %1763 = vmatprep.subr.mxu0 0.0
    %1764 = vmatpush2.msra.mxu0 0.0
    %1765 = vmatprep.subr.mxu0 0.0
    %1766 = vmatpush2.msra.mxu0 0.0
    %1767 = vmatprep.subr.mxu0 0.0
    %1768 = vmatpush2.msra.mxu0 0.0
    %1769 = vmatprep.subr.mxu0 0.0
    %1770 = vmatpush2.msra.mxu0 0.0
    %1771 = vmatprep.subr.mxu0 0.0
    %1772 = vmatpush2.msra.mxu0 0.0
    %1773 = vmatprep.subr.mxu0 0.0
    %1774 = vmatpush2.msra.mxu0 0.0
    %1775 = vmatprep.subr.mxu0 0.0
    %1776 = vmatpush2.msra.mxu0 0.0
    %1777 = vmatprep.subr.mxu0 0.0
    %1778 = vmatpush2.msra.mxu0 0.0
    %1779 = vmatprep.subr.mxu0 0.0
    %1780 = vmatpush2.msra.mxu0 0.0
    %1781 = vmatprep.subr.mxu0 0.0
    %1782 = vmatpush2.msra.mxu0 0.0
    %1783 = vmatprep.subr.mxu0 0.0
    %1784 = vmatpush2.msra.mxu0 0.0
    %1785 = vmatprep.subr.mxu0 0.0
    %1786 = vmatpush2.msra.mxu0 0.0
    %1787 = vmatprep.mubr.f32.mxu0 0.0
    %1788 = vmatmul.mubr.f32.gmra.mxu0 %v1721
    %v1789 = vpop.f32.mrf.mxu0
    %v1790 = vadd.f32 0.0, %v1789
    %v1791 = vpop.f32.mrf.mxu0
    %1792 = vdwg.mxu0
    %1794 = vrot.lane.b32.xlu0 %v1717, 32
    %v1795 = vpop.permute.xlu0 %1794
    %v1796 = vsel %vm113, %v1795, 0
    %1798 = vmatprep.subr.mxu0 0.0
    %1799 = vmatpush1.msra.mxu0 0.0
    %1800 = vmatprep.subr.mxu0 0.0
    %1801 = vmatpush1.msra.mxu0 0.0
    %1802 = vmatprep.subr.mxu0 0.0
    %1803 = vmatpush1.msra.mxu0 0.0
    %1804 = vmatprep.subr.mxu0 0.0
    %1805 = vmatpush1.msra.mxu0 0.0
    %1806 = vmatprep.subr.mxu0 0.0
    %1807 = vmatpush1.msra.mxu0 0.0
    %1808 = vmatprep.subr.mxu0 0.0
    %1809 = vmatpush1.msra.mxu0 0.0
    %1810 = vmatprep.subr.mxu0 0.0
    %1811 = vmatpush1.msra.mxu0 0.0
    %1812 = vmatprep.subr.mxu0 0.0
    %1813 = vmatpush1.msra.mxu0 0.0
    %1814 = vmatprep.subr.mxu0 0.0
    %1815 = vmatpush1.msra.mxu0 0.0
    %1816 = vmatprep.subr.mxu0 0.0
    %1817 = vmatpush1.msra.mxu0 0.0
    %1818 = vmatprep.subr.mxu0 0.0
    %1819 = vmatpush1.msra.mxu0 0.0
    %1820 = vmatprep.subr.mxu0 0.0
    %1821 = vmatpush1.msra.mxu0 0.0
    %1822 = vmatprep.subr.mxu0 0.0
    %1823 = vmatpush1.msra.mxu0 %v252
    %1824 = vmatprep.subr.mxu0 0.0
    %1825 = vmatpush1.msra.mxu0 %v251
    %1826 = vmatprep.subr.mxu0 0.0
    %1827 = vmatpush1.msra.mxu0 %v250
    %1828 = vmatprep.subr.mxu0 0.0
    %1829 = vmatpush1.msra.mxu0 %v249
    %1830 = vmatprep.subr.mxu0 0.0
    %1831 = vmatpush2.msra.mxu0 0.0
    %1832 = vmatprep.subr.mxu0 0.0
    %1833 = vmatpush2.msra.mxu0 0.0
    %1834 = vmatprep.subr.mxu0 0.0
    %1835 = vmatpush2.msra.mxu0 0.0
    %1836 = vmatprep.subr.mxu0 0.0
    %1837 = vmatpush2.msra.mxu0 0.0
    %1838 = vmatprep.subr.mxu0 0.0
    %1839 = vmatpush2.msra.mxu0 0.0
    %1840 = vmatprep.subr.mxu0 0.0
    %1841 = vmatpush2.msra.mxu0 0.0
    %1842 = vmatprep.subr.mxu0 0.0
    %1843 = vmatpush2.msra.mxu0 0.0
    %1844 = vmatprep.subr.mxu0 0.0
    %1845 = vmatpush2.msra.mxu0 0.0
    %1846 = vmatprep.subr.mxu0 0.0
    %1847 = vmatpush2.msra.mxu0 0.0
    %1848 = vmatprep.subr.mxu0 0.0
    %1849 = vmatpush2.msra.mxu0 0.0
    %1850 = vmatprep.subr.mxu0 0.0
    %1851 = vmatpush2.msra.mxu0 0.0
    %1852 = vmatprep.subr.mxu0 0.0
    %1853 = vmatpush2.msra.mxu0 0.0
    %1854 = vmatprep.subr.mxu0 0.0
    %1855 = vmatpush2.msra.mxu0 0.0
    %1856 = vmatprep.subr.mxu0 0.0
    %1857 = vmatpush2.msra.mxu0 0.0
    %1858 = vmatprep.subr.mxu0 0.0
    %1859 = vmatpush2.msra.mxu0 0.0
    %1860 = vmatprep.subr.mxu0 0.0
    %1861 = vmatpush2.msra.mxu0 0.0
    %1862 = vmatprep.mubr.f32.mxu0 0.0
    %1863 = vmatmul.mubr.f32.gmra.mxu0 %v1796
    %v1864 = vpop.f32.mrf.mxu0
    %v1865 = vadd.f32 %v1790, %v1864
    %v1866 = vpop.f32.mrf.mxu0
    %1867 = vdwg.mxu0
    %v1868 = vadd.f32 %v1865, %v262
    %v1869 = vxor.u32 %v1868, 2147483648
    %v1870 = vmul.f32 %v1869, 1.442695
    %v1871 = vpow.pop %v1870
    %v1872 = vadd.f32 %v1871, 1.0
    %v1873 = vrcp.pop %v1872
    %v1874 = vmul.f32 1.0, %v1873
    %v1875 = vtanh.pop %v1868
    %v1876 = vmul.f32 %v1874, %v1614
    %1878 = vrot.lane.b32.xlu0 %v1875, 64
    %v1879 = vpop.permute.xlu0 %1878
    %v1881 = vmul.f32 %v1874, %v1879
    %1883 = vrot.lane.b32.xlu0 %v1881, 32
    %v1884 = vpop.permute.xlu0 %1883
    %v1886 = vadd.f32 %v1876, %v1884
    %v1887 = vtanh.pop %v1886
    %1889 = vrot.lane.b32.xlu0 %v1887, 64
    %v1890 = vpop.permute.xlu0 %1889
    %v1892 = vmul.f32 %v1874, %v1890
    %s1893 = scalar_lea.vmem [#allocation2], 12
    %v1894 = vld [vmem:[%s1893] sm:$0x3]
    %1895 = vmatprep.subr.mxu0 0.0
    %1896 = vmatpush1.msra.mxu0 0.0
    %1897 = vmatprep.subr.mxu0 0.0
    %1898 = vmatpush1.msra.mxu0 0.0
    %1899 = vmatprep.subr.mxu0 0.0
    %1900 = vmatpush1.msra.mxu0 0.0
    %1901 = vmatprep.subr.mxu0 0.0
    %1902 = vmatpush1.msra.mxu0 0.0
    %1903 = vmatprep.subr.mxu0 0.0
    %1904 = vmatpush1.msra.mxu0 0.0
    %1905 = vmatprep.subr.mxu0 0.0
    %1906 = vmatpush1.msra.mxu0 0.0
    %1907 = vmatprep.subr.mxu0 0.0
    %1908 = vmatpush1.msra.mxu0 0.0
    %1909 = vmatprep.subr.mxu0 0.0
    %1910 = vmatpush1.msra.mxu0 0.0
    %1911 = vmatprep.subr.mxu0 0.0
    %1912 = vmatpush1.msra.mxu0 0.0
    %1913 = vmatprep.subr.mxu0 0.0
    %1914 = vmatpush1.msra.mxu0 0.0
    %1915 = vmatprep.subr.mxu0 0.0
    %1916 = vmatpush1.msra.mxu0 0.0
    %1917 = vmatprep.subr.mxu0 0.0
    %1918 = vmatpush1.msra.mxu0 0.0
    %1919 = vmatprep.subr.mxu0 0.0
    %1920 = vmatpush1.msra.mxu0 %v248
    %1921 = vmatprep.subr.mxu0 0.0
    %1922 = vmatpush1.msra.mxu0 %v247
    %1923 = vmatprep.subr.mxu0 0.0
    %1924 = vmatpush1.msra.mxu0 %v246
    %1925 = vmatprep.subr.mxu0 0.0
    %1926 = vmatpush1.msra.mxu0 %v245
    %1927 = vmatprep.subr.mxu0 0.0
    %1928 = vmatpush2.msra.mxu0 0.0
    %1929 = vmatprep.subr.mxu0 0.0
    %1930 = vmatpush2.msra.mxu0 0.0
    %1931 = vmatprep.subr.mxu0 0.0
    %1932 = vmatpush2.msra.mxu0 0.0
    %1933 = vmatprep.subr.mxu0 0.0
    %1934 = vmatpush2.msra.mxu0 0.0
    %1935 = vmatprep.subr.mxu0 0.0
    %1936 = vmatpush2.msra.mxu0 0.0
    %1937 = vmatprep.subr.mxu0 0.0
    %1938 = vmatpush2.msra.mxu0 0.0
    %1939 = vmatprep.subr.mxu0 0.0
    %1940 = vmatpush2.msra.mxu0 0.0
    %1941 = vmatprep.subr.mxu0 0.0
    %1942 = vmatpush2.msra.mxu0 0.0
    %1943 = vmatprep.subr.mxu0 0.0
    %1944 = vmatpush2.msra.mxu0 0.0
    %1945 = vmatprep.subr.mxu0 0.0
    %1946 = vmatpush2.msra.mxu0 0.0
    %1947 = vmatprep.subr.mxu0 0.0
    %1948 = vmatpush2.msra.mxu0 0.0
    %1949 = vmatprep.subr.mxu0 0.0
    %1950 = vmatpush2.msra.mxu0 0.0
    %1951 = vmatprep.subr.mxu0 0.0
    %1952 = vmatpush2.msra.mxu0 0.0
    %1953 = vmatprep.subr.mxu0 0.0
    %1954 = vmatpush2.msra.mxu0 0.0
    %1955 = vmatprep.subr.mxu0 0.0
    %1956 = vmatpush2.msra.mxu0 0.0
    %1957 = vmatprep.subr.mxu0 0.0
    %1958 = vmatpush2.msra.mxu0 0.0
    %1959 = vmatprep.mubr.f32.mxu0 0.0
    %1960 = vmatmul.mubr.f32.gmra.mxu0 %v1796
    %v1961 = vpop.f32.mrf.mxu0
    %v1962 = vadd.f32 0.0, %v1961
    %v1963 = vpop.f32.mrf.mxu0
    %1964 = vdwg.mxu0
    %v1965 = vadd.f32 %v1894, %v1962
    %v1966 = vxor.u32 %v1965, 2147483648
    %v1967 = vmul.f32 %v1966, 1.442695
    %v1968 = vpow.pop %v1967
    %v1969 = vadd.f32 %v1968, 1.0
    %v1970 = vrcp.pop %v1969
    %v1971 = vmul.f32 1.0, %v1970
    %v1972 = vtanh.pop %v1965
    %v1973 = vmul.f32 %v1971, %v1711
    %1975 = vrot.lane.b32.xlu0 %v1972, 64
    %v1976 = vpop.permute.xlu0 %1975
    %v1978 = vmul.f32 %v1971, %v1976
    %1980 = vrot.lane.b32.xlu0 %v1978, 32
    %v1981 = vpop.permute.xlu0 %1980
    %v1983 = vadd.f32 %v1973, %v1981
    %v1984 = vtanh.pop %v1983
    %1986 = vrot.lane.b32.xlu0 %v1984, 64
    %v1987 = vpop.permute.xlu0 %1986
    %v1989 = vmul.f32 %v1971, %v1987
    %1991 = vrot.lane.b32.xlu0 %v1892, 32
    %v1992 = vpop.permute.xlu0 %1991
    %v1993 = vsel %vm113, %v1992, 0
    %1995 = vmatprep.subr.mxu0 0.0
    %1996 = vmatpush1.msra.mxu0 0.0
    %1997 = vmatprep.subr.mxu0 0.0
    %1998 = vmatpush1.msra.mxu0 0.0
    %1999 = vmatprep.subr.mxu0 0.0
    %2000 = vmatpush1.msra.mxu0 0.0
    %2001 = vmatprep.subr.mxu0 0.0
    %2002 = vmatpush1.msra.mxu0 0.0
    %2003 = vmatprep.subr.mxu0 0.0
    %2004 = vmatpush1.msra.mxu0 0.0
    %2005 = vmatprep.subr.mxu0 0.0
    %2006 = vmatpush1.msra.mxu0 0.0
    %2007 = vmatprep.subr.mxu0 0.0
    %2008 = vmatpush1.msra.mxu0 0.0
    %2009 = vmatprep.subr.mxu0 0.0
    %2010 = vmatpush1.msra.mxu0 0.0
    %2011 = vmatprep.subr.mxu0 0.0
    %2012 = vmatpush1.msra.mxu0 0.0
    %2013 = vmatprep.subr.mxu0 0.0
    %2014 = vmatpush1.msra.mxu0 0.0
    %2015 = vmatprep.subr.mxu0 0.0
    %2016 = vmatpush1.msra.mxu0 0.0
    %2017 = vmatprep.subr.mxu0 0.0
    %2018 = vmatpush1.msra.mxu0 0.0
    %2019 = vmatprep.subr.mxu0 0.0
    %2020 = vmatpush1.msra.mxu0 %v256
    %2021 = vmatprep.subr.mxu0 0.0
    %2022 = vmatpush1.msra.mxu0 %v255
    %2023 = vmatprep.subr.mxu0 0.0
    %2024 = vmatpush1.msra.mxu0 %v254
    %2025 = vmatprep.subr.mxu0 0.0
    %2026 = vmatpush1.msra.mxu0 %v253
    %2027 = vmatprep.subr.mxu0 0.0
    %2028 = vmatpush2.msra.mxu0 0.0
    %2029 = vmatprep.subr.mxu0 0.0
    %2030 = vmatpush2.msra.mxu0 0.0
    %2031 = vmatprep.subr.mxu0 0.0
    %2032 = vmatpush2.msra.mxu0 0.0
    %2033 = vmatprep.subr.mxu0 0.0
    %2034 = vmatpush2.msra.mxu0 0.0
    %2035 = vmatprep.subr.mxu0 0.0
    %2036 = vmatpush2.msra.mxu0 0.0
    %2037 = vmatprep.subr.mxu0 0.0
    %2038 = vmatpush2.msra.mxu0 0.0
    %2039 = vmatprep.subr.mxu0 0.0
    %2040 = vmatpush2.msra.mxu0 0.0
    %2041 = vmatprep.subr.mxu0 0.0
    %2042 = vmatpush2.msra.mxu0 0.0
    %2043 = vmatprep.subr.mxu0 0.0
    %2044 = vmatpush2.msra.mxu0 0.0
    %2045 = vmatprep.subr.mxu0 0.0
    %2046 = vmatpush2.msra.mxu0 0.0
    %2047 = vmatprep.subr.mxu0 0.0
    %2048 = vmatpush2.msra.mxu0 0.0
    %2049 = vmatprep.subr.mxu0 0.0
    %2050 = vmatpush2.msra.mxu0 0.0
    %2051 = vmatprep.subr.mxu0 0.0
    %2052 = vmatpush2.msra.mxu0 0.0
    %2053 = vmatprep.subr.mxu0 0.0
    %2054 = vmatpush2.msra.mxu0 0.0
    %2055 = vmatprep.subr.mxu0 0.0
    %2056 = vmatpush2.msra.mxu0 0.0
    %2057 = vmatprep.subr.mxu0 0.0
    %2058 = vmatpush2.msra.mxu0 0.0
    %2059 = vmatprep.mubr.f32.mxu0 0.0
    %2060 = vmatmul.mubr.f32.gmra.mxu0 %v1993
    %v2061 = vpop.f32.mrf.mxu0
    %v2062 = vadd.f32 0.0, %v2061
    %v2063 = vpop.f32.mrf.mxu0
    %2064 = vdwg.mxu0
    %2066 = vrot.lane.b32.xlu0 %v1989, 32
    %v2067 = vpop.permute.xlu0 %2066
    %v2068 = vsel %vm113, %v2067, 0
    %2070 = vmatprep.subr.mxu0 0.0
    %2071 = vmatpush1.msra.mxu0 0.0
    %2072 = vmatprep.subr.mxu0 0.0
    %2073 = vmatpush1.msra.mxu0 0.0
    %2074 = vmatprep.subr.mxu0 0.0
    %2075 = vmatpush1.msra.mxu0 0.0
    %2076 = vmatprep.subr.mxu0 0.0
    %2077 = vmatpush1.msra.mxu0 0.0
    %2078 = vmatprep.subr.mxu0 0.0
    %2079 = vmatpush1.msra.mxu0 0.0
    %2080 = vmatprep.subr.mxu0 0.0
    %2081 = vmatpush1.msra.mxu0 0.0
    %2082 = vmatprep.subr.mxu0 0.0
    %2083 = vmatpush1.msra.mxu0 0.0
    %2084 = vmatprep.subr.mxu0 0.0
    %2085 = vmatpush1.msra.mxu0 0.0
    %2086 = vmatprep.subr.mxu0 0.0
    %2087 = vmatpush1.msra.mxu0 0.0
    %2088 = vmatprep.subr.mxu0 0.0
    %2089 = vmatpush1.msra.mxu0 0.0
    %2090 = vmatprep.subr.mxu0 0.0
    %2091 = vmatpush1.msra.mxu0 0.0
    %2092 = vmatprep.subr.mxu0 0.0
    %2093 = vmatpush1.msra.mxu0 0.0
    %2094 = vmatprep.subr.mxu0 0.0
    %2095 = vmatpush1.msra.mxu0 %v252
    %2096 = vmatprep.subr.mxu0 0.0
    %2097 = vmatpush1.msra.mxu0 %v251
    %2098 = vmatprep.subr.mxu0 0.0
    %2099 = vmatpush1.msra.mxu0 %v250
    %2100 = vmatprep.subr.mxu0 0.0
    %2101 = vmatpush1.msra.mxu0 %v249
    %2102 = vmatprep.subr.mxu0 0.0
    %2103 = vmatpush2.msra.mxu0 0.0
    %2104 = vmatprep.subr.mxu0 0.0
    %2105 = vmatpush2.msra.mxu0 0.0
    %2106 = vmatprep.subr.mxu0 0.0
    %2107 = vmatpush2.msra.mxu0 0.0
    %2108 = vmatprep.subr.mxu0 0.0
    %2109 = vmatpush2.msra.mxu0 0.0
    %2110 = vmatprep.subr.mxu0 0.0
    %2111 = vmatpush2.msra.mxu0 0.0
    %2112 = vmatprep.subr.mxu0 0.0
    %2113 = vmatpush2.msra.mxu0 0.0
    %2114 = vmatprep.subr.mxu0 0.0
    %2115 = vmatpush2.msra.mxu0 0.0
    %2116 = vmatprep.subr.mxu0 0.0
    %2117 = vmatpush2.msra.mxu0 0.0
    %2118 = vmatprep.subr.mxu0 0.0
    %2119 = vmatpush2.msra.mxu0 0.0
    %2120 = vmatprep.subr.mxu0 0.0
    %2121 = vmatpush2.msra.mxu0 0.0
    %2122 = vmatprep.subr.mxu0 0.0
    %2123 = vmatpush2.msra.mxu0 0.0
    %2124 = vmatprep.subr.mxu0 0.0
    %2125 = vmatpush2.msra.mxu0 0.0
    %2126 = vmatprep.subr.mxu0 0.0
    %2127 = vmatpush2.msra.mxu0 0.0
    %2128 = vmatprep.subr.mxu0 0.0
    %2129 = vmatpush2.msra.mxu0 0.0
    %2130 = vmatprep.subr.mxu0 0.0
    %2131 = vmatpush2.msra.mxu0 0.0
    %2132 = vmatprep.subr.mxu0 0.0
    %2133 = vmatpush2.msra.mxu0 0.0
    %2134 = vmatprep.mubr.f32.mxu0 0.0
    %2135 = vmatmul.mubr.f32.gmra.mxu0 %v2068
    %v2136 = vpop.f32.mrf.mxu0
    %v2137 = vadd.f32 %v2062, %v2136
    %v2138 = vpop.f32.mrf.mxu0
    %2139 = vdwg.mxu0
    %v2140 = vadd.f32 %v2137, %v262
    %v2141 = vxor.u32 %v2140, 2147483648
    %v2142 = vmul.f32 %v2141, 1.442695
    %v2143 = vpow.pop %v2142
    %v2144 = vadd.f32 %v2143, 1.0
    %v2145 = vrcp.pop %v2144
    %v2146 = vmul.f32 1.0, %v2145
    %v2147 = vtanh.pop %v2140
    %v2148 = vmul.f32 %v2146, %v1886
    %2150 = vrot.lane.b32.xlu0 %v2147, 64
    %v2151 = vpop.permute.xlu0 %2150
    %v2153 = vmul.f32 %v2146, %v2151
    %2155 = vrot.lane.b32.xlu0 %v2153, 32
    %v2156 = vpop.permute.xlu0 %2155
    %v2158 = vadd.f32 %v2148, %v2156
    %v2159 = vtanh.pop %v2158
    %2161 = vrot.lane.b32.xlu0 %v2159, 64
    %v2162 = vpop.permute.xlu0 %2161
    %v2164 = vmul.f32 %v2146, %v2162
    %s2165 = scalar_lea.vmem [#allocation2], 14
    %v2166 = vld [vmem:[%s2165] sm:$0x3]
    %2167 = vmatprep.subr.mxu0 0.0
    %2168 = vmatpush1.msra.mxu0 0.0
    %2169 = vmatprep.subr.mxu0 0.0
    %2170 = vmatpush1.msra.mxu0 0.0
    %2171 = vmatprep.subr.mxu0 0.0
    %2172 = vmatpush1.msra.mxu0 0.0
    %2173 = vmatprep.subr.mxu0 0.0
    %2174 = vmatpush1.msra.mxu0 0.0
    %2175 = vmatprep.subr.mxu0 0.0
    %2176 = vmatpush1.msra.mxu0 0.0
    %2177 = vmatprep.subr.mxu0 0.0
    %2178 = vmatpush1.msra.mxu0 0.0
    %2179 = vmatprep.subr.mxu0 0.0
    %2180 = vmatpush1.msra.mxu0 0.0
    %2181 = vmatprep.subr.mxu0 0.0
    %2182 = vmatpush1.msra.mxu0 0.0
    %2183 = vmatprep.subr.mxu0 0.0
    %2184 = vmatpush1.msra.mxu0 0.0
    %2185 = vmatprep.subr.mxu0 0.0
    %2186 = vmatpush1.msra.mxu0 0.0
    %2187 = vmatprep.subr.mxu0 0.0
    %2188 = vmatpush1.msra.mxu0 0.0
    %2189 = vmatprep.subr.mxu0 0.0
    %2190 = vmatpush1.msra.mxu0 0.0
    %2191 = vmatprep.subr.mxu0 0.0
    %2192 = vmatpush1.msra.mxu0 %v248
    %2193 = vmatprep.subr.mxu0 0.0
    %2194 = vmatpush1.msra.mxu0 %v247
    %2195 = vmatprep.subr.mxu0 0.0
    %2196 = vmatpush1.msra.mxu0 %v246
    %2197 = vmatprep.subr.mxu0 0.0
    %2198 = vmatpush1.msra.mxu0 %v245
    %2199 = vmatprep.subr.mxu0 0.0
    %2200 = vmatpush2.msra.mxu0 0.0
    %2201 = vmatprep.subr.mxu0 0.0
    %2202 = vmatpush2.msra.mxu0 0.0
    %2203 = vmatprep.subr.mxu0 0.0
    %2204 = vmatpush2.msra.mxu0 0.0
    %2205 = vmatprep.subr.mxu0 0.0
    %2206 = vmatpush2.msra.mxu0 0.0
    %2207 = vmatprep.subr.mxu0 0.0
    %2208 = vmatpush2.msra.mxu0 0.0
    %2209 = vmatprep.subr.mxu0 0.0
    %2210 = vmatpush2.msra.mxu0 0.0
    %2211 = vmatprep.subr.mxu0 0.0
    %2212 = vmatpush2.msra.mxu0 0.0
    %2213 = vmatprep.subr.mxu0 0.0
    %2214 = vmatpush2.msra.mxu0 0.0
    %2215 = vmatprep.subr.mxu0 0.0
    %2216 = vmatpush2.msra.mxu0 0.0
    %2217 = vmatprep.subr.mxu0 0.0
    %2218 = vmatpush2.msra.mxu0 0.0
    %2219 = vmatprep.subr.mxu0 0.0
    %2220 = vmatpush2.msra.mxu0 0.0
    %2221 = vmatprep.subr.mxu0 0.0
    %2222 = vmatpush2.msra.mxu0 0.0
    %2223 = vmatprep.subr.mxu0 0.0
    %2224 = vmatpush2.msra.mxu0 0.0
    %2225 = vmatprep.subr.mxu0 0.0
    %2226 = vmatpush2.msra.mxu0 0.0
    %2227 = vmatprep.subr.mxu0 0.0
    %2228 = vmatpush2.msra.mxu0 0.0
    %2229 = vmatprep.subr.mxu0 0.0
    %2230 = vmatpush2.msra.mxu0 0.0
    %2231 = vmatprep.mubr.f32.mxu0 0.0
    %2232 = vmatmul.mubr.f32.gmra.mxu0 %v2068
    %v2233 = vpop.f32.mrf.mxu0
    %v2234 = vadd.f32 0.0, %v2233
    %v2235 = vpop.f32.mrf.mxu0
    %2236 = vdwg.mxu0
    %v2237 = vadd.f32 %v2166, %v2234
    %v2238 = vxor.u32 %v2237, 2147483648
    %v2239 = vmul.f32 %v2238, 1.442695
    %v2240 = vpow.pop %v2239
    %v2241 = vadd.f32 %v2240, 1.0
    %v2242 = vrcp.pop %v2241
    %v2243 = vmul.f32 1.0, %v2242
    %v2244 = vtanh.pop %v2237
    %v2245 = vmul.f32 %v2243, %v1983
    %2247 = vrot.lane.b32.xlu0 %v2244, 64
    %v2248 = vpop.permute.xlu0 %2247
    %v2250 = vmul.f32 %v2243, %v2248
    %2252 = vrot.lane.b32.xlu0 %v2250, 32
    %v2253 = vpop.permute.xlu0 %2252
    %v2255 = vadd.f32 %v2245, %v2253
    %v2256 = vtanh.pop %v2255
    %2258 = vrot.lane.b32.xlu0 %v2256, 64
    %v2259 = vpop.permute.xlu0 %2258
    %v2261 = vmul.f32 %v2243, %v2259
    %2263 = vrot.lane.b32.xlu0 %v2164, 32
    %v2264 = vpop.permute.xlu0 %2263
    %v2265 = vsel %vm113, %v2264, 0
    %2267 = vmatprep.subr.mxu0 0.0
    %2268 = vmatpush1.msra.mxu0 0.0
    %2269 = vmatprep.subr.mxu0 0.0
    %2270 = vmatpush1.msra.mxu0 0.0
    %2271 = vmatprep.subr.mxu0 0.0
    %2272 = vmatpush1.msra.mxu0 0.0
    %2273 = vmatprep.subr.mxu0 0.0
    %2274 = vmatpush1.msra.mxu0 0.0
    %2275 = vmatprep.subr.mxu0 0.0
    %2276 = vmatpush1.msra.mxu0 0.0
    %2277 = vmatprep.subr.mxu0 0.0
    %2278 = vmatpush1.msra.mxu0 0.0
    %2279 = vmatprep.subr.mxu0 0.0
    %2280 = vmatpush1.msra.mxu0 0.0
    %2281 = vmatprep.subr.mxu0 0.0
    %2282 = vmatpush1.msra.mxu0 0.0
    %2283 = vmatprep.subr.mxu0 0.0
    %2284 = vmatpush1.msra.mxu0 0.0
    %2285 = vmatprep.subr.mxu0 0.0
    %2286 = vmatpush1.msra.mxu0 0.0
    %2287 = vmatprep.subr.mxu0 0.0
    %2288 = vmatpush1.msra.mxu0 0.0
    %2289 = vmatprep.subr.mxu0 0.0
    %2290 = vmatpush1.msra.mxu0 0.0
    %2291 = vmatprep.subr.mxu0 0.0
    %2292 = vmatpush1.msra.mxu0 %v256
    %2293 = vmatprep.subr.mxu0 0.0
    %2294 = vmatpush1.msra.mxu0 %v255
    %2295 = vmatprep.subr.mxu0 0.0
    %2296 = vmatpush1.msra.mxu0 %v254
    %2297 = vmatprep.subr.mxu0 0.0
    %2298 = vmatpush1.msra.mxu0 %v253
    %2299 = vmatprep.subr.mxu0 0.0
    %2300 = vmatpush2.msra.mxu0 0.0
    %2301 = vmatprep.subr.mxu0 0.0
    %2302 = vmatpush2.msra.mxu0 0.0
    %2303 = vmatprep.subr.mxu0 0.0
    %2304 = vmatpush2.msra.mxu0 0.0
    %2305 = vmatprep.subr.mxu0 0.0
    %2306 = vmatpush2.msra.mxu0 0.0
    %2307 = vmatprep.subr.mxu0 0.0
    %2308 = vmatpush2.msra.mxu0 0.0
    %2309 = vmatprep.subr.mxu0 0.0
    %2310 = vmatpush2.msra.mxu0 0.0
    %2311 = vmatprep.subr.mxu0 0.0
    %2312 = vmatpush2.msra.mxu0 0.0
    %2313 = vmatprep.subr.mxu0 0.0
    %2314 = vmatpush2.msra.mxu0 0.0
    %2315 = vmatprep.subr.mxu0 0.0
    %2316 = vmatpush2.msra.mxu0 0.0
    %2317 = vmatprep.subr.mxu0 0.0
    %2318 = vmatpush2.msra.mxu0 0.0
    %2319 = vmatprep.subr.mxu0 0.0
    %2320 = vmatpush2.msra.mxu0 0.0
    %2321 = vmatprep.subr.mxu0 0.0
    %2322 = vmatpush2.msra.mxu0 0.0
    %2323 = vmatprep.subr.mxu0 0.0
    %2324 = vmatpush2.msra.mxu0 0.0
    %2325 = vmatprep.subr.mxu0 0.0
    %2326 = vmatpush2.msra.mxu0 0.0
    %2327 = vmatprep.subr.mxu0 0.0
    %2328 = vmatpush2.msra.mxu0 0.0
    %2329 = vmatprep.subr.mxu0 0.0
    %2330 = vmatpush2.msra.mxu0 0.0
    %2331 = vmatprep.mubr.f32.mxu0 0.0
    %2332 = vmatmul.mubr.f32.gmra.mxu0 %v2265
    %v2333 = vpop.f32.mrf.mxu0
    %v2334 = vadd.f32 0.0, %v2333
    %v2335 = vpop.f32.mrf.mxu0
    %2336 = vdwg.mxu0
    %2338 = vrot.lane.b32.xlu0 %v2261, 32
    %v2339 = vpop.permute.xlu0 %2338
    %v2340 = vsel %vm113, %v2339, 0
    %2342 = vmatprep.subr.mxu0 0.0
    %2343 = vmatpush1.msra.mxu0 0.0
    %2344 = vmatprep.subr.mxu0 0.0
    %2345 = vmatpush1.msra.mxu0 0.0
    %2346 = vmatprep.subr.mxu0 0.0
    %2347 = vmatpush1.msra.mxu0 0.0
    %2348 = vmatprep.subr.mxu0 0.0
    %2349 = vmatpush1.msra.mxu0 0.0
    %2350 = vmatprep.subr.mxu0 0.0
    %2351 = vmatpush1.msra.mxu0 0.0
    %2352 = vmatprep.subr.mxu0 0.0
    %2353 = vmatpush1.msra.mxu0 0.0
    %2354 = vmatprep.subr.mxu0 0.0
    %2355 = vmatpush1.msra.mxu0 0.0
    %2356 = vmatprep.subr.mxu0 0.0
    %2357 = vmatpush1.msra.mxu0 0.0
    %2358 = vmatprep.subr.mxu0 0.0
    %2359 = vmatpush1.msra.mxu0 0.0
    %2360 = vmatprep.subr.mxu0 0.0
    %2361 = vmatpush1.msra.mxu0 0.0
    %2362 = vmatprep.subr.mxu0 0.0
    %2363 = vmatpush1.msra.mxu0 0.0
    %2364 = vmatprep.subr.mxu0 0.0
    %2365 = vmatpush1.msra.mxu0 0.0
    %2366 = vmatprep.subr.mxu0 0.0
    %2367 = vmatpush1.msra.mxu0 %v252
    %2368 = vmatprep.subr.mxu0 0.0
    %2369 = vmatpush1.msra.mxu0 %v251
    %2370 = vmatprep.subr.mxu0 0.0
    %2371 = vmatpush1.msra.mxu0 %v250
    %2372 = vmatprep.subr.mxu0 0.0
    %2373 = vmatpush1.msra.mxu0 %v249
    %2374 = vmatprep.subr.mxu0 0.0
    %2375 = vmatpush2.msra.mxu0 0.0
    %2376 = vmatprep.subr.mxu0 0.0
    %2377 = vmatpush2.msra.mxu0 0.0
    %2378 = vmatprep.subr.mxu0 0.0
    %2379 = vmatpush2.msra.mxu0 0.0
    %2380 = vmatprep.subr.mxu0 0.0
    %2381 = vmatpush2.msra.mxu0 0.0
    %2382 = vmatprep.subr.mxu0 0.0
    %2383 = vmatpush2.msra.mxu0 0.0
    %2384 = vmatprep.subr.mxu0 0.0
    %2385 = vmatpush2.msra.mxu0 0.0
    %2386 = vmatprep.subr.mxu0 0.0
    %2387 = vmatpush2.msra.mxu0 0.0
    %2388 = vmatprep.subr.mxu0 0.0
    %2389 = vmatpush2.msra.mxu0 0.0
    %2390 = vmatprep.subr.mxu0 0.0
    %2391 = vmatpush2.msra.mxu0 0.0
    %2392 = vmatprep.subr.mxu0 0.0
    %2393 = vmatpush2.msra.mxu0 0.0
    %2394 = vmatprep.subr.mxu0 0.0
    %2395 = vmatpush2.msra.mxu0 0.0
    %2396 = vmatprep.subr.mxu0 0.0
    %2397 = vmatpush2.msra.mxu0 0.0
    %2398 = vmatprep.subr.mxu0 0.0
    %2399 = vmatpush2.msra.mxu0 0.0
    %2400 = vmatprep.subr.mxu0 0.0
    %2401 = vmatpush2.msra.mxu0 0.0
    %2402 = vmatprep.subr.mxu0 0.0
    %2403 = vmatpush2.msra.mxu0 0.0
    %2404 = vmatprep.subr.mxu0 0.0
    %2405 = vmatpush2.msra.mxu0 0.0
    %2406 = vmatprep.mubr.f32.mxu0 0.0
    %2407 = vmatmul.mubr.f32.gmra.mxu0 %v2340
    %v2408 = vpop.f32.mrf.mxu0
    %v2409 = vadd.f32 %v2334, %v2408
    %v2410 = vpop.f32.mrf.mxu0
    %2411 = vdwg.mxu0
    %v2412 = vadd.f32 %v2409, %v262
    %v2413 = vxor.u32 %v2412, 2147483648
    %v2414 = vmul.f32 %v2413, 1.442695
    %v2415 = vpow.pop %v2414
    %v2416 = vadd.f32 %v2415, 1.0
    %v2417 = vrcp.pop %v2416
    %v2418 = vmul.f32 1.0, %v2417
    %v2419 = vtanh.pop %v2412
    %v2420 = vmul.f32 %v2418, %v2158
    %2422 = vrot.lane.b32.xlu0 %v2419, 64
    %v2423 = vpop.permute.xlu0 %2422
    %v2425 = vmul.f32 %v2418, %v2423
    %2427 = vrot.lane.b32.xlu0 %v2425, 32
    %v2428 = vpop.permute.xlu0 %2427
    %v2430 = vadd.f32 %v2420, %v2428
    %v2431 = vtanh.pop %v2430
    %2433 = vrot.lane.b32.xlu0 %v2431, 64
    %v2434 = vpop.permute.xlu0 %2433
    %v2436 = vmul.f32 %v2418, %v2434
    %2438 = vrot.lane.b32.xlu0 %v2436, 32
    %v2439 = vpop.permute.xlu0 %2438
    %vm2441 = vcmask 254976
    %v2442 = vsel %vm2441, %v2439, 0.0
    %2443 = vadd.xlane.f32.xlu0 %v2442
    %v2444 = vpop.xlane.xlu0 %2443
    %v2445 = vrcp.pop 32.0
    %v2446 = vmul.f32 %v2444, %v2445
    %v2447 = vsub.f32 %v2436, %v2446
    %v2448 = vmul.f32 %v2447, %v2447
    %2450 = vrot.lane.b32.xlu0 %v2448, 32
    %v2451 = vpop.permute.xlu0 %2450
    %v2453 = vsel %vm2441, %v2451, 0.0
    %2454 = vadd.xlane.f32.xlu0 %v2453
    %v2455 = vpop.xlane.xlu0 %2454
    %v2456 = vmul.f32 %v2455, %v2445
    %v2457 = vadd.f32 %v2456, 1e-05
    %v2458 = vrsqrt.pop %v2457
    %v2459 = vmul.f32 %v2447, %v2458
    %v2460 = vld [vmem:[%s7] sm:$0x1]
    %v2462 = vlaneseq
    %v2463 = vshrl.u32 %v2462, 7
    %v2464 = vsub.s32 0, %v2463
    %v2465 = vrot.slane %v2460, %v2464
    %2466 = vrot.lane.b32.xlu0 %v2465, 96
    %v2467 = vpop.permute.xlu0 %2466
    %v2469 = vmul.f32 %v2459, %v2467
    %v2470 = vld [vmem:[%s8] sm:$0x1]
    %v2472 = vlaneseq
    %v2473 = vshrl.u32 %v2472, 7
    %v2474 = vsub.s32 0, %v2473
    %v2475 = vrot.slane %v2470, %v2474
    %2476 = vrot.lane.b32.xlu0 %v2475, 96
    %v2477 = vpop.permute.xlu0 %2476
    %v2479 = vadd.f32 %v2469, %v2477
    %v2480 = vld [vmem:[%s9] sm:$0xff]
    %v2481 = vld [vmem:[%s9 + $0x8] sm:$0xff]
    %v2482 = vld [vmem:[%s9 + $0x10] sm:$0xff]
    %v2483 = vld [vmem:[%s9 + $0x18] sm:$0xff]
    %v2484 = vld [vmem:[%s10] sm:$0x1]
    %v2486 = vlaneseq
    %v2487 = vshrl.u32 %v2486, 7
    %v2488 = vsub.s32 0, %v2487
    %v2489 = vrot.slane %v2484, %v2488
    %2492 = vrot.lane.b32.xlu0 %v2479, 32
    %v2493 = vpop.permute.xlu0 %2492
    %v2494 = vsel %vm113, %v2493, 0
    %2496 = vmatprep.subr.mxu0 0.0
    %2497 = vmatpush1.msra.mxu0 0.0
    %2498 = vmatprep.subr.mxu0 0.0
    %2499 = vmatpush1.msra.mxu0 0.0
    %2500 = vmatprep.subr.mxu0 0.0
    %2501 = vmatpush1.msra.mxu0 0.0
    %2502 = vmatprep.subr.mxu0 0.0
    %2503 = vmatpush1.msra.mxu0 0.0
    %2504 = vmatprep.subr.mxu0 0.0
    %2505 = vmatpush1.msra.mxu0 0.0
    %2506 = vmatprep.subr.mxu0 0.0
    %2507 = vmatpush1.msra.mxu0 0.0
    %2508 = vmatprep.subr.mxu0 0.0
    %2509 = vmatpush1.msra.mxu0 0.0
    %2510 = vmatprep.subr.mxu0 0.0
    %2511 = vmatpush1.msra.mxu0 0.0
    %2512 = vmatprep.subr.mxu0 0.0
    %2513 = vmatpush1.msra.mxu0 0.0
    %2514 = vmatprep.subr.mxu0 0.0
    %2515 = vmatpush1.msra.mxu0 0.0
    %2516 = vmatprep.subr.mxu0 0.0
    %2517 = vmatpush1.msra.mxu0 0.0
    %2518 = vmatprep.subr.mxu0 0.0
    %2519 = vmatpush1.msra.mxu0 0.0
    %2520 = vmatprep.subr.mxu0 0.0
    %2521 = vmatpush1.msra.mxu0 %v2483
    %2522 = vmatprep.subr.mxu0 0.0
    %2523 = vmatpush1.msra.mxu0 %v2482
    %2524 = vmatprep.subr.mxu0 0.0
    %2525 = vmatpush1.msra.mxu0 %v2481
    %2526 = vmatprep.subr.mxu0 0.0
    %2527 = vmatpush1.msra.mxu0 %v2480
    %2528 = vmatprep.subr.mxu0 0.0
    %2529 = vmatpush2.msra.mxu0 0.0
    %2530 = vmatprep.subr.mxu0 0.0
    %2531 = vmatpush2.msra.mxu0 0.0
    %2532 = vmatprep.subr.mxu0 0.0
    %2533 = vmatpush2.msra.mxu0 0.0
    %2534 = vmatprep.subr.mxu0 0.0
    %2535 = vmatpush2.msra.mxu0 0.0
    %2536 = vmatprep.subr.mxu0 0.0
    %2537 = vmatpush2.msra.mxu0 0.0
    %2538 = vmatprep.subr.mxu0 0.0
    %2539 = vmatpush2.msra.mxu0 0.0
    %2540 = vmatprep.subr.mxu0 0.0
    %2541 = vmatpush2.msra.mxu0 0.0
    %2542 = vmatprep.subr.mxu0 0.0
    %2543 = vmatpush2.msra.mxu0 0.0
    %2544 = vmatprep.subr.mxu0 0.0
    %2545 = vmatpush2.msra.mxu0 0.0
    %2546 = vmatprep.subr.mxu0 0.0
    %2547 = vmatpush2.msra.mxu0 0.0
    %2548 = vmatprep.subr.mxu0 0.0
    %2549 = vmatpush2.msra.mxu0 0.0
    %2550 = vmatprep.subr.mxu0 0.0
    %2551 = vmatpush2.msra.mxu0 0.0
    %2552 = vmatprep.subr.mxu0 0.0
    %2553 = vmatpush2.msra.mxu0 0.0
    %2554 = vmatprep.subr.mxu0 0.0
    %2555 = vmatpush2.msra.mxu0 0.0
    %2556 = vmatprep.subr.mxu0 0.0
    %2557 = vmatpush2.msra.mxu0 0.0
    %2558 = vmatprep.subr.mxu0 0.0
    %2559 = vmatpush2.msra.mxu0 0.0
    %2560 = vmatprep.mubr.f32.mxu0 0.0
    %2561 = vmatmul.mubr.f32.gmra.mxu0 %v2494
    %v2562 = vpop.f32.mrf.mxu0
    %v2563 = vadd.f32 %v2489, %v2562
    %v2564 = vpop.f32.mrf.mxu0
    %2565 = vdwg.mxu0
    %v2566 = vld [vmem:[%s11] sm:$0xff]
    %v2567 = vld [vmem:[%s11 + $0x8] sm:$0xff]
    %v2568 = vld [vmem:[%s11 + $0x10] sm:$0xff]
    %v2569 = vld [vmem:[%s11 + $0x18] sm:$0xff]
    %v2570 = vld [vmem:[%s12] sm:$0x1]
    %v2572 = vlaneseq
    %v2573 = vshrl.u32 %v2572, 7
    %v2574 = vsub.s32 0, %v2573
    %v2575 = vrot.slane %v2570, %v2574
    %2577 = vmatprep.subr.mxu0 0.0
    %2578 = vmatpush1.msra.mxu0 0.0
    %2579 = vmatprep.subr.mxu0 0.0
    %2580 = vmatpush1.msra.mxu0 0.0
    %2581 = vmatprep.subr.mxu0 0.0
    %2582 = vmatpush1.msra.mxu0 0.0
    %2583 = vmatprep.subr.mxu0 0.0
    %2584 = vmatpush1.msra.mxu0 0.0
    %2585 = vmatprep.subr.mxu0 0.0
    %2586 = vmatpush1.msra.mxu0 0.0
    %2587 = vmatprep.subr.mxu0 0.0
    %2588 = vmatpush1.msra.mxu0 0.0
    %2589 = vmatprep.subr.mxu0 0.0
    %2590 = vmatpush1.msra.mxu0 0.0
    %2591 = vmatprep.subr.mxu0 0.0
    %2592 = vmatpush1.msra.mxu0 0.0
    %2593 = vmatprep.subr.mxu0 0.0
    %2594 = vmatpush1.msra.mxu0 0.0
    %2595 = vmatprep.subr.mxu0 0.0
    %2596 = vmatpush1.msra.mxu0 0.0
    %2597 = vmatprep.subr.mxu0 0.0
    %2598 = vmatpush1.msra.mxu0 0.0
    %2599 = vmatprep.subr.mxu0 0.0
    %2600 = vmatpush1.msra.mxu0 0.0
    %2601 = vmatprep.subr.mxu0 0.0
    %2602 = vmatpush1.msra.mxu0 %v2569
    %2603 = vmatprep.subr.mxu0 0.0
    %2604 = vmatpush1.msra.mxu0 %v2568
    %2605 = vmatprep.subr.mxu0 0.0
    %2606 = vmatpush1.msra.mxu0 %v2567
    %2607 = vmatprep.subr.mxu0 0.0
    %2608 = vmatpush1.msra.mxu0 %v2566
    %2609 = vmatprep.subr.mxu0 0.0
    %2610 = vmatpush2.msra.mxu0 0.0
    %2611 = vmatprep.subr.mxu0 0.0
    %2612 = vmatpush2.msra.mxu0 0.0
    %2613 = vmatprep.subr.mxu0 0.0
    %2614 = vmatpush2.msra.mxu0 0.0
    %2615 = vmatprep.subr.mxu0 0.0
    %2616 = vmatpush2.msra.mxu0 0.0
    %2617 = vmatprep.subr.mxu0 0.0
    %2618 = vmatpush2.msra.mxu0 0.0
    %2619 = vmatprep.subr.mxu0 0.0
    %2620 = vmatpush2.msra.mxu0 0.0
    %2621 = vmatprep.subr.mxu0 0.0
    %2622 = vmatpush2.msra.mxu0 0.0
    %2623 = vmatprep.subr.mxu0 0.0
    %2624 = vmatpush2.msra.mxu0 0.0
    %2625 = vmatprep.subr.mxu0 0.0
    %2626 = vmatpush2.msra.mxu0 0.0
    %2627 = vmatprep.subr.mxu0 0.0
    %2628 = vmatpush2.msra.mxu0 0.0
    %2629 = vmatprep.subr.mxu0 0.0
    %2630 = vmatpush2.msra.mxu0 0.0
    %2631 = vmatprep.subr.mxu0 0.0
    %2632 = vmatpush2.msra.mxu0 0.0
    %2633 = vmatprep.subr.mxu0 0.0
    %2634 = vmatpush2.msra.mxu0 0.0
    %2635 = vmatprep.subr.mxu0 0.0
    %2636 = vmatpush2.msra.mxu0 0.0
    %2637 = vmatprep.subr.mxu0 0.0
    %2638 = vmatpush2.msra.mxu0 0.0
    %2639 = vmatprep.subr.mxu0 0.0
    %2640 = vmatpush2.msra.mxu0 0.0
    %2641 = vmatprep.mubr.f32.mxu0 0.0
    %2642 = vmatmul.mubr.f32.gmra.mxu0 %v2494
    %v2643 = vpop.f32.mrf.mxu0
    %v2644 = vadd.f32 %v2575, %v2643
    %v2645 = vpop.f32.mrf.mxu0
    %2646 = vdwg.mxu0
    %vm2647 = vcmask 58368
    %2648 = vst.msk [vmem:[#allocation3] sm:$0x3] %vm2647, %v2563
    %2649 = vst.msk [vmem:[#allocation5] sm:$0x3] %vm2647, %v2644
    %v2650 = vld [vmem:[%s13] sm:$0x3]
    %v2651 = vmul.f32 %v2644, 0.5
    %v2652 = vmul.f32 %v2651, 1.442695
    %v2653 = vpow.pop %v2652
    %v2654 = vmul.f32 %v2650, %v2653
    %v2655 = vadd.f32 %v2563, %v2654
    %2656 = vst.msk [vmem:[%s16] sm:$0x3] %vm2647, %v2655
    // Predicated region
    $region58: #{vae_forward.2} parent=1 // pred_check
      _
    $region59: #{vae_forward.2} parent=1 // pred_check_branch
      %2658 = sbr.rel (0) target = $region61
    $region60: #{vae_forward.2} parent=1 // pred_region
      %s2660 = ssub.s32 32, 32
      %2661 = vsyncadd [#allocation4], %s2660
      %s2663 = sshll.u32 [#allocation3], 4
      %s2664 = int_to_ptr.vmem [resolvable:$true] %s2663
      %2666 = dma.vmem_to_hbm [thread:$0]  %s2664, 32, %s14, [#allocation4]
    $region61: #{vae_forward.2} parent=1 // pred_fallthru
      _
    // Predicated region
    $region62: #{vae_forward.2} parent=1 // pred_check
      _
    $region63: #{vae_forward.2} parent=1 // pred_check_branch
      %2668 = sbr.rel (0) target = $region65
    $region64: #{vae_forward.2} parent=1 // pred_region
      %s2670 = ssub.s32 32, 32
      %2671 = vsyncadd [#allocation6], %s2670
      %s2673 = sshll.u32 [#allocation5], 4
      %s2674 = int_to_ptr.vmem [resolvable:$true] %s2673
      %2676 = dma.vmem_to_hbm [thread:$0]  %s2674, 32, %s15, [#allocation6]
    $region65: #{vae_forward.2} parent=1 // pred_fallthru
      _
    // Predicated region
    $region66: #{vae_forward.2} parent=1 // pred_check
      _
    $region67: #{vae_forward.2} parent=1 // pred_check_branch
      %2678 = sbr.rel (0) target = $region69
    $region68: #{vae_forward.2} parent=1 // pred_region
      _
    $region69: #{vae_forward.2} parent=1 // pred_fallthru
      _
    // Predicated region
    $region70: #{vae_forward.2} parent=1 // pred_check
      _
    $region71: #{vae_forward.2} parent=1 // pred_check_branch
      %2680 = sbr.rel (0) target = $region73
    $region72: #{vae_forward.2} parent=1 // pred_region
      %2681 = dma.done [#allocation4], 32
    $region73: #{vae_forward.2} parent=1 // pred_fallthru
      _
    // Predicated region
    $region74: #{vae_forward.2} parent=1 // pred_check
      _
    $region75: #{vae_forward.2} parent=1 // pred_check_branch
      %2683 = sbr.rel (0) target = $region77
    $region76: #{vae_forward.2} parent=1 // pred_region
      %2684 = dma.done [#allocation6], 32
    $region77: #{vae_forward.2} parent=1 // pred_fallthru
      _
    // Predicated region
    $region78: #{vae_forward.2} parent=1 // pred_check
      _
    $region79: #{vae_forward.2} parent=1 // pred_check_branch
      %2686 = sbr.rel (0) target = $region81
    $region80: #{vae_forward.2} parent=1 // pred_region
      _
    $region81: #{vae_forward.2} parent=1 // pred_fallthru
      _
    %2687 = vsyncpa [#allocation4], 1
    %2688 = vsyncpa [#allocation6], 1

</llo_original>
